<compile_context>
chip_gen: v7x
topology: tpu7x:2x2x1
jax: 0.10.0
libtpu: 0.0.40
codegen_flags: <defaults>
</compile_context>

<pallas_src>
import functools

import jax
import jax.numpy as jnp
from jax import lax
from jax.experimental import pallas as pl
from jax.experimental.pallas import tpu as pltpu


# -----------------------------------------------------------------------------
# Fused SCM forward kernel
# -----------------------------------------------------------------------------
def scm_fused(x_nhwc, p):
    """x_nhwc: (B, H, W, 3) f32.  p: preprocessed weight dict (see _prep)."""
    B, H, W, Cin = x_nhwc.shape
    assert Cin == 3, "SCM expects 3 input channels"
    c1 = p["w1"].shape[-1]            # out_plane // 4
    c2 = p["w3"].shape[-1]            # out_plane // 2
    c4 = p["w4t"].shape[0]            # out_plane - 3
    cout = p["b5t"].shape[0]          # out_plane
    HW = H * W
    Hp, Wp = H + 2, W + 2

    # "rhs transposed" contraction: (M, K) x (N, K) -> (M, N)
    dn_rhs_t = (((1,), (1,)), ((), ()))

    def kernel(x_ref, w1_ref, b1_ref, w2_ref, b2_ref, w3_ref, b3_ref,
               w4t_ref, b4t_ref, w5xt_ref, w5yt_ref, b5t_ref, o_ref,
               pad1_ref, pad3_ref):

        def conv3x3(pad_ref, w_ref, b_ref, cin):
            # 9 tap matmuls accumulated in f32; acc initialized from tap 0.
            acc = None
            for t in range(9):
                ky, kx = divmod(t, 3)
                patch = pad_ref[ky:ky + H, kx:kx + W, :].reshape(HW, cin)
                d = jnp.dot(patch.astype(jnp.bfloat16), w_ref[t],
                            preferred_element_type=jnp.float32)
                acc = d if acc is None else acc + d
            return jnp.maximum(acc + b_ref[...], 0.0)

        x = x_ref[0]                                      # (H, W, 3) f32

        # --- conv1: 3x3, 3 -> c1, ReLU (in-kernel zero padding) --------------
        pad1_ref[...] = jnp.zeros(pad1_ref.shape, pad1_ref.dtype)
        pad1_ref[1:H + 1, 1:W + 1, :] = x
        y1 = conv3x3(pad1_ref, w1_ref, b1_ref, 3)         # (HW, c1) f32

        # --- conv2: 1x1, c1 -> c2, ReLU ---------------------------------------
        y2 = jnp.maximum(
            jnp.dot(y1.astype(jnp.bfloat16), w2_ref[...],
                    preferred_element_type=jnp.float32) + b2_ref[...], 0.0)

        # --- conv3: 3x3, c2 -> c2, ReLU ---------------------------------------
        pad3_ref[...] = jnp.zeros(pad3_ref.shape, pad3_ref.dtype)
        pad3_ref[1:H + 1, 1:W + 1, :] = y2.reshape(H, W, c2)
        y3 = conv3x3(pad3_ref, w3_ref, b3_ref, c2)        # (HW, c2) f32

        # --- conv4: 1x1, c2 -> c4, ReLU -- channel-major (lane-dense) ---------
        # y4t[j, p] = relu(sum_k w4[k, j] * y3[p, k] + b4[j])
        y4t = jnp.maximum(
            lax.dot_general(w4t_ref[...], y3.astype(jnp.bfloat16), dn_rhs_t,
                            preferred_element_type=jnp.float32)
            + b4t_ref[...], 0.0)                          # (c4, HW) f32

        # --- final 1x1, no ReLU; concat folded away; channel-major output -----
        xf = x.reshape(HW, 3).astype(jnp.bfloat16)
        out_t = (lax.dot_general(w5xt_ref[...], xf, dn_rhs_t,
                                 preferred_element_type=jnp.float32)
                 + jnp.dot(w5yt_ref[...], y4t.astype(jnp.bfloat16),
                           preferred_element_type=jnp.float32)
                 + b5t_ref[...])                          # (cout, HW) f32
        o_ref[...] = out_t.reshape(1, cout, HW)

    def res_spec(arr):
        # Full-array resident block: same block index every grid step -> one DMA.
        nd = arr.ndim
        return pl.BlockSpec(arr.shape, lambda b, nd=nd: (0,) * nd)

    return pl.pallas_call(
        kernel,
        out_shape=jax.ShapeDtypeStruct((B, cout, HW), jnp.float32),
        grid=(B,),
        in_specs=[
            pl.BlockSpec((1, H, W, 3), lambda b: (b, 0, 0, 0)),
            res_spec(p["w1"]), res_spec(p["b1"]),
            res_spec(p["w2"]), res_spec(p["b2"]),
            res_spec(p["w3"]), res_spec(p["b3"]),
            res_spec(p["w4t"]), res_spec(p["b4t"]),
            res_spec(p["w5xt"]), res_spec(p["w5yt"]), res_spec(p["b5t"]),
        ],
        out_specs=pl.BlockSpec((1, cout, HW), lambda b: (b, 0, 0)),
        scratch_shapes=[pltpu.VMEM((Hp, Wp, 3), jnp.float32),
                        pltpu.VMEM((Hp, Wp, c2), jnp.float32)],
        compiler_params=pltpu.CompilerParams(
            dimension_semantics=("parallel",)),
    )(x_nhwc, p["w1"], p["b1"], p["w2"], p["b2"], p["w3"], p["b3"],
      p["w4t"], p["b4t"], p["w5xt"], p["w5yt"], p["b5t"])


# -----------------------------------------------------------------------------
# SCM parameters (deterministic synthetic init, mirrors SCM.__init__)
# -----------------------------------------------------------------------------
def make_scm_params(out_plane, key):
    """Weights stored as HWIO, bias (Cout,), relu flag."""
    main_defs = [
        (3,              out_plane // 4, 3, True),
        (out_plane // 4, out_plane // 2, 1, True),
        (out_plane // 2, out_plane // 2, 3, True),
        (out_plane // 2, out_plane - 3,  1, True),
    ]
    final_def = (out_plane, out_plane, 1, False)

    def make_layer(key, cin, cout, k, relu):
        kw, kb = jax.random.split(key)
        fan_in = cin * k * k
        scale = 1.0 / jnp.sqrt(jnp.float32(fan_in))
        w = jax.random.uniform(kw, (k, k, cin, cout), jnp.float32,
                               minval=-scale, maxval=scale)
        b = jax.random.uniform(kb, (cout,), jnp.float32,
                               minval=-scale, maxval=scale)
        return (w, b, relu)

    params = {"main": []}
    for d in main_defs:
        key, sub = jax.random.split(key)
        params["main"].append(make_layer(sub, *d))
    key, sub = jax.random.split(key)
    params["conv"] = make_layer(sub, *final_def)
    return params


def _prep(params):
    """Flatten / pre-transpose conv weights for the fused kernel; bf16 MXU operands."""
    (w1, b1, _), (w2, b2, _), (w3, b3, _), (w4, b4, _) = params["main"]
    w5, b5, _ = params["conv"]
    c1, c2, c4, cout = w1.shape[-1], w3.shape[-1], w4.shape[-1], w5.shape[-1]
    w5m = w5.reshape(w5.shape[-2], cout)          # (out_plane_in, out_plane_out)
    return {
        "w1": w1.reshape(9, 3, c1).astype(jnp.bfloat16),
        "b1": b1.reshape(1, c1).astype(jnp.float32),
        "w2": w2.reshape(c1, c2).astype(jnp.bfloat16),
        "b2": b2.reshape(1, c2).astype(jnp.float32),
        "w3": w3.reshape(9, c2, c2).astype(jnp.bfloat16),
        "b3": b3.reshape(1, c2).astype(jnp.float32),
        # Tail in channel-major (transposed) form:
        "w4t": w4.reshape(c2, c4).T.astype(jnp.bfloat16),    # (c4, c2)
        "b4t": b4.reshape(c4, 1).astype(jnp.float32),
        "w5xt": w5m[:3, :].T.astype(jnp.bfloat16),           # (cout, 3)  acts on x
        "w5yt": w5m[3:, :].T.astype(jnp.bfloat16),           # (cout, c4) acts on main(x)
        "b5t": b5.reshape(cout, 1).astype(jnp.float32),
    }


def scm_forward(x_nchw, params):
    """Matches SCM.forward: conv1x1(cat([x, main(x)], C)); concat folded away.

    The kernel emits (B, out_plane, H*W) channel-major, so the output is NCHW
    after a free reshape (no output transpose in the wrapper)."""
    p = _prep(params)
    B, _, H, W = x_nchw.shape
    x_nhwc = jnp.transpose(x_nchw, (0, 2, 3, 1))   # small: 3 channels only
    out = scm_fused(x_nhwc, p)                     # (B, out_plane, H*W)
    return out.reshape(B, -1, H, W)                # NCHW


# -----------------------------------------------------------------------------
# Pure-JAX f32 reference (verification only)
# -----------------------------------------------------------------------------
def _ref_conv(x_nhwc, w_hwio, bias, relu):
    out = jax.lax.conv_general_dilated(
        x_nhwc, w_hwio, window_strides=(1, 1), padding="SAME",
        dimension_numbers=("NHWC", "HWIO", "NHWC"))
    out = out + bias.reshape(1, 1, 1, -1)
    return jnp.maximum(out, 0.0) if relu else out


def scm_forward_ref(x_nchw, params):
    x = jnp.transpose(x_nchw, (0, 2, 3, 1))
    y = x
    for (w, b, relu) in params["main"]:
        y = _ref_conv(y, w, b, relu)
    cat = jnp.concatenate([x, y], axis=-1)
    w, b, relu = params["conv"]
    out = _ref_conv(cat, w, b, relu)
    return jnp.transpose(out, (0, 3, 1, 2))


if __name__ == "__main__":
    key = jax.random.PRNGKey(0)
    k_x, k_p = jax.random.split(key)

    B, C, Hh, Ww = 2, 3, 16, 16          # SCM expects 3 input channels (RGB)
    out_plane = 32
    x = jax.random.normal(k_x, (B, C, Hh, Ww), jnp.float32)

    params = make_scm_params(out_plane, k_p)

    fwd = jax.jit(functools.partial(scm_forward, params=params))
    out = jax.block_until_ready(fwd(x))
    assert out.shape == (B, out_plane, Hh, Ww), out.shape

    ref = jax.block_until_ready(scm_forward_ref(x, params))
    max_err = float(jnp.max(jnp.abs(out - ref)))
    # bf16 MXU operands with f32 accumulation -> slightly relaxed tolerance.
    assert jnp.allclose(out, ref, rtol=3e-2, atol=3e-2), max_err

    print("KERNEL_OK")
</pallas_src>

<mosaic_0001>
module attributes {stable_mosaic.version = 11 : i64} {
  func.func @kernel(%arg0: i32, %arg1: memref<1x16x16x3xf32, #tpu.memory_space<vmem>>, %arg2: memref<9x3x8xbf16, #tpu.memory_space<vmem>>, %arg3: memref<1x8xf32, #tpu.memory_space<vmem>>, %arg4: memref<8x16xbf16, #tpu.memory_space<vmem>>, %arg5: memref<1x16xf32, #tpu.memory_space<vmem>>, %arg6: memref<9x16x16xbf16, #tpu.memory_space<vmem>>, %arg7: memref<1x16xf32, #tpu.memory_space<vmem>>, %arg8: memref<29x16xbf16, #tpu.memory_space<vmem>>, %arg9: memref<29x1xf32, #tpu.memory_space<vmem>>, %arg10: memref<32x3xbf16, #tpu.memory_space<vmem>>, %arg11: memref<32x29xbf16, #tpu.memory_space<vmem>>, %arg12: memref<32x1xf32, #tpu.memory_space<vmem>>, %arg13: memref<1x32x256xf32, #tpu.memory_space<vmem>>, %arg14: memref<18x18x3xf32, #tpu.memory_space<vmem>>, %arg15: memref<18x18x16xf32, #tpu.memory_space<vmem>>) attributes {dimension_semantics = [#tpu.dimension_semantics<parallel>], iteration_bounds = array<i64: 2>, scalar_prefetch = 0 : i64, scratch_operands = 2 : i64, tpu.core_type = #tpu.core_type<tc>, window_params = [{transform_indices = @transform_0, window_bounds = array<i64: 1, 16, 16, 3>}, {pipeline_mode = #tpu.pipeline_mode<synchronous>, transform_indices = @transform_1, window_bounds = array<i64: 9, 3, 8>}, {pipeline_mode = #tpu.pipeline_mode<synchronous>, transform_indices = @transform_2, window_bounds = array<i64: 1, 8>}, {pipeline_mode = #tpu.pipeline_mode<synchronous>, transform_indices = @transform_3, window_bounds = array<i64: 8, 16>}, {pipeline_mode = #tpu.pipeline_mode<synchronous>, transform_indices = @transform_4, window_bounds = array<i64: 1, 16>}, {pipeline_mode = #tpu.pipeline_mode<synchronous>, transform_indices = @transform_5, window_bounds = array<i64: 9, 16, 16>}, {pipeline_mode = #tpu.pipeline_mode<synchronous>, transform_indices = @transform_6, window_bounds = array<i64: 1, 16>}, {pipeline_mode = #tpu.pipeline_mode<synchronous>, transform_indices = @transform_7, window_bounds = array<i64: 29, 16>}, {pipeline_mode = #tpu.pipeline_mode<synchronous>, transform_indices = @transform_8, window_bounds = array<i64: 29, 1>}, {pipeline_mode = #tpu.pipeline_mode<synchronous>, transform_indices = @transform_9, window_bounds = array<i64: 32, 3>}, {pipeline_mode = #tpu.pipeline_mode<synchronous>, transform_indices = @transform_10, window_bounds = array<i64: 32, 29>}, {pipeline_mode = #tpu.pipeline_mode<synchronous>, transform_indices = @transform_11, window_bounds = array<i64: 32, 1>}, {transform_indices = @transform_12, window_bounds = array<i64: 1, 32, 256>}]} {
    %c0 = arith.constant 0 : index
    %c0_0 = arith.constant 0 : index
    %c0_1 = arith.constant 0 : index
    %c0_2 = arith.constant 0 : index
    %0 = vector.load %arg1[%c0, %c0_0, %c0_1, %c0_2] : memref<1x16x16x3xf32, #tpu.memory_space<vmem>>, vector<1x16x16x3xf32>
    %1 = vector.shape_cast %0 : vector<1x16x16x3xf32> to vector<16x16x3xf32>
    %cst = arith.constant 0.000000e+00 : f32
    %2 = vector.broadcast %cst : f32 to vector<18x18x3xf32>
    %c0_3 = arith.constant 0 : index
    %c0_4 = arith.constant 0 : index
    %c0_5 = arith.constant 0 : index
    %3 = vector.load %arg14[%c0_3, %c0_4, %c0_5] : memref<18x18x3xf32, #tpu.memory_space<vmem>>, vector<18x18x3xf32>
    tpu.vector_store %arg14[%c0_3, %c0_4, %c0_5], %2 {strides = array<i32>} : memref<18x18x3xf32, #tpu.memory_space<vmem>>, vector<18x18x3xf32>,
    %c1 = arith.constant 1 : index
    %c1_6 = arith.constant 1 : index
    %c0_7 = arith.constant 0 : index
    %4 = vector.load %arg14[%c1, %c1_6, %c0_7] : memref<18x18x3xf32, #tpu.memory_space<vmem>>, vector<16x16x3xf32>
    tpu.vector_store %arg14[%c1, %c1_6, %c0_7], %1 {strides = array<i32>} : memref<18x18x3xf32, #tpu.memory_space<vmem>>, vector<16x16x3xf32>,
    %c0_8 = arith.constant 0 : index
    %c0_9 = arith.constant 0 : index
    %c0_10 = arith.constant 0 : index
    %5 = vector.load %arg14[%c0_8, %c0_9, %c0_10] : memref<18x18x3xf32, #tpu.memory_space<vmem>>, vector<16x16x3xf32>
    %6 = vector.shape_cast %5 : vector<16x16x3xf32> to vector<256x3xf32>
    %7 = arith.truncf %6 : vector<256x3xf32> to vector<256x3xbf16>
    %c0_11 = arith.constant 0 : index
    %c0_12 = arith.constant 0 : index
    %c0_13 = arith.constant 0 : index
    %8 = vector.load %arg2[%c0_11, %c0_12, %c0_13] : memref<9x3x8xbf16, #tpu.memory_space<vmem>>, vector<1x3x8xbf16>
    %9 = vector.shape_cast %8 : vector<1x3x8xbf16> to vector<3x8xbf16>
    %cst_14 = arith.constant dense<0.000000e+00> : vector<256x8xf32>
    %10 = tpu.matmul %7, %9, %cst_14 {dimension_numbers = #tpu.dot_dimension_numbers<[1], [0], [0], [1], [0, 0, 1, 1], [], []>} : vector<256x3xbf16>, vector<3x8xbf16>, vector<256x8xf32> -> vector<256x8xf32>
    %c0_15 = arith.constant 0 : index
    %c1_16 = arith.constant 1 : index
    %c0_17 = arith.constant 0 : index
    %11 = vector.load %arg14[%c0_15, %c1_16, %c0_17] : memref<18x18x3xf32, #tpu.memory_space<vmem>>, vector<16x16x3xf32>
    %12 = vector.shape_cast %11 : vector<16x16x3xf32> to vector<256x3xf32>
    %13 = arith.truncf %12 : vector<256x3xf32> to vector<256x3xbf16>
    %c1_18 = arith.constant 1 : index
    %c0_19 = arith.constant 0 : index
    %c0_20 = arith.constant 0 : index
    %14 = vector.load %arg2[%c1_18, %c0_19, %c0_20] : memref<9x3x8xbf16, #tpu.memory_space<vmem>>, vector<1x3x8xbf16>
    %15 = vector.shape_cast %14 : vector<1x3x8xbf16> to vector<3x8xbf16>
    %cst_21 = arith.constant dense<0.000000e+00> : vector<256x8xf32>
    %16 = tpu.matmul %13, %15, %cst_21 {dimension_numbers = #tpu.dot_dimension_numbers<[1], [0], [0], [1], [0, 0, 1, 1], [], []>} : vector<256x3xbf16>, vector<3x8xbf16>, vector<256x8xf32> -> vector<256x8xf32>
    %17 = arith.addf %10, %16 : vector<256x8xf32>
    %c0_22 = arith.constant 0 : index
    %c2 = arith.constant 2 : index
    %c0_23 = arith.constant 0 : index
    %18 = vector.load %arg14[%c0_22, %c2, %c0_23] : memref<18x18x3xf32, #tpu.memory_space<vmem>>, vector<16x16x3xf32>
    %19 = vector.shape_cast %18 : vector<16x16x3xf32> to vector<256x3xf32>
    %20 = arith.truncf %19 : vector<256x3xf32> to vector<256x3xbf16>
    %c2_24 = arith.constant 2 : index
    %c0_25 = arith.constant 0 : index
    %c0_26 = arith.constant 0 : index
    %21 = vector.load %arg2[%c2_24, %c0_25, %c0_26] : memref<9x3x8xbf16, #tpu.memory_space<vmem>>, vector<1x3x8xbf16>
    %22 = vector.shape_cast %21 : vector<1x3x8xbf16> to vector<3x8xbf16>
    %cst_27 = arith.constant dense<0.000000e+00> : vector<256x8xf32>
    %23 = tpu.matmul %20, %22, %cst_27 {dimension_numbers = #tpu.dot_dimension_numbers<[1], [0], [0], [1], [0, 0, 1, 1], [], []>} : vector<256x3xbf16>, vector<3x8xbf16>, vector<256x8xf32> -> vector<256x8xf32>
    %24 = arith.addf %17, %23 : vector<256x8xf32>
    %c1_28 = arith.constant 1 : index
    %c0_29 = arith.constant 0 : index
    %c0_30 = arith.constant 0 : index
    %25 = vector.load %arg14[%c1_28, %c0_29, %c0_30] : memref<18x18x3xf32, #tpu.memory_space<vmem>>, vector<16x16x3xf32>
    %26 = vector.shape_cast %25 : vector<16x16x3xf32> to vector<256x3xf32>
    %27 = arith.truncf %26 : vector<256x3xf32> to vector<256x3xbf16>
    %c3 = arith.constant 3 : index
    %c0_31 = arith.constant 0 : index
    %c0_32 = arith.constant 0 : index
    %28 = vector.load %arg2[%c3, %c0_31, %c0_32] : memref<9x3x8xbf16, #tpu.memory_space<vmem>>, vector<1x3x8xbf16>
    %29 = vector.shape_cast %28 : vector<1x3x8xbf16> to vector<3x8xbf16>
    %cst_33 = arith.constant dense<0.000000e+00> : vector<256x8xf32>
    %30 = tpu.matmul %27, %29, %cst_33 {dimension_numbers = #tpu.dot_dimension_numbers<[1], [0], [0], [1], [0, 0, 1, 1], [], []>} : vector<256x3xbf16>, vector<3x8xbf16>, vector<256x8xf32> -> vector<256x8xf32>
    %31 = arith.addf %24, %30 : vector<256x8xf32>
    %c1_34 = arith.constant 1 : index
    %c1_35 = arith.constant 1 : index
    %c0_36 = arith.constant 0 : index
    %32 = vector.load %arg14[%c1_34, %c1_35, %c0_36] : memref<18x18x3xf32, #tpu.memory_space<vmem>>, vector<16x16x3xf32>
    %33 = vector.shape_cast %32 : vector<16x16x3xf32> to vector<256x3xf32>
    %34 = arith.truncf %33 : vector<256x3xf32> to vector<256x3xbf16>
    %c4 = arith.constant 4 : index
    %c0_37 = arith.constant 0 : index
    %c0_38 = arith.constant 0 : index
    %35 = vector.load %arg2[%c4, %c0_37, %c0_38] : memref<9x3x8xbf16, #tpu.memory_space<vmem>>, vector<1x3x8xbf16>
    %36 = vector.shape_cast %35 : vector<1x3x8xbf16> to vector<3x8xbf16>
    %cst_39 = arith.constant dense<0.000000e+00> : vector<256x8xf32>
    %37 = tpu.matmul %34, %36, %cst_39 {dimension_numbers = #tpu.dot_dimension_numbers<[1], [0], [0], [1], [0, 0, 1, 1], [], []>} : vector<256x3xbf16>, vector<3x8xbf16>, vector<256x8xf32> -> vector<256x8xf32>
    %38 = arith.addf %31, %37 : vector<256x8xf32>
    %c1_40 = arith.constant 1 : index
    %c2_41 = arith.constant 2 : index
    %c0_42 = arith.constant 0 : index
    %39 = vector.load %arg14[%c1_40, %c2_41, %c0_42] : memref<18x18x3xf32, #tpu.memory_space<vmem>>, vector<16x16x3xf32>
    %40 = vector.shape_cast %39 : vector<16x16x3xf32> to vector<256x3xf32>
    %41 = arith.truncf %40 : vector<256x3xf32> to vector<256x3xbf16>
    %c5 = arith.constant 5 : index
    %c0_43 = arith.constant 0 : index
    %c0_44 = arith.constant 0 : index
    %42 = vector.load %arg2[%c5, %c0_43, %c0_44] : memref<9x3x8xbf16, #tpu.memory_space<vmem>>, vector<1x3x8xbf16>
    %43 = vector.shape_cast %42 : vector<1x3x8xbf16> to vector<3x8xbf16>
    %cst_45 = arith.constant dense<0.000000e+00> : vector<256x8xf32>
    %44 = tpu.matmul %41, %43, %cst_45 {dimension_numbers = #tpu.dot_dimension_numbers<[1], [0], [0], [1], [0, 0, 1, 1], [], []>} : vector<256x3xbf16>, vector<3x8xbf16>, vector<256x8xf32> -> vector<256x8xf32>
    %45 = arith.addf %38, %44 : vector<256x8xf32>
    %c2_46 = arith.constant 2 : index
    %c0_47 = arith.constant 0 : index
    %c0_48 = arith.constant 0 : index
    %46 = vector.load %arg14[%c2_46, %c0_47, %c0_48] : memref<18x18x3xf32, #tpu.memory_space<vmem>>, vector<16x16x3xf32>
    %47 = vector.shape_cast %46 : vector<16x16x3xf32> to vector<256x3xf32>
    %48 = arith.truncf %47 : vector<256x3xf32> to vector<256x3xbf16>
    %c6 = arith.constant 6 : index
    %c0_49 = arith.constant 0 : index
    %c0_50 = arith.constant 0 : index
    %49 = vector.load %arg2[%c6, %c0_49, %c0_50] : memref<9x3x8xbf16, #tpu.memory_space<vmem>>, vector<1x3x8xbf16>
    %50 = vector.shape_cast %49 : vector<1x3x8xbf16> to vector<3x8xbf16>
    %cst_51 = arith.constant dense<0.000000e+00> : vector<256x8xf32>
    %51 = tpu.matmul %48, %50, %cst_51 {dimension_numbers = #tpu.dot_dimension_numbers<[1], [0], [0], [1], [0, 0, 1, 1], [], []>} : vector<256x3xbf16>, vector<3x8xbf16>, vector<256x8xf32> -> vector<256x8xf32>
    %52 = arith.addf %45, %51 : vector<256x8xf32>
    %c2_52 = arith.constant 2 : index
    %c1_53 = arith.constant 1 : index
    %c0_54 = arith.constant 0 : index
    %53 = vector.load %arg14[%c2_52, %c1_53, %c0_54] : memref<18x18x3xf32, #tpu.memory_space<vmem>>, vector<16x16x3xf32>
    %54 = vector.shape_cast %53 : vector<16x16x3xf32> to vector<256x3xf32>
    %55 = arith.truncf %54 : vector<256x3xf32> to vector<256x3xbf16>
    %c7 = arith.constant 7 : index
    %c0_55 = arith.constant 0 : index
    %c0_56 = arith.constant 0 : index
    %56 = vector.load %arg2[%c7, %c0_55, %c0_56] : memref<9x3x8xbf16, #tpu.memory_space<vmem>>, vector<1x3x8xbf16>
    %57 = vector.shape_cast %56 : vector<1x3x8xbf16> to vector<3x8xbf16>
    %cst_57 = arith.constant dense<0.000000e+00> : vector<256x8xf32>
    %58 = tpu.matmul %55, %57, %cst_57 {dimension_numbers = #tpu.dot_dimension_numbers<[1], [0], [0], [1], [0, 0, 1, 1], [], []>} : vector<256x3xbf16>, vector<3x8xbf16>, vector<256x8xf32> -> vector<256x8xf32>
    %59 = arith.addf %52, %58 : vector<256x8xf32>
    %c2_58 = arith.constant 2 : index
    %c2_59 = arith.constant 2 : index
    %c0_60 = arith.constant 0 : index
    %60 = vector.load %arg14[%c2_58, %c2_59, %c0_60] : memref<18x18x3xf32, #tpu.memory_space<vmem>>, vector<16x16x3xf32>
    %61 = vector.shape_cast %60 : vector<16x16x3xf32> to vector<256x3xf32>
    %62 = arith.truncf %61 : vector<256x3xf32> to vector<256x3xbf16>
    %c8 = arith.constant 8 : index
    %c0_61 = arith.constant 0 : index
    %c0_62 = arith.constant 0 : index
    %63 = vector.load %arg2[%c8, %c0_61, %c0_62] : memref<9x3x8xbf16, #tpu.memory_space<vmem>>, vector<1x3x8xbf16>
    %64 = vector.shape_cast %63 : vector<1x3x8xbf16> to vector<3x8xbf16>
    %cst_63 = arith.constant dense<0.000000e+00> : vector<256x8xf32>
    %65 = tpu.matmul %62, %64, %cst_63 {dimension_numbers = #tpu.dot_dimension_numbers<[1], [0], [0], [1], [0, 0, 1, 1], [], []>} : vector<256x3xbf16>, vector<3x8xbf16>, vector<256x8xf32> -> vector<256x8xf32>
    %66 = arith.addf %59, %65 : vector<256x8xf32>
    %c0_64 = arith.constant 0 : index
    %c0_65 = arith.constant 0 : index
    %67 = vector.load %arg3[%c0_64, %c0_65] : memref<1x8xf32, #tpu.memory_space<vmem>>, vector<1x8xf32>
    %68 = vector.broadcast %67 : vector<1x8xf32> to vector<256x8xf32>
    %69 = arith.addf %66, %68 : vector<256x8xf32>
    %cst_66 = arith.constant 0.000000e+00 : f32
    %70 = vector.broadcast %cst_66 : f32 to vector<256x8xf32>
    %71 = arith.maximumf %69, %70 : vector<256x8xf32>
    %72 = arith.truncf %71 : vector<256x8xf32> to vector<256x8xbf16>
    %c0_67 = arith.constant 0 : index
    %c0_68 = arith.constant 0 : index
    %73 = vector.load %arg4[%c0_67, %c0_68] : memref<8x16xbf16, #tpu.memory_space<vmem>>, vector<8x16xbf16>
    %cst_69 = arith.constant dense<0.000000e+00> : vector<256x16xf32>
    %74 = tpu.matmul %72, %73, %cst_69 {dimension_numbers = #tpu.dot_dimension_numbers<[1], [0], [0], [1], [0, 0, 1, 1], [], []>} : vector<256x8xbf16>, vector<8x16xbf16>, vector<256x16xf32> -> vector<256x16xf32>
    %c0_70 = arith.constant 0 : index
    %c0_71 = arith.constant 0 : index
    %75 = vector.load %arg5[%c0_70, %c0_71] : memref<1x16xf32, #tpu.memory_space<vmem>>, vector<1x16xf32>
    %76 = vector.broadcast %75 : vector<1x16xf32> to vector<256x16xf32>
    %77 = arith.addf %74, %76 : vector<256x16xf32>
    %cst_72 = arith.constant 0.000000e+00 : f32
    %78 = vector.broadcast %cst_72 : f32 to vector<256x16xf32>
    %79 = arith.maximumf %77, %78 : vector<256x16xf32>
    %cst_73 = arith.constant 0.000000e+00 : f32
    %80 = vector.broadcast %cst_73 : f32 to vector<18x18x16xf32>
    %c0_74 = arith.constant 0 : index
    %c0_75 = arith.constant 0 : index
    %c0_76 = arith.constant 0 : index
    %81 = vector.load %arg15[%c0_74, %c0_75, %c0_76] : memref<18x18x16xf32, #tpu.memory_space<vmem>>, vector<18x18x16xf32>
    tpu.vector_store %arg15[%c0_74, %c0_75, %c0_76], %80 {strides = array<i32>} : memref<18x18x16xf32, #tpu.memory_space<vmem>>, vector<18x18x16xf32>,
    %82 = vector.shape_cast %79 : vector<256x16xf32> to vector<16x16x16xf32>
    %c1_77 = arith.constant 1 : index
    %c1_78 = arith.constant 1 : index
    %c0_79 = arith.constant 0 : index
    %83 = vector.load %arg15[%c1_77, %c1_78, %c0_79] : memref<18x18x16xf32, #tpu.memory_space<vmem>>, vector<16x16x16xf32>
    tpu.vector_store %arg15[%c1_77, %c1_78, %c0_79], %82 {strides = array<i32>} : memref<18x18x16xf32, #tpu.memory_space<vmem>>, vector<16x16x16xf32>,
    %c0_80 = arith.constant 0 : index
    %c0_81 = arith.constant 0 : index
    %c0_82 = arith.constant 0 : index
    %84 = vector.load %arg15[%c0_80, %c0_81, %c0_82] : memref<18x18x16xf32, #tpu.memory_space<vmem>>, vector<16x16x16xf32>
    %85 = vector.shape_cast %84 : vector<16x16x16xf32> to vector<256x16xf32>
    %86 = arith.truncf %85 : vector<256x16xf32> to vector<256x16xbf16>
    %c0_83 = arith.constant 0 : index
    %c0_84 = arith.constant 0 : index
    %c0_85 = arith.constant 0 : index
    %87 = vector.load %arg6[%c0_83, %c0_84, %c0_85] : memref<9x16x16xbf16, #tpu.memory_space<vmem>>, vector<1x16x16xbf16>
    %88 = vector.shape_cast %87 : vector<1x16x16xbf16> to vector<16x16xbf16>
    %cst_86 = arith.constant dense<0.000000e+00> : vector<256x16xf32>
    %89 = tpu.matmul %86, %88, %cst_86 {dimension_numbers = #tpu.dot_dimension_numbers<[1], [0], [0], [1], [0, 0, 1, 1], [], []>} : vector<256x16xbf16>, vector<16x16xbf16>, vector<256x16xf32> -> vector<256x16xf32>
    %c0_87 = arith.constant 0 : index
    %c1_88 = arith.constant 1 : index
    %c0_89 = arith.constant 0 : index
    %90 = vector.load %arg15[%c0_87, %c1_88, %c0_89] : memref<18x18x16xf32, #tpu.memory_space<vmem>>, vector<16x16x16xf32>
    %91 = vector.shape_cast %90 : vector<16x16x16xf32> to vector<256x16xf32>
    %92 = arith.truncf %91 : vector<256x16xf32> to vector<256x16xbf16>
    %c1_90 = arith.constant 1 : index
    %c0_91 = arith.constant 0 : index
    %c0_92 = arith.constant 0 : index
    %93 = vector.load %arg6[%c1_90, %c0_91, %c0_92] : memref<9x16x16xbf16, #tpu.memory_space<vmem>>, vector<1x16x16xbf16>
    %94 = vector.shape_cast %93 : vector<1x16x16xbf16> to vector<16x16xbf16>
    %cst_93 = arith.constant dense<0.000000e+00> : vector<256x16xf32>
    %95 = tpu.matmul %92, %94, %cst_93 {dimension_numbers = #tpu.dot_dimension_numbers<[1], [0], [0], [1], [0, 0, 1, 1], [], []>} : vector<256x16xbf16>, vector<16x16xbf16>, vector<256x16xf32> -> vector<256x16xf32>
    %96 = arith.addf %89, %95 : vector<256x16xf32>
    %c0_94 = arith.constant 0 : index
    %c2_95 = arith.constant 2 : index
    %c0_96 = arith.constant 0 : index
    %97 = vector.load %arg15[%c0_94, %c2_95, %c0_96] : memref<18x18x16xf32, #tpu.memory_space<vmem>>, vector<16x16x16xf32>
    %98 = vector.shape_cast %97 : vector<16x16x16xf32> to vector<256x16xf32>
    %99 = arith.truncf %98 : vector<256x16xf32> to vector<256x16xbf16>
    %c2_97 = arith.constant 2 : index
    %c0_98 = arith.constant 0 : index
    %c0_99 = arith.constant 0 : index
    %100 = vector.load %arg6[%c2_97, %c0_98, %c0_99] : memref<9x16x16xbf16, #tpu.memory_space<vmem>>, vector<1x16x16xbf16>
    %101 = vector.shape_cast %100 : vector<1x16x16xbf16> to vector<16x16xbf16>
    %cst_100 = arith.constant dense<0.000000e+00> : vector<256x16xf32>
    %102 = tpu.matmul %99, %101, %cst_100 {dimension_numbers = #tpu.dot_dimension_numbers<[1], [0], [0], [1], [0, 0, 1, 1], [], []>} : vector<256x16xbf16>, vector<16x16xbf16>, vector<256x16xf32> -> vector<256x16xf32>
    %103 = arith.addf %96, %102 : vector<256x16xf32>
    %c1_101 = arith.constant 1 : index
    %c0_102 = arith.constant 0 : index
    %c0_103 = arith.constant 0 : index
    %104 = vector.load %arg15[%c1_101, %c0_102, %c0_103] : memref<18x18x16xf32, #tpu.memory_space<vmem>>, vector<16x16x16xf32>
    %105 = vector.shape_cast %104 : vector<16x16x16xf32> to vector<256x16xf32>
    %106 = arith.truncf %105 : vector<256x16xf32> to vector<256x16xbf16>
    %c3_104 = arith.constant 3 : index
    %c0_105 = arith.constant 0 : index
    %c0_106 = arith.constant 0 : index
    %107 = vector.load %arg6[%c3_104, %c0_105, %c0_106] : memref<9x16x16xbf16, #tpu.memory_space<vmem>>, vector<1x16x16xbf16>
    %108 = vector.shape_cast %107 : vector<1x16x16xbf16> to vector<16x16xbf16>
    %cst_107 = arith.constant dense<0.000000e+00> : vector<256x16xf32>
    %109 = tpu.matmul %106, %108, %cst_107 {dimension_numbers = #tpu.dot_dimension_numbers<[1], [0], [0], [1], [0, 0, 1, 1], [], []>} : vector<256x16xbf16>, vector<16x16xbf16>, vector<256x16xf32> -> vector<256x16xf32>
    %110 = arith.addf %103, %109 : vector<256x16xf32>
    %c1_108 = arith.constant 1 : index
    %c1_109 = arith.constant 1 : index
    %c0_110 = arith.constant 0 : index
    %111 = vector.load %arg15[%c1_108, %c1_109, %c0_110] : memref<18x18x16xf32, #tpu.memory_space<vmem>>, vector<16x16x16xf32>
    %112 = vector.shape_cast %111 : vector<16x16x16xf32> to vector<256x16xf32>
    %113 = arith.truncf %112 : vector<256x16xf32> to vector<256x16xbf16>
    %c4_111 = arith.constant 4 : index
    %c0_112 = arith.constant 0 : index
    %c0_113 = arith.constant 0 : index
    %114 = vector.load %arg6[%c4_111, %c0_112, %c0_113] : memref<9x16x16xbf16, #tpu.memory_space<vmem>>, vector<1x16x16xbf16>
    %115 = vector.shape_cast %114 : vector<1x16x16xbf16> to vector<16x16xbf16>
    %cst_114 = arith.constant dense<0.000000e+00> : vector<256x16xf32>
    %116 = tpu.matmul %113, %115, %cst_114 {dimension_numbers = #tpu.dot_dimension_numbers<[1], [0], [0], [1], [0, 0, 1, 1], [], []>} : vector<256x16xbf16>, vector<16x16xbf16>, vector<256x16xf32> -> vector<256x16xf32>
    %117 = arith.addf %110, %116 : vector<256x16xf32>
    %c1_115 = arith.constant 1 : index
    %c2_116 = arith.constant 2 : index
    %c0_117 = arith.constant 0 : index
    %118 = vector.load %arg15[%c1_115, %c2_116, %c0_117] : memref<18x18x16xf32, #tpu.memory_space<vmem>>, vector<16x16x16xf32>
    %119 = vector.shape_cast %118 : vector<16x16x16xf32> to vector<256x16xf32>
    %120 = arith.truncf %119 : vector<256x16xf32> to vector<256x16xbf16>
    %c5_118 = arith.constant 5 : index
    %c0_119 = arith.constant 0 : index
    %c0_120 = arith.constant 0 : index
    %121 = vector.load %arg6[%c5_118, %c0_119, %c0_120] : memref<9x16x16xbf16, #tpu.memory_space<vmem>>, vector<1x16x16xbf16>
    %122 = vector.shape_cast %121 : vector<1x16x16xbf16> to vector<16x16xbf16>
    %cst_121 = arith.constant dense<0.000000e+00> : vector<256x16xf32>
    %123 = tpu.matmul %120, %122, %cst_121 {dimension_numbers = #tpu.dot_dimension_numbers<[1], [0], [0], [1], [0, 0, 1, 1], [], []>} : vector<256x16xbf16>, vector<16x16xbf16>, vector<256x16xf32> -> vector<256x16xf32>
    %124 = arith.addf %117, %123 : vector<256x16xf32>
    %c2_122 = arith.constant 2 : index
    %c0_123 = arith.constant 0 : index
    %c0_124 = arith.constant 0 : index
    %125 = vector.load %arg15[%c2_122, %c0_123, %c0_124] : memref<18x18x16xf32, #tpu.memory_space<vmem>>, vector<16x16x16xf32>
    %126 = vector.shape_cast %125 : vector<16x16x16xf32> to vector<256x16xf32>
    %127 = arith.truncf %126 : vector<256x16xf32> to vector<256x16xbf16>
    %c6_125 = arith.constant 6 : index
    %c0_126 = arith.constant 0 : index
    %c0_127 = arith.constant 0 : index
    %128 = vector.load %arg6[%c6_125, %c0_126, %c0_127] : memref<9x16x16xbf16, #tpu.memory_space<vmem>>, vector<1x16x16xbf16>
    %129 = vector.shape_cast %128 : vector<1x16x16xbf16> to vector<16x16xbf16>
    %cst_128 = arith.constant dense<0.000000e+00> : vector<256x16xf32>
    %130 = tpu.matmul %127, %129, %cst_128 {dimension_numbers = #tpu.dot_dimension_numbers<[1], [0], [0], [1], [0, 0, 1, 1], [], []>} : vector<256x16xbf16>, vector<16x16xbf16>, vector<256x16xf32> -> vector<256x16xf32>
    %131 = arith.addf %124, %130 : vector<256x16xf32>
    %c2_129 = arith.constant 2 : index
    %c1_130 = arith.constant 1 : index
    %c0_131 = arith.constant 0 : index
    %132 = vector.load %arg15[%c2_129, %c1_130, %c0_131] : memref<18x18x16xf32, #tpu.memory_space<vmem>>, vector<16x16x16xf32>
    %133 = vector.shape_cast %132 : vector<16x16x16xf32> to vector<256x16xf32>
    %134 = arith.truncf %133 : vector<256x16xf32> to vector<256x16xbf16>
    %c7_132 = arith.constant 7 : index
    %c0_133 = arith.constant 0 : index
    %c0_134 = arith.constant 0 : index
    %135 = vector.load %arg6[%c7_132, %c0_133, %c0_134] : memref<9x16x16xbf16, #tpu.memory_space<vmem>>, vector<1x16x16xbf16>
    %136 = vector.shape_cast %135 : vector<1x16x16xbf16> to vector<16x16xbf16>
    %cst_135 = arith.constant dense<0.000000e+00> : vector<256x16xf32>
    %137 = tpu.matmul %134, %136, %cst_135 {dimension_numbers = #tpu.dot_dimension_numbers<[1], [0], [0], [1], [0, 0, 1, 1], [], []>} : vector<256x16xbf16>, vector<16x16xbf16>, vector<256x16xf32> -> vector<256x16xf32>
    %138 = arith.addf %131, %137 : vector<256x16xf32>
    %c2_136 = arith.constant 2 : index
    %c2_137 = arith.constant 2 : index
    %c0_138 = arith.constant 0 : index
    %139 = vector.load %arg15[%c2_136, %c2_137, %c0_138] : memref<18x18x16xf32, #tpu.memory_space<vmem>>, vector<16x16x16xf32>
    %140 = vector.shape_cast %139 : vector<16x16x16xf32> to vector<256x16xf32>
    %141 = arith.truncf %140 : vector<256x16xf32> to vector<256x16xbf16>
    %c8_139 = arith.constant 8 : index
    %c0_140 = arith.constant 0 : index
    %c0_141 = arith.constant 0 : index
    %142 = vector.load %arg6[%c8_139, %c0_140, %c0_141] : memref<9x16x16xbf16, #tpu.memory_space<vmem>>, vector<1x16x16xbf16>
    %143 = vector.shape_cast %142 : vector<1x16x16xbf16> to vector<16x16xbf16>
    %cst_142 = arith.constant dense<0.000000e+00> : vector<256x16xf32>
    %144 = tpu.matmul %141, %143, %cst_142 {dimension_numbers = #tpu.dot_dimension_numbers<[1], [0], [0], [1], [0, 0, 1, 1], [], []>} : vector<256x16xbf16>, vector<16x16xbf16>, vector<256x16xf32> -> vector<256x16xf32>
    %145 = arith.addf %138, %144 : vector<256x16xf32>
    %c0_143 = arith.constant 0 : index
    %c0_144 = arith.constant 0 : index
    %146 = vector.load %arg7[%c0_143, %c0_144] : memref<1x16xf32, #tpu.memory_space<vmem>>, vector<1x16xf32>
    %147 = vector.broadcast %146 : vector<1x16xf32> to vector<256x16xf32>
    %148 = arith.addf %145, %147 : vector<256x16xf32>
    %cst_145 = arith.constant 0.000000e+00 : f32
    %149 = vector.broadcast %cst_145 : f32 to vector<256x16xf32>
    %150 = arith.maximumf %148, %149 : vector<256x16xf32>
    %c0_146 = arith.constant 0 : index
    %c0_147 = arith.constant 0 : index
    %151 = vector.load %arg8[%c0_146, %c0_147] : memref<29x16xbf16, #tpu.memory_space<vmem>>, vector<29x16xbf16>
    %152 = arith.truncf %150 : vector<256x16xf32> to vector<256x16xbf16>
    %cst_148 = arith.constant dense<0.000000e+00> : vector<29x256xf32>
    %153 = tpu.matmul %151, %152, %cst_148 {dimension_numbers = #tpu.dot_dimension_numbers<[1], [1], [0], [0], [0, 0, 1, 0], [], []>} : vector<29x16xbf16>, vector<256x16xbf16>, vector<29x256xf32> -> vector<29x256xf32>
    %c0_149 = arith.constant 0 : index
    %c0_150 = arith.constant 0 : index
    %154 = vector.load %arg9[%c0_149, %c0_150] : memref<29x1xf32, #tpu.memory_space<vmem>>, vector<29x1xf32>
    %155 = vector.broadcast %154 : vector<29x1xf32> to vector<29x256xf32>
    %156 = arith.addf %153, %155 : vector<29x256xf32>
    %cst_151 = arith.constant 0.000000e+00 : f32
    %157 = vector.broadcast %cst_151 : f32 to vector<29x256xf32>
    %158 = arith.maximumf %156, %157 : vector<29x256xf32>
    %159 = vector.shape_cast %1 : vector<16x16x3xf32> to vector<256x3xf32>
    %160 = arith.truncf %159 : vector<256x3xf32> to vector<256x3xbf16>
    %c0_152 = arith.constant 0 : index
    %c0_153 = arith.constant 0 : index
    %161 = vector.load %arg10[%c0_152, %c0_153] : memref<32x3xbf16, #tpu.memory_space<vmem>>, vector<32x3xbf16>
    %cst_154 = arith.constant dense<0.000000e+00> : vector<32x256xf32>
    %162 = tpu.matmul %161, %160, %cst_154 {dimension_numbers = #tpu.dot_dimension_numbers<[1], [1], [0], [0], [0, 0, 1, 0], [], []>} : vector<32x3xbf16>, vector<256x3xbf16>, vector<32x256xf32> -> vector<32x256xf32>
    %c0_155 = arith.constant 0 : index
    %c0_156 = arith.constant 0 : index
    %163 = vector.load %arg11[%c0_155, %c0_156] : memref<32x29xbf16, #tpu.memory_space<vmem>>, vector<32x29xbf16>
    %164 = arith.truncf %158 : vector<29x256xf32> to vector<29x256xbf16>
    %cst_157 = arith.constant dense<0.000000e+00> : vector<32x256xf32>
    %165 = tpu.matmul %163, %164, %cst_157 {dimension_numbers = #tpu.dot_dimension_numbers<[1], [0], [0], [1], [0, 0, 1, 1], [], []>} : vector<32x29xbf16>, vector<29x256xbf16>, vector<32x256xf32> -> vector<32x256xf32>
    %166 = arith.addf %162, %165 : vector<32x256xf32>
    %c0_158 = arith.constant 0 : index
    %c0_159 = arith.constant 0 : index
    %167 = vector.load %arg12[%c0_158, %c0_159] : memref<32x1xf32, #tpu.memory_space<vmem>>, vector<32x1xf32>
    %168 = vector.broadcast %167 : vector<32x1xf32> to vector<32x256xf32>
    %169 = arith.addf %166, %168 : vector<32x256xf32>
    %170 = vector.shape_cast %169 : vector<32x256xf32> to vector<1x32x256xf32>
    %c0_160 = arith.constant 0 : index
    %c0_161 = arith.constant 0 : index
    %c0_162 = arith.constant 0 : index
    %171 = vector.load %arg13[%c0_160, %c0_161, %c0_162] : memref<1x32x256xf32, #tpu.memory_space<vmem>>, vector<1x32x256xf32>
    tpu.vector_store %arg13[%c0_160, %c0_161, %c0_162], %170 {strides = array<i32>} : memref<1x32x256xf32, #tpu.memory_space<vmem>>, vector<1x32x256xf32>,
    return
  }
  func.func @transform_0(%arg0: i32) -> (i32, i32, i32, i32) {
    %c0_i32 = arith.constant 0 : i32
    %c0_i32_0 = arith.constant 0 : i32
    %c0_i32_1 = arith.constant 0 : i32
    %c0_i32_2 = arith.constant 0 : i32
    return %arg0, %c0_i32, %c0_i32_0, %c0_i32_1 : i32, i32, i32, i32
  }
  func.func @transform_1(%arg0: i32) -> (i32, i32, i32) {
    %c0_i32 = arith.constant 0 : i32
    %c0_i32_0 = arith.constant 0 : i32
    %c0_i32_1 = arith.constant 0 : i32
    %c0_i32_2 = arith.constant 0 : i32
    return %c0_i32, %c0_i32_0, %c0_i32_1 : i32, i32, i32
  }
  func.func @transform_2(%arg0: i32) -> (i32, i32) {
    %c0_i32 = arith.constant 0 : i32
    %c0_i32_0 = arith.constant 0 : i32
    %c0_i32_1 = arith.constant 0 : i32
    return %c0_i32, %c0_i32_0 : i32, i32
  }
  func.func @transform_3(%arg0: i32) -> (i32, i32) {
    %c0_i32 = arith.constant 0 : i32
    %c0_i32_0 = arith.constant 0 : i32
    %c0_i32_1 = arith.constant 0 : i32
    return %c0_i32, %c0_i32_0 : i32, i32
  }
  func.func @transform_4(%arg0: i32) -> (i32, i32) {
    %c0_i32 = arith.constant 0 : i32
    %c0_i32_0 = arith.constant 0 : i32
    %c0_i32_1 = arith.constant 0 : i32
    return %c0_i32, %c0_i32_0 : i32, i32
  }
  func.func @transform_5(%arg0: i32) -> (i32, i32, i32) {
    %c0_i32 = arith.constant 0 : i32
    %c0_i32_0 = arith.constant 0 : i32
    %c0_i32_1 = arith.constant 0 : i32
    %c0_i32_2 = arith.constant 0 : i32
    return %c0_i32, %c0_i32_0, %c0_i32_1 : i32, i32, i32
  }
  func.func @transform_6(%arg0: i32) -> (i32, i32) {
    %c0_i32 = arith.constant 0 : i32
    %c0_i32_0 = arith.constant 0 : i32
    %c0_i32_1 = arith.constant 0 : i32
    return %c0_i32, %c0_i32_0 : i32, i32
  }
  func.func @transform_7(%arg0: i32) -> (i32, i32) {
    %c0_i32 = arith.constant 0 : i32
    %c0_i32_0 = arith.constant 0 : i32
    %c0_i32_1 = arith.constant 0 : i32
    return %c0_i32, %c0_i32_0 : i32, i32
  }
  func.func @transform_8(%arg0: i32) -> (i32, i32) {
    %c0_i32 = arith.constant 0 : i32
    %c0_i32_0 = arith.constant 0 : i32
    %c0_i32_1 = arith.constant 0 : i32
    return %c0_i32, %c0_i32_0 : i32, i32
  }
  func.func @transform_9(%arg0: i32) -> (i32, i32) {
    %c0_i32 = arith.constant 0 : i32
    %c0_i32_0 = arith.constant 0 : i32
    %c0_i32_1 = arith.constant 0 : i32
    return %c0_i32, %c0_i32_0 : i32, i32
  }
  func.func @transform_10(%arg0: i32) -> (i32, i32) {
    %c0_i32 = arith.constant 0 : i32
    %c0_i32_0 = arith.constant 0 : i32
    %c0_i32_1 = arith.constant 0 : i32
    return %c0_i32, %c0_i32_0 : i32, i32
  }
  func.func @transform_11(%arg0: i32) -> (i32, i32) {
    %c0_i32 = arith.constant 0 : i32
    %c0_i32_0 = arith.constant 0 : i32
    %c0_i32_1 = arith.constant 0 : i32
    return %c0_i32, %c0_i32_0 : i32, i32
  }
  func.func @transform_12(%arg0: i32) -> (i32, i32, i32) {
    %c0_i32 = arith.constant 0 : i32
    %c0_i32_0 = arith.constant 0 : i32
    %c0_i32_1 = arith.constant 0 : i32
    return %arg0, %c0_i32, %c0_i32_0 : i32, i32, i32
  }
}

</mosaic_0001>

<llo_original>
// kernel: scm_forward.1
$region0: #{scm_forward.1}
  #allocation0 [shape = 'u32[]', space=smem, size = 0x4, offset = 0x4, fixed_abs, tag = 'smem constant byte address 0x4 - core index']
  #allocation1 [shape = 'u32[144,128]{1,0:T(1,128)}', space=vmem, size = 0x12000, scoped, tag = 'internal scratch']
  #allocation2 [shape = 'f32[18,18,3]{2,1,0:T(8,128)}', space=vmem, size = 0x36000, scoped, tag = 'scratch operand']
  #allocation3 [shape = 'f32[18,18,16]{2,1,0:T(8,128)}', space=vmem, size = 0x36000, scoped, tag = 'scratch operand']
  %s0 = inlined_call_operand.vmem [shape: f32[2,16,16,3], index: 0, kind: input, shape index: {}]
  %s1 = inlined_call_operand.vmem [shape: bf16[9,3,8], index: 1, kind: input, shape index: {}]
  %s2 = inlined_call_operand.vmem [shape: f32[1,8], index: 2, kind: input, shape index: {}]
  %s3 = inlined_call_operand.vmem [shape: bf16[8,16], index: 3, kind: input, shape index: {}]
  %s4 = inlined_call_operand.vmem [shape: f32[1,16], index: 4, kind: input, shape index: {}]
  %s5 = inlined_call_operand.vmem [shape: bf16[9,16,16], index: 5, kind: input, shape index: {}]
  %s6 = inlined_call_operand.vmem [shape: f32[1,16], index: 6, kind: input, shape index: {}]
  %s7 = inlined_call_operand.vmem [shape: bf16[29,16], index: 7, kind: input, shape index: {}]
  %s8 = inlined_call_operand.vmem [shape: f32[29,1], index: 8, kind: input, shape index: {}]
  %s9 = inlined_call_operand.vmem [shape: bf16[32,3], index: 9, kind: input, shape index: {}]
  %s10 = inlined_call_operand.vmem [shape: bf16[32,29], index: 10, kind: input, shape index: {}]
  %s11 = inlined_call_operand.vmem [shape: f32[32,1], index: 11, kind: input, shape index: {}]
  %s12 = inlined_call_operand.vmem [shape: f32[2,32,256], index: 12, kind: output, shape index: {}]
  %s13 = sld [smem:[#allocation0]]
  $region81: #{scm_forward.1} parent=0
    _
  %s15 = ssub.s32 1, %s13
  %s16 = scalar_select 0, %s15, %s13
  loop: start=0, step=1, limit=4
  $region2: #{scm_forward.1} parent=0 // loop_pre_header
    _
  $region3: #{scm_forward.1} parent=0 // loop_header
    %s18 = sphi 0, %s22
    %p19 = scmp.ge.s32.totalorder %s18, 4
    %s28 = sphi 0, %s30
    %s31 = sphi 0, %s28
    %s32 = sphi 0, %s31
    %s48 = sphi 0, %s32
    %s52 = sphi 0, %s52
    %s54 = sphi 0, %s52
    %s55 = sphi 0, %s54
    %s69 = sphi 0, %s55
    %s73 = sphi 0, %s73
    %s75 = sphi 0, %s73
    %s76 = sphi 0, %s75
    %s90 = sphi 0, %s76
    %s94 = sphi 0, %s94
    %s96 = sphi 0, %s94
    %s97 = sphi 0, %s96
    %s111 = sphi 0, %s97
    %s115 = sphi 0, %s115
    %s117 = sphi 0, %s115
    %s118 = sphi 0, %s117
    %s132 = sphi 0, %s118
    %s136 = sphi 0, %s136
    %s138 = sphi 0, %s136
    %s139 = sphi 0, %s138
    %s153 = sphi 0, %s139
    %s157 = sphi 0, %s157
    %s159 = sphi 0, %s157
    %s160 = sphi 0, %s159
    %s174 = sphi 0, %s160
    %s178 = sphi 0, %s178
    %s180 = sphi 0, %s178
    %s181 = sphi 0, %s180
    %s195 = sphi 0, %s181
    %s199 = sphi 0, %s199
    %s201 = sphi 0, %s199
    %s202 = sphi 0, %s201
    %s216 = sphi 0, %s202
    %s220 = sphi 0, %s220
    %s222 = sphi 0, %s220
    %s223 = sphi 0, %s222
    %s237 = sphi 0, %s223
    %s241 = sphi 0, %s241
    %s243 = sphi 0, %s241
    %s244 = sphi 0, %s243
    %s258 = sphi 0, %s244
    %s262 = sphi 0, %s262
    %s264 = sphi 0, %s262
    %s265 = sphi 0, %s264
    %s279 = sphi 0, %s265
    %s285 = sphi 0, %s287
    %s288 = sphi 0, %s285
    %s289 = sphi 0, %s288
    %s305 = sphi 0, %s289
  $region4: #{scm_forward.1} parent=0 // loop_header_branch
    %21 = sbr.rel (%p19) target = $region8
  $region5: #{scm_forward.1} parent=0 // loop_body
    %s23 = ssub.s32 %s18, 1
    %s24 = ssub.s32 %s18, 2
    %s25 = sadd.s32 %s18, 1
    %s26 = ssub.s32 %s18, %s25
    %p27 = scmp.eq.s32.totalorder %s26, 0
    %s29 = sadd.s32 %s28, 1
    %s30 = scalar_select %p27, %s28, %s29
    %p33 = pneg %p27
    %p34 = scmp.eq.s32.totalorder %s18, 1
    %p35 = por %p33, %p34
    %p36 = scmp.ne.s32.totalorder %s28, %s31
    %p37 = scmp.eq.s32.totalorder %s18, 0
    %p38 = por %p36, %p37
    %p39 = scmp.ne.s32.totalorder %s28, %s31
    %p40 = scmp.eq.s32.totalorder %s23, 1
    %p41 = por %p39, %p40
    %p42 = scmp.ne.s32.totalorder %s31, %s32
    %p43 = scmp.eq.s32.totalorder %s23, 0
    %p44 = por %p42, %p43
    %p45 = scmp.ne.s32.totalorder %s31, %s32
    %p46 = scmp.eq.s32.totalorder %s24, 1
    %p47 = por %p45, %p46
    %p49 = scmp.ne.s32.totalorder %s32, %s48
    %p50 = scmp.eq.s32.totalorder %s24, 0
    %p51 = por %p49, %p50
    %s53 = sadd.s32 %s52, 1
    %p56 = scmp.eq.s32.totalorder %s18, 1
    %p57 = scmp.ne.s32.totalorder %s52, %s54
    %p58 = scmp.eq.s32.totalorder %s18, 0
    %p59 = por %p57, %p58
    %p60 = scmp.ne.s32.totalorder %s52, %s54
    %p61 = scmp.eq.s32.totalorder %s23, 1
    %p62 = por %p60, %p61
    %p63 = scmp.ne.s32.totalorder %s54, %s55
    %p64 = scmp.eq.s32.totalorder %s23, 0
    %p65 = por %p63, %p64
    %p66 = scmp.ne.s32.totalorder %s54, %s55
    %p67 = scmp.eq.s32.totalorder %s24, 1
    %p68 = por %p66, %p67
    %p70 = scmp.ne.s32.totalorder %s55, %s69
    %p71 = scmp.eq.s32.totalorder %s24, 0
    %p72 = por %p70, %p71
    %s74 = sadd.s32 %s73, 1
    %p77 = scmp.eq.s32.totalorder %s18, 1
    %p78 = scmp.ne.s32.totalorder %s73, %s75
    %p79 = scmp.eq.s32.totalorder %s18, 0
    %p80 = por %p78, %p79
    %p81 = scmp.ne.s32.totalorder %s73, %s75
    %p82 = scmp.eq.s32.totalorder %s23, 1
    %p83 = por %p81, %p82
    %p84 = scmp.ne.s32.totalorder %s75, %s76
    %p85 = scmp.eq.s32.totalorder %s23, 0
    %p86 = por %p84, %p85
    %p87 = scmp.ne.s32.totalorder %s75, %s76
    %p88 = scmp.eq.s32.totalorder %s24, 1
    %p89 = por %p87, %p88
    %p91 = scmp.ne.s32.totalorder %s76, %s90
    %p92 = scmp.eq.s32.totalorder %s24, 0
    %p93 = por %p91, %p92
    %s95 = sadd.s32 %s94, 1
    %p98 = scmp.eq.s32.totalorder %s18, 1
    %p99 = scmp.ne.s32.totalorder %s94, %s96
    %p100 = scmp.eq.s32.totalorder %s18, 0
    %p101 = por %p99, %p100
    %p102 = scmp.ne.s32.totalorder %s94, %s96
    %p103 = scmp.eq.s32.totalorder %s23, 1
    %p104 = por %p102, %p103
    %p105 = scmp.ne.s32.totalorder %s96, %s97
    %p106 = scmp.eq.s32.totalorder %s23, 0
    %p107 = por %p105, %p106
    %p108 = scmp.ne.s32.totalorder %s96, %s97
    %p109 = scmp.eq.s32.totalorder %s24, 1
    %p110 = por %p108, %p109
    %p112 = scmp.ne.s32.totalorder %s97, %s111
    %p113 = scmp.eq.s32.totalorder %s24, 0
    %p114 = por %p112, %p113
    %s116 = sadd.s32 %s115, 1
    %p119 = scmp.eq.s32.totalorder %s18, 1
    %p120 = scmp.ne.s32.totalorder %s115, %s117
    %p121 = scmp.eq.s32.totalorder %s18, 0
    %p122 = por %p120, %p121
    %p123 = scmp.ne.s32.totalorder %s115, %s117
    %p124 = scmp.eq.s32.totalorder %s23, 1
    %p125 = por %p123, %p124
    %p126 = scmp.ne.s32.totalorder %s117, %s118
    %p127 = scmp.eq.s32.totalorder %s23, 0
    %p128 = por %p126, %p127
    %p129 = scmp.ne.s32.totalorder %s117, %s118
    %p130 = scmp.eq.s32.totalorder %s24, 1
    %p131 = por %p129, %p130
    %p133 = scmp.ne.s32.totalorder %s118, %s132
    %p134 = scmp.eq.s32.totalorder %s24, 0
    %p135 = por %p133, %p134
    %s137 = sadd.s32 %s136, 1
    %p140 = scmp.eq.s32.totalorder %s18, 1
    %p141 = scmp.ne.s32.totalorder %s136, %s138
    %p142 = scmp.eq.s32.totalorder %s18, 0
    %p143 = por %p141, %p142
    %p144 = scmp.ne.s32.totalorder %s136, %s138
    %p145 = scmp.eq.s32.totalorder %s23, 1
    %p146 = por %p144, %p145
    %p147 = scmp.ne.s32.totalorder %s138, %s139
    %p148 = scmp.eq.s32.totalorder %s23, 0
    %p149 = por %p147, %p148
    %p150 = scmp.ne.s32.totalorder %s138, %s139
    %p151 = scmp.eq.s32.totalorder %s24, 1
    %p152 = por %p150, %p151
    %p154 = scmp.ne.s32.totalorder %s139, %s153
    %p155 = scmp.eq.s32.totalorder %s24, 0
    %p156 = por %p154, %p155
    %s158 = sadd.s32 %s157, 1
    %p161 = scmp.eq.s32.totalorder %s18, 1
    %p162 = scmp.ne.s32.totalorder %s157, %s159
    %p163 = scmp.eq.s32.totalorder %s18, 0
    %p164 = por %p162, %p163
    %p165 = scmp.ne.s32.totalorder %s157, %s159
    %p166 = scmp.eq.s32.totalorder %s23, 1
    %p167 = por %p165, %p166
    %p168 = scmp.ne.s32.totalorder %s159, %s160
    %p169 = scmp.eq.s32.totalorder %s23, 0
    %p170 = por %p168, %p169
    %p171 = scmp.ne.s32.totalorder %s159, %s160
    %p172 = scmp.eq.s32.totalorder %s24, 1
    %p173 = por %p171, %p172
    %p175 = scmp.ne.s32.totalorder %s160, %s174
    %p176 = scmp.eq.s32.totalorder %s24, 0
    %p177 = por %p175, %p176
    %s179 = sadd.s32 %s178, 1
    %p182 = scmp.eq.s32.totalorder %s18, 1
    %p183 = scmp.ne.s32.totalorder %s178, %s180
    %p184 = scmp.eq.s32.totalorder %s18, 0
    %p185 = por %p183, %p184
    %p186 = scmp.ne.s32.totalorder %s178, %s180
    %p187 = scmp.eq.s32.totalorder %s23, 1
    %p188 = por %p186, %p187
    %p189 = scmp.ne.s32.totalorder %s180, %s181
    %p190 = scmp.eq.s32.totalorder %s23, 0
    %p191 = por %p189, %p190
    %p192 = scmp.ne.s32.totalorder %s180, %s181
    %p193 = scmp.eq.s32.totalorder %s24, 1
    %p194 = por %p192, %p193
    %p196 = scmp.ne.s32.totalorder %s181, %s195
    %p197 = scmp.eq.s32.totalorder %s24, 0
    %p198 = por %p196, %p197
    %s200 = sadd.s32 %s199, 1
    %p203 = scmp.eq.s32.totalorder %s18, 1
    %p204 = scmp.ne.s32.totalorder %s199, %s201
    %p205 = scmp.eq.s32.totalorder %s18, 0
    %p206 = por %p204, %p205
    %p207 = scmp.ne.s32.totalorder %s199, %s201
    %p208 = scmp.eq.s32.totalorder %s23, 1
    %p209 = por %p207, %p208
    %p210 = scmp.ne.s32.totalorder %s201, %s202
    %p211 = scmp.eq.s32.totalorder %s23, 0
    %p212 = por %p210, %p211
    %p213 = scmp.ne.s32.totalorder %s201, %s202
    %p214 = scmp.eq.s32.totalorder %s24, 1
    %p215 = por %p213, %p214
    %p217 = scmp.ne.s32.totalorder %s202, %s216
    %p218 = scmp.eq.s32.totalorder %s24, 0
    %p219 = por %p217, %p218
    %s221 = sadd.s32 %s220, 1
    %p224 = scmp.eq.s32.totalorder %s18, 1
    %p225 = scmp.ne.s32.totalorder %s220, %s222
    %p226 = scmp.eq.s32.totalorder %s18, 0
    %p227 = por %p225, %p226
    %p228 = scmp.ne.s32.totalorder %s220, %s222
    %p229 = scmp.eq.s32.totalorder %s23, 1
    %p230 = por %p228, %p229
    %p231 = scmp.ne.s32.totalorder %s222, %s223
    %p232 = scmp.eq.s32.totalorder %s23, 0
    %p233 = por %p231, %p232
    %p234 = scmp.ne.s32.totalorder %s222, %s223
    %p235 = scmp.eq.s32.totalorder %s24, 1
    %p236 = por %p234, %p235
    %p238 = scmp.ne.s32.totalorder %s223, %s237
    %p239 = scmp.eq.s32.totalorder %s24, 0
    %p240 = por %p238, %p239
    %s242 = sadd.s32 %s241, 1
    %p245 = scmp.eq.s32.totalorder %s18, 1
    %p246 = scmp.ne.s32.totalorder %s241, %s243
    %p247 = scmp.eq.s32.totalorder %s18, 0
    %p248 = por %p246, %p247
    %p249 = scmp.ne.s32.totalorder %s241, %s243
    %p250 = scmp.eq.s32.totalorder %s23, 1
    %p251 = por %p249, %p250
    %p252 = scmp.ne.s32.totalorder %s243, %s244
    %p253 = scmp.eq.s32.totalorder %s23, 0
    %p254 = por %p252, %p253
    %p255 = scmp.ne.s32.totalorder %s243, %s244
    %p256 = scmp.eq.s32.totalorder %s24, 1
    %p257 = por %p255, %p256
    %p259 = scmp.ne.s32.totalorder %s244, %s258
    %p260 = scmp.eq.s32.totalorder %s24, 0
    %p261 = por %p259, %p260
    %s263 = sadd.s32 %s262, 1
    %p266 = scmp.eq.s32.totalorder %s18, 1
    %p267 = scmp.ne.s32.totalorder %s262, %s264
    %p268 = scmp.eq.s32.totalorder %s18, 0
    %p269 = por %p267, %p268
    %p270 = scmp.ne.s32.totalorder %s262, %s264
    %p271 = scmp.eq.s32.totalorder %s23, 1
    %p272 = por %p270, %p271
    %p273 = scmp.ne.s32.totalorder %s264, %s265
    %p274 = scmp.eq.s32.totalorder %s23, 0
    %p275 = por %p273, %p274
    %p276 = scmp.ne.s32.totalorder %s264, %s265
    %p277 = scmp.eq.s32.totalorder %s24, 1
    %p278 = por %p276, %p277
    %p280 = scmp.ne.s32.totalorder %s265, %s279
    %p281 = scmp.eq.s32.totalorder %s24, 0
    %p282 = por %p280, %p281
    %s283 = ssub.s32 %s18, %s25
    %p284 = scmp.eq.s32.totalorder %s283, 0
    %s286 = sadd.s32 %s285, 1
    %s287 = scalar_select %p284, %s285, %s286
    %p290 = pneg %p284
    %p291 = scmp.eq.s32.totalorder %s18, 1
    %p292 = por %p290, %p291
    %p293 = scmp.ne.s32.totalorder %s285, %s288
    %p294 = scmp.eq.s32.totalorder %s18, 0
    %p295 = por %p293, %p294
    %p296 = scmp.ne.s32.totalorder %s285, %s288
    %p297 = scmp.eq.s32.totalorder %s23, 1
    %p298 = por %p296, %p297
    %p299 = scmp.ne.s32.totalorder %s288, %s289
    %p300 = scmp.eq.s32.totalorder %s23, 0
    %p301 = por %p299, %p300
    %p302 = scmp.ne.s32.totalorder %s288, %s289
    %p303 = scmp.eq.s32.totalorder %s24, 1
    %p304 = por %p302, %p303
    %p306 = scmp.ne.s32.totalorder %s289, %s305
    %p307 = scmp.eq.s32.totalorder %s24, 0
    %p308 = por %p306, %p307
    %p309 = scmp.le.s32.totalorder 1, %s18
    %p310 = scmp.lt.s32.totalorder %s18, 3
    %p311 = pnand %p309, %p310
    %p312 = pneg %p311
    // Predicated region
    $region9: #{scm_forward.1} parent=5 // pred_check
      _
    $region10: #{scm_forward.1} parent=5 // pred_check_branch
      %314 = sbr.rel (%p311) target = $region12
    $region11: #{scm_forward.1} parent=5 // pred_region
      %s315 = ssub.s32 %s18, 1
      // Predicated region
      $region13: #{scm_forward.1} parent=11 // pred_check
        %p316 = pneg %p65
      $region14: #{scm_forward.1} parent=11 // pred_check_branch
        %318 = sbr.rel (%p316) target = $region16
      $region15: #{scm_forward.1} parent=11 // pred_region
        _
      $region16: #{scm_forward.1} parent=11 // pred_fallthru
        _
      // Predicated region
      $region17: #{scm_forward.1} parent=11 // pred_check
        %p319 = pneg %p86
      $region18: #{scm_forward.1} parent=11 // pred_check_branch
        %321 = sbr.rel (%p319) target = $region20
      $region19: #{scm_forward.1} parent=11 // pred_region
        _
      $region20: #{scm_forward.1} parent=11 // pred_fallthru
        _
      // Predicated region
      $region21: #{scm_forward.1} parent=11 // pred_check
        %p322 = pneg %p107
      $region22: #{scm_forward.1} parent=11 // pred_check_branch
        %324 = sbr.rel (%p322) target = $region24
      $region23: #{scm_forward.1} parent=11 // pred_region
        _
      $region24: #{scm_forward.1} parent=11 // pred_fallthru
        _
      // Predicated region
      $region25: #{scm_forward.1} parent=11 // pred_check
        %p325 = pneg %p128
      $region26: #{scm_forward.1} parent=11 // pred_check_branch
        %327 = sbr.rel (%p325) target = $region28
      $region27: #{scm_forward.1} parent=11 // pred_region
        _
      $region28: #{scm_forward.1} parent=11 // pred_fallthru
        _
      // Predicated region
      $region29: #{scm_forward.1} parent=11 // pred_check
        %p328 = pneg %p149
      $region30: #{scm_forward.1} parent=11 // pred_check_branch
        %330 = sbr.rel (%p328) target = $region32
      $region31: #{scm_forward.1} parent=11 // pred_region
        _
      $region32: #{scm_forward.1} parent=11 // pred_fallthru
        _
      // Predicated region
      $region33: #{scm_forward.1} parent=11 // pred_check
        %p331 = pneg %p170
      $region34: #{scm_forward.1} parent=11 // pred_check_branch
        %333 = sbr.rel (%p331) target = $region36
      $region35: #{scm_forward.1} parent=11 // pred_region
        _
      $region36: #{scm_forward.1} parent=11 // pred_fallthru
        _
      // Predicated region
      $region37: #{scm_forward.1} parent=11 // pred_check
        %p334 = pneg %p191
      $region38: #{scm_forward.1} parent=11 // pred_check_branch
        %336 = sbr.rel (%p334) target = $region40
      $region39: #{scm_forward.1} parent=11 // pred_region
        _
      $region40: #{scm_forward.1} parent=11 // pred_fallthru
        _
      // Predicated region
      $region41: #{scm_forward.1} parent=11 // pred_check
        %p337 = pneg %p212
      $region42: #{scm_forward.1} parent=11 // pred_check_branch
        %339 = sbr.rel (%p337) target = $region44
      $region43: #{scm_forward.1} parent=11 // pred_region
        _
      $region44: #{scm_forward.1} parent=11 // pred_fallthru
        _
      // Predicated region
      $region45: #{scm_forward.1} parent=11 // pred_check
        %p340 = pneg %p233
      $region46: #{scm_forward.1} parent=11 // pred_check_branch
        %342 = sbr.rel (%p340) target = $region48
      $region47: #{scm_forward.1} parent=11 // pred_region
        _
      $region48: #{scm_forward.1} parent=11 // pred_fallthru
        _
      // Predicated region
      $region49: #{scm_forward.1} parent=11 // pred_check
        %p343 = pneg %p254
      $region50: #{scm_forward.1} parent=11 // pred_check_branch
        %345 = sbr.rel (%p343) target = $region52
      $region51: #{scm_forward.1} parent=11 // pred_region
        _
      $region52: #{scm_forward.1} parent=11 // pred_fallthru
        _
      // Predicated region
      $region53: #{scm_forward.1} parent=11 // pred_check
        %p346 = pneg %p275
      $region54: #{scm_forward.1} parent=11 // pred_check_branch
        %348 = sbr.rel (%p346) target = $region56
      $region55: #{scm_forward.1} parent=11 // pred_region
        _
      $region56: #{scm_forward.1} parent=11 // pred_fallthru
        _
    $region12: #{scm_forward.1} parent=5 // pred_fallthru
      _
    %p349 = scmp.lt.s32.totalorder %s18, 2
    // Predicated region
    $region57: #{scm_forward.1} parent=5 // pred_check
      %p350 = pneg %p349
    $region58: #{scm_forward.1} parent=5 // pred_check_branch
      %352 = sbr.rel (%p350) target = $region60
    $region59: #{scm_forward.1} parent=5 // pred_region
      // Predicated region
      $region61: #{scm_forward.1} parent=59 // pred_check
        %p353 = pneg %p38
      $region62: #{scm_forward.1} parent=59 // pred_check_branch
        %355 = sbr.rel (%p353) target = $region64
      $region63: #{scm_forward.1} parent=59 // pred_region
        %p356 = scmp.lt.s32.totalorder %s18, 1
        %s357 = scalar_select %p356, %s18, 1
        %s358 = smul.addr %s357, 32
        %s359 = smul.addr %s358, 8
        %s360 = scalar_lea.vmem %s0, %s359
      $region64: #{scm_forward.1} parent=59 // pred_fallthru
        _
    $region60: #{scm_forward.1} parent=5 // pred_fallthru
      _
    %p361 = scmp.le.s32.totalorder 1, %s18
    %p362 = scmp.lt.s32.totalorder %s18, 3
    %p363 = pnand %p361, %p362
    %p364 = pneg %p363
    // Predicated region
    $region65: #{scm_forward.1} parent=5 // pred_check
      _
    $region66: #{scm_forward.1} parent=5 // pred_check_branch
      %366 = sbr.rel (%p363) target = $region68
    $region67: #{scm_forward.1} parent=5 // pred_region
      %s367 = ssub.s32 %s18, 1
      %p368 = scmp.lt.s32.totalorder %s23, 1
      %s369 = scalar_select %p368, %s23, 1
      %s370 = smul.addr %s369, 32
      %s371 = smul.addr %s370, 8
      %s372 = scalar_lea.vmem %s0, %s371
      %p373 = pneg %p44
      %p374 = pneg %p41
      %p375 = pneg %p65
      %p376 = pneg %p62
      %p377 = pneg %p86
      %p378 = pneg %p83
      %p379 = pneg %p107
      %p380 = pneg %p104
      %p381 = pneg %p128
      %p382 = pneg %p125
      %p383 = pneg %p149
      %p384 = pneg %p146
      %p385 = pneg %p170
      %p386 = pneg %p167
      %p387 = pneg %p191
      %p388 = pneg %p188
      %p389 = pneg %p212
      %p390 = pneg %p209
      %p391 = pneg %p233
      %p392 = pneg %p230
      %p393 = pneg %p254
      %p394 = pneg %p251
      %p395 = pneg %p275
      %p396 = pneg %p272
      %p397 = pneg %p301
      %p398 = pneg %p298
      %p399 = scmp.lt.s32.totalorder %s23, 1
      %s400 = scalar_select %p399, %s23, 1
      %s401 = smul.addr %s400, 8
      %s402 = smul.addr %s401, 8
      %s403 = scalar_lea.vmem %s12, %s402
      %p404 = scmp.lt.s32.totalorder %s23, 1
      %s405 = scalar_select %p404, %s23, 1
      %s406 = smul.addr %s405, 32
      %s407 = smul.addr %s406, 8
      %s408 = scalar_lea.vmem %s0, %s407
      %p409 = scmp.lt.s32.totalorder %s23, 1
      %s410 = scalar_select %p409, %s23, 1
      %s411 = smul.addr %s410, 8
      %s412 = smul.addr %s411, 8
      %s413 = scalar_lea.vmem %s12, %s412
      %v415 = vld [vmem:[%s408] sm:$0xff]
      %v416 = vld [vmem:[%s408 + $0x8] sm:$0xff]
      %v417 = vld [vmem:[%s408 + $0x10] sm:$0xff]
      %v418 = vld [vmem:[%s408 + $0x18] sm:$0xff]
      %v419 = vld [vmem:[%s408 + $0x20] sm:$0xff]
      %v420 = vld [vmem:[%s408 + $0x28] sm:$0xff]
      %v421 = vld [vmem:[%s408 + $0x30] sm:$0xff]
      %v422 = vld [vmem:[%s408 + $0x38] sm:$0xff]
      %v423 = vld [vmem:[%s408 + $0x40] sm:$0xff]
      %v424 = vld [vmem:[%s408 + $0x48] sm:$0xff]
      %v425 = vld [vmem:[%s408 + $0x50] sm:$0xff]
      %v426 = vld [vmem:[%s408 + $0x58] sm:$0xff]
      %v427 = vld [vmem:[%s408 + $0x60] sm:$0xff]
      %v428 = vld [vmem:[%s408 + $0x68] sm:$0xff]
      %v429 = vld [vmem:[%s408 + $0x70] sm:$0xff]
      %v430 = vld [vmem:[%s408 + $0x78] sm:$0xff]
      %v431 = vld [vmem:[%s408 + $0x80] sm:$0xff]
      %v432 = vld [vmem:[%s408 + $0x88] sm:$0xff]
      %v433 = vld [vmem:[%s408 + $0x90] sm:$0xff]
      %v434 = vld [vmem:[%s408 + $0x98] sm:$0xff]
      %v435 = vld [vmem:[%s408 + $0xa0] sm:$0xff]
      %v436 = vld [vmem:[%s408 + $0xa8] sm:$0xff]
      %v437 = vld [vmem:[%s408 + $0xb0] sm:$0xff]
      %v438 = vld [vmem:[%s408 + $0xb8] sm:$0xff]
      %v439 = vld [vmem:[%s408 + $0xc0] sm:$0xff]
      %v440 = vld [vmem:[%s408 + $0xc8] sm:$0xff]
      %v441 = vld [vmem:[%s408 + $0xd0] sm:$0xff]
      %v442 = vld [vmem:[%s408 + $0xd8] sm:$0xff]
      %v443 = vld [vmem:[%s408 + $0xe0] sm:$0xff]
      %v444 = vld [vmem:[%s408 + $0xe8] sm:$0xff]
      %v445 = vld [vmem:[%s408 + $0xf0] sm:$0xff]
      %v446 = vld [vmem:[%s408 + $0xf8] sm:$0xff]
      %vm447 = vcmask 23552
      %448 = vst.msk [vmem:[#allocation2] sm:$0xff] %vm447, 0.0
      %449 = vst.msk [vmem:[#allocation2 + $0x8] sm:$0xff] %vm447, 0.0
      %vm450 = vcmask 17408
      %451 = vst.msk [vmem:[#allocation2 + $0x10] sm:$0x3] %vm450, 0.0
      %452 = vst.msk [vmem:[#allocation2 + $0x18] sm:$0xff] %vm447, 0.0
      %453 = vst.msk [vmem:[#allocation2 + $0x20] sm:$0xff] %vm447, 0.0
      %454 = vst.msk [vmem:[#allocation2 + $0x28] sm:$0x3] %vm450, 0.0
      %455 = vst.msk [vmem:[#allocation2 + $0x30] sm:$0xff] %vm447, 0.0
      %456 = vst.msk [vmem:[#allocation2 + $0x38] sm:$0xff] %vm447, 0.0
      %457 = vst.msk [vmem:[#allocation2 + $0x40] sm:$0x3] %vm450, 0.0
      %458 = vst.msk [vmem:[#allocation2 + $0x48] sm:$0xff] %vm447, 0.0
      %459 = vst.msk [vmem:[#allocation2 + $0x50] sm:$0xff] %vm447, 0.0
      %460 = vst.msk [vmem:[#allocation2 + $0x58] sm:$0x3] %vm450, 0.0
      %461 = vst.msk [vmem:[#allocation2 + $0x60] sm:$0xff] %vm447, 0.0
      %462 = vst.msk [vmem:[#allocation2 + $0x68] sm:$0xff] %vm447, 0.0
      %463 = vst.msk [vmem:[#allocation2 + $0x70] sm:$0x3] %vm450, 0.0
      %464 = vst.msk [vmem:[#allocation2 + $0x78] sm:$0xff] %vm447, 0.0
      %465 = vst.msk [vmem:[#allocation2 + $0x80] sm:$0xff] %vm447, 0.0
      %466 = vst.msk [vmem:[#allocation2 + $0x88] sm:$0x3] %vm450, 0.0
      %467 = vst.msk [vmem:[#allocation2 + $0x90] sm:$0xff] %vm447, 0.0
      %468 = vst.msk [vmem:[#allocation2 + $0x98] sm:$0xff] %vm447, 0.0
      %469 = vst.msk [vmem:[#allocation2 + $0xa0] sm:$0x3] %vm450, 0.0
      %470 = vst.msk [vmem:[#allocation2 + $0xa8] sm:$0xff] %vm447, 0.0
      %471 = vst.msk [vmem:[#allocation2 + $0xb0] sm:$0xff] %vm447, 0.0
      %472 = vst.msk [vmem:[#allocation2 + $0xb8] sm:$0x3] %vm450, 0.0
      %473 = vst.msk [vmem:[#allocation2 + $0xc0] sm:$0xff] %vm447, 0.0
      %474 = vst.msk [vmem:[#allocation2 + $0xc8] sm:$0xff] %vm447, 0.0
      %475 = vst.msk [vmem:[#allocation2 + $0xd0] sm:$0x3] %vm450, 0.0
      %476 = vst.msk [vmem:[#allocation2 + $0xd8] sm:$0xff] %vm447, 0.0
      %477 = vst.msk [vmem:[#allocation2 + $0xe0] sm:$0xff] %vm447, 0.0
      %478 = vst.msk [vmem:[#allocation2 + $0xe8] sm:$0x3] %vm450, 0.0
      %479 = vst.msk [vmem:[#allocation2 + $0xf0] sm:$0xff] %vm447, 0.0
      %480 = vst.msk [vmem:[#allocation2 + $0xf8] sm:$0xff] %vm447, 0.0
      %481 = vst.msk [vmem:[#allocation2 + $0x100] sm:$0x3] %vm450, 0.0
      %482 = vst.msk [vmem:[#allocation2 + $0x108] sm:$0xff] %vm447, 0.0
      %483 = vst.msk [vmem:[#allocation2 + $0x110] sm:$0xff] %vm447, 0.0
      %484 = vst.msk [vmem:[#allocation2 + $0x118] sm:$0x3] %vm450, 0.0
      %485 = vst.msk [vmem:[#allocation2 + $0x120] sm:$0xff] %vm447, 0.0
      %486 = vst.msk [vmem:[#allocation2 + $0x128] sm:$0xff] %vm447, 0.0
      %487 = vst.msk [vmem:[#allocation2 + $0x130] sm:$0x3] %vm450, 0.0
      %488 = vst.msk [vmem:[#allocation2 + $0x138] sm:$0xff] %vm447, 0.0
      %489 = vst.msk [vmem:[#allocation2 + $0x140] sm:$0xff] %vm447, 0.0
      %490 = vst.msk [vmem:[#allocation2 + $0x148] sm:$0x3] %vm450, 0.0
      %491 = vst.msk [vmem:[#allocation2 + $0x150] sm:$0xff] %vm447, 0.0
      %492 = vst.msk [vmem:[#allocation2 + $0x158] sm:$0xff] %vm447, 0.0
      %493 = vst.msk [vmem:[#allocation2 + $0x160] sm:$0x3] %vm450, 0.0
      %494 = vst.msk [vmem:[#allocation2 + $0x168] sm:$0xff] %vm447, 0.0
      %495 = vst.msk [vmem:[#allocation2 + $0x170] sm:$0xff] %vm447, 0.0
      %496 = vst.msk [vmem:[#allocation2 + $0x178] sm:$0x3] %vm450, 0.0
      %497 = vst.msk [vmem:[#allocation2 + $0x180] sm:$0xff] %vm447, 0.0
      %498 = vst.msk [vmem:[#allocation2 + $0x188] sm:$0xff] %vm447, 0.0
      %499 = vst.msk [vmem:[#allocation2 + $0x190] sm:$0x3] %vm450, 0.0
      %500 = vst.msk [vmem:[#allocation2 + $0x198] sm:$0xff] %vm447, 0.0
      %501 = vst.msk [vmem:[#allocation2 + $0x1a0] sm:$0xff] %vm447, 0.0
      %502 = vst.msk [vmem:[#allocation2 + $0x1a8] sm:$0x3] %vm450, 0.0
      %s503 = scalar_lea.vmem [#allocation2], 24
      %504 = vst.msk [vmem:[%s503 + $0x1] sm:$0xff] %vm447, %v415
      %505 = vst.msk [vmem:[%s503 + $0x9] sm:$0xff] %vm447, %v416
      %506 = vst.msk [vmem:[%s503 + $0x19] sm:$0xff] %vm447, %v417
      %507 = vst.msk [vmem:[%s503 + $0x21] sm:$0xff] %vm447, %v418
      %508 = vst.msk [vmem:[%s503 + $0x31] sm:$0xff] %vm447, %v419
      %509 = vst.msk [vmem:[%s503 + $0x39] sm:$0xff] %vm447, %v420
      %510 = vst.msk [vmem:[%s503 + $0x49] sm:$0xff] %vm447, %v421
      %511 = vst.msk [vmem:[%s503 + $0x51] sm:$0xff] %vm447, %v422
      %512 = vst.msk [vmem:[%s503 + $0x61] sm:$0xff] %vm447, %v423
      %513 = vst.msk [vmem:[%s503 + $0x69] sm:$0xff] %vm447, %v424
      %514 = vst.msk [vmem:[%s503 + $0x79] sm:$0xff] %vm447, %v425
      %515 = vst.msk [vmem:[%s503 + $0x81] sm:$0xff] %vm447, %v426
      %516 = vst.msk [vmem:[%s503 + $0x91] sm:$0xff] %vm447, %v427
      %517 = vst.msk [vmem:[%s503 + $0x99] sm:$0xff] %vm447, %v428
      %518 = vst.msk [vmem:[%s503 + $0xa9] sm:$0xff] %vm447, %v429
      %519 = vst.msk [vmem:[%s503 + $0xb1] sm:$0xff] %vm447, %v430
      %520 = vst.msk [vmem:[%s503 + $0xc1] sm:$0xff] %vm447, %v431
      %521 = vst.msk [vmem:[%s503 + $0xc9] sm:$0xff] %vm447, %v432
      %522 = vst.msk [vmem:[%s503 + $0xd9] sm:$0xff] %vm447, %v433
      %523 = vst.msk [vmem:[%s503 + $0xe1] sm:$0xff] %vm447, %v434
      %524 = vst.msk [vmem:[%s503 + $0xf1] sm:$0xff] %vm447, %v435
      %525 = vst.msk [vmem:[%s503 + $0xf9] sm:$0xff] %vm447, %v436
      %526 = vst.msk [vmem:[%s503 + $0x109] sm:$0xff] %vm447, %v437
      %527 = vst.msk [vmem:[%s503 + $0x111] sm:$0xff] %vm447, %v438
      %528 = vst.msk [vmem:[%s503 + $0x121] sm:$0xff] %vm447, %v439
      %529 = vst.msk [vmem:[%s503 + $0x129] sm:$0xff] %vm447, %v440
      %530 = vst.msk [vmem:[%s503 + $0x139] sm:$0xff] %vm447, %v441
      %531 = vst.msk [vmem:[%s503 + $0x141] sm:$0xff] %vm447, %v442
      %532 = vst.msk [vmem:[%s503 + $0x151] sm:$0xff] %vm447, %v443
      %533 = vst.msk [vmem:[%s503 + $0x159] sm:$0xff] %vm447, %v444
      %534 = vst.msk [vmem:[%s503 + $0x169] sm:$0xff] %vm447, %v445
      %535 = vst.msk [vmem:[%s503 + $0x171] sm:$0xff] %vm447, %v446
      %v536 = vld [vmem:[#allocation2] sm:$0xff]
      %v537 = vld [vmem:[#allocation2 + $0x8] sm:$0xff]
      %v538 = vld [vmem:[#allocation2 + $0x18] sm:$0xff]
      %v539 = vld [vmem:[#allocation2 + $0x20] sm:$0xff]
      %v540 = vld [vmem:[#allocation2 + $0x30] sm:$0xff]
      %v541 = vld [vmem:[#allocation2 + $0x38] sm:$0xff]
      %v542 = vld [vmem:[#allocation2 + $0x48] sm:$0xff]
      %v543 = vld [vmem:[#allocation2 + $0x50] sm:$0xff]
      %v544 = vld [vmem:[#allocation2 + $0x60] sm:$0xff]
      %v545 = vld [vmem:[#allocation2 + $0x68] sm:$0xff]
      %v546 = vld [vmem:[#allocation2 + $0x78] sm:$0xff]
      %v547 = vld [vmem:[#allocation2 + $0x80] sm:$0xff]
      %v548 = vld [vmem:[#allocation2 + $0x90] sm:$0xff]
      %v549 = vld [vmem:[#allocation2 + $0x98] sm:$0xff]
      %v550 = vld [vmem:[#allocation2 + $0xa8] sm:$0xff]
      %v551 = vld [vmem:[#allocation2 + $0xb0] sm:$0xff]
      %v552 = vld [vmem:[#allocation2 + $0xc0] sm:$0xff]
      %v553 = vld [vmem:[#allocation2 + $0xc8] sm:$0xff]
      %v554 = vld [vmem:[#allocation2 + $0xd8] sm:$0xff]
      %v555 = vld [vmem:[#allocation2 + $0xe0] sm:$0xff]
      %v556 = vld [vmem:[#allocation2 + $0xf0] sm:$0xff]
      %v557 = vld [vmem:[#allocation2 + $0xf8] sm:$0xff]
      %v558 = vld [vmem:[#allocation2 + $0x108] sm:$0xff]
      %v559 = vld [vmem:[#allocation2 + $0x110] sm:$0xff]
      %v560 = vld [vmem:[#allocation2 + $0x120] sm:$0xff]
      %v561 = vld [vmem:[#allocation2 + $0x128] sm:$0xff]
      %v562 = vld [vmem:[#allocation2 + $0x138] sm:$0xff]
      %v563 = vld [vmem:[#allocation2 + $0x140] sm:$0xff]
      %v564 = vld [vmem:[#allocation2 + $0x150] sm:$0xff]
      %v565 = vld [vmem:[#allocation2 + $0x158] sm:$0xff]
      %v566 = vld [vmem:[#allocation2 + $0x168] sm:$0xff]
      %v567 = vld [vmem:[#allocation2 + $0x170] sm:$0xff]
      %v568 = vpack.c.bf16 %v537, %v536
      %v569 = vpack.c.bf16 %v539, %v538
      %v570 = vpack.c.bf16 %v541, %v540
      %v571 = vpack.c.bf16 %v543, %v542
      %v572 = vpack.c.bf16 %v545, %v544
      %v573 = vpack.c.bf16 %v547, %v546
      %v574 = vpack.c.bf16 %v549, %v548
      %v575 = vpack.c.bf16 %v551, %v550
      %v576 = vpack.c.bf16 %v553, %v552
      %v577 = vpack.c.bf16 %v555, %v554
      %v578 = vpack.c.bf16 %v557, %v556
      %v579 = vpack.c.bf16 %v559, %v558
      %v580 = vpack.c.bf16 %v561, %v560
      %v581 = vpack.c.bf16 %v563, %v562
      %v582 = vpack.c.bf16 %v565, %v564
      %v583 = vpack.c.bf16 %v567, %v566
      %v584 = vld [vmem:[%s1] sm:$0x3]
      %v585 = vld [vmem:[#allocation2 + $0x1] sm:$0xff]
      %v586 = vld [vmem:[#allocation2 + $0x9] sm:$0xff]
      %v587 = vld [vmem:[#allocation2 + $0x19] sm:$0xff]
      %v588 = vld [vmem:[#allocation2 + $0x21] sm:$0xff]
      %v589 = vld [vmem:[#allocation2 + $0x31] sm:$0xff]
      %v590 = vld [vmem:[#allocation2 + $0x39] sm:$0xff]
      %v591 = vld [vmem:[#allocation2 + $0x49] sm:$0xff]
      %v592 = vld [vmem:[#allocation2 + $0x51] sm:$0xff]
      %v593 = vld [vmem:[#allocation2 + $0x61] sm:$0xff]
      %v594 = vld [vmem:[#allocation2 + $0x69] sm:$0xff]
      %v595 = vld [vmem:[#allocation2 + $0x79] sm:$0xff]
      %v596 = vld [vmem:[#allocation2 + $0x81] sm:$0xff]
      %v597 = vld [vmem:[#allocation2 + $0x91] sm:$0xff]
      %v598 = vld [vmem:[#allocation2 + $0x99] sm:$0xff]
      %v599 = vld [vmem:[#allocation2 + $0xa9] sm:$0xff]
      %v600 = vld [vmem:[#allocation2 + $0xb1] sm:$0xff]
      %v601 = vld [vmem:[#allocation2 + $0xc1] sm:$0xff]
      %v602 = vld [vmem:[#allocation2 + $0xc9] sm:$0xff]
      %v603 = vld [vmem:[#allocation2 + $0xd9] sm:$0xff]
      %v604 = vld [vmem:[#allocation2 + $0xe1] sm:$0xff]
      %v605 = vld [vmem:[#allocation2 + $0xf1] sm:$0xff]
      %v606 = vld [vmem:[#allocation2 + $0xf9] sm:$0xff]
      %v607 = vld [vmem:[#allocation2 + $0x109] sm:$0xff]
      %v608 = vld [vmem:[#allocation2 + $0x111] sm:$0xff]
      %v609 = vld [vmem:[#allocation2 + $0x121] sm:$0xff]
      %v610 = vld [vmem:[#allocation2 + $0x129] sm:$0xff]
      %v611 = vld [vmem:[#allocation2 + $0x139] sm:$0xff]
      %v612 = vld [vmem:[#allocation2 + $0x141] sm:$0xff]
      %v613 = vld [vmem:[#allocation2 + $0x151] sm:$0xff]
      %v614 = vld [vmem:[#allocation2 + $0x159] sm:$0xff]
      %v615 = vld [vmem:[#allocation2 + $0x169] sm:$0xff]
      %v616 = vld [vmem:[#allocation2 + $0x171] sm:$0xff]
      %v617 = vpack.c.bf16 %v586, %v585
      %v618 = vpack.c.bf16 %v588, %v587
      %v619 = vpack.c.bf16 %v590, %v589
      %v620 = vpack.c.bf16 %v592, %v591
      %v621 = vpack.c.bf16 %v594, %v593
      %v622 = vpack.c.bf16 %v596, %v595
      %v623 = vpack.c.bf16 %v598, %v597
      %v624 = vpack.c.bf16 %v600, %v599
      %v625 = vpack.c.bf16 %v602, %v601
      %v626 = vpack.c.bf16 %v604, %v603
      %v627 = vpack.c.bf16 %v606, %v605
      %v628 = vpack.c.bf16 %v608, %v607
      %v629 = vpack.c.bf16 %v610, %v609
      %v630 = vpack.c.bf16 %v612, %v611
      %v631 = vpack.c.bf16 %v614, %v613
      %v632 = vpack.c.bf16 %v616, %v615
      %s633 = scalar_lea.vmem %s1, 2
      %v634 = vld [vmem:[%s633] sm:$0x3]
      %v636 = vsel %vm447, %v617, 0
      %v639 = vsel %vm447, %v618, 0
      %v642 = vsel %vm447, %v619, 0
      %v645 = vsel %vm447, %v620, 0
      %v648 = vsel %vm447, %v621, 0
      %v651 = vsel %vm447, %v622, 0
      %v654 = vsel %vm447, %v623, 0
      %v657 = vsel %vm447, %v624, 0
      %v660 = vsel %vm447, %v625, 0
      %v663 = vsel %vm447, %v626, 0
      %v666 = vsel %vm447, %v627, 0
      %v669 = vsel %vm447, %v628, 0
      %v672 = vsel %vm447, %v629, 0
      %v675 = vsel %vm447, %v630, 0
      %v678 = vsel %vm447, %v631, 0
      %v681 = vsel %vm447, %v632, 0
      %vm683 = vcmask 1040384
      %vm684 = vcmask 1041408
      %v685 = vsel %vm683, 4294967295, 65535
      %v686 = vsel %vm684, %v685, 0
      %v688 = vand.u32 %v634, %v686
      %690 = vmatprep.subr.bf16.mxu0 0
      %691 = vmatpush1.bf16.msra.mxu0 %v688
      %692 = vmatprep.subr.bf16.mxu0 0
      %693 = vmatpush1.bf16.msra.mxu0 0
      %694 = vmatprep.subr.bf16.mxu0 0
      %695 = vmatpush1.bf16.msra.mxu0 0
      %696 = vmatprep.subr.bf16.mxu0 0
      %697 = vmatpush1.bf16.msra.mxu0 0
      %698 = vmatprep.subr.bf16.mxu0 0
      %699 = vmatpush1.bf16.msra.mxu0 0
      %700 = vmatprep.subr.bf16.mxu0 0
      %701 = vmatpush1.bf16.msra.mxu0 0
      %702 = vmatprep.subr.bf16.mxu0 0
      %703 = vmatpush1.bf16.msra.mxu0 0
      %704 = vmatprep.subr.bf16.mxu0 0
      %705 = vmatpush1.bf16.msra.mxu0 0
      %706 = vmatprep.subr.bf16.mxu0 0
      %707 = vmatpush1.bf16.msra.mxu0 0
      %708 = vmatprep.subr.bf16.mxu0 0
      %709 = vmatpush1.bf16.msra.mxu0 0
      %710 = vmatprep.subr.bf16.mxu0 0
      %711 = vmatpush1.bf16.msra.mxu0 0
      %712 = vmatprep.subr.bf16.mxu0 0
      %713 = vmatpush1.bf16.msra.mxu0 0
      %714 = vmatprep.subr.bf16.mxu0 0
      %715 = vmatpush1.bf16.msra.mxu0 0
      %716 = vmatprep.subr.bf16.mxu0 0
      %717 = vmatpush1.bf16.msra.mxu0 0
      %718 = vmatprep.subr.bf16.mxu0 0
      %719 = vmatpush1.bf16.msra.mxu0 0
      %720 = vmatprep.subr.bf16.mxu0 0
      %721 = vmatpush1.bf16.msra.mxu0 0
      %722 = vmatprep.mubr.bf16.mxu0 0
      %723 = vmatmul.mubr.bf16.gmra.mrb[0].mxu0 %v636
      %v724 = vpop.f32.mrb[0].mxu0
      %v725 = vadd.f32 0.0, %v724
      %v726 = vpop.f32.mrb[0].mxu0
      %v727 = vpop.f32.mrb[0].mxu0
      %v728 = vadd.f32 0.0, %v727
      %v729 = vpop.f32.mrb[0].mxu0
      %730 = vmatprep.mubr.bf16.mxu0 0
      %731 = vmatmul.mubr.bf16.gmra.mrb[0].mxu0 %v639
      %v732 = vpop.f32.mrb[0].mxu0
      %v733 = vadd.f32 0.0, %v732
      %v734 = vpop.f32.mrb[0].mxu0
      %v735 = vpop.f32.mrb[0].mxu0
      %v736 = vadd.f32 0.0, %v735
      %v737 = vpop.f32.mrb[0].mxu0
      %738 = vmatprep.mubr.bf16.mxu0 0
      %739 = vmatmul.mubr.bf16.gmra.mrb[0].mxu0 %v642
      %v740 = vpop.f32.mrb[0].mxu0
      %v741 = vadd.f32 0.0, %v740
      %v742 = vpop.f32.mrb[0].mxu0
      %v743 = vpop.f32.mrb[0].mxu0
      %v744 = vadd.f32 0.0, %v743
      %v745 = vpop.f32.mrb[0].mxu0
      %746 = vmatprep.mubr.bf16.mxu0 0
      %747 = vmatmul.mubr.bf16.gmra.mrb[0].mxu0 %v645
      %v748 = vpop.f32.mrb[0].mxu0
      %v749 = vadd.f32 0.0, %v748
      %v750 = vpop.f32.mrb[0].mxu0
      %v751 = vpop.f32.mrb[0].mxu0
      %v752 = vadd.f32 0.0, %v751
      %v753 = vpop.f32.mrb[0].mxu0
      %754 = vmatprep.mubr.bf16.mxu0 0
      %755 = vmatmul.mubr.bf16.gmra.mrb[0].mxu0 %v648
      %v756 = vpop.f32.mrb[0].mxu0
      %v757 = vadd.f32 0.0, %v756
      %v758 = vpop.f32.mrb[0].mxu0
      %v759 = vpop.f32.mrb[0].mxu0
      %v760 = vadd.f32 0.0, %v759
      %v761 = vpop.f32.mrb[0].mxu0
      %762 = vmatprep.mubr.bf16.mxu0 0
      %763 = vmatmul.mubr.bf16.gmra.mrb[0].mxu0 %v651
      %v764 = vpop.f32.mrb[0].mxu0
      %v765 = vadd.f32 0.0, %v764
      %v766 = vpop.f32.mrb[0].mxu0
      %v767 = vpop.f32.mrb[0].mxu0
      %v768 = vadd.f32 0.0, %v767
      %v769 = vpop.f32.mrb[0].mxu0
      %770 = vmatprep.mubr.bf16.mxu0 0
      %771 = vmatmul.mubr.bf16.gmra.mrb[0].mxu0 %v654
      %v772 = vpop.f32.mrb[0].mxu0
      %v773 = vadd.f32 0.0, %v772
      %v774 = vpop.f32.mrb[0].mxu0
      %v775 = vpop.f32.mrb[0].mxu0
      %v776 = vadd.f32 0.0, %v775
      %v777 = vpop.f32.mrb[0].mxu0
      %778 = vmatprep.mubr.bf16.mxu0 0
      %779 = vmatmul.mubr.bf16.gmra.mrb[0].mxu0 %v657
      %v780 = vpop.f32.mrb[0].mxu0
      %v781 = vadd.f32 0.0, %v780
      %v782 = vpop.f32.mrb[0].mxu0
      %v783 = vpop.f32.mrb[0].mxu0
      %v784 = vadd.f32 0.0, %v783
      %v785 = vpop.f32.mrb[0].mxu0
      %786 = vmatprep.mubr.bf16.mxu0 0
      %787 = vmatmul.mubr.bf16.gmra.mrb[0].mxu0 %v660
      %v788 = vpop.f32.mrb[0].mxu0
      %v789 = vadd.f32 0.0, %v788
      %v790 = vpop.f32.mrb[0].mxu0
      %v791 = vpop.f32.mrb[0].mxu0
      %v792 = vadd.f32 0.0, %v791
      %v793 = vpop.f32.mrb[0].mxu0
      %794 = vmatprep.mubr.bf16.mxu0 0
      %795 = vmatmul.mubr.bf16.gmra.mrb[0].mxu0 %v663
      %v796 = vpop.f32.mrb[0].mxu0
      %v797 = vadd.f32 0.0, %v796
      %v798 = vpop.f32.mrb[0].mxu0
      %v799 = vpop.f32.mrb[0].mxu0
      %v800 = vadd.f32 0.0, %v799
      %v801 = vpop.f32.mrb[0].mxu0
      %802 = vmatprep.mubr.bf16.mxu0 0
      %803 = vmatmul.mubr.bf16.gmra.mrb[0].mxu0 %v666
      %v804 = vpop.f32.mrb[0].mxu0
      %v805 = vadd.f32 0.0, %v804
      %v806 = vpop.f32.mrb[0].mxu0
      %v807 = vpop.f32.mrb[0].mxu0
      %v808 = vadd.f32 0.0, %v807
      %v809 = vpop.f32.mrb[0].mxu0
      %810 = vmatprep.mubr.bf16.mxu0 0
      %811 = vmatmul.mubr.bf16.gmra.mrb[0].mxu0 %v669
      %v812 = vpop.f32.mrb[0].mxu0
      %v813 = vadd.f32 0.0, %v812
      %v814 = vpop.f32.mrb[0].mxu0
      %v815 = vpop.f32.mrb[0].mxu0
      %v816 = vadd.f32 0.0, %v815
      %v817 = vpop.f32.mrb[0].mxu0
      %818 = vmatprep.mubr.bf16.mxu0 0
      %819 = vmatmul.mubr.bf16.gmra.mrb[0].mxu0 %v672
      %v820 = vpop.f32.mrb[0].mxu0
      %v821 = vadd.f32 0.0, %v820
      %v822 = vpop.f32.mrb[0].mxu0
      %v823 = vpop.f32.mrb[0].mxu0
      %v824 = vadd.f32 0.0, %v823
      %v825 = vpop.f32.mrb[0].mxu0
      %826 = vmatprep.mubr.bf16.mxu0 0
      %827 = vmatmul.mubr.bf16.gmra.mrb[0].mxu0 %v675
      %v828 = vpop.f32.mrb[0].mxu0
      %v829 = vadd.f32 0.0, %v828
      %v830 = vpop.f32.mrb[0].mxu0
      %v831 = vpop.f32.mrb[0].mxu0
      %v832 = vadd.f32 0.0, %v831
      %v833 = vpop.f32.mrb[0].mxu0
      %834 = vmatprep.mubr.bf16.mxu0 0
      %835 = vmatmul.mubr.bf16.gmra.mrb[0].mxu0 %v678
      %v836 = vpop.f32.mrb[0].mxu0
      %v837 = vadd.f32 0.0, %v836
      %v838 = vpop.f32.mrb[0].mxu0
      %v839 = vpop.f32.mrb[0].mxu0
      %v840 = vadd.f32 0.0, %v839
      %v841 = vpop.f32.mrb[0].mxu0
      %842 = vmatprep.mubr.bf16.mxu0 0
      %843 = vmatmul.mubr.bf16.gmra.mrb[0].mxu0 %v681
      %v844 = vpop.f32.mrb[0].mxu0
      %v845 = vadd.f32 0.0, %v844
      %v846 = vpop.f32.mrb[0].mxu0
      %v847 = vpop.f32.mrb[0].mxu0
      %v848 = vadd.f32 0.0, %v847
      %v849 = vpop.f32.mrb[0].mxu0
      %850 = vdwg.mxu0
      %v852 = vsel %vm447, %v568, 0
      %v855 = vsel %vm447, %v569, 0
      %v858 = vsel %vm447, %v570, 0
      %v861 = vsel %vm447, %v571, 0
      %v864 = vsel %vm447, %v572, 0
      %v867 = vsel %vm447, %v573, 0
      %v870 = vsel %vm447, %v574, 0
      %v873 = vsel %vm447, %v575, 0
      %v876 = vsel %vm447, %v576, 0
      %v879 = vsel %vm447, %v577, 0
      %v882 = vsel %vm447, %v578, 0
      %v885 = vsel %vm447, %v579, 0
      %v888 = vsel %vm447, %v580, 0
      %v891 = vsel %vm447, %v581, 0
      %v894 = vsel %vm447, %v582, 0
      %v897 = vsel %vm447, %v583, 0
      %v900 = vand.u32 %v584, %v686
      %902 = vmatprep.subr.bf16.mxu0 0
      %903 = vmatpush1.bf16.msra.mxu0 %v900
      %904 = vmatprep.subr.bf16.mxu0 0
      %905 = vmatpush1.bf16.msra.mxu0 0
      %906 = vmatprep.subr.bf16.mxu0 0
      %907 = vmatpush1.bf16.msra.mxu0 0
      %908 = vmatprep.subr.bf16.mxu0 0
      %909 = vmatpush1.bf16.msra.mxu0 0
      %910 = vmatprep.subr.bf16.mxu0 0
      %911 = vmatpush1.bf16.msra.mxu0 0
      %912 = vmatprep.subr.bf16.mxu0 0
      %913 = vmatpush1.bf16.msra.mxu0 0
      %914 = vmatprep.subr.bf16.mxu0 0
      %915 = vmatpush1.bf16.msra.mxu0 0
      %916 = vmatprep.subr.bf16.mxu0 0
      %917 = vmatpush1.bf16.msra.mxu0 0
      %918 = vmatprep.subr.bf16.mxu0 0
      %919 = vmatpush1.bf16.msra.mxu0 0
      %920 = vmatprep.subr.bf16.mxu0 0
      %921 = vmatpush1.bf16.msra.mxu0 0
      %922 = vmatprep.subr.bf16.mxu0 0
      %923 = vmatpush1.bf16.msra.mxu0 0
      %924 = vmatprep.subr.bf16.mxu0 0
      %925 = vmatpush1.bf16.msra.mxu0 0
      %926 = vmatprep.subr.bf16.mxu0 0
      %927 = vmatpush1.bf16.msra.mxu0 0
      %928 = vmatprep.subr.bf16.mxu0 0
      %929 = vmatpush1.bf16.msra.mxu0 0
      %930 = vmatprep.subr.bf16.mxu0 0
      %931 = vmatpush1.bf16.msra.mxu0 0
      %932 = vmatprep.subr.bf16.mxu0 0
      %933 = vmatpush1.bf16.msra.mxu0 0
      %934 = vmatprep.mubr.bf16.mxu0 0
      %935 = vmatmul.mubr.bf16.gmra.mrb[0].mxu0 %v852
      %v936 = vpop.f32.mrb[0].mxu0
      %v937 = vadd.f32 %v725, %v936
      %v938 = vpop.f32.mrb[0].mxu0
      %v939 = vpop.f32.mrb[0].mxu0
      %v940 = vadd.f32 %v728, %v939
      %v941 = vpop.f32.mrb[0].mxu0
      %942 = vmatprep.mubr.bf16.mxu0 0
      %943 = vmatmul.mubr.bf16.gmra.mrb[0].mxu0 %v855
      %v944 = vpop.f32.mrb[0].mxu0
      %v945 = vadd.f32 %v733, %v944
      %v946 = vpop.f32.mrb[0].mxu0
      %v947 = vpop.f32.mrb[0].mxu0
      %v948 = vadd.f32 %v736, %v947
      %v949 = vpop.f32.mrb[0].mxu0
      %950 = vmatprep.mubr.bf16.mxu0 0
      %951 = vmatmul.mubr.bf16.gmra.mrb[0].mxu0 %v858
      %v952 = vpop.f32.mrb[0].mxu0
      %v953 = vadd.f32 %v741, %v952
      %v954 = vpop.f32.mrb[0].mxu0
      %v955 = vpop.f32.mrb[0].mxu0
      %v956 = vadd.f32 %v744, %v955
      %v957 = vpop.f32.mrb[0].mxu0
      %958 = vmatprep.mubr.bf16.mxu0 0
      %959 = vmatmul.mubr.bf16.gmra.mrb[0].mxu0 %v861
      %v960 = vpop.f32.mrb[0].mxu0
      %v961 = vadd.f32 %v749, %v960
      %v962 = vpop.f32.mrb[0].mxu0
      %v963 = vpop.f32.mrb[0].mxu0
      %v964 = vadd.f32 %v752, %v963
      %v965 = vpop.f32.mrb[0].mxu0
      %966 = vmatprep.mubr.bf16.mxu0 0
      %967 = vmatmul.mubr.bf16.gmra.mrb[0].mxu0 %v864
      %v968 = vpop.f32.mrb[0].mxu0
      %v969 = vadd.f32 %v757, %v968
      %v970 = vpop.f32.mrb[0].mxu0
      %v971 = vpop.f32.mrb[0].mxu0
      %v972 = vadd.f32 %v760, %v971
      %v973 = vpop.f32.mrb[0].mxu0
      %974 = vmatprep.mubr.bf16.mxu0 0
      %975 = vmatmul.mubr.bf16.gmra.mrb[0].mxu0 %v867
      %v976 = vpop.f32.mrb[0].mxu0
      %v977 = vadd.f32 %v765, %v976
      %v978 = vpop.f32.mrb[0].mxu0
      %v979 = vpop.f32.mrb[0].mxu0
      %v980 = vadd.f32 %v768, %v979
      %v981 = vpop.f32.mrb[0].mxu0
      %982 = vmatprep.mubr.bf16.mxu0 0
      %983 = vmatmul.mubr.bf16.gmra.mrb[0].mxu0 %v870
      %v984 = vpop.f32.mrb[0].mxu0
      %v985 = vadd.f32 %v773, %v984
      %v986 = vpop.f32.mrb[0].mxu0
      %v987 = vpop.f32.mrb[0].mxu0
      %v988 = vadd.f32 %v776, %v987
      %v989 = vpop.f32.mrb[0].mxu0
      %990 = vmatprep.mubr.bf16.mxu0 0
      %991 = vmatmul.mubr.bf16.gmra.mrb[0].mxu0 %v873
      %v992 = vpop.f32.mrb[0].mxu0
      %v993 = vadd.f32 %v781, %v992
      %v994 = vpop.f32.mrb[0].mxu0
      %v995 = vpop.f32.mrb[0].mxu0
      %v996 = vadd.f32 %v784, %v995
      %v997 = vpop.f32.mrb[0].mxu0
      %998 = vmatprep.mubr.bf16.mxu0 0
      %999 = vmatmul.mubr.bf16.gmra.mrb[0].mxu0 %v876
      %v1000 = vpop.f32.mrb[0].mxu0
      %v1001 = vadd.f32 %v789, %v1000
      %v1002 = vpop.f32.mrb[0].mxu0
      %v1003 = vpop.f32.mrb[0].mxu0
      %v1004 = vadd.f32 %v792, %v1003
      %v1005 = vpop.f32.mrb[0].mxu0
      %1006 = vmatprep.mubr.bf16.mxu0 0
      %1007 = vmatmul.mubr.bf16.gmra.mrb[0].mxu0 %v879
      %v1008 = vpop.f32.mrb[0].mxu0
      %v1009 = vadd.f32 %v797, %v1008
      %v1010 = vpop.f32.mrb[0].mxu0
      %v1011 = vpop.f32.mrb[0].mxu0
      %v1012 = vadd.f32 %v800, %v1011
      %v1013 = vpop.f32.mrb[0].mxu0
      %1014 = vmatprep.mubr.bf16.mxu0 0
      %1015 = vmatmul.mubr.bf16.gmra.mrb[0].mxu0 %v882
      %v1016 = vpop.f32.mrb[0].mxu0
      %v1017 = vadd.f32 %v805, %v1016
      %v1018 = vpop.f32.mrb[0].mxu0
      %v1019 = vpop.f32.mrb[0].mxu0
      %v1020 = vadd.f32 %v808, %v1019
      %v1021 = vpop.f32.mrb[0].mxu0
      %1022 = vmatprep.mubr.bf16.mxu0 0
      %1023 = vmatmul.mubr.bf16.gmra.mrb[0].mxu0 %v885
      %v1024 = vpop.f32.mrb[0].mxu0
      %v1025 = vadd.f32 %v813, %v1024
      %v1026 = vpop.f32.mrb[0].mxu0
      %v1027 = vpop.f32.mrb[0].mxu0
      %v1028 = vadd.f32 %v816, %v1027
      %v1029 = vpop.f32.mrb[0].mxu0
      %1030 = vmatprep.mubr.bf16.mxu0 0
      %1031 = vmatmul.mubr.bf16.gmra.mrb[0].mxu0 %v888
      %v1032 = vpop.f32.mrb[0].mxu0
      %v1033 = vadd.f32 %v821, %v1032
      %v1034 = vpop.f32.mrb[0].mxu0
      %v1035 = vpop.f32.mrb[0].mxu0
      %v1036 = vadd.f32 %v824, %v1035
      %v1037 = vpop.f32.mrb[0].mxu0
      %1038 = vmatprep.mubr.bf16.mxu0 0
      %1039 = vmatmul.mubr.bf16.gmra.mrb[0].mxu0 %v891
      %v1040 = vpop.f32.mrb[0].mxu0
      %v1041 = vadd.f32 %v829, %v1040
      %v1042 = vpop.f32.mrb[0].mxu0
      %v1043 = vpop.f32.mrb[0].mxu0
      %v1044 = vadd.f32 %v832, %v1043
      %v1045 = vpop.f32.mrb[0].mxu0
      %1046 = vmatprep.mubr.bf16.mxu0 0
      %1047 = vmatmul.mubr.bf16.gmra.mrb[0].mxu0 %v894
      %v1048 = vpop.f32.mrb[0].mxu0
      %v1049 = vadd.f32 %v837, %v1048
      %v1050 = vpop.f32.mrb[0].mxu0
      %v1051 = vpop.f32.mrb[0].mxu0
      %v1052 = vadd.f32 %v840, %v1051
      %v1053 = vpop.f32.mrb[0].mxu0
      %1054 = vmatprep.mubr.bf16.mxu0 0
      %1055 = vmatmul.mubr.bf16.gmra.mrb[0].mxu0 %v897
      %v1056 = vpop.f32.mrb[0].mxu0
      %v1057 = vadd.f32 %v845, %v1056
      %v1058 = vpop.f32.mrb[0].mxu0
      %v1059 = vpop.f32.mrb[0].mxu0
      %v1060 = vadd.f32 %v848, %v1059
      %v1061 = vpop.f32.mrb[0].mxu0
      %1062 = vdwg.mxu0
      %v1063 = vld [vmem:[#allocation2 + $0x2] sm:$0xff]
      %v1064 = vld [vmem:[#allocation2 + $0xa] sm:$0xff]
      %v1065 = vld [vmem:[#allocation2 + $0x1a] sm:$0xff]
      %v1066 = vld [vmem:[#allocation2 + $0x22] sm:$0xff]
      %v1067 = vld [vmem:[#allocation2 + $0x32] sm:$0xff]
      %v1068 = vld [vmem:[#allocation2 + $0x3a] sm:$0xff]
      %v1069 = vld [vmem:[#allocation2 + $0x4a] sm:$0xff]
      %v1070 = vld [vmem:[#allocation2 + $0x52] sm:$0xff]
      %v1071 = vld [vmem:[#allocation2 + $0x62] sm:$0xff]
      %v1072 = vld [vmem:[#allocation2 + $0x6a] sm:$0xff]
      %v1073 = vld [vmem:[#allocation2 + $0x7a] sm:$0xff]
      %v1074 = vld [vmem:[#allocation2 + $0x82] sm:$0xff]
      %v1075 = vld [vmem:[#allocation2 + $0x92] sm:$0xff]
      %v1076 = vld [vmem:[#allocation2 + $0x9a] sm:$0xff]
      %v1077 = vld [vmem:[#allocation2 + $0xaa] sm:$0xff]
      %v1078 = vld [vmem:[#allocation2 + $0xb2] sm:$0xff]
      %v1079 = vld [vmem:[#allocation2 + $0xc2] sm:$0xff]
      %v1080 = vld [vmem:[#allocation2 + $0xca] sm:$0xff]
      %v1081 = vld [vmem:[#allocation2 + $0xda] sm:$0xff]
      %v1082 = vld [vmem:[#allocation2 + $0xe2] sm:$0xff]
      %v1083 = vld [vmem:[#allocation2 + $0xf2] sm:$0xff]
      %v1084 = vld [vmem:[#allocation2 + $0xfa] sm:$0xff]
      %v1085 = vld [vmem:[#allocation2 + $0x10a] sm:$0xff]
      %v1086 = vld [vmem:[#allocation2 + $0x112] sm:$0xff]
      %v1087 = vld [vmem:[#allocation2 + $0x122] sm:$0xff]
      %v1088 = vld [vmem:[#allocation2 + $0x12a] sm:$0xff]
      %v1089 = vld [vmem:[#allocation2 + $0x13a] sm:$0xff]
      %v1090 = vld [vmem:[#allocation2 + $0x142] sm:$0xff]
      %v1091 = vld [vmem:[#allocation2 + $0x152] sm:$0xff]
      %v1092 = vld [vmem:[#allocation2 + $0x15a] sm:$0xff]
      %v1093 = vld [vmem:[#allocation2 + $0x16a] sm:$0xff]
      %v1094 = vld [vmem:[#allocation2 + $0x172] sm:$0xff]
      %v1095 = vpack.c.bf16 %v1064, %v1063
      %v1096 = vpack.c.bf16 %v1066, %v1065
      %v1097 = vpack.c.bf16 %v1068, %v1067
      %v1098 = vpack.c.bf16 %v1070, %v1069
      %v1099 = vpack.c.bf16 %v1072, %v1071
      %v1100 = vpack.c.bf16 %v1074, %v1073
      %v1101 = vpack.c.bf16 %v1076, %v1075
      %v1102 = vpack.c.bf16 %v1078, %v1077
      %v1103 = vpack.c.bf16 %v1080, %v1079
      %v1104 = vpack.c.bf16 %v1082, %v1081
      %v1105 = vpack.c.bf16 %v1084, %v1083
      %v1106 = vpack.c.bf16 %v1086, %v1085
      %v1107 = vpack.c.bf16 %v1088, %v1087
      %v1108 = vpack.c.bf16 %v1090, %v1089
      %v1109 = vpack.c.bf16 %v1092, %v1091
      %v1110 = vpack.c.bf16 %v1094, %v1093
      %s1111 = scalar_lea.vmem %s1, 4
      %v1112 = vld [vmem:[%s1111] sm:$0x3]
      %v1114 = vsel %vm447, %v1095, 0
      %v1117 = vsel %vm447, %v1096, 0
      %v1120 = vsel %vm447, %v1097, 0
      %v1123 = vsel %vm447, %v1098, 0
      %v1126 = vsel %vm447, %v1099, 0
      %v1129 = vsel %vm447, %v1100, 0
      %v1132 = vsel %vm447, %v1101, 0
      %v1135 = vsel %vm447, %v1102, 0
      %v1138 = vsel %vm447, %v1103, 0
      %v1141 = vsel %vm447, %v1104, 0
      %v1144 = vsel %vm447, %v1105, 0
      %v1147 = vsel %vm447, %v1106, 0
      %v1150 = vsel %vm447, %v1107, 0
      %v1153 = vsel %vm447, %v1108, 0
      %v1156 = vsel %vm447, %v1109, 0
      %v1159 = vsel %vm447, %v1110, 0
      %v1162 = vand.u32 %v1112, %v686
      %1164 = vmatprep.subr.bf16.mxu0 0
      %1165 = vmatpush1.bf16.msra.mxu0 %v1162
      %1166 = vmatprep.subr.bf16.mxu0 0
      %1167 = vmatpush1.bf16.msra.mxu0 0
      %1168 = vmatprep.subr.bf16.mxu0 0
      %1169 = vmatpush1.bf16.msra.mxu0 0
      %1170 = vmatprep.subr.bf16.mxu0 0
      %1171 = vmatpush1.bf16.msra.mxu0 0
      %1172 = vmatprep.subr.bf16.mxu0 0
      %1173 = vmatpush1.bf16.msra.mxu0 0
      %1174 = vmatprep.subr.bf16.mxu0 0
      %1175 = vmatpush1.bf16.msra.mxu0 0
      %1176 = vmatprep.subr.bf16.mxu0 0
      %1177 = vmatpush1.bf16.msra.mxu0 0
      %1178 = vmatprep.subr.bf16.mxu0 0
      %1179 = vmatpush1.bf16.msra.mxu0 0
      %1180 = vmatprep.subr.bf16.mxu0 0
      %1181 = vmatpush1.bf16.msra.mxu0 0
      %1182 = vmatprep.subr.bf16.mxu0 0
      %1183 = vmatpush1.bf16.msra.mxu0 0
      %1184 = vmatprep.subr.bf16.mxu0 0
      %1185 = vmatpush1.bf16.msra.mxu0 0
      %1186 = vmatprep.subr.bf16.mxu0 0
      %1187 = vmatpush1.bf16.msra.mxu0 0
      %1188 = vmatprep.subr.bf16.mxu0 0
      %1189 = vmatpush1.bf16.msra.mxu0 0
      %1190 = vmatprep.subr.bf16.mxu0 0
      %1191 = vmatpush1.bf16.msra.mxu0 0
      %1192 = vmatprep.subr.bf16.mxu0 0
      %1193 = vmatpush1.bf16.msra.mxu0 0
      %1194 = vmatprep.subr.bf16.mxu0 0
      %1195 = vmatpush1.bf16.msra.mxu0 0
      %1196 = vmatprep.mubr.bf16.mxu0 0
      %1197 = vmatmul.mubr.bf16.gmra.mrb[0].mxu0 %v1114
      %v1198 = vpop.f32.mrb[0].mxu0
      %v1199 = vadd.f32 0.0, %v1198
      %v1200 = vpop.f32.mrb[0].mxu0
      %v1201 = vpop.f32.mrb[0].mxu0
      %v1202 = vadd.f32 0.0, %v1201
      %v1203 = vpop.f32.mrb[0].mxu0
      %1204 = vmatprep.mubr.bf16.mxu0 0
      %1205 = vmatmul.mubr.bf16.gmra.mrb[0].mxu0 %v1117
      %v1206 = vpop.f32.mrb[0].mxu0
      %v1207 = vadd.f32 0.0, %v1206
      %v1208 = vpop.f32.mrb[0].mxu0
      %v1209 = vpop.f32.mrb[0].mxu0
      %v1210 = vadd.f32 0.0, %v1209
      %v1211 = vpop.f32.mrb[0].mxu0
      %1212 = vmatprep.mubr.bf16.mxu0 0
      %1213 = vmatmul.mubr.bf16.gmra.mrb[0].mxu0 %v1120
      %v1214 = vpop.f32.mrb[0].mxu0
      %v1215 = vadd.f32 0.0, %v1214
      %v1216 = vpop.f32.mrb[0].mxu0
      %v1217 = vpop.f32.mrb[0].mxu0
      %v1218 = vadd.f32 0.0, %v1217
      %v1219 = vpop.f32.mrb[0].mxu0
      %1220 = vmatprep.mubr.bf16.mxu0 0
      %1221 = vmatmul.mubr.bf16.gmra.mrb[0].mxu0 %v1123
      %v1222 = vpop.f32.mrb[0].mxu0
      %v1223 = vadd.f32 0.0, %v1222
      %v1224 = vpop.f32.mrb[0].mxu0
      %v1225 = vpop.f32.mrb[0].mxu0
      %v1226 = vadd.f32 0.0, %v1225
      %v1227 = vpop.f32.mrb[0].mxu0
      %1228 = vmatprep.mubr.bf16.mxu0 0
      %1229 = vmatmul.mubr.bf16.gmra.mrb[0].mxu0 %v1126
      %v1230 = vpop.f32.mrb[0].mxu0
      %v1231 = vadd.f32 0.0, %v1230
      %v1232 = vpop.f32.mrb[0].mxu0
      %v1233 = vpop.f32.mrb[0].mxu0
      %v1234 = vadd.f32 0.0, %v1233
      %v1235 = vpop.f32.mrb[0].mxu0
      %1236 = vmatprep.mubr.bf16.mxu0 0
      %1237 = vmatmul.mubr.bf16.gmra.mrb[0].mxu0 %v1129
      %v1238 = vpop.f32.mrb[0].mxu0
      %v1239 = vadd.f32 0.0, %v1238
      %v1240 = vpop.f32.mrb[0].mxu0
      %v1241 = vpop.f32.mrb[0].mxu0
      %v1242 = vadd.f32 0.0, %v1241
      %v1243 = vpop.f32.mrb[0].mxu0
      %1244 = vmatprep.mubr.bf16.mxu0 0
      %1245 = vmatmul.mubr.bf16.gmra.mrb[0].mxu0 %v1132
      %v1246 = vpop.f32.mrb[0].mxu0
      %v1247 = vadd.f32 0.0, %v1246
      %v1248 = vpop.f32.mrb[0].mxu0
      %v1249 = vpop.f32.mrb[0].mxu0
      %v1250 = vadd.f32 0.0, %v1249
      %v1251 = vpop.f32.mrb[0].mxu0
      %1252 = vmatprep.mubr.bf16.mxu0 0
      %1253 = vmatmul.mubr.bf16.gmra.mrb[0].mxu0 %v1135
      %v1254 = vpop.f32.mrb[0].mxu0
      %v1255 = vadd.f32 0.0, %v1254
      %v1256 = vpop.f32.mrb[0].mxu0
      %v1257 = vpop.f32.mrb[0].mxu0
      %v1258 = vadd.f32 0.0, %v1257
      %v1259 = vpop.f32.mrb[0].mxu0
      %1260 = vmatprep.mubr.bf16.mxu0 0
      %1261 = vmatmul.mubr.bf16.gmra.mrb[0].mxu0 %v1138
      %v1262 = vpop.f32.mrb[0].mxu0
      %v1263 = vadd.f32 0.0, %v1262
      %v1264 = vpop.f32.mrb[0].mxu0
      %v1265 = vpop.f32.mrb[0].mxu0
      %v1266 = vadd.f32 0.0, %v1265
      %v1267 = vpop.f32.mrb[0].mxu0
      %1268 = vmatprep.mubr.bf16.mxu0 0
      %1269 = vmatmul.mubr.bf16.gmra.mrb[0].mxu0 %v1141
      %v1270 = vpop.f32.mrb[0].mxu0
      %v1271 = vadd.f32 0.0, %v1270
      %v1272 = vpop.f32.mrb[0].mxu0
      %v1273 = vpop.f32.mrb[0].mxu0
      %v1274 = vadd.f32 0.0, %v1273
      %v1275 = vpop.f32.mrb[0].mxu0
      %1276 = vmatprep.mubr.bf16.mxu0 0
      %1277 = vmatmul.mubr.bf16.gmra.mrb[0].mxu0 %v1144
      %v1278 = vpop.f32.mrb[0].mxu0
      %v1279 = vadd.f32 0.0, %v1278
      %v1280 = vpop.f32.mrb[0].mxu0
      %v1281 = vpop.f32.mrb[0].mxu0
      %v1282 = vadd.f32 0.0, %v1281
      %v1283 = vpop.f32.mrb[0].mxu0
      %1284 = vmatprep.mubr.bf16.mxu0 0
      %1285 = vmatmul.mubr.bf16.gmra.mrb[0].mxu0 %v1147
      %v1286 = vpop.f32.mrb[0].mxu0
      %v1287 = vadd.f32 0.0, %v1286
      %v1288 = vpop.f32.mrb[0].mxu0
      %v1289 = vpop.f32.mrb[0].mxu0
      %v1290 = vadd.f32 0.0, %v1289
      %v1291 = vpop.f32.mrb[0].mxu0
      %1292 = vmatprep.mubr.bf16.mxu0 0
      %1293 = vmatmul.mubr.bf16.gmra.mrb[0].mxu0 %v1150
      %v1294 = vpop.f32.mrb[0].mxu0
      %v1295 = vadd.f32 0.0, %v1294
      %v1296 = vpop.f32.mrb[0].mxu0
      %v1297 = vpop.f32.mrb[0].mxu0
      %v1298 = vadd.f32 0.0, %v1297
      %v1299 = vpop.f32.mrb[0].mxu0
      %1300 = vmatprep.mubr.bf16.mxu0 0
      %1301 = vmatmul.mubr.bf16.gmra.mrb[0].mxu0 %v1153
      %v1302 = vpop.f32.mrb[0].mxu0
      %v1303 = vadd.f32 0.0, %v1302
      %v1304 = vpop.f32.mrb[0].mxu0
      %v1305 = vpop.f32.mrb[0].mxu0
      %v1306 = vadd.f32 0.0, %v1305
      %v1307 = vpop.f32.mrb[0].mxu0
      %1308 = vmatprep.mubr.bf16.mxu0 0
      %1309 = vmatmul.mubr.bf16.gmra.mrb[0].mxu0 %v1156
      %v1310 = vpop.f32.mrb[0].mxu0
      %v1311 = vadd.f32 0.0, %v1310
      %v1312 = vpop.f32.mrb[0].mxu0
      %v1313 = vpop.f32.mrb[0].mxu0
      %v1314 = vadd.f32 0.0, %v1313
      %v1315 = vpop.f32.mrb[0].mxu0
      %1316 = vmatprep.mubr.bf16.mxu0 0
      %1317 = vmatmul.mubr.bf16.gmra.mrb[0].mxu0 %v1159
      %v1318 = vpop.f32.mrb[0].mxu0
      %v1319 = vadd.f32 0.0, %v1318
      %v1320 = vpop.f32.mrb[0].mxu0
      %v1321 = vpop.f32.mrb[0].mxu0
      %v1322 = vadd.f32 0.0, %v1321
      %v1323 = vpop.f32.mrb[0].mxu0
      %1324 = vdwg.mxu0
      %v1325 = vadd.f32 %v937, %v1199
      %v1326 = vadd.f32 %v940, %v1202
      %v1327 = vadd.f32 %v945, %v1207
      %v1328 = vadd.f32 %v948, %v1210
      %v1329 = vadd.f32 %v953, %v1215
      %v1330 = vadd.f32 %v956, %v1218
      %v1331 = vadd.f32 %v961, %v1223
      %v1332 = vadd.f32 %v964, %v1226
      %v1333 = vadd.f32 %v969, %v1231
      %v1334 = vadd.f32 %v972, %v1234
      %v1335 = vadd.f32 %v977, %v1239
      %v1336 = vadd.f32 %v980, %v1242
      %v1337 = vadd.f32 %v985, %v1247
      %v1338 = vadd.f32 %v988, %v1250
      %v1339 = vadd.f32 %v993, %v1255
      %v1340 = vadd.f32 %v996, %v1258
      %v1341 = vadd.f32 %v1001, %v1263
      %v1342 = vadd.f32 %v1004, %v1266
      %v1343 = vadd.f32 %v1009, %v1271
      %v1344 = vadd.f32 %v1012, %v1274
      %v1345 = vadd.f32 %v1017, %v1279
      %v1346 = vadd.f32 %v1020, %v1282
      %v1347 = vadd.f32 %v1025, %v1287
      %v1348 = vadd.f32 %v1028, %v1290
      %v1349 = vadd.f32 %v1033, %v1295
      %v1350 = vadd.f32 %v1036, %v1298
      %v1351 = vadd.f32 %v1041, %v1303
      %v1352 = vadd.f32 %v1044, %v1306
      %v1353 = vadd.f32 %v1049, %v1311
      %v1354 = vadd.f32 %v1052, %v1314
      %v1355 = vadd.f32 %v1057, %v1319
      %v1356 = vadd.f32 %v1060, %v1322
      %v1357 = vld [vmem:[%s503] sm:$0xff]
      %v1358 = vld [vmem:[%s503 + $0x8] sm:$0xff]
      %v1359 = vld [vmem:[%s503 + $0x18] sm:$0xff]
      %v1360 = vld [vmem:[%s503 + $0x20] sm:$0xff]
      %v1361 = vld [vmem:[%s503 + $0x30] sm:$0xff]
      %v1362 = vld [vmem:[%s503 + $0x38] sm:$0xff]
      %v1363 = vld [vmem:[%s503 + $0x48] sm:$0xff]
      %v1364 = vld [vmem:[%s503 + $0x50] sm:$0xff]
      %v1365 = vld [vmem:[%s503 + $0x60] sm:$0xff]
      %v1366 = vld [vmem:[%s503 + $0x68] sm:$0xff]
      %v1367 = vld [vmem:[%s503 + $0x78] sm:$0xff]
      %v1368 = vld [vmem:[%s503 + $0x80] sm:$0xff]
      %v1369 = vld [vmem:[%s503 + $0x90] sm:$0xff]
      %v1370 = vld [vmem:[%s503 + $0x98] sm:$0xff]
      %v1371 = vld [vmem:[%s503 + $0xa8] sm:$0xff]
      %v1372 = vld [vmem:[%s503 + $0xb0] sm:$0xff]
      %v1373 = vld [vmem:[%s503 + $0xc0] sm:$0xff]
      %v1374 = vld [vmem:[%s503 + $0xc8] sm:$0xff]
      %v1375 = vld [vmem:[%s503 + $0xd8] sm:$0xff]
      %v1376 = vld [vmem:[%s503 + $0xe0] sm:$0xff]
      %v1377 = vld [vmem:[%s503 + $0xf0] sm:$0xff]
      %v1378 = vld [vmem:[%s503 + $0xf8] sm:$0xff]
      %v1379 = vld [vmem:[%s503 + $0x108] sm:$0xff]
      %v1380 = vld [vmem:[%s503 + $0x110] sm:$0xff]
      %v1381 = vld [vmem:[%s503 + $0x120] sm:$0xff]
      %v1382 = vld [vmem:[%s503 + $0x128] sm:$0xff]
      %v1383 = vld [vmem:[%s503 + $0x138] sm:$0xff]
      %v1384 = vld [vmem:[%s503 + $0x140] sm:$0xff]
      %v1385 = vld [vmem:[%s503 + $0x150] sm:$0xff]
      %v1386 = vld [vmem:[%s503 + $0x158] sm:$0xff]
      %v1387 = vld [vmem:[%s503 + $0x168] sm:$0xff]
      %v1388 = vld [vmem:[%s503 + $0x170] sm:$0xff]
      %v1389 = vpack.c.bf16 %v1358, %v1357
      %v1390 = vpack.c.bf16 %v1360, %v1359
      %v1391 = vpack.c.bf16 %v1362, %v1361
      %v1392 = vpack.c.bf16 %v1364, %v1363
      %v1393 = vpack.c.bf16 %v1366, %v1365
      %v1394 = vpack.c.bf16 %v1368, %v1367
      %v1395 = vpack.c.bf16 %v1370, %v1369
      %v1396 = vpack.c.bf16 %v1372, %v1371
      %v1397 = vpack.c.bf16 %v1374, %v1373
      %v1398 = vpack.c.bf16 %v1376, %v1375
      %v1399 = vpack.c.bf16 %v1378, %v1377
      %v1400 = vpack.c.bf16 %v1380, %v1379
      %v1401 = vpack.c.bf16 %v1382, %v1381
      %v1402 = vpack.c.bf16 %v1384, %v1383
      %v1403 = vpack.c.bf16 %v1386, %v1385
      %v1404 = vpack.c.bf16 %v1388, %v1387
      %s1405 = scalar_lea.vmem %s1, 6
      %v1406 = vld [vmem:[%s1405] sm:$0x3]
      %v1408 = vsel %vm447, %v1389, 0
      %v1411 = vsel %vm447, %v1390, 0
      %v1414 = vsel %vm447, %v1391, 0
      %v1417 = vsel %vm447, %v1392, 0
      %v1420 = vsel %vm447, %v1393, 0
      %v1423 = vsel %vm447, %v1394, 0
      %v1426 = vsel %vm447, %v1395, 0
      %v1429 = vsel %vm447, %v1396, 0
      %v1432 = vsel %vm447, %v1397, 0
      %v1435 = vsel %vm447, %v1398, 0
      %v1438 = vsel %vm447, %v1399, 0
      %v1441 = vsel %vm447, %v1400, 0
      %v1444 = vsel %vm447, %v1401, 0
      %v1447 = vsel %vm447, %v1402, 0
      %v1450 = vsel %vm447, %v1403, 0
      %v1453 = vsel %vm447, %v1404, 0
      %v1456 = vand.u32 %v1406, %v686
      %1458 = vmatprep.subr.bf16.mxu0 0
      %1459 = vmatpush1.bf16.msra.mxu0 %v1456
      %1460 = vmatprep.subr.bf16.mxu0 0
      %1461 = vmatpush1.bf16.msra.mxu0 0
      %1462 = vmatprep.subr.bf16.mxu0 0
      %1463 = vmatpush1.bf16.msra.mxu0 0
      %1464 = vmatprep.subr.bf16.mxu0 0
      %1465 = vmatpush1.bf16.msra.mxu0 0
      %1466 = vmatprep.subr.bf16.mxu0 0
      %1467 = vmatpush1.bf16.msra.mxu0 0
      %1468 = vmatprep.subr.bf16.mxu0 0
      %1469 = vmatpush1.bf16.msra.mxu0 0
      %1470 = vmatprep.subr.bf16.mxu0 0
      %1471 = vmatpush1.bf16.msra.mxu0 0
      %1472 = vmatprep.subr.bf16.mxu0 0
      %1473 = vmatpush1.bf16.msra.mxu0 0
      %1474 = vmatprep.subr.bf16.mxu0 0
      %1475 = vmatpush1.bf16.msra.mxu0 0
      %1476 = vmatprep.subr.bf16.mxu0 0
      %1477 = vmatpush1.bf16.msra.mxu0 0
      %1478 = vmatprep.subr.bf16.mxu0 0
      %1479 = vmatpush1.bf16.msra.mxu0 0
      %1480 = vmatprep.subr.bf16.mxu0 0
      %1481 = vmatpush1.bf16.msra.mxu0 0
      %1482 = vmatprep.subr.bf16.mxu0 0
      %1483 = vmatpush1.bf16.msra.mxu0 0
      %1484 = vmatprep.subr.bf16.mxu0 0
      %1485 = vmatpush1.bf16.msra.mxu0 0
      %1486 = vmatprep.subr.bf16.mxu0 0
      %1487 = vmatpush1.bf16.msra.mxu0 0
      %1488 = vmatprep.subr.bf16.mxu0 0
      %1489 = vmatpush1.bf16.msra.mxu0 0
      %1490 = vmatprep.mubr.bf16.mxu0 0
      %1491 = vmatmul.mubr.bf16.gmra.mrb[0].mxu0 %v1408
      %v1492 = vpop.f32.mrb[0].mxu0
      %v1493 = vadd.f32 0.0, %v1492
      %v1494 = vpop.f32.mrb[0].mxu0
      %v1495 = vpop.f32.mrb[0].mxu0
      %v1496 = vadd.f32 0.0, %v1495
      %v1497 = vpop.f32.mrb[0].mxu0
      %1498 = vmatprep.mubr.bf16.mxu0 0
      %1499 = vmatmul.mubr.bf16.gmra.mrb[0].mxu0 %v1411
      %v1500 = vpop.f32.mrb[0].mxu0
      %v1501 = vadd.f32 0.0, %v1500
      %v1502 = vpop.f32.mrb[0].mxu0
      %v1503 = vpop.f32.mrb[0].mxu0
      %v1504 = vadd.f32 0.0, %v1503
      %v1505 = vpop.f32.mrb[0].mxu0
      %1506 = vmatprep.mubr.bf16.mxu0 0
      %1507 = vmatmul.mubr.bf16.gmra.mrb[0].mxu0 %v1414
      %v1508 = vpop.f32.mrb[0].mxu0
      %v1509 = vadd.f32 0.0, %v1508
      %v1510 = vpop.f32.mrb[0].mxu0
      %v1511 = vpop.f32.mrb[0].mxu0
      %v1512 = vadd.f32 0.0, %v1511
      %v1513 = vpop.f32.mrb[0].mxu0
      %1514 = vmatprep.mubr.bf16.mxu0 0
      %1515 = vmatmul.mubr.bf16.gmra.mrb[0].mxu0 %v1417
      %v1516 = vpop.f32.mrb[0].mxu0
      %v1517 = vadd.f32 0.0, %v1516
      %v1518 = vpop.f32.mrb[0].mxu0
      %v1519 = vpop.f32.mrb[0].mxu0
      %v1520 = vadd.f32 0.0, %v1519
      %v1521 = vpop.f32.mrb[0].mxu0
      %1522 = vmatprep.mubr.bf16.mxu0 0
      %1523 = vmatmul.mubr.bf16.gmra.mrb[0].mxu0 %v1420
      %v1524 = vpop.f32.mrb[0].mxu0
      %v1525 = vadd.f32 0.0, %v1524
      %v1526 = vpop.f32.mrb[0].mxu0
      %v1527 = vpop.f32.mrb[0].mxu0
      %v1528 = vadd.f32 0.0, %v1527
      %v1529 = vpop.f32.mrb[0].mxu0
      %1530 = vmatprep.mubr.bf16.mxu0 0
      %1531 = vmatmul.mubr.bf16.gmra.mrb[0].mxu0 %v1423
      %v1532 = vpop.f32.mrb[0].mxu0
      %v1533 = vadd.f32 0.0, %v1532
      %v1534 = vpop.f32.mrb[0].mxu0
      %v1535 = vpop.f32.mrb[0].mxu0
      %v1536 = vadd.f32 0.0, %v1535
      %v1537 = vpop.f32.mrb[0].mxu0
      %1538 = vmatprep.mubr.bf16.mxu0 0
      %1539 = vmatmul.mubr.bf16.gmra.mrb[0].mxu0 %v1426
      %v1540 = vpop.f32.mrb[0].mxu0
      %v1541 = vadd.f32 0.0, %v1540
      %v1542 = vpop.f32.mrb[0].mxu0
      %v1543 = vpop.f32.mrb[0].mxu0
      %v1544 = vadd.f32 0.0, %v1543
      %v1545 = vpop.f32.mrb[0].mxu0
      %1546 = vmatprep.mubr.bf16.mxu0 0
      %1547 = vmatmul.mubr.bf16.gmra.mrb[0].mxu0 %v1429
      %v1548 = vpop.f32.mrb[0].mxu0
      %v1549 = vadd.f32 0.0, %v1548
      %v1550 = vpop.f32.mrb[0].mxu0
      %v1551 = vpop.f32.mrb[0].mxu0
      %v1552 = vadd.f32 0.0, %v1551
      %v1553 = vpop.f32.mrb[0].mxu0
      %1554 = vmatprep.mubr.bf16.mxu0 0
      %1555 = vmatmul.mubr.bf16.gmra.mrb[0].mxu0 %v1432
      %v1556 = vpop.f32.mrb[0].mxu0
      %v1557 = vadd.f32 0.0, %v1556
      %v1558 = vpop.f32.mrb[0].mxu0
      %v1559 = vpop.f32.mrb[0].mxu0
      %v1560 = vadd.f32 0.0, %v1559
      %v1561 = vpop.f32.mrb[0].mxu0
      %1562 = vmatprep.mubr.bf16.mxu0 0
      %1563 = vmatmul.mubr.bf16.gmra.mrb[0].mxu0 %v1435
      %v1564 = vpop.f32.mrb[0].mxu0
      %v1565 = vadd.f32 0.0, %v1564
      %v1566 = vpop.f32.mrb[0].mxu0
      %v1567 = vpop.f32.mrb[0].mxu0
      %v1568 = vadd.f32 0.0, %v1567
      %v1569 = vpop.f32.mrb[0].mxu0
      %1570 = vmatprep.mubr.bf16.mxu0 0
      %1571 = vmatmul.mubr.bf16.gmra.mrb[0].mxu0 %v1438
      %v1572 = vpop.f32.mrb[0].mxu0
      %v1573 = vadd.f32 0.0, %v1572
      %v1574 = vpop.f32.mrb[0].mxu0
      %v1575 = vpop.f32.mrb[0].mxu0
      %v1576 = vadd.f32 0.0, %v1575
      %v1577 = vpop.f32.mrb[0].mxu0
      %1578 = vmatprep.mubr.bf16.mxu0 0
      %1579 = vmatmul.mubr.bf16.gmra.mrb[0].mxu0 %v1441
      %v1580 = vpop.f32.mrb[0].mxu0
      %v1581 = vadd.f32 0.0, %v1580
      %v1582 = vpop.f32.mrb[0].mxu0
      %v1583 = vpop.f32.mrb[0].mxu0
      %v1584 = vadd.f32 0.0, %v1583
      %v1585 = vpop.f32.mrb[0].mxu0
      %1586 = vmatprep.mubr.bf16.mxu0 0
      %1587 = vmatmul.mubr.bf16.gmra.mrb[0].mxu0 %v1444
      %v1588 = vpop.f32.mrb[0].mxu0
      %v1589 = vadd.f32 0.0, %v1588
      %v1590 = vpop.f32.mrb[0].mxu0
      %v1591 = vpop.f32.mrb[0].mxu0
      %v1592 = vadd.f32 0.0, %v1591
      %v1593 = vpop.f32.mrb[0].mxu0
      %1594 = vmatprep.mubr.bf16.mxu0 0
      %1595 = vmatmul.mubr.bf16.gmra.mrb[0].mxu0 %v1447
      %v1596 = vpop.f32.mrb[0].mxu0
      %v1597 = vadd.f32 0.0, %v1596
      %v1598 = vpop.f32.mrb[0].mxu0
      %v1599 = vpop.f32.mrb[0].mxu0
      %v1600 = vadd.f32 0.0, %v1599
      %v1601 = vpop.f32.mrb[0].mxu0
      %1602 = vmatprep.mubr.bf16.mxu0 0
      %1603 = vmatmul.mubr.bf16.gmra.mrb[0].mxu0 %v1450
      %v1604 = vpop.f32.mrb[0].mxu0
      %v1605 = vadd.f32 0.0, %v1604
      %v1606 = vpop.f32.mrb[0].mxu0
      %v1607 = vpop.f32.mrb[0].mxu0
      %v1608 = vadd.f32 0.0, %v1607
      %v1609 = vpop.f32.mrb[0].mxu0
      %1610 = vmatprep.mubr.bf16.mxu0 0
      %1611 = vmatmul.mubr.bf16.gmra.mrb[0].mxu0 %v1453
      %v1612 = vpop.f32.mrb[0].mxu0
      %v1613 = vadd.f32 0.0, %v1612
      %v1614 = vpop.f32.mrb[0].mxu0
      %v1615 = vpop.f32.mrb[0].mxu0
      %v1616 = vadd.f32 0.0, %v1615
      %v1617 = vpop.f32.mrb[0].mxu0
      %1618 = vdwg.mxu0
      %v1619 = vadd.f32 %v1325, %v1493
      %v1620 = vadd.f32 %v1326, %v1496
      %v1621 = vadd.f32 %v1327, %v1501
      %v1622 = vadd.f32 %v1328, %v1504
      %v1623 = vadd.f32 %v1329, %v1509
      %v1624 = vadd.f32 %v1330, %v1512
      %v1625 = vadd.f32 %v1331, %v1517
      %v1626 = vadd.f32 %v1332, %v1520
      %v1627 = vadd.f32 %v1333, %v1525
      %v1628 = vadd.f32 %v1334, %v1528
      %v1629 = vadd.f32 %v1335, %v1533
      %v1630 = vadd.f32 %v1336, %v1536
      %v1631 = vadd.f32 %v1337, %v1541
      %v1632 = vadd.f32 %v1338, %v1544
      %v1633 = vadd.f32 %v1339, %v1549
      %v1634 = vadd.f32 %v1340, %v1552
      %v1635 = vadd.f32 %v1341, %v1557
      %v1636 = vadd.f32 %v1342, %v1560
      %v1637 = vadd.f32 %v1343, %v1565
      %v1638 = vadd.f32 %v1344, %v1568
      %v1639 = vadd.f32 %v1345, %v1573
      %v1640 = vadd.f32 %v1346, %v1576
      %v1641 = vadd.f32 %v1347, %v1581
      %v1642 = vadd.f32 %v1348, %v1584
      %v1643 = vadd.f32 %v1349, %v1589
      %v1644 = vadd.f32 %v1350, %v1592
      %v1645 = vadd.f32 %v1351, %v1597
      %v1646 = vadd.f32 %v1352, %v1600
      %v1647 = vadd.f32 %v1353, %v1605
      %v1648 = vadd.f32 %v1354, %v1608
      %v1649 = vadd.f32 %v1355, %v1613
      %v1650 = vadd.f32 %v1356, %v1616
      %v1651 = vld [vmem:[%s503 + $0x1] sm:$0xff]
      %v1652 = vld [vmem:[%s503 + $0x9] sm:$0xff]
      %v1653 = vld [vmem:[%s503 + $0x19] sm:$0xff]
      %v1654 = vld [vmem:[%s503 + $0x21] sm:$0xff]
      %v1655 = vld [vmem:[%s503 + $0x31] sm:$0xff]
      %v1656 = vld [vmem:[%s503 + $0x39] sm:$0xff]
      %v1657 = vld [vmem:[%s503 + $0x49] sm:$0xff]
      %v1658 = vld [vmem:[%s503 + $0x51] sm:$0xff]
      %v1659 = vld [vmem:[%s503 + $0x61] sm:$0xff]
      %v1660 = vld [vmem:[%s503 + $0x69] sm:$0xff]
      %v1661 = vld [vmem:[%s503 + $0x79] sm:$0xff]
      %v1662 = vld [vmem:[%s503 + $0x81] sm:$0xff]
      %v1663 = vld [vmem:[%s503 + $0x91] sm:$0xff]
      %v1664 = vld [vmem:[%s503 + $0x99] sm:$0xff]
      %v1665 = vld [vmem:[%s503 + $0xa9] sm:$0xff]
      %v1666 = vld [vmem:[%s503 + $0xb1] sm:$0xff]
      %v1667 = vld [vmem:[%s503 + $0xc1] sm:$0xff]
      %v1668 = vld [vmem:[%s503 + $0xc9] sm:$0xff]
      %v1669 = vld [vmem:[%s503 + $0xd9] sm:$0xff]
      %v1670 = vld [vmem:[%s503 + $0xe1] sm:$0xff]
      %v1671 = vld [vmem:[%s503 + $0xf1] sm:$0xff]
      %v1672 = vld [vmem:[%s503 + $0xf9] sm:$0xff]
      %v1673 = vld [vmem:[%s503 + $0x109] sm:$0xff]
      %v1674 = vld [vmem:[%s503 + $0x111] sm:$0xff]
      %v1675 = vld [vmem:[%s503 + $0x121] sm:$0xff]
      %v1676 = vld [vmem:[%s503 + $0x129] sm:$0xff]
      %v1677 = vld [vmem:[%s503 + $0x139] sm:$0xff]
      %v1678 = vld [vmem:[%s503 + $0x141] sm:$0xff]
      %v1679 = vld [vmem:[%s503 + $0x151] sm:$0xff]
      %v1680 = vld [vmem:[%s503 + $0x159] sm:$0xff]
      %v1681 = vld [vmem:[%s503 + $0x169] sm:$0xff]
      %v1682 = vld [vmem:[%s503 + $0x171] sm:$0xff]
      %v1683 = vpack.c.bf16 %v1652, %v1651
      %v1684 = vpack.c.bf16 %v1654, %v1653
      %v1685 = vpack.c.bf16 %v1656, %v1655
      %v1686 = vpack.c.bf16 %v1658, %v1657
      %v1687 = vpack.c.bf16 %v1660, %v1659
      %v1688 = vpack.c.bf16 %v1662, %v1661
      %v1689 = vpack.c.bf16 %v1664, %v1663
      %v1690 = vpack.c.bf16 %v1666, %v1665
      %v1691 = vpack.c.bf16 %v1668, %v1667
      %v1692 = vpack.c.bf16 %v1670, %v1669
      %v1693 = vpack.c.bf16 %v1672, %v1671
      %v1694 = vpack.c.bf16 %v1674, %v1673
      %v1695 = vpack.c.bf16 %v1676, %v1675
      %v1696 = vpack.c.bf16 %v1678, %v1677
      %v1697 = vpack.c.bf16 %v1680, %v1679
      %v1698 = vpack.c.bf16 %v1682, %v1681
      %s1699 = scalar_lea.vmem %s1, 8
      %v1700 = vld [vmem:[%s1699] sm:$0x3]
      %v1702 = vsel %vm447, %v1683, 0
      %v1705 = vsel %vm447, %v1684, 0
      %v1708 = vsel %vm447, %v1685, 0
      %v1711 = vsel %vm447, %v1686, 0
      %v1714 = vsel %vm447, %v1687, 0
      %v1717 = vsel %vm447, %v1688, 0
      %v1720 = vsel %vm447, %v1689, 0
      %v1723 = vsel %vm447, %v1690, 0
      %v1726 = vsel %vm447, %v1691, 0
      %v1729 = vsel %vm447, %v1692, 0
      %v1732 = vsel %vm447, %v1693, 0
      %v1735 = vsel %vm447, %v1694, 0
      %v1738 = vsel %vm447, %v1695, 0
      %v1741 = vsel %vm447, %v1696, 0
      %v1744 = vsel %vm447, %v1697, 0
      %v1747 = vsel %vm447, %v1698, 0
      %v1750 = vand.u32 %v1700, %v686
      %1752 = vmatprep.subr.bf16.mxu0 0
      %1753 = vmatpush1.bf16.msra.mxu0 %v1750
      %1754 = vmatprep.subr.bf16.mxu0 0
      %1755 = vmatpush1.bf16.msra.mxu0 0
      %1756 = vmatprep.subr.bf16.mxu0 0
      %1757 = vmatpush1.bf16.msra.mxu0 0
      %1758 = vmatprep.subr.bf16.mxu0 0
      %1759 = vmatpush1.bf16.msra.mxu0 0
      %1760 = vmatprep.subr.bf16.mxu0 0
      %1761 = vmatpush1.bf16.msra.mxu0 0
      %1762 = vmatprep.subr.bf16.mxu0 0
      %1763 = vmatpush1.bf16.msra.mxu0 0
      %1764 = vmatprep.subr.bf16.mxu0 0
      %1765 = vmatpush1.bf16.msra.mxu0 0
      %1766 = vmatprep.subr.bf16.mxu0 0
      %1767 = vmatpush1.bf16.msra.mxu0 0
      %1768 = vmatprep.subr.bf16.mxu0 0
      %1769 = vmatpush1.bf16.msra.mxu0 0
      %1770 = vmatprep.subr.bf16.mxu0 0
      %1771 = vmatpush1.bf16.msra.mxu0 0
      %1772 = vmatprep.subr.bf16.mxu0 0
      %1773 = vmatpush1.bf16.msra.mxu0 0
      %1774 = vmatprep.subr.bf16.mxu0 0
      %1775 = vmatpush1.bf16.msra.mxu0 0
      %1776 = vmatprep.subr.bf16.mxu0 0
      %1777 = vmatpush1.bf16.msra.mxu0 0
      %1778 = vmatprep.subr.bf16.mxu0 0
      %1779 = vmatpush1.bf16.msra.mxu0 0
      %1780 = vmatprep.subr.bf16.mxu0 0
      %1781 = vmatpush1.bf16.msra.mxu0 0
      %1782 = vmatprep.subr.bf16.mxu0 0
      %1783 = vmatpush1.bf16.msra.mxu0 0
      %1784 = vmatprep.mubr.bf16.mxu0 0
      %1785 = vmatmul.mubr.bf16.gmra.mrb[0].mxu0 %v1702
      %v1786 = vpop.f32.mrb[0].mxu0
      %v1787 = vadd.f32 0.0, %v1786
      %v1788 = vpop.f32.mrb[0].mxu0
      %v1789 = vpop.f32.mrb[0].mxu0
      %v1790 = vadd.f32 0.0, %v1789
      %v1791 = vpop.f32.mrb[0].mxu0
      %1792 = vmatprep.mubr.bf16.mxu0 0
      %1793 = vmatmul.mubr.bf16.gmra.mrb[0].mxu0 %v1705
      %v1794 = vpop.f32.mrb[0].mxu0
      %v1795 = vadd.f32 0.0, %v1794
      %v1796 = vpop.f32.mrb[0].mxu0
      %v1797 = vpop.f32.mrb[0].mxu0
      %v1798 = vadd.f32 0.0, %v1797
      %v1799 = vpop.f32.mrb[0].mxu0
      %1800 = vmatprep.mubr.bf16.mxu0 0
      %1801 = vmatmul.mubr.bf16.gmra.mrb[0].mxu0 %v1708
      %v1802 = vpop.f32.mrb[0].mxu0
      %v1803 = vadd.f32 0.0, %v1802
      %v1804 = vpop.f32.mrb[0].mxu0
      %v1805 = vpop.f32.mrb[0].mxu0
      %v1806 = vadd.f32 0.0, %v1805
      %v1807 = vpop.f32.mrb[0].mxu0
      %1808 = vmatprep.mubr.bf16.mxu0 0
      %1809 = vmatmul.mubr.bf16.gmra.mrb[0].mxu0 %v1711
      %v1810 = vpop.f32.mrb[0].mxu0
      %v1811 = vadd.f32 0.0, %v1810
      %v1812 = vpop.f32.mrb[0].mxu0
      %v1813 = vpop.f32.mrb[0].mxu0
      %v1814 = vadd.f32 0.0, %v1813
      %v1815 = vpop.f32.mrb[0].mxu0
      %1816 = vmatprep.mubr.bf16.mxu0 0
      %1817 = vmatmul.mubr.bf16.gmra.mrb[0].mxu0 %v1714
      %v1818 = vpop.f32.mrb[0].mxu0
      %v1819 = vadd.f32 0.0, %v1818
      %v1820 = vpop.f32.mrb[0].mxu0
      %v1821 = vpop.f32.mrb[0].mxu0
      %v1822 = vadd.f32 0.0, %v1821
      %v1823 = vpop.f32.mrb[0].mxu0
      %1824 = vmatprep.mubr.bf16.mxu0 0
      %1825 = vmatmul.mubr.bf16.gmra.mrb[0].mxu0 %v1717
      %v1826 = vpop.f32.mrb[0].mxu0
      %v1827 = vadd.f32 0.0, %v1826
      %v1828 = vpop.f32.mrb[0].mxu0
      %v1829 = vpop.f32.mrb[0].mxu0
      %v1830 = vadd.f32 0.0, %v1829
      %v1831 = vpop.f32.mrb[0].mxu0
      %1832 = vmatprep.mubr.bf16.mxu0 0
      %1833 = vmatmul.mubr.bf16.gmra.mrb[0].mxu0 %v1720
      %v1834 = vpop.f32.mrb[0].mxu0
      %v1835 = vadd.f32 0.0, %v1834
      %v1836 = vpop.f32.mrb[0].mxu0
      %v1837 = vpop.f32.mrb[0].mxu0
      %v1838 = vadd.f32 0.0, %v1837
      %v1839 = vpop.f32.mrb[0].mxu0
      %1840 = vmatprep.mubr.bf16.mxu0 0
      %1841 = vmatmul.mubr.bf16.gmra.mrb[0].mxu0 %v1723
      %v1842 = vpop.f32.mrb[0].mxu0
      %v1843 = vadd.f32 0.0, %v1842
      %v1844 = vpop.f32.mrb[0].mxu0
      %v1845 = vpop.f32.mrb[0].mxu0
      %v1846 = vadd.f32 0.0, %v1845
      %v1847 = vpop.f32.mrb[0].mxu0
      %1848 = vmatprep.mubr.bf16.mxu0 0
      %1849 = vmatmul.mubr.bf16.gmra.mrb[0].mxu0 %v1726
      %v1850 = vpop.f32.mrb[0].mxu0
      %v1851 = vadd.f32 0.0, %v1850
      %v1852 = vpop.f32.mrb[0].mxu0
      %v1853 = vpop.f32.mrb[0].mxu0
      %v1854 = vadd.f32 0.0, %v1853
      %v1855 = vpop.f32.mrb[0].mxu0
      %1856 = vmatprep.mubr.bf16.mxu0 0
      %1857 = vmatmul.mubr.bf16.gmra.mrb[0].mxu0 %v1729
      %v1858 = vpop.f32.mrb[0].mxu0
      %v1859 = vadd.f32 0.0, %v1858
      %v1860 = vpop.f32.mrb[0].mxu0
      %v1861 = vpop.f32.mrb[0].mxu0
      %v1862 = vadd.f32 0.0, %v1861
      %v1863 = vpop.f32.mrb[0].mxu0
      %1864 = vmatprep.mubr.bf16.mxu0 0
      %1865 = vmatmul.mubr.bf16.gmra.mrb[0].mxu0 %v1732
      %v1866 = vpop.f32.mrb[0].mxu0
      %v1867 = vadd.f32 0.0, %v1866
      %v1868 = vpop.f32.mrb[0].mxu0
      %v1869 = vpop.f32.mrb[0].mxu0
      %v1870 = vadd.f32 0.0, %v1869
      %v1871 = vpop.f32.mrb[0].mxu0
      %1872 = vmatprep.mubr.bf16.mxu0 0
      %1873 = vmatmul.mubr.bf16.gmra.mrb[0].mxu0 %v1735
      %v1874 = vpop.f32.mrb[0].mxu0
      %v1875 = vadd.f32 0.0, %v1874
      %v1876 = vpop.f32.mrb[0].mxu0
      %v1877 = vpop.f32.mrb[0].mxu0
      %v1878 = vadd.f32 0.0, %v1877
      %v1879 = vpop.f32.mrb[0].mxu0
      %1880 = vmatprep.mubr.bf16.mxu0 0
      %1881 = vmatmul.mubr.bf16.gmra.mrb[0].mxu0 %v1738
      %v1882 = vpop.f32.mrb[0].mxu0
      %v1883 = vadd.f32 0.0, %v1882
      %v1884 = vpop.f32.mrb[0].mxu0
      %v1885 = vpop.f32.mrb[0].mxu0
      %v1886 = vadd.f32 0.0, %v1885
      %v1887 = vpop.f32.mrb[0].mxu0
      %1888 = vmatprep.mubr.bf16.mxu0 0
      %1889 = vmatmul.mubr.bf16.gmra.mrb[0].mxu0 %v1741
      %v1890 = vpop.f32.mrb[0].mxu0
      %v1891 = vadd.f32 0.0, %v1890
      %v1892 = vpop.f32.mrb[0].mxu0
      %v1893 = vpop.f32.mrb[0].mxu0
      %v1894 = vadd.f32 0.0, %v1893
      %v1895 = vpop.f32.mrb[0].mxu0
      %1896 = vmatprep.mubr.bf16.mxu0 0
      %1897 = vmatmul.mubr.bf16.gmra.mrb[0].mxu0 %v1744
      %v1898 = vpop.f32.mrb[0].mxu0
      %v1899 = vadd.f32 0.0, %v1898
      %v1900 = vpop.f32.mrb[0].mxu0
      %v1901 = vpop.f32.mrb[0].mxu0
      %v1902 = vadd.f32 0.0, %v1901
      %v1903 = vpop.f32.mrb[0].mxu0
      %1904 = vmatprep.mubr.bf16.mxu0 0
      %1905 = vmatmul.mubr.bf16.gmra.mrb[0].mxu0 %v1747
      %v1906 = vpop.f32.mrb[0].mxu0
      %v1907 = vadd.f32 0.0, %v1906
      %v1908 = vpop.f32.mrb[0].mxu0
      %v1909 = vpop.f32.mrb[0].mxu0
      %v1910 = vadd.f32 0.0, %v1909
      %v1911 = vpop.f32.mrb[0].mxu0
      %1912 = vdwg.mxu0
      %v1913 = vadd.f32 %v1619, %v1787
      %v1914 = vadd.f32 %v1620, %v1790
      %v1915 = vadd.f32 %v1621, %v1795
      %v1916 = vadd.f32 %v1622, %v1798
      %v1917 = vadd.f32 %v1623, %v1803
      %v1918 = vadd.f32 %v1624, %v1806
      %v1919 = vadd.f32 %v1625, %v1811
      %v1920 = vadd.f32 %v1626, %v1814
      %v1921 = vadd.f32 %v1627, %v1819
      %v1922 = vadd.f32 %v1628, %v1822
      %v1923 = vadd.f32 %v1629, %v1827
      %v1924 = vadd.f32 %v1630, %v1830
      %v1925 = vadd.f32 %v1631, %v1835
      %v1926 = vadd.f32 %v1632, %v1838
      %v1927 = vadd.f32 %v1633, %v1843
      %v1928 = vadd.f32 %v1634, %v1846
      %v1929 = vadd.f32 %v1635, %v1851
      %v1930 = vadd.f32 %v1636, %v1854
      %v1931 = vadd.f32 %v1637, %v1859
      %v1932 = vadd.f32 %v1638, %v1862
      %v1933 = vadd.f32 %v1639, %v1867
      %v1934 = vadd.f32 %v1640, %v1870
      %v1935 = vadd.f32 %v1641, %v1875
      %v1936 = vadd.f32 %v1642, %v1878
      %v1937 = vadd.f32 %v1643, %v1883
      %v1938 = vadd.f32 %v1644, %v1886
      %v1939 = vadd.f32 %v1645, %v1891
      %v1940 = vadd.f32 %v1646, %v1894
      %v1941 = vadd.f32 %v1647, %v1899
      %v1942 = vadd.f32 %v1648, %v1902
      %v1943 = vadd.f32 %v1649, %v1907
      %v1944 = vadd.f32 %v1650, %v1910
      %v1945 = vld [vmem:[%s503 + $0x2] sm:$0xff]
      %v1946 = vld [vmem:[%s503 + $0xa] sm:$0xff]
      %v1947 = vld [vmem:[%s503 + $0x1a] sm:$0xff]
      %v1948 = vld [vmem:[%s503 + $0x22] sm:$0xff]
      %v1949 = vld [vmem:[%s503 + $0x32] sm:$0xff]
      %v1950 = vld [vmem:[%s503 + $0x3a] sm:$0xff]
      %v1951 = vld [vmem:[%s503 + $0x4a] sm:$0xff]
      %v1952 = vld [vmem:[%s503 + $0x52] sm:$0xff]
      %v1953 = vld [vmem:[%s503 + $0x62] sm:$0xff]
      %v1954 = vld [vmem:[%s503 + $0x6a] sm:$0xff]
      %v1955 = vld [vmem:[%s503 + $0x7a] sm:$0xff]
      %v1956 = vld [vmem:[%s503 + $0x82] sm:$0xff]
      %v1957 = vld [vmem:[%s503 + $0x92] sm:$0xff]
      %v1958 = vld [vmem:[%s503 + $0x9a] sm:$0xff]
      %v1959 = vld [vmem:[%s503 + $0xaa] sm:$0xff]
      %v1960 = vld [vmem:[%s503 + $0xb2] sm:$0xff]
      %v1961 = vld [vmem:[%s503 + $0xc2] sm:$0xff]
      %v1962 = vld [vmem:[%s503 + $0xca] sm:$0xff]
      %v1963 = vld [vmem:[%s503 + $0xda] sm:$0xff]
      %v1964 = vld [vmem:[%s503 + $0xe2] sm:$0xff]
      %v1965 = vld [vmem:[%s503 + $0xf2] sm:$0xff]
      %v1966 = vld [vmem:[%s503 + $0xfa] sm:$0xff]
      %v1967 = vld [vmem:[%s503 + $0x10a] sm:$0xff]
      %v1968 = vld [vmem:[%s503 + $0x112] sm:$0xff]
      %v1969 = vld [vmem:[%s503 + $0x122] sm:$0xff]
      %v1970 = vld [vmem:[%s503 + $0x12a] sm:$0xff]
      %v1971 = vld [vmem:[%s503 + $0x13a] sm:$0xff]
      %v1972 = vld [vmem:[%s503 + $0x142] sm:$0xff]
      %v1973 = vld [vmem:[%s503 + $0x152] sm:$0xff]
      %v1974 = vld [vmem:[%s503 + $0x15a] sm:$0xff]
      %v1975 = vld [vmem:[%s503 + $0x16a] sm:$0xff]
      %v1976 = vld [vmem:[%s503 + $0x172] sm:$0xff]
      %v1977 = vpack.c.bf16 %v1946, %v1945
      %v1978 = vpack.c.bf16 %v1948, %v1947
      %v1979 = vpack.c.bf16 %v1950, %v1949
      %v1980 = vpack.c.bf16 %v1952, %v1951
      %v1981 = vpack.c.bf16 %v1954, %v1953
      %v1982 = vpack.c.bf16 %v1956, %v1955
      %v1983 = vpack.c.bf16 %v1958, %v1957
      %v1984 = vpack.c.bf16 %v1960, %v1959
      %v1985 = vpack.c.bf16 %v1962, %v1961
      %v1986 = vpack.c.bf16 %v1964, %v1963
      %v1987 = vpack.c.bf16 %v1966, %v1965
      %v1988 = vpack.c.bf16 %v1968, %v1967
      %v1989 = vpack.c.bf16 %v1970, %v1969
      %v1990 = vpack.c.bf16 %v1972, %v1971
      %v1991 = vpack.c.bf16 %v1974, %v1973
      %v1992 = vpack.c.bf16 %v1976, %v1975
      %s1993 = scalar_lea.vmem %s1, 10
      %v1994 = vld [vmem:[%s1993] sm:$0x3]
      %v1996 = vsel %vm447, %v1977, 0
      %v1999 = vsel %vm447, %v1978, 0
      %v2002 = vsel %vm447, %v1979, 0
      %v2005 = vsel %vm447, %v1980, 0
      %v2008 = vsel %vm447, %v1981, 0
      %v2011 = vsel %vm447, %v1982, 0
      %v2014 = vsel %vm447, %v1983, 0
      %v2017 = vsel %vm447, %v1984, 0
      %v2020 = vsel %vm447, %v1985, 0
      %v2023 = vsel %vm447, %v1986, 0
      %v2026 = vsel %vm447, %v1987, 0
      %v2029 = vsel %vm447, %v1988, 0
      %v2032 = vsel %vm447, %v1989, 0
      %v2035 = vsel %vm447, %v1990, 0
      %v2038 = vsel %vm447, %v1991, 0
      %v2041 = vsel %vm447, %v1992, 0
      %v2044 = vand.u32 %v1994, %v686
      %2046 = vmatprep.subr.bf16.mxu0 0
      %2047 = vmatpush1.bf16.msra.mxu0 %v2044
      %2048 = vmatprep.subr.bf16.mxu0 0
      %2049 = vmatpush1.bf16.msra.mxu0 0
      %2050 = vmatprep.subr.bf16.mxu0 0
      %2051 = vmatpush1.bf16.msra.mxu0 0
      %2052 = vmatprep.subr.bf16.mxu0 0
      %2053 = vmatpush1.bf16.msra.mxu0 0
      %2054 = vmatprep.subr.bf16.mxu0 0
      %2055 = vmatpush1.bf16.msra.mxu0 0
      %2056 = vmatprep.subr.bf16.mxu0 0
      %2057 = vmatpush1.bf16.msra.mxu0 0
      %2058 = vmatprep.subr.bf16.mxu0 0
      %2059 = vmatpush1.bf16.msra.mxu0 0
      %2060 = vmatprep.subr.bf16.mxu0 0
      %2061 = vmatpush1.bf16.msra.mxu0 0
      %2062 = vmatprep.subr.bf16.mxu0 0
      %2063 = vmatpush1.bf16.msra.mxu0 0
      %2064 = vmatprep.subr.bf16.mxu0 0
      %2065 = vmatpush1.bf16.msra.mxu0 0
      %2066 = vmatprep.subr.bf16.mxu0 0
      %2067 = vmatpush1.bf16.msra.mxu0 0
      %2068 = vmatprep.subr.bf16.mxu0 0
      %2069 = vmatpush1.bf16.msra.mxu0 0
      %2070 = vmatprep.subr.bf16.mxu0 0
      %2071 = vmatpush1.bf16.msra.mxu0 0
      %2072 = vmatprep.subr.bf16.mxu0 0
      %2073 = vmatpush1.bf16.msra.mxu0 0
      %2074 = vmatprep.subr.bf16.mxu0 0
      %2075 = vmatpush1.bf16.msra.mxu0 0
      %2076 = vmatprep.subr.bf16.mxu0 0
      %2077 = vmatpush1.bf16.msra.mxu0 0
      %2078 = vmatprep.mubr.bf16.mxu0 0
      %2079 = vmatmul.mubr.bf16.gmra.mrb[0].mxu0 %v1996
      %v2080 = vpop.f32.mrb[0].mxu0
      %v2081 = vadd.f32 0.0, %v2080
      %v2082 = vpop.f32.mrb[0].mxu0
      %v2083 = vpop.f32.mrb[0].mxu0
      %v2084 = vadd.f32 0.0, %v2083
      %v2085 = vpop.f32.mrb[0].mxu0
      %2086 = vmatprep.mubr.bf16.mxu0 0
      %2087 = vmatmul.mubr.bf16.gmra.mrb[0].mxu0 %v1999
      %v2088 = vpop.f32.mrb[0].mxu0
      %v2089 = vadd.f32 0.0, %v2088
      %v2090 = vpop.f32.mrb[0].mxu0
      %v2091 = vpop.f32.mrb[0].mxu0
      %v2092 = vadd.f32 0.0, %v2091
      %v2093 = vpop.f32.mrb[0].mxu0
      %2094 = vmatprep.mubr.bf16.mxu0 0
      %2095 = vmatmul.mubr.bf16.gmra.mrb[0].mxu0 %v2002
      %v2096 = vpop.f32.mrb[0].mxu0
      %v2097 = vadd.f32 0.0, %v2096
      %v2098 = vpop.f32.mrb[0].mxu0
      %v2099 = vpop.f32.mrb[0].mxu0
      %v2100 = vadd.f32 0.0, %v2099
      %v2101 = vpop.f32.mrb[0].mxu0
      %2102 = vmatprep.mubr.bf16.mxu0 0
      %2103 = vmatmul.mubr.bf16.gmra.mrb[0].mxu0 %v2005
      %v2104 = vpop.f32.mrb[0].mxu0
      %v2105 = vadd.f32 0.0, %v2104
      %v2106 = vpop.f32.mrb[0].mxu0
      %v2107 = vpop.f32.mrb[0].mxu0
      %v2108 = vadd.f32 0.0, %v2107
      %v2109 = vpop.f32.mrb[0].mxu0
      %2110 = vmatprep.mubr.bf16.mxu0 0
      %2111 = vmatmul.mubr.bf16.gmra.mrb[0].mxu0 %v2008
      %v2112 = vpop.f32.mrb[0].mxu0
      %v2113 = vadd.f32 0.0, %v2112
      %v2114 = vpop.f32.mrb[0].mxu0
      %v2115 = vpop.f32.mrb[0].mxu0
      %v2116 = vadd.f32 0.0, %v2115
      %v2117 = vpop.f32.mrb[0].mxu0
      %2118 = vmatprep.mubr.bf16.mxu0 0
      %2119 = vmatmul.mubr.bf16.gmra.mrb[0].mxu0 %v2011
      %v2120 = vpop.f32.mrb[0].mxu0
      %v2121 = vadd.f32 0.0, %v2120
      %v2122 = vpop.f32.mrb[0].mxu0
      %v2123 = vpop.f32.mrb[0].mxu0
      %v2124 = vadd.f32 0.0, %v2123
      %v2125 = vpop.f32.mrb[0].mxu0
      %2126 = vmatprep.mubr.bf16.mxu0 0
      %2127 = vmatmul.mubr.bf16.gmra.mrb[0].mxu0 %v2014
      %v2128 = vpop.f32.mrb[0].mxu0
      %v2129 = vadd.f32 0.0, %v2128
      %v2130 = vpop.f32.mrb[0].mxu0
      %v2131 = vpop.f32.mrb[0].mxu0
      %v2132 = vadd.f32 0.0, %v2131
      %v2133 = vpop.f32.mrb[0].mxu0
      %2134 = vmatprep.mubr.bf16.mxu0 0
      %2135 = vmatmul.mubr.bf16.gmra.mrb[0].mxu0 %v2017
      %v2136 = vpop.f32.mrb[0].mxu0
      %v2137 = vadd.f32 0.0, %v2136
      %v2138 = vpop.f32.mrb[0].mxu0
      %v2139 = vpop.f32.mrb[0].mxu0
      %v2140 = vadd.f32 0.0, %v2139
      %v2141 = vpop.f32.mrb[0].mxu0
      %2142 = vmatprep.mubr.bf16.mxu0 0
      %2143 = vmatmul.mubr.bf16.gmra.mrb[0].mxu0 %v2020
      %v2144 = vpop.f32.mrb[0].mxu0
      %v2145 = vadd.f32 0.0, %v2144
      %v2146 = vpop.f32.mrb[0].mxu0
      %v2147 = vpop.f32.mrb[0].mxu0
      %v2148 = vadd.f32 0.0, %v2147
      %v2149 = vpop.f32.mrb[0].mxu0
      %2150 = vmatprep.mubr.bf16.mxu0 0
      %2151 = vmatmul.mubr.bf16.gmra.mrb[0].mxu0 %v2023
      %v2152 = vpop.f32.mrb[0].mxu0
      %v2153 = vadd.f32 0.0, %v2152
      %v2154 = vpop.f32.mrb[0].mxu0
      %v2155 = vpop.f32.mrb[0].mxu0
      %v2156 = vadd.f32 0.0, %v2155
      %v2157 = vpop.f32.mrb[0].mxu0
      %2158 = vmatprep.mubr.bf16.mxu0 0
      %2159 = vmatmul.mubr.bf16.gmra.mrb[0].mxu0 %v2026
      %v2160 = vpop.f32.mrb[0].mxu0
      %v2161 = vadd.f32 0.0, %v2160
      %v2162 = vpop.f32.mrb[0].mxu0
      %v2163 = vpop.f32.mrb[0].mxu0
      %v2164 = vadd.f32 0.0, %v2163
      %v2165 = vpop.f32.mrb[0].mxu0
      %2166 = vmatprep.mubr.bf16.mxu0 0
      %2167 = vmatmul.mubr.bf16.gmra.mrb[0].mxu0 %v2029
      %v2168 = vpop.f32.mrb[0].mxu0
      %v2169 = vadd.f32 0.0, %v2168
      %v2170 = vpop.f32.mrb[0].mxu0
      %v2171 = vpop.f32.mrb[0].mxu0
      %v2172 = vadd.f32 0.0, %v2171
      %v2173 = vpop.f32.mrb[0].mxu0
      %2174 = vmatprep.mubr.bf16.mxu0 0
      %2175 = vmatmul.mubr.bf16.gmra.mrb[0].mxu0 %v2032
      %v2176 = vpop.f32.mrb[0].mxu0
      %v2177 = vadd.f32 0.0, %v2176
      %v2178 = vpop.f32.mrb[0].mxu0
      %v2179 = vpop.f32.mrb[0].mxu0
      %v2180 = vadd.f32 0.0, %v2179
      %v2181 = vpop.f32.mrb[0].mxu0
      %2182 = vmatprep.mubr.bf16.mxu0 0
      %2183 = vmatmul.mubr.bf16.gmra.mrb[0].mxu0 %v2035
      %v2184 = vpop.f32.mrb[0].mxu0
      %v2185 = vadd.f32 0.0, %v2184
      %v2186 = vpop.f32.mrb[0].mxu0
      %v2187 = vpop.f32.mrb[0].mxu0
      %v2188 = vadd.f32 0.0, %v2187
      %v2189 = vpop.f32.mrb[0].mxu0
      %2190 = vmatprep.mubr.bf16.mxu0 0
      %2191 = vmatmul.mubr.bf16.gmra.mrb[0].mxu0 %v2038
      %v2192 = vpop.f32.mrb[0].mxu0
      %v2193 = vadd.f32 0.0, %v2192
      %v2194 = vpop.f32.mrb[0].mxu0
      %v2195 = vpop.f32.mrb[0].mxu0
      %v2196 = vadd.f32 0.0, %v2195
      %v2197 = vpop.f32.mrb[0].mxu0
      %2198 = vmatprep.mubr.bf16.mxu0 0
      %2199 = vmatmul.mubr.bf16.gmra.mrb[0].mxu0 %v2041
      %v2200 = vpop.f32.mrb[0].mxu0
      %v2201 = vadd.f32 0.0, %v2200
      %v2202 = vpop.f32.mrb[0].mxu0
      %v2203 = vpop.f32.mrb[0].mxu0
      %v2204 = vadd.f32 0.0, %v2203
      %v2205 = vpop.f32.mrb[0].mxu0
      %2206 = vdwg.mxu0
      %v2207 = vadd.f32 %v1913, %v2081
      %v2208 = vadd.f32 %v1914, %v2084
      %v2209 = vadd.f32 %v1915, %v2089
      %v2210 = vadd.f32 %v1916, %v2092
      %v2211 = vadd.f32 %v1917, %v2097
      %v2212 = vadd.f32 %v1918, %v2100
      %v2213 = vadd.f32 %v1919, %v2105
      %v2214 = vadd.f32 %v1920, %v2108
      %v2215 = vadd.f32 %v1921, %v2113
      %v2216 = vadd.f32 %v1922, %v2116
      %v2217 = vadd.f32 %v1923, %v2121
      %v2218 = vadd.f32 %v1924, %v2124
      %v2219 = vadd.f32 %v1925, %v2129
      %v2220 = vadd.f32 %v1926, %v2132
      %v2221 = vadd.f32 %v1927, %v2137
      %v2222 = vadd.f32 %v1928, %v2140
      %v2223 = vadd.f32 %v1929, %v2145
      %v2224 = vadd.f32 %v1930, %v2148
      %v2225 = vadd.f32 %v1931, %v2153
      %v2226 = vadd.f32 %v1932, %v2156
      %v2227 = vadd.f32 %v1933, %v2161
      %v2228 = vadd.f32 %v1934, %v2164
      %v2229 = vadd.f32 %v1935, %v2169
      %v2230 = vadd.f32 %v1936, %v2172
      %v2231 = vadd.f32 %v1937, %v2177
      %v2232 = vadd.f32 %v1938, %v2180
      %v2233 = vadd.f32 %v1939, %v2185
      %v2234 = vadd.f32 %v1940, %v2188
      %v2235 = vadd.f32 %v1941, %v2193
      %v2236 = vadd.f32 %v1942, %v2196
      %v2237 = vadd.f32 %v1943, %v2201
      %v2238 = vadd.f32 %v1944, %v2204
      %s2239 = scalar_lea.vmem [#allocation2], 48
      %v2240 = vld [vmem:[%s2239] sm:$0xff]
      %v2241 = vld [vmem:[%s2239 + $0x8] sm:$0xff]
      %v2242 = vld [vmem:[%s2239 + $0x18] sm:$0xff]
      %v2243 = vld [vmem:[%s2239 + $0x20] sm:$0xff]
      %v2244 = vld [vmem:[%s2239 + $0x30] sm:$0xff]
      %v2245 = vld [vmem:[%s2239 + $0x38] sm:$0xff]
      %v2246 = vld [vmem:[%s2239 + $0x48] sm:$0xff]
      %v2247 = vld [vmem:[%s2239 + $0x50] sm:$0xff]
      %v2248 = vld [vmem:[%s2239 + $0x60] sm:$0xff]
      %v2249 = vld [vmem:[%s2239 + $0x68] sm:$0xff]
      %v2250 = vld [vmem:[%s2239 + $0x78] sm:$0xff]
      %v2251 = vld [vmem:[%s2239 + $0x80] sm:$0xff]
      %v2252 = vld [vmem:[%s2239 + $0x90] sm:$0xff]
      %v2253 = vld [vmem:[%s2239 + $0x98] sm:$0xff]
      %v2254 = vld [vmem:[%s2239 + $0xa8] sm:$0xff]
      %v2255 = vld [vmem:[%s2239 + $0xb0] sm:$0xff]
      %v2256 = vld [vmem:[%s2239 + $0xc0] sm:$0xff]
      %v2257 = vld [vmem:[%s2239 + $0xc8] sm:$0xff]
      %v2258 = vld [vmem:[%s2239 + $0xd8] sm:$0xff]
      %v2259 = vld [vmem:[%s2239 + $0xe0] sm:$0xff]
      %v2260 = vld [vmem:[%s2239 + $0xf0] sm:$0xff]
      %v2261 = vld [vmem:[%s2239 + $0xf8] sm:$0xff]
      %v2262 = vld [vmem:[%s2239 + $0x108] sm:$0xff]
      %v2263 = vld [vmem:[%s2239 + $0x110] sm:$0xff]
      %v2264 = vld [vmem:[%s2239 + $0x120] sm:$0xff]
      %v2265 = vld [vmem:[%s2239 + $0x128] sm:$0xff]
      %v2266 = vld [vmem:[%s2239 + $0x138] sm:$0xff]
      %v2267 = vld [vmem:[%s2239 + $0x140] sm:$0xff]
      %v2268 = vld [vmem:[%s2239 + $0x150] sm:$0xff]
      %v2269 = vld [vmem:[%s2239 + $0x158] sm:$0xff]
      %v2270 = vld [vmem:[%s2239 + $0x168] sm:$0xff]
      %v2271 = vld [vmem:[%s2239 + $0x170] sm:$0xff]
      %v2272 = vpack.c.bf16 %v2241, %v2240
      %v2273 = vpack.c.bf16 %v2243, %v2242
      %v2274 = vpack.c.bf16 %v2245, %v2244
      %v2275 = vpack.c.bf16 %v2247, %v2246
      %v2276 = vpack.c.bf16 %v2249, %v2248
      %v2277 = vpack.c.bf16 %v2251, %v2250
      %v2278 = vpack.c.bf16 %v2253, %v2252
      %v2279 = vpack.c.bf16 %v2255, %v2254
      %v2280 = vpack.c.bf16 %v2257, %v2256
      %v2281 = vpack.c.bf16 %v2259, %v2258
      %v2282 = vpack.c.bf16 %v2261, %v2260
      %v2283 = vpack.c.bf16 %v2263, %v2262
      %v2284 = vpack.c.bf16 %v2265, %v2264
      %v2285 = vpack.c.bf16 %v2267, %v2266
      %v2286 = vpack.c.bf16 %v2269, %v2268
      %v2287 = vpack.c.bf16 %v2271, %v2270
      %s2288 = scalar_lea.vmem %s1, 12
      %v2289 = vld [vmem:[%s2288] sm:$0x3]
      %v2291 = vsel %vm447, %v2272, 0
      %v2294 = vsel %vm447, %v2273, 0
      %v2297 = vsel %vm447, %v2274, 0
      %v2300 = vsel %vm447, %v2275, 0
      %v2303 = vsel %vm447, %v2276, 0
      %v2306 = vsel %vm447, %v2277, 0
      %v2309 = vsel %vm447, %v2278, 0
      %v2312 = vsel %vm447, %v2279, 0
      %v2315 = vsel %vm447, %v2280, 0
      %v2318 = vsel %vm447, %v2281, 0
      %v2321 = vsel %vm447, %v2282, 0
      %v2324 = vsel %vm447, %v2283, 0
      %v2327 = vsel %vm447, %v2284, 0
      %v2330 = vsel %vm447, %v2285, 0
      %v2333 = vsel %vm447, %v2286, 0
      %v2336 = vsel %vm447, %v2287, 0
      %v2339 = vand.u32 %v2289, %v686
      %2341 = vmatprep.subr.bf16.mxu0 0
      %2342 = vmatpush1.bf16.msra.mxu0 %v2339
      %2343 = vmatprep.subr.bf16.mxu0 0
      %2344 = vmatpush1.bf16.msra.mxu0 0
      %2345 = vmatprep.subr.bf16.mxu0 0
      %2346 = vmatpush1.bf16.msra.mxu0 0
      %2347 = vmatprep.subr.bf16.mxu0 0
      %2348 = vmatpush1.bf16.msra.mxu0 0
      %2349 = vmatprep.subr.bf16.mxu0 0
      %2350 = vmatpush1.bf16.msra.mxu0 0
      %2351 = vmatprep.subr.bf16.mxu0 0
      %2352 = vmatpush1.bf16.msra.mxu0 0
      %2353 = vmatprep.subr.bf16.mxu0 0
      %2354 = vmatpush1.bf16.msra.mxu0 0
      %2355 = vmatprep.subr.bf16.mxu0 0
      %2356 = vmatpush1.bf16.msra.mxu0 0
      %2357 = vmatprep.subr.bf16.mxu0 0
      %2358 = vmatpush1.bf16.msra.mxu0 0
      %2359 = vmatprep.subr.bf16.mxu0 0
      %2360 = vmatpush1.bf16.msra.mxu0 0
      %2361 = vmatprep.subr.bf16.mxu0 0
      %2362 = vmatpush1.bf16.msra.mxu0 0
      %2363 = vmatprep.subr.bf16.mxu0 0
      %2364 = vmatpush1.bf16.msra.mxu0 0
      %2365 = vmatprep.subr.bf16.mxu0 0
      %2366 = vmatpush1.bf16.msra.mxu0 0
      %2367 = vmatprep.subr.bf16.mxu0 0
      %2368 = vmatpush1.bf16.msra.mxu0 0
      %2369 = vmatprep.subr.bf16.mxu0 0
      %2370 = vmatpush1.bf16.msra.mxu0 0
      %2371 = vmatprep.subr.bf16.mxu0 0
      %2372 = vmatpush1.bf16.msra.mxu0 0
      %2373 = vmatprep.mubr.bf16.mxu0 0
      %2374 = vmatmul.mubr.bf16.gmra.mrb[0].mxu0 %v2291
      %v2375 = vpop.f32.mrb[0].mxu0
      %v2376 = vadd.f32 0.0, %v2375
      %v2377 = vpop.f32.mrb[0].mxu0
      %v2378 = vpop.f32.mrb[0].mxu0
      %v2379 = vadd.f32 0.0, %v2378
      %v2380 = vpop.f32.mrb[0].mxu0
      %2381 = vmatprep.mubr.bf16.mxu0 0
      %2382 = vmatmul.mubr.bf16.gmra.mrb[0].mxu0 %v2294
      %v2383 = vpop.f32.mrb[0].mxu0
      %v2384 = vadd.f32 0.0, %v2383
      %v2385 = vpop.f32.mrb[0].mxu0
      %v2386 = vpop.f32.mrb[0].mxu0
      %v2387 = vadd.f32 0.0, %v2386
      %v2388 = vpop.f32.mrb[0].mxu0
      %2389 = vmatprep.mubr.bf16.mxu0 0
      %2390 = vmatmul.mubr.bf16.gmra.mrb[0].mxu0 %v2297
      %v2391 = vpop.f32.mrb[0].mxu0
      %v2392 = vadd.f32 0.0, %v2391
      %v2393 = vpop.f32.mrb[0].mxu0
      %v2394 = vpop.f32.mrb[0].mxu0
      %v2395 = vadd.f32 0.0, %v2394
      %v2396 = vpop.f32.mrb[0].mxu0
      %2397 = vmatprep.mubr.bf16.mxu0 0
      %2398 = vmatmul.mubr.bf16.gmra.mrb[0].mxu0 %v2300
      %v2399 = vpop.f32.mrb[0].mxu0
      %v2400 = vadd.f32 0.0, %v2399
      %v2401 = vpop.f32.mrb[0].mxu0
      %v2402 = vpop.f32.mrb[0].mxu0
      %v2403 = vadd.f32 0.0, %v2402
      %v2404 = vpop.f32.mrb[0].mxu0
      %2405 = vmatprep.mubr.bf16.mxu0 0
      %2406 = vmatmul.mubr.bf16.gmra.mrb[0].mxu0 %v2303
      %v2407 = vpop.f32.mrb[0].mxu0
      %v2408 = vadd.f32 0.0, %v2407
      %v2409 = vpop.f32.mrb[0].mxu0
      %v2410 = vpop.f32.mrb[0].mxu0
      %v2411 = vadd.f32 0.0, %v2410
      %v2412 = vpop.f32.mrb[0].mxu0
      %2413 = vmatprep.mubr.bf16.mxu0 0
      %2414 = vmatmul.mubr.bf16.gmra.mrb[0].mxu0 %v2306
      %v2415 = vpop.f32.mrb[0].mxu0
      %v2416 = vadd.f32 0.0, %v2415
      %v2417 = vpop.f32.mrb[0].mxu0
      %v2418 = vpop.f32.mrb[0].mxu0
      %v2419 = vadd.f32 0.0, %v2418
      %v2420 = vpop.f32.mrb[0].mxu0
      %2421 = vmatprep.mubr.bf16.mxu0 0
      %2422 = vmatmul.mubr.bf16.gmra.mrb[0].mxu0 %v2309
      %v2423 = vpop.f32.mrb[0].mxu0
      %v2424 = vadd.f32 0.0, %v2423
      %v2425 = vpop.f32.mrb[0].mxu0
      %v2426 = vpop.f32.mrb[0].mxu0
      %v2427 = vadd.f32 0.0, %v2426
      %v2428 = vpop.f32.mrb[0].mxu0
      %2429 = vmatprep.mubr.bf16.mxu0 0
      %2430 = vmatmul.mubr.bf16.gmra.mrb[0].mxu0 %v2312
      %v2431 = vpop.f32.mrb[0].mxu0
      %v2432 = vadd.f32 0.0, %v2431
      %v2433 = vpop.f32.mrb[0].mxu0
      %v2434 = vpop.f32.mrb[0].mxu0
      %v2435 = vadd.f32 0.0, %v2434
      %v2436 = vpop.f32.mrb[0].mxu0
      %2437 = vmatprep.mubr.bf16.mxu0 0
      %2438 = vmatmul.mubr.bf16.gmra.mrb[0].mxu0 %v2315
      %v2439 = vpop.f32.mrb[0].mxu0
      %v2440 = vadd.f32 0.0, %v2439
      %v2441 = vpop.f32.mrb[0].mxu0
      %v2442 = vpop.f32.mrb[0].mxu0
      %v2443 = vadd.f32 0.0, %v2442
      %v2444 = vpop.f32.mrb[0].mxu0
      %2445 = vmatprep.mubr.bf16.mxu0 0
      %2446 = vmatmul.mubr.bf16.gmra.mrb[0].mxu0 %v2318
      %v2447 = vpop.f32.mrb[0].mxu0
      %v2448 = vadd.f32 0.0, %v2447
      %v2449 = vpop.f32.mrb[0].mxu0
      %v2450 = vpop.f32.mrb[0].mxu0
      %v2451 = vadd.f32 0.0, %v2450
      %v2452 = vpop.f32.mrb[0].mxu0
      %2453 = vmatprep.mubr.bf16.mxu0 0
      %2454 = vmatmul.mubr.bf16.gmra.mrb[0].mxu0 %v2321
      %v2455 = vpop.f32.mrb[0].mxu0
      %v2456 = vadd.f32 0.0, %v2455
      %v2457 = vpop.f32.mrb[0].mxu0
      %v2458 = vpop.f32.mrb[0].mxu0
      %v2459 = vadd.f32 0.0, %v2458
      %v2460 = vpop.f32.mrb[0].mxu0
      %2461 = vmatprep.mubr.bf16.mxu0 0
      %2462 = vmatmul.mubr.bf16.gmra.mrb[0].mxu0 %v2324
      %v2463 = vpop.f32.mrb[0].mxu0
      %v2464 = vadd.f32 0.0, %v2463
      %v2465 = vpop.f32.mrb[0].mxu0
      %v2466 = vpop.f32.mrb[0].mxu0
      %v2467 = vadd.f32 0.0, %v2466
      %v2468 = vpop.f32.mrb[0].mxu0
      %2469 = vmatprep.mubr.bf16.mxu0 0
      %2470 = vmatmul.mubr.bf16.gmra.mrb[0].mxu0 %v2327
      %v2471 = vpop.f32.mrb[0].mxu0
      %v2472 = vadd.f32 0.0, %v2471
      %v2473 = vpop.f32.mrb[0].mxu0
      %v2474 = vpop.f32.mrb[0].mxu0
      %v2475 = vadd.f32 0.0, %v2474
      %v2476 = vpop.f32.mrb[0].mxu0
      %2477 = vmatprep.mubr.bf16.mxu0 0
      %2478 = vmatmul.mubr.bf16.gmra.mrb[0].mxu0 %v2330
      %v2479 = vpop.f32.mrb[0].mxu0
      %v2480 = vadd.f32 0.0, %v2479
      %v2481 = vpop.f32.mrb[0].mxu0
      %v2482 = vpop.f32.mrb[0].mxu0
      %v2483 = vadd.f32 0.0, %v2482
      %v2484 = vpop.f32.mrb[0].mxu0
      %2485 = vmatprep.mubr.bf16.mxu0 0
      %2486 = vmatmul.mubr.bf16.gmra.mrb[0].mxu0 %v2333
      %v2487 = vpop.f32.mrb[0].mxu0
      %v2488 = vadd.f32 0.0, %v2487
      %v2489 = vpop.f32.mrb[0].mxu0
      %v2490 = vpop.f32.mrb[0].mxu0
      %v2491 = vadd.f32 0.0, %v2490
      %v2492 = vpop.f32.mrb[0].mxu0
      %2493 = vmatprep.mubr.bf16.mxu0 0
      %2494 = vmatmul.mubr.bf16.gmra.mrb[0].mxu0 %v2336
      %v2495 = vpop.f32.mrb[0].mxu0
      %v2496 = vadd.f32 0.0, %v2495
      %v2497 = vpop.f32.mrb[0].mxu0
      %v2498 = vpop.f32.mrb[0].mxu0
      %v2499 = vadd.f32 0.0, %v2498
      %v2500 = vpop.f32.mrb[0].mxu0
      %2501 = vdwg.mxu0
      %v2502 = vadd.f32 %v2207, %v2376
      %v2503 = vadd.f32 %v2208, %v2379
      %v2504 = vadd.f32 %v2209, %v2384
      %v2505 = vadd.f32 %v2210, %v2387
      %v2506 = vadd.f32 %v2211, %v2392
      %v2507 = vadd.f32 %v2212, %v2395
      %v2508 = vadd.f32 %v2213, %v2400
      %v2509 = vadd.f32 %v2214, %v2403
      %v2510 = vadd.f32 %v2215, %v2408
      %v2511 = vadd.f32 %v2216, %v2411
      %v2512 = vadd.f32 %v2217, %v2416
      %v2513 = vadd.f32 %v2218, %v2419
      %v2514 = vadd.f32 %v2219, %v2424
      %v2515 = vadd.f32 %v2220, %v2427
      %v2516 = vadd.f32 %v2221, %v2432
      %v2517 = vadd.f32 %v2222, %v2435
      %v2518 = vadd.f32 %v2223, %v2440
      %v2519 = vadd.f32 %v2224, %v2443
      %v2520 = vadd.f32 %v2225, %v2448
      %v2521 = vadd.f32 %v2226, %v2451
      %v2522 = vadd.f32 %v2227, %v2456
      %v2523 = vadd.f32 %v2228, %v2459
      %v2524 = vadd.f32 %v2229, %v2464
      %v2525 = vadd.f32 %v2230, %v2467
      %v2526 = vadd.f32 %v2231, %v2472
      %v2527 = vadd.f32 %v2232, %v2475
      %v2528 = vadd.f32 %v2233, %v2480
      %v2529 = vadd.f32 %v2234, %v2483
      %v2530 = vadd.f32 %v2235, %v2488
      %v2531 = vadd.f32 %v2236, %v2491
      %v2532 = vadd.f32 %v2237, %v2496
      %v2533 = vadd.f32 %v2238, %v2499
      %v2534 = vld [vmem:[%s2239 + $0x1] sm:$0xff]
      %v2535 = vld [vmem:[%s2239 + $0x9] sm:$0xff]
      %v2536 = vld [vmem:[%s2239 + $0x19] sm:$0xff]
      %v2537 = vld [vmem:[%s2239 + $0x21] sm:$0xff]
      %v2538 = vld [vmem:[%s2239 + $0x31] sm:$0xff]
      %v2539 = vld [vmem:[%s2239 + $0x39] sm:$0xff]
      %v2540 = vld [vmem:[%s2239 + $0x49] sm:$0xff]
      %v2541 = vld [vmem:[%s2239 + $0x51] sm:$0xff]
      %v2542 = vld [vmem:[%s2239 + $0x61] sm:$0xff]
      %v2543 = vld [vmem:[%s2239 + $0x69] sm:$0xff]
      %v2544 = vld [vmem:[%s2239 + $0x79] sm:$0xff]
      %v2545 = vld [vmem:[%s2239 + $0x81] sm:$0xff]
      %v2546 = vld [vmem:[%s2239 + $0x91] sm:$0xff]
      %v2547 = vld [vmem:[%s2239 + $0x99] sm:$0xff]
      %v2548 = vld [vmem:[%s2239 + $0xa9] sm:$0xff]
      %v2549 = vld [vmem:[%s2239 + $0xb1] sm:$0xff]
      %v2550 = vld [vmem:[%s2239 + $0xc1] sm:$0xff]
      %v2551 = vld [vmem:[%s2239 + $0xc9] sm:$0xff]
      %v2552 = vld [vmem:[%s2239 + $0xd9] sm:$0xff]
      %v2553 = vld [vmem:[%s2239 + $0xe1] sm:$0xff]
      %v2554 = vld [vmem:[%s2239 + $0xf1] sm:$0xff]
      %v2555 = vld [vmem:[%s2239 + $0xf9] sm:$0xff]
      %v2556 = vld [vmem:[%s2239 + $0x109] sm:$0xff]
      %v2557 = vld [vmem:[%s2239 + $0x111] sm:$0xff]
      %v2558 = vld [vmem:[%s2239 + $0x121] sm:$0xff]
      %v2559 = vld [vmem:[%s2239 + $0x129] sm:$0xff]
      %v2560 = vld [vmem:[%s2239 + $0x139] sm:$0xff]
      %v2561 = vld [vmem:[%s2239 + $0x141] sm:$0xff]
      %v2562 = vld [vmem:[%s2239 + $0x151] sm:$0xff]
      %v2563 = vld [vmem:[%s2239 + $0x159] sm:$0xff]
      %v2564 = vld [vmem:[%s2239 + $0x169] sm:$0xff]
      %v2565 = vld [vmem:[%s2239 + $0x171] sm:$0xff]
      %v2566 = vpack.c.bf16 %v2535, %v2534
      %v2567 = vpack.c.bf16 %v2537, %v2536
      %v2568 = vpack.c.bf16 %v2539, %v2538
      %v2569 = vpack.c.bf16 %v2541, %v2540
      %v2570 = vpack.c.bf16 %v2543, %v2542
      %v2571 = vpack.c.bf16 %v2545, %v2544
      %v2572 = vpack.c.bf16 %v2547, %v2546
      %v2573 = vpack.c.bf16 %v2549, %v2548
      %v2574 = vpack.c.bf16 %v2551, %v2550
      %v2575 = vpack.c.bf16 %v2553, %v2552
      %v2576 = vpack.c.bf16 %v2555, %v2554
      %v2577 = vpack.c.bf16 %v2557, %v2556
      %v2578 = vpack.c.bf16 %v2559, %v2558
      %v2579 = vpack.c.bf16 %v2561, %v2560
      %v2580 = vpack.c.bf16 %v2563, %v2562
      %v2581 = vpack.c.bf16 %v2565, %v2564
      %s2582 = scalar_lea.vmem %s1, 14
      %v2583 = vld [vmem:[%s2582] sm:$0x3]
      %v2585 = vsel %vm447, %v2566, 0
      %v2588 = vsel %vm447, %v2567, 0
      %v2591 = vsel %vm447, %v2568, 0
      %v2594 = vsel %vm447, %v2569, 0
      %v2597 = vsel %vm447, %v2570, 0
      %v2600 = vsel %vm447, %v2571, 0
      %v2603 = vsel %vm447, %v2572, 0
      %v2606 = vsel %vm447, %v2573, 0
      %v2609 = vsel %vm447, %v2574, 0
      %v2612 = vsel %vm447, %v2575, 0
      %v2615 = vsel %vm447, %v2576, 0
      %v2618 = vsel %vm447, %v2577, 0
      %v2621 = vsel %vm447, %v2578, 0
      %v2624 = vsel %vm447, %v2579, 0
      %v2627 = vsel %vm447, %v2580, 0
      %v2630 = vsel %vm447, %v2581, 0
      %v2633 = vand.u32 %v2583, %v686
      %2635 = vmatprep.subr.bf16.mxu0 0
      %2636 = vmatpush1.bf16.msra.mxu0 %v2633
      %2637 = vmatprep.subr.bf16.mxu0 0
      %2638 = vmatpush1.bf16.msra.mxu0 0
      %2639 = vmatprep.subr.bf16.mxu0 0
      %2640 = vmatpush1.bf16.msra.mxu0 0
      %2641 = vmatprep.subr.bf16.mxu0 0
      %2642 = vmatpush1.bf16.msra.mxu0 0
      %2643 = vmatprep.subr.bf16.mxu0 0
      %2644 = vmatpush1.bf16.msra.mxu0 0
      %2645 = vmatprep.subr.bf16.mxu0 0
      %2646 = vmatpush1.bf16.msra.mxu0 0
      %2647 = vmatprep.subr.bf16.mxu0 0
      %2648 = vmatpush1.bf16.msra.mxu0 0
      %2649 = vmatprep.subr.bf16.mxu0 0
      %2650 = vmatpush1.bf16.msra.mxu0 0
      %2651 = vmatprep.subr.bf16.mxu0 0
      %2652 = vmatpush1.bf16.msra.mxu0 0
      %2653 = vmatprep.subr.bf16.mxu0 0
      %2654 = vmatpush1.bf16.msra.mxu0 0
      %2655 = vmatprep.subr.bf16.mxu0 0
      %2656 = vmatpush1.bf16.msra.mxu0 0
      %2657 = vmatprep.subr.bf16.mxu0 0
      %2658 = vmatpush1.bf16.msra.mxu0 0
      %2659 = vmatprep.subr.bf16.mxu0 0
      %2660 = vmatpush1.bf16.msra.mxu0 0
      %2661 = vmatprep.subr.bf16.mxu0 0
      %2662 = vmatpush1.bf16.msra.mxu0 0
      %2663 = vmatprep.subr.bf16.mxu0 0
      %2664 = vmatpush1.bf16.msra.mxu0 0
      %2665 = vmatprep.subr.bf16.mxu0 0
      %2666 = vmatpush1.bf16.msra.mxu0 0
      %2667 = vmatprep.mubr.bf16.mxu0 0
      %2668 = vmatmul.mubr.bf16.gmra.mrb[0].mxu0 %v2585
      %v2669 = vpop.f32.mrb[0].mxu0
      %v2670 = vadd.f32 0.0, %v2669
      %v2671 = vpop.f32.mrb[0].mxu0
      %v2672 = vpop.f32.mrb[0].mxu0
      %v2673 = vadd.f32 0.0, %v2672
      %v2674 = vpop.f32.mrb[0].mxu0
      %2675 = vmatprep.mubr.bf16.mxu0 0
      %2676 = vmatmul.mubr.bf16.gmra.mrb[0].mxu0 %v2588
      %v2677 = vpop.f32.mrb[0].mxu0
      %v2678 = vadd.f32 0.0, %v2677
      %v2679 = vpop.f32.mrb[0].mxu0
      %v2680 = vpop.f32.mrb[0].mxu0
      %v2681 = vadd.f32 0.0, %v2680
      %v2682 = vpop.f32.mrb[0].mxu0
      %2683 = vmatprep.mubr.bf16.mxu0 0
      %2684 = vmatmul.mubr.bf16.gmra.mrb[0].mxu0 %v2591
      %v2685 = vpop.f32.mrb[0].mxu0
      %v2686 = vadd.f32 0.0, %v2685
      %v2687 = vpop.f32.mrb[0].mxu0
      %v2688 = vpop.f32.mrb[0].mxu0
      %v2689 = vadd.f32 0.0, %v2688
      %v2690 = vpop.f32.mrb[0].mxu0
      %2691 = vmatprep.mubr.bf16.mxu0 0
      %2692 = vmatmul.mubr.bf16.gmra.mrb[0].mxu0 %v2594
      %v2693 = vpop.f32.mrb[0].mxu0
      %v2694 = vadd.f32 0.0, %v2693
      %v2695 = vpop.f32.mrb[0].mxu0
      %v2696 = vpop.f32.mrb[0].mxu0
      %v2697 = vadd.f32 0.0, %v2696
      %v2698 = vpop.f32.mrb[0].mxu0
      %2699 = vmatprep.mubr.bf16.mxu0 0
      %2700 = vmatmul.mubr.bf16.gmra.mrb[0].mxu0 %v2597
      %v2701 = vpop.f32.mrb[0].mxu0
      %v2702 = vadd.f32 0.0, %v2701
      %v2703 = vpop.f32.mrb[0].mxu0
      %v2704 = vpop.f32.mrb[0].mxu0
      %v2705 = vadd.f32 0.0, %v2704
      %v2706 = vpop.f32.mrb[0].mxu0
      %2707 = vmatprep.mubr.bf16.mxu0 0
      %2708 = vmatmul.mubr.bf16.gmra.mrb[0].mxu0 %v2600
      %v2709 = vpop.f32.mrb[0].mxu0
      %v2710 = vadd.f32 0.0, %v2709
      %v2711 = vpop.f32.mrb[0].mxu0
      %v2712 = vpop.f32.mrb[0].mxu0
      %v2713 = vadd.f32 0.0, %v2712
      %v2714 = vpop.f32.mrb[0].mxu0
      %2715 = vmatprep.mubr.bf16.mxu0 0
      %2716 = vmatmul.mubr.bf16.gmra.mrb[0].mxu0 %v2603
      %v2717 = vpop.f32.mrb[0].mxu0
      %v2718 = vadd.f32 0.0, %v2717
      %v2719 = vpop.f32.mrb[0].mxu0
      %v2720 = vpop.f32.mrb[0].mxu0
      %v2721 = vadd.f32 0.0, %v2720
      %v2722 = vpop.f32.mrb[0].mxu0
      %2723 = vmatprep.mubr.bf16.mxu0 0
      %2724 = vmatmul.mubr.bf16.gmra.mrb[0].mxu0 %v2606
      %v2725 = vpop.f32.mrb[0].mxu0
      %v2726 = vadd.f32 0.0, %v2725
      %v2727 = vpop.f32.mrb[0].mxu0
      %v2728 = vpop.f32.mrb[0].mxu0
      %v2729 = vadd.f32 0.0, %v2728
      %v2730 = vpop.f32.mrb[0].mxu0
      %2731 = vmatprep.mubr.bf16.mxu0 0
      %2732 = vmatmul.mubr.bf16.gmra.mrb[0].mxu0 %v2609
      %v2733 = vpop.f32.mrb[0].mxu0
      %v2734 = vadd.f32 0.0, %v2733
      %v2735 = vpop.f32.mrb[0].mxu0
      %v2736 = vpop.f32.mrb[0].mxu0
      %v2737 = vadd.f32 0.0, %v2736
      %v2738 = vpop.f32.mrb[0].mxu0
      %2739 = vmatprep.mubr.bf16.mxu0 0
      %2740 = vmatmul.mubr.bf16.gmra.mrb[0].mxu0 %v2612
      %v2741 = vpop.f32.mrb[0].mxu0
      %v2742 = vadd.f32 0.0, %v2741
      %v2743 = vpop.f32.mrb[0].mxu0
      %v2744 = vpop.f32.mrb[0].mxu0
      %v2745 = vadd.f32 0.0, %v2744
      %v2746 = vpop.f32.mrb[0].mxu0
      %2747 = vmatprep.mubr.bf16.mxu0 0
      %2748 = vmatmul.mubr.bf16.gmra.mrb[0].mxu0 %v2615
      %v2749 = vpop.f32.mrb[0].mxu0
      %v2750 = vadd.f32 0.0, %v2749
      %v2751 = vpop.f32.mrb[0].mxu0
      %v2752 = vpop.f32.mrb[0].mxu0
      %v2753 = vadd.f32 0.0, %v2752
      %v2754 = vpop.f32.mrb[0].mxu0
      %2755 = vmatprep.mubr.bf16.mxu0 0
      %2756 = vmatmul.mubr.bf16.gmra.mrb[0].mxu0 %v2618
      %v2757 = vpop.f32.mrb[0].mxu0
      %v2758 = vadd.f32 0.0, %v2757
      %v2759 = vpop.f32.mrb[0].mxu0
      %v2760 = vpop.f32.mrb[0].mxu0
      %v2761 = vadd.f32 0.0, %v2760
      %v2762 = vpop.f32.mrb[0].mxu0
      %2763 = vmatprep.mubr.bf16.mxu0 0
      %2764 = vmatmul.mubr.bf16.gmra.mrb[0].mxu0 %v2621
      %v2765 = vpop.f32.mrb[0].mxu0
      %v2766 = vadd.f32 0.0, %v2765
      %v2767 = vpop.f32.mrb[0].mxu0
      %v2768 = vpop.f32.mrb[0].mxu0
      %v2769 = vadd.f32 0.0, %v2768
      %v2770 = vpop.f32.mrb[0].mxu0
      %2771 = vmatprep.mubr.bf16.mxu0 0
      %2772 = vmatmul.mubr.bf16.gmra.mrb[0].mxu0 %v2624
      %v2773 = vpop.f32.mrb[0].mxu0
      %v2774 = vadd.f32 0.0, %v2773
      %v2775 = vpop.f32.mrb[0].mxu0
      %v2776 = vpop.f32.mrb[0].mxu0
      %v2777 = vadd.f32 0.0, %v2776
      %v2778 = vpop.f32.mrb[0].mxu0
      %2779 = vmatprep.mubr.bf16.mxu0 0
      %2780 = vmatmul.mubr.bf16.gmra.mrb[0].mxu0 %v2627
      %v2781 = vpop.f32.mrb[0].mxu0
      %v2782 = vadd.f32 0.0, %v2781
      %v2783 = vpop.f32.mrb[0].mxu0
      %v2784 = vpop.f32.mrb[0].mxu0
      %v2785 = vadd.f32 0.0, %v2784
      %v2786 = vpop.f32.mrb[0].mxu0
      %2787 = vmatprep.mubr.bf16.mxu0 0
      %2788 = vmatmul.mubr.bf16.gmra.mrb[0].mxu0 %v2630
      %v2789 = vpop.f32.mrb[0].mxu0
      %v2790 = vadd.f32 0.0, %v2789
      %v2791 = vpop.f32.mrb[0].mxu0
      %v2792 = vpop.f32.mrb[0].mxu0
      %v2793 = vadd.f32 0.0, %v2792
      %v2794 = vpop.f32.mrb[0].mxu0
      %2795 = vdwg.mxu0
      %v2796 = vadd.f32 %v2502, %v2670
      %v2797 = vadd.f32 %v2503, %v2673
      %v2798 = vadd.f32 %v2504, %v2678
      %v2799 = vadd.f32 %v2505, %v2681
      %v2800 = vadd.f32 %v2506, %v2686
      %v2801 = vadd.f32 %v2507, %v2689
      %v2802 = vadd.f32 %v2508, %v2694
      %v2803 = vadd.f32 %v2509, %v2697
      %v2804 = vadd.f32 %v2510, %v2702
      %v2805 = vadd.f32 %v2511, %v2705
      %v2806 = vadd.f32 %v2512, %v2710
      %v2807 = vadd.f32 %v2513, %v2713
      %v2808 = vadd.f32 %v2514, %v2718
      %v2809 = vadd.f32 %v2515, %v2721
      %v2810 = vadd.f32 %v2516, %v2726
      %v2811 = vadd.f32 %v2517, %v2729
      %v2812 = vadd.f32 %v2518, %v2734
      %v2813 = vadd.f32 %v2519, %v2737
      %v2814 = vadd.f32 %v2520, %v2742
      %v2815 = vadd.f32 %v2521, %v2745
      %v2816 = vadd.f32 %v2522, %v2750
      %v2817 = vadd.f32 %v2523, %v2753
      %v2818 = vadd.f32 %v2524, %v2758
      %v2819 = vadd.f32 %v2525, %v2761
      %v2820 = vadd.f32 %v2526, %v2766
      %v2821 = vadd.f32 %v2527, %v2769
      %v2822 = vadd.f32 %v2528, %v2774
      %v2823 = vadd.f32 %v2529, %v2777
      %v2824 = vadd.f32 %v2530, %v2782
      %v2825 = vadd.f32 %v2531, %v2785
      %v2826 = vadd.f32 %v2532, %v2790
      %v2827 = vadd.f32 %v2533, %v2793
      %v2828 = vld [vmem:[%s2239 + $0x2] sm:$0xff]
      %v2829 = vld [vmem:[%s2239 + $0xa] sm:$0xff]
      %v2830 = vld [vmem:[%s2239 + $0x1a] sm:$0xff]
      %v2831 = vld [vmem:[%s2239 + $0x22] sm:$0xff]
      %v2832 = vld [vmem:[%s2239 + $0x32] sm:$0xff]
      %v2833 = vld [vmem:[%s2239 + $0x3a] sm:$0xff]
      %v2834 = vld [vmem:[%s2239 + $0x4a] sm:$0xff]
      %v2835 = vld [vmem:[%s2239 + $0x52] sm:$0xff]
      %v2836 = vld [vmem:[%s2239 + $0x62] sm:$0xff]
      %v2837 = vld [vmem:[%s2239 + $0x6a] sm:$0xff]
      %v2838 = vld [vmem:[%s2239 + $0x7a] sm:$0xff]
      %v2839 = vld [vmem:[%s2239 + $0x82] sm:$0xff]
      %v2840 = vld [vmem:[%s2239 + $0x92] sm:$0xff]
      %v2841 = vld [vmem:[%s2239 + $0x9a] sm:$0xff]
      %v2842 = vld [vmem:[%s2239 + $0xaa] sm:$0xff]
      %v2843 = vld [vmem:[%s2239 + $0xb2] sm:$0xff]
      %v2844 = vld [vmem:[%s2239 + $0xc2] sm:$0xff]
      %v2845 = vld [vmem:[%s2239 + $0xca] sm:$0xff]
      %v2846 = vld [vmem:[%s2239 + $0xda] sm:$0xff]
      %v2847 = vld [vmem:[%s2239 + $0xe2] sm:$0xff]
      %v2848 = vld [vmem:[%s2239 + $0xf2] sm:$0xff]
      %v2849 = vld [vmem:[%s2239 + $0xfa] sm:$0xff]
      %v2850 = vld [vmem:[%s2239 + $0x10a] sm:$0xff]
      %v2851 = vld [vmem:[%s2239 + $0x112] sm:$0xff]
      %v2852 = vld [vmem:[%s2239 + $0x122] sm:$0xff]
      %v2853 = vld [vmem:[%s2239 + $0x12a] sm:$0xff]
      %v2854 = vld [vmem:[%s2239 + $0x13a] sm:$0xff]
      %v2855 = vld [vmem:[%s2239 + $0x142] sm:$0xff]
      %v2856 = vld [vmem:[%s2239 + $0x152] sm:$0xff]
      %v2857 = vld [vmem:[%s2239 + $0x15a] sm:$0xff]
      %v2858 = vld [vmem:[%s2239 + $0x16a] sm:$0xff]
      %v2859 = vld [vmem:[%s2239 + $0x172] sm:$0xff]
      %v2860 = vpack.c.bf16 %v2829, %v2828
      %v2861 = vpack.c.bf16 %v2831, %v2830
      %v2862 = vpack.c.bf16 %v2833, %v2832
      %v2863 = vpack.c.bf16 %v2835, %v2834
      %v2864 = vpack.c.bf16 %v2837, %v2836
      %v2865 = vpack.c.bf16 %v2839, %v2838
      %v2866 = vpack.c.bf16 %v2841, %v2840
      %v2867 = vpack.c.bf16 %v2843, %v2842
      %v2868 = vpack.c.bf16 %v2845, %v2844
      %v2869 = vpack.c.bf16 %v2847, %v2846
      %v2870 = vpack.c.bf16 %v2849, %v2848
      %v2871 = vpack.c.bf16 %v2851, %v2850
      %v2872 = vpack.c.bf16 %v2853, %v2852
      %v2873 = vpack.c.bf16 %v2855, %v2854
      %v2874 = vpack.c.bf16 %v2857, %v2856
      %v2875 = vpack.c.bf16 %v2859, %v2858
      %s2876 = scalar_lea.vmem %s1, 16
      %v2877 = vld [vmem:[%s2876] sm:$0x3]
      %v2879 = vsel %vm447, %v2860, 0
      %v2882 = vsel %vm447, %v2861, 0
      %v2885 = vsel %vm447, %v2862, 0
      %v2888 = vsel %vm447, %v2863, 0
      %v2891 = vsel %vm447, %v2864, 0
      %v2894 = vsel %vm447, %v2865, 0
      %v2897 = vsel %vm447, %v2866, 0
      %v2900 = vsel %vm447, %v2867, 0
      %v2903 = vsel %vm447, %v2868, 0
      %v2906 = vsel %vm447, %v2869, 0
      %v2909 = vsel %vm447, %v2870, 0
      %v2912 = vsel %vm447, %v2871, 0
      %v2915 = vsel %vm447, %v2872, 0
      %v2918 = vsel %vm447, %v2873, 0
      %v2921 = vsel %vm447, %v2874, 0
      %v2924 = vsel %vm447, %v2875, 0
      %v2927 = vand.u32 %v2877, %v686
      %2929 = vmatprep.subr.bf16.mxu0 0
      %2930 = vmatpush1.bf16.msra.mxu0 %v2927
      %2931 = vmatprep.subr.bf16.mxu0 0
      %2932 = vmatpush1.bf16.msra.mxu0 0
      %2933 = vmatprep.subr.bf16.mxu0 0
      %2934 = vmatpush1.bf16.msra.mxu0 0
      %2935 = vmatprep.subr.bf16.mxu0 0
      %2936 = vmatpush1.bf16.msra.mxu0 0
      %2937 = vmatprep.subr.bf16.mxu0 0
      %2938 = vmatpush1.bf16.msra.mxu0 0
      %2939 = vmatprep.subr.bf16.mxu0 0
      %2940 = vmatpush1.bf16.msra.mxu0 0
      %2941 = vmatprep.subr.bf16.mxu0 0
      %2942 = vmatpush1.bf16.msra.mxu0 0
      %2943 = vmatprep.subr.bf16.mxu0 0
      %2944 = vmatpush1.bf16.msra.mxu0 0
      %2945 = vmatprep.subr.bf16.mxu0 0
      %2946 = vmatpush1.bf16.msra.mxu0 0
      %2947 = vmatprep.subr.bf16.mxu0 0
      %2948 = vmatpush1.bf16.msra.mxu0 0
      %2949 = vmatprep.subr.bf16.mxu0 0
      %2950 = vmatpush1.bf16.msra.mxu0 0
      %2951 = vmatprep.subr.bf16.mxu0 0
      %2952 = vmatpush1.bf16.msra.mxu0 0
      %2953 = vmatprep.subr.bf16.mxu0 0
      %2954 = vmatpush1.bf16.msra.mxu0 0
      %2955 = vmatprep.subr.bf16.mxu0 0
      %2956 = vmatpush1.bf16.msra.mxu0 0
      %2957 = vmatprep.subr.bf16.mxu0 0
      %2958 = vmatpush1.bf16.msra.mxu0 0
      %2959 = vmatprep.subr.bf16.mxu0 0
      %2960 = vmatpush1.bf16.msra.mxu0 0
      %2961 = vmatprep.mubr.bf16.mxu0 0
      %2962 = vmatmul.mubr.bf16.gmra.mrb[0].mxu0 %v2879
      %v2963 = vpop.f32.mrb[0].mxu0
      %v2964 = vadd.f32 0.0, %v2963
      %v2965 = vpop.f32.mrb[0].mxu0
      %v2966 = vpop.f32.mrb[0].mxu0
      %v2967 = vadd.f32 0.0, %v2966
      %v2968 = vpop.f32.mrb[0].mxu0
      %2969 = vmatprep.mubr.bf16.mxu0 0
      %2970 = vmatmul.mubr.bf16.gmra.mrb[0].mxu0 %v2882
      %v2971 = vpop.f32.mrb[0].mxu0
      %v2972 = vadd.f32 0.0, %v2971
      %v2973 = vpop.f32.mrb[0].mxu0
      %v2974 = vpop.f32.mrb[0].mxu0
      %v2975 = vadd.f32 0.0, %v2974
      %v2976 = vpop.f32.mrb[0].mxu0
      %2977 = vmatprep.mubr.bf16.mxu0 0
      %2978 = vmatmul.mubr.bf16.gmra.mrb[0].mxu0 %v2885
      %v2979 = vpop.f32.mrb[0].mxu0
      %v2980 = vadd.f32 0.0, %v2979
      %v2981 = vpop.f32.mrb[0].mxu0
      %v2982 = vpop.f32.mrb[0].mxu0
      %v2983 = vadd.f32 0.0, %v2982
      %v2984 = vpop.f32.mrb[0].mxu0
      %2985 = vmatprep.mubr.bf16.mxu0 0
      %2986 = vmatmul.mubr.bf16.gmra.mrb[0].mxu0 %v2888
      %v2987 = vpop.f32.mrb[0].mxu0
      %v2988 = vadd.f32 0.0, %v2987
      %v2989 = vpop.f32.mrb[0].mxu0
      %v2990 = vpop.f32.mrb[0].mxu0
      %v2991 = vadd.f32 0.0, %v2990
      %v2992 = vpop.f32.mrb[0].mxu0
      %2993 = vmatprep.mubr.bf16.mxu0 0
      %2994 = vmatmul.mubr.bf16.gmra.mrb[0].mxu0 %v2891
      %v2995 = vpop.f32.mrb[0].mxu0
      %v2996 = vadd.f32 0.0, %v2995
      %v2997 = vpop.f32.mrb[0].mxu0
      %v2998 = vpop.f32.mrb[0].mxu0
      %v2999 = vadd.f32 0.0, %v2998
      %v3000 = vpop.f32.mrb[0].mxu0
      %3001 = vmatprep.mubr.bf16.mxu0 0
      %3002 = vmatmul.mubr.bf16.gmra.mrb[0].mxu0 %v2894
      %v3003 = vpop.f32.mrb[0].mxu0
      %v3004 = vadd.f32 0.0, %v3003
      %v3005 = vpop.f32.mrb[0].mxu0
      %v3006 = vpop.f32.mrb[0].mxu0
      %v3007 = vadd.f32 0.0, %v3006
      %v3008 = vpop.f32.mrb[0].mxu0
      %3009 = vmatprep.mubr.bf16.mxu0 0
      %3010 = vmatmul.mubr.bf16.gmra.mrb[0].mxu0 %v2897
      %v3011 = vpop.f32.mrb[0].mxu0
      %v3012 = vadd.f32 0.0, %v3011
      %v3013 = vpop.f32.mrb[0].mxu0
      %v3014 = vpop.f32.mrb[0].mxu0
      %v3015 = vadd.f32 0.0, %v3014
      %v3016 = vpop.f32.mrb[0].mxu0
      %3017 = vmatprep.mubr.bf16.mxu0 0
      %3018 = vmatmul.mubr.bf16.gmra.mrb[0].mxu0 %v2900
      %v3019 = vpop.f32.mrb[0].mxu0
      %v3020 = vadd.f32 0.0, %v3019
      %v3021 = vpop.f32.mrb[0].mxu0
      %v3022 = vpop.f32.mrb[0].mxu0
      %v3023 = vadd.f32 0.0, %v3022
      %v3024 = vpop.f32.mrb[0].mxu0
      %3025 = vmatprep.mubr.bf16.mxu0 0
      %3026 = vmatmul.mubr.bf16.gmra.mrb[0].mxu0 %v2903
      %v3027 = vpop.f32.mrb[0].mxu0
      %v3028 = vadd.f32 0.0, %v3027
      %v3029 = vpop.f32.mrb[0].mxu0
      %v3030 = vpop.f32.mrb[0].mxu0
      %v3031 = vadd.f32 0.0, %v3030
      %v3032 = vpop.f32.mrb[0].mxu0
      %3033 = vmatprep.mubr.bf16.mxu0 0
      %3034 = vmatmul.mubr.bf16.gmra.mrb[0].mxu0 %v2906
      %v3035 = vpop.f32.mrb[0].mxu0
      %v3036 = vadd.f32 0.0, %v3035
      %v3037 = vpop.f32.mrb[0].mxu0
      %v3038 = vpop.f32.mrb[0].mxu0
      %v3039 = vadd.f32 0.0, %v3038
      %v3040 = vpop.f32.mrb[0].mxu0
      %3041 = vmatprep.mubr.bf16.mxu0 0
      %3042 = vmatmul.mubr.bf16.gmra.mrb[0].mxu0 %v2909
      %v3043 = vpop.f32.mrb[0].mxu0
      %v3044 = vadd.f32 0.0, %v3043
      %v3045 = vpop.f32.mrb[0].mxu0
      %v3046 = vpop.f32.mrb[0].mxu0
      %v3047 = vadd.f32 0.0, %v3046
      %v3048 = vpop.f32.mrb[0].mxu0
      %3049 = vmatprep.mubr.bf16.mxu0 0
      %3050 = vmatmul.mubr.bf16.gmra.mrb[0].mxu0 %v2912
      %v3051 = vpop.f32.mrb[0].mxu0
      %v3052 = vadd.f32 0.0, %v3051
      %v3053 = vpop.f32.mrb[0].mxu0
      %v3054 = vpop.f32.mrb[0].mxu0
      %v3055 = vadd.f32 0.0, %v3054
      %v3056 = vpop.f32.mrb[0].mxu0
      %3057 = vmatprep.mubr.bf16.mxu0 0
      %3058 = vmatmul.mubr.bf16.gmra.mrb[0].mxu0 %v2915
      %v3059 = vpop.f32.mrb[0].mxu0
      %v3060 = vadd.f32 0.0, %v3059
      %v3061 = vpop.f32.mrb[0].mxu0
      %v3062 = vpop.f32.mrb[0].mxu0
      %v3063 = vadd.f32 0.0, %v3062
      %v3064 = vpop.f32.mrb[0].mxu0
      %3065 = vmatprep.mubr.bf16.mxu0 0
      %3066 = vmatmul.mubr.bf16.gmra.mrb[0].mxu0 %v2918
      %v3067 = vpop.f32.mrb[0].mxu0
      %v3068 = vadd.f32 0.0, %v3067
      %v3069 = vpop.f32.mrb[0].mxu0
      %v3070 = vpop.f32.mrb[0].mxu0
      %v3071 = vadd.f32 0.0, %v3070
      %v3072 = vpop.f32.mrb[0].mxu0
      %3073 = vmatprep.mubr.bf16.mxu0 0
      %3074 = vmatmul.mubr.bf16.gmra.mrb[0].mxu0 %v2921
      %v3075 = vpop.f32.mrb[0].mxu0
      %v3076 = vadd.f32 0.0, %v3075
      %v3077 = vpop.f32.mrb[0].mxu0
      %v3078 = vpop.f32.mrb[0].mxu0
      %v3079 = vadd.f32 0.0, %v3078
      %v3080 = vpop.f32.mrb[0].mxu0
      %3081 = vmatprep.mubr.bf16.mxu0 0
      %3082 = vmatmul.mubr.bf16.gmra.mrb[0].mxu0 %v2924
      %v3083 = vpop.f32.mrb[0].mxu0
      %v3084 = vadd.f32 0.0, %v3083
      %v3085 = vpop.f32.mrb[0].mxu0
      %v3086 = vpop.f32.mrb[0].mxu0
      %v3087 = vadd.f32 0.0, %v3086
      %v3088 = vpop.f32.mrb[0].mxu0
      %3089 = vdwg.mxu0
      %v3090 = vadd.f32 %v2796, %v2964
      %v3091 = vadd.f32 %v2797, %v2967
      %v3092 = vadd.f32 %v2798, %v2972
      %v3093 = vadd.f32 %v2799, %v2975
      %v3094 = vadd.f32 %v2800, %v2980
      %v3095 = vadd.f32 %v2801, %v2983
      %v3096 = vadd.f32 %v2802, %v2988
      %v3097 = vadd.f32 %v2803, %v2991
      %v3098 = vadd.f32 %v2804, %v2996
      %v3099 = vadd.f32 %v2805, %v2999
      %v3100 = vadd.f32 %v2806, %v3004
      %v3101 = vadd.f32 %v2807, %v3007
      %v3102 = vadd.f32 %v2808, %v3012
      %v3103 = vadd.f32 %v2809, %v3015
      %v3104 = vadd.f32 %v2810, %v3020
      %v3105 = vadd.f32 %v2811, %v3023
      %v3106 = vadd.f32 %v2812, %v3028
      %v3107 = vadd.f32 %v2813, %v3031
      %v3108 = vadd.f32 %v2814, %v3036
      %v3109 = vadd.f32 %v2815, %v3039
      %v3110 = vadd.f32 %v2816, %v3044
      %v3111 = vadd.f32 %v2817, %v3047
      %v3112 = vadd.f32 %v2818, %v3052
      %v3113 = vadd.f32 %v2819, %v3055
      %v3114 = vadd.f32 %v2820, %v3060
      %v3115 = vadd.f32 %v2821, %v3063
      %v3116 = vadd.f32 %v2822, %v3068
      %v3117 = vadd.f32 %v2823, %v3071
      %v3118 = vadd.f32 %v2824, %v3076
      %v3119 = vadd.f32 %v2825, %v3079
      %v3120 = vadd.f32 %v2826, %v3084
      %v3121 = vadd.f32 %v2827, %v3087
      %v3122 = vld [vmem:[%s2] sm:$0x1]
      %v3124 = vlaneseq
      %v3125 = vshrl.u32 %v3124, 7
      %v3126 = vsub.s32 0, %v3125
      %v3127 = vrot.slane %v3122, %v3126
      %v3129 = vadd.f32 %v3090, %v3127
      %v3130 = vadd.f32 %v3091, %v3127
      %v3131 = vadd.f32 %v3092, %v3127
      %v3132 = vadd.f32 %v3093, %v3127
      %v3133 = vadd.f32 %v3094, %v3127
      %v3134 = vadd.f32 %v3095, %v3127
      %v3135 = vadd.f32 %v3096, %v3127
      %v3136 = vadd.f32 %v3097, %v3127
      %v3137 = vadd.f32 %v3098, %v3127
      %v3138 = vadd.f32 %v3099, %v3127
      %v3139 = vadd.f32 %v3100, %v3127
      %v3140 = vadd.f32 %v3101, %v3127
      %v3141 = vadd.f32 %v3102, %v3127
      %v3142 = vadd.f32 %v3103, %v3127
      %v3143 = vadd.f32 %v3104, %v3127
      %v3144 = vadd.f32 %v3105, %v3127
      %v3145 = vadd.f32 %v3106, %v3127
      %v3146 = vadd.f32 %v3107, %v3127
      %v3147 = vadd.f32 %v3108, %v3127
      %v3148 = vadd.f32 %v3109, %v3127
      %v3149 = vadd.f32 %v3110, %v3127
      %v3150 = vadd.f32 %v3111, %v3127
      %v3151 = vadd.f32 %v3112, %v3127
      %v3152 = vadd.f32 %v3113, %v3127
      %v3153 = vadd.f32 %v3114, %v3127
      %v3154 = vadd.f32 %v3115, %v3127
      %v3155 = vadd.f32 %v3116, %v3127
      %v3156 = vadd.f32 %v3117, %v3127
      %v3157 = vadd.f32 %v3118, %v3127
      %v3158 = vadd.f32 %v3119, %v3127
      %v3159 = vadd.f32 %v3120, %v3127
      %v3160 = vadd.f32 %v3121, %v3127
      %v3161 = vmax.f32 %v3129, 0.0
      %v3162 = vmax.f32 %v3130, 0.0
      %v3163 = vmax.f32 %v3131, 0.0
      %v3164 = vmax.f32 %v3132, 0.0
      %v3165 = vmax.f32 %v3133, 0.0
      %v3166 = vmax.f32 %v3134, 0.0
      %v3167 = vmax.f32 %v3135, 0.0
      %v3168 = vmax.f32 %v3136, 0.0
      %v3169 = vmax.f32 %v3137, 0.0
      %v3170 = vmax.f32 %v3138, 0.0
      %v3171 = vmax.f32 %v3139, 0.0
      %v3172 = vmax.f32 %v3140, 0.0
      %v3173 = vmax.f32 %v3141, 0.0
      %v3174 = vmax.f32 %v3142, 0.0
      %v3175 = vmax.f32 %v3143, 0.0
      %v3176 = vmax.f32 %v3144, 0.0
      %v3177 = vmax.f32 %v3145, 0.0
      %v3178 = vmax.f32 %v3146, 0.0
      %v3179 = vmax.f32 %v3147, 0.0
      %v3180 = vmax.f32 %v3148, 0.0
      %v3181 = vmax.f32 %v3149, 0.0
      %v3182 = vmax.f32 %v3150, 0.0
      %v3183 = vmax.f32 %v3151, 0.0
      %v3184 = vmax.f32 %v3152, 0.0
      %v3185 = vmax.f32 %v3153, 0.0
      %v3186 = vmax.f32 %v3154, 0.0
      %v3187 = vmax.f32 %v3155, 0.0
      %v3188 = vmax.f32 %v3156, 0.0
      %v3189 = vmax.f32 %v3157, 0.0
      %v3190 = vmax.f32 %v3158, 0.0
      %v3191 = vmax.f32 %v3159, 0.0
      %v3192 = vmax.f32 %v3160, 0.0
      %v3193 = vpack.c.bf16 %v3162, %v3161
      %v3194 = vpack.c.bf16 %v3164, %v3163
      %v3195 = vpack.c.bf16 %v3166, %v3165
      %v3196 = vpack.c.bf16 %v3168, %v3167
      %v3197 = vpack.c.bf16 %v3170, %v3169
      %v3198 = vpack.c.bf16 %v3172, %v3171
      %v3199 = vpack.c.bf16 %v3174, %v3173
      %v3200 = vpack.c.bf16 %v3176, %v3175
      %v3201 = vpack.c.bf16 %v3178, %v3177
      %v3202 = vpack.c.bf16 %v3180, %v3179
      %v3203 = vpack.c.bf16 %v3182, %v3181
      %v3204 = vpack.c.bf16 %v3184, %v3183
      %v3205 = vpack.c.bf16 %v3186, %v3185
      %v3206 = vpack.c.bf16 %v3188, %v3187
      %v3207 = vpack.c.bf16 %v3190, %v3189
      %v3208 = vpack.c.bf16 %v3192, %v3191
      %v3209 = vld [vmem:[%s3] sm:$0xf]
      %v3210 = vld [vmem:[%s4] sm:$0x1]
      %v3212 = vlaneseq
      %v3213 = vshrl.u32 %v3212, 7
      %v3214 = vsub.s32 0, %v3213
      %v3215 = vrot.slane %v3210, %v3214
      %vm3217 = vcmask 64512
      %v3219 = vsel %vm3217, %v3193, 0
      %v3222 = vsel %vm3217, %v3194, 0
      %v3225 = vsel %vm3217, %v3195, 0
      %v3228 = vsel %vm3217, %v3196, 0
      %v3231 = vsel %vm3217, %v3197, 0
      %v3234 = vsel %vm3217, %v3198, 0
      %v3237 = vsel %vm3217, %v3199, 0
      %v3240 = vsel %vm3217, %v3200, 0
      %v3243 = vsel %vm3217, %v3201, 0
      %v3246 = vsel %vm3217, %v3202, 0
      %v3249 = vsel %vm3217, %v3203, 0
      %v3252 = vsel %vm3217, %v3204, 0
      %v3255 = vsel %vm3217, %v3205, 0
      %v3258 = vsel %vm3217, %v3206, 0
      %v3261 = vsel %vm3217, %v3207, 0
      %v3264 = vsel %vm3217, %v3208, 0
      %vm3266 = vcmask 1043456
      %v3268 = vsel %vm3266, %v3209, 0
      %3270 = vmatprep.subr.bf16.mxu0 0
      %3271 = vmatpush1.bf16.msra.mxu0 %v3268
      %3272 = vmatprep.subr.bf16.mxu0 0
      %3273 = vmatpush1.bf16.msra.mxu0 0
      %3274 = vmatprep.subr.bf16.mxu0 0
      %3275 = vmatpush1.bf16.msra.mxu0 0
      %3276 = vmatprep.subr.bf16.mxu0 0
      %3277 = vmatpush1.bf16.msra.mxu0 0
      %3278 = vmatprep.subr.bf16.mxu0 0
      %3279 = vmatpush1.bf16.msra.mxu0 0
      %3280 = vmatprep.subr.bf16.mxu0 0
      %3281 = vmatpush1.bf16.msra.mxu0 0
      %3282 = vmatprep.subr.bf16.mxu0 0
      %3283 = vmatpush1.bf16.msra.mxu0 0
      %3284 = vmatprep.subr.bf16.mxu0 0
      %3285 = vmatpush1.bf16.msra.mxu0 0
      %3286 = vmatprep.subr.bf16.mxu0 0
      %3287 = vmatpush1.bf16.msra.mxu0 0
      %3288 = vmatprep.subr.bf16.mxu0 0
      %3289 = vmatpush1.bf16.msra.mxu0 0
      %3290 = vmatprep.subr.bf16.mxu0 0
      %3291 = vmatpush1.bf16.msra.mxu0 0
      %3292 = vmatprep.subr.bf16.mxu0 0
      %3293 = vmatpush1.bf16.msra.mxu0 0
      %3294 = vmatprep.subr.bf16.mxu0 0
      %3295 = vmatpush1.bf16.msra.mxu0 0
      %3296 = vmatprep.subr.bf16.mxu0 0
      %3297 = vmatpush1.bf16.msra.mxu0 0
      %3298 = vmatprep.subr.bf16.mxu0 0
      %3299 = vmatpush1.bf16.msra.mxu0 0
      %3300 = vmatprep.subr.bf16.mxu0 0
      %3301 = vmatpush1.bf16.msra.mxu0 0
      %3302 = vmatprep.mubr.bf16.mxu0 0
      %3303 = vmatmul.mubr.bf16.gmra.mrb[0].mxu0 %v3219
      %v3304 = vpop.f32.mrb[0].mxu0
      %v3305 = vadd.f32 %v3215, %v3304
      %v3306 = vpop.f32.mrb[0].mxu0
      %v3307 = vpop.f32.mrb[0].mxu0
      %v3308 = vadd.f32 %v3215, %v3307
      %v3309 = vpop.f32.mrb[0].mxu0
      %3310 = vmatprep.mubr.bf16.mxu0 0
      %3311 = vmatmul.mubr.bf16.gmra.mrb[0].mxu0 %v3222
      %v3312 = vpop.f32.mrb[0].mxu0
      %v3313 = vadd.f32 %v3215, %v3312
      %v3314 = vpop.f32.mrb[0].mxu0
      %v3315 = vpop.f32.mrb[0].mxu0
      %v3316 = vadd.f32 %v3215, %v3315
      %v3317 = vpop.f32.mrb[0].mxu0
      %3318 = vmatprep.mubr.bf16.mxu0 0
      %3319 = vmatmul.mubr.bf16.gmra.mrb[0].mxu0 %v3225
      %v3320 = vpop.f32.mrb[0].mxu0
      %v3321 = vadd.f32 %v3215, %v3320
      %v3322 = vpop.f32.mrb[0].mxu0
      %v3323 = vpop.f32.mrb[0].mxu0
      %v3324 = vadd.f32 %v3215, %v3323
      %v3325 = vpop.f32.mrb[0].mxu0
      %3326 = vmatprep.mubr.bf16.mxu0 0
      %3327 = vmatmul.mubr.bf16.gmra.mrb[0].mxu0 %v3228
      %v3328 = vpop.f32.mrb[0].mxu0
      %v3329 = vadd.f32 %v3215, %v3328
      %v3330 = vpop.f32.mrb[0].mxu0
      %v3331 = vpop.f32.mrb[0].mxu0
      %v3332 = vadd.f32 %v3215, %v3331
      %v3333 = vpop.f32.mrb[0].mxu0
      %3334 = vmatprep.mubr.bf16.mxu0 0
      %3335 = vmatmul.mubr.bf16.gmra.mrb[0].mxu0 %v3231
      %v3336 = vpop.f32.mrb[0].mxu0
      %v3337 = vadd.f32 %v3215, %v3336
      %v3338 = vpop.f32.mrb[0].mxu0
      %v3339 = vpop.f32.mrb[0].mxu0
      %v3340 = vadd.f32 %v3215, %v3339
      %v3341 = vpop.f32.mrb[0].mxu0
      %3342 = vmatprep.mubr.bf16.mxu0 0
      %3343 = vmatmul.mubr.bf16.gmra.mrb[0].mxu0 %v3234
      %v3344 = vpop.f32.mrb[0].mxu0
      %v3345 = vadd.f32 %v3215, %v3344
      %v3346 = vpop.f32.mrb[0].mxu0
      %v3347 = vpop.f32.mrb[0].mxu0
      %v3348 = vadd.f32 %v3215, %v3347
      %v3349 = vpop.f32.mrb[0].mxu0
      %3350 = vmatprep.mubr.bf16.mxu0 0
      %3351 = vmatmul.mubr.bf16.gmra.mrb[0].mxu0 %v3237
      %v3352 = vpop.f32.mrb[0].mxu0
      %v3353 = vadd.f32 %v3215, %v3352
      %v3354 = vpop.f32.mrb[0].mxu0
      %v3355 = vpop.f32.mrb[0].mxu0
      %v3356 = vadd.f32 %v3215, %v3355
      %v3357 = vpop.f32.mrb[0].mxu0
      %3358 = vmatprep.mubr.bf16.mxu0 0
      %3359 = vmatmul.mubr.bf16.gmra.mrb[0].mxu0 %v3240
      %v3360 = vpop.f32.mrb[0].mxu0
      %v3361 = vadd.f32 %v3215, %v3360
      %v3362 = vpop.f32.mrb[0].mxu0
      %v3363 = vpop.f32.mrb[0].mxu0
      %v3364 = vadd.f32 %v3215, %v3363
      %v3365 = vpop.f32.mrb[0].mxu0
      %3366 = vmatprep.mubr.bf16.mxu0 0
      %3367 = vmatmul.mubr.bf16.gmra.mrb[0].mxu0 %v3243
      %v3368 = vpop.f32.mrb[0].mxu0
      %v3369 = vadd.f32 %v3215, %v3368
      %v3370 = vpop.f32.mrb[0].mxu0
      %v3371 = vpop.f32.mrb[0].mxu0
      %v3372 = vadd.f32 %v3215, %v3371
      %v3373 = vpop.f32.mrb[0].mxu0
      %3374 = vmatprep.mubr.bf16.mxu0 0
      %3375 = vmatmul.mubr.bf16.gmra.mrb[0].mxu0 %v3246
      %v3376 = vpop.f32.mrb[0].mxu0
      %v3377 = vadd.f32 %v3215, %v3376
      %v3378 = vpop.f32.mrb[0].mxu0
      %v3379 = vpop.f32.mrb[0].mxu0
      %v3380 = vadd.f32 %v3215, %v3379
      %v3381 = vpop.f32.mrb[0].mxu0
      %3382 = vmatprep.mubr.bf16.mxu0 0
      %3383 = vmatmul.mubr.bf16.gmra.mrb[0].mxu0 %v3249
      %v3384 = vpop.f32.mrb[0].mxu0
      %v3385 = vadd.f32 %v3215, %v3384
      %v3386 = vpop.f32.mrb[0].mxu0
      %v3387 = vpop.f32.mrb[0].mxu0
      %v3388 = vadd.f32 %v3215, %v3387
      %v3389 = vpop.f32.mrb[0].mxu0
      %3390 = vmatprep.mubr.bf16.mxu0 0
      %3391 = vmatmul.mubr.bf16.gmra.mrb[0].mxu0 %v3252
      %v3392 = vpop.f32.mrb[0].mxu0
      %v3393 = vadd.f32 %v3215, %v3392
      %v3394 = vpop.f32.mrb[0].mxu0
      %v3395 = vpop.f32.mrb[0].mxu0
      %v3396 = vadd.f32 %v3215, %v3395
      %v3397 = vpop.f32.mrb[0].mxu0
      %3398 = vmatprep.mubr.bf16.mxu0 0
      %3399 = vmatmul.mubr.bf16.gmra.mrb[0].mxu0 %v3255
      %v3400 = vpop.f32.mrb[0].mxu0
      %v3401 = vadd.f32 %v3215, %v3400
      %v3402 = vpop.f32.mrb[0].mxu0
      %v3403 = vpop.f32.mrb[0].mxu0
      %v3404 = vadd.f32 %v3215, %v3403
      %v3405 = vpop.f32.mrb[0].mxu0
      %3406 = vmatprep.mubr.bf16.mxu0 0
      %3407 = vmatmul.mubr.bf16.gmra.mrb[0].mxu0 %v3258
      %v3408 = vpop.f32.mrb[0].mxu0
      %v3409 = vadd.f32 %v3215, %v3408
      %v3410 = vpop.f32.mrb[0].mxu0
      %v3411 = vpop.f32.mrb[0].mxu0
      %v3412 = vadd.f32 %v3215, %v3411
      %v3413 = vpop.f32.mrb[0].mxu0
      %3414 = vmatprep.mubr.bf16.mxu0 0
      %3415 = vmatmul.mubr.bf16.gmra.mrb[0].mxu0 %v3261
      %v3416 = vpop.f32.mrb[0].mxu0
      %v3417 = vadd.f32 %v3215, %v3416
      %v3418 = vpop.f32.mrb[0].mxu0
      %v3419 = vpop.f32.mrb[0].mxu0
      %v3420 = vadd.f32 %v3215, %v3419
      %v3421 = vpop.f32.mrb[0].mxu0
      %3422 = vmatprep.mubr.bf16.mxu0 0
      %3423 = vmatmul.mubr.bf16.gmra.mrb[0].mxu0 %v3264
      %v3424 = vpop.f32.mrb[0].mxu0
      %v3425 = vadd.f32 %v3215, %v3424
      %v3426 = vpop.f32.mrb[0].mxu0
      %v3427 = vpop.f32.mrb[0].mxu0
      %v3428 = vadd.f32 %v3215, %v3427
      %v3429 = vpop.f32.mrb[0].mxu0
      %3430 = vdwg.mxu0
      %v3431 = vmax.f32 %v3305, 0.0
      %v3432 = vmax.f32 %v3308, 0.0
      %v3433 = vmax.f32 %v3313, 0.0
      %v3434 = vmax.f32 %v3316, 0.0
      %v3435 = vmax.f32 %v3321, 0.0
      %v3436 = vmax.f32 %v3324, 0.0
      %v3437 = vmax.f32 %v3329, 0.0
      %v3438 = vmax.f32 %v3332, 0.0
      %v3439 = vmax.f32 %v3337, 0.0
      %v3440 = vmax.f32 %v3340, 0.0
      %v3441 = vmax.f32 %v3345, 0.0
      %v3442 = vmax.f32 %v3348, 0.0
      %v3443 = vmax.f32 %v3353, 0.0
      %v3444 = vmax.f32 %v3356, 0.0
      %v3445 = vmax.f32 %v3361, 0.0
      %v3446 = vmax.f32 %v3364, 0.0
      %v3447 = vmax.f32 %v3369, 0.0
      %v3448 = vmax.f32 %v3372, 0.0
      %v3449 = vmax.f32 %v3377, 0.0
      %v3450 = vmax.f32 %v3380, 0.0
      %v3451 = vmax.f32 %v3385, 0.0
      %v3452 = vmax.f32 %v3388, 0.0
      %v3453 = vmax.f32 %v3393, 0.0
      %v3454 = vmax.f32 %v3396, 0.0
      %v3455 = vmax.f32 %v3401, 0.0
      %v3456 = vmax.f32 %v3404, 0.0
      %v3457 = vmax.f32 %v3409, 0.0
      %v3458 = vmax.f32 %v3412, 0.0
      %v3459 = vmax.f32 %v3417, 0.0
      %v3460 = vmax.f32 %v3420, 0.0
      %v3461 = vmax.f32 %v3425, 0.0
      %v3462 = vmax.f32 %v3428, 0.0
      %vm3463 = vcmask 130048
      %3464 = vst.msk [vmem:[#allocation3] sm:$0xff] %vm3463, 0.0
      %3465 = vst.msk [vmem:[#allocation3 + $0x8] sm:$0xff] %vm3463, 0.0
      %vm3466 = vcmask 123904
      %3467 = vst.msk [vmem:[#allocation3 + $0x10] sm:$0x3] %vm3466, 0.0
      %3468 = vst.msk [vmem:[#allocation3 + $0x18] sm:$0xff] %vm3463, 0.0
      %3469 = vst.msk [vmem:[#allocation3 + $0x20] sm:$0xff] %vm3463, 0.0
      %3470 = vst.msk [vmem:[#allocation3 + $0x28] sm:$0x3] %vm3466, 0.0
      %3471 = vst.msk [vmem:[#allocation3 + $0x30] sm:$0xff] %vm3463, 0.0
      %3472 = vst.msk [vmem:[#allocation3 + $0x38] sm:$0xff] %vm3463, 0.0
      %3473 = vst.msk [vmem:[#allocation3 + $0x40] sm:$0x3] %vm3466, 0.0
      %3474 = vst.msk [vmem:[#allocation3 + $0x48] sm:$0xff] %vm3463, 0.0
      %3475 = vst.msk [vmem:[#allocation3 + $0x50] sm:$0xff] %vm3463, 0.0
      %3476 = vst.msk [vmem:[#allocation3 + $0x58] sm:$0x3] %vm3466, 0.0
      %3477 = vst.msk [vmem:[#allocation3 + $0x60] sm:$0xff] %vm3463, 0.0
      %3478 = vst.msk [vmem:[#allocation3 + $0x68] sm:$0xff] %vm3463, 0.0
      %3479 = vst.msk [vmem:[#allocation3 + $0x70] sm:$0x3] %vm3466, 0.0
      %3480 = vst.msk [vmem:[#allocation3 + $0x78] sm:$0xff] %vm3463, 0.0
      %3481 = vst.msk [vmem:[#allocation3 + $0x80] sm:$0xff] %vm3463, 0.0
      %3482 = vst.msk [vmem:[#allocation3 + $0x88] sm:$0x3] %vm3466, 0.0
      %3483 = vst.msk [vmem:[#allocation3 + $0x90] sm:$0xff] %vm3463, 0.0
      %3484 = vst.msk [vmem:[#allocation3 + $0x98] sm:$0xff] %vm3463, 0.0
      %3485 = vst.msk [vmem:[#allocation3 + $0xa0] sm:$0x3] %vm3466, 0.0
      %3486 = vst.msk [vmem:[#allocation3 + $0xa8] sm:$0xff] %vm3463, 0.0
      %3487 = vst.msk [vmem:[#allocation3 + $0xb0] sm:$0xff] %vm3463, 0.0
      %3488 = vst.msk [vmem:[#allocation3 + $0xb8] sm:$0x3] %vm3466, 0.0
      %3489 = vst.msk [vmem:[#allocation3 + $0xc0] sm:$0xff] %vm3463, 0.0
      %3490 = vst.msk [vmem:[#allocation3 + $0xc8] sm:$0xff] %vm3463, 0.0
      %3491 = vst.msk [vmem:[#allocation3 + $0xd0] sm:$0x3] %vm3466, 0.0
      %3492 = vst.msk [vmem:[#allocation3 + $0xd8] sm:$0xff] %vm3463, 0.0
      %3493 = vst.msk [vmem:[#allocation3 + $0xe0] sm:$0xff] %vm3463, 0.0
      %3494 = vst.msk [vmem:[#allocation3 + $0xe8] sm:$0x3] %vm3466, 0.0
      %3495 = vst.msk [vmem:[#allocation3 + $0xf0] sm:$0xff] %vm3463, 0.0
      %3496 = vst.msk [vmem:[#allocation3 + $0xf8] sm:$0xff] %vm3463, 0.0
      %3497 = vst.msk [vmem:[#allocation3 + $0x100] sm:$0x3] %vm3466, 0.0
      %3498 = vst.msk [vmem:[#allocation3 + $0x108] sm:$0xff] %vm3463, 0.0
      %3499 = vst.msk [vmem:[#allocation3 + $0x110] sm:$0xff] %vm3463, 0.0
      %3500 = vst.msk [vmem:[#allocation3 + $0x118] sm:$0x3] %vm3466, 0.0
      %3501 = vst.msk [vmem:[#allocation3 + $0x120] sm:$0xff] %vm3463, 0.0
      %3502 = vst.msk [vmem:[#allocation3 + $0x128] sm:$0xff] %vm3463, 0.0
      %3503 = vst.msk [vmem:[#allocation3 + $0x130] sm:$0x3] %vm3466, 0.0
      %3504 = vst.msk [vmem:[#allocation3 + $0x138] sm:$0xff] %vm3463, 0.0
      %3505 = vst.msk [vmem:[#allocation3 + $0x140] sm:$0xff] %vm3463, 0.0
      %3506 = vst.msk [vmem:[#allocation3 + $0x148] sm:$0x3] %vm3466, 0.0
      %3507 = vst.msk [vmem:[#allocation3 + $0x150] sm:$0xff] %vm3463, 0.0
      %3508 = vst.msk [vmem:[#allocation3 + $0x158] sm:$0xff] %vm3463, 0.0
      %3509 = vst.msk [vmem:[#allocation3 + $0x160] sm:$0x3] %vm3466, 0.0
      %3510 = vst.msk [vmem:[#allocation3 + $0x168] sm:$0xff] %vm3463, 0.0
      %3511 = vst.msk [vmem:[#allocation3 + $0x170] sm:$0xff] %vm3463, 0.0
      %3512 = vst.msk [vmem:[#allocation3 + $0x178] sm:$0x3] %vm3466, 0.0
      %3513 = vst.msk [vmem:[#allocation3 + $0x180] sm:$0xff] %vm3463, 0.0
      %3514 = vst.msk [vmem:[#allocation3 + $0x188] sm:$0xff] %vm3463, 0.0
      %3515 = vst.msk [vmem:[#allocation3 + $0x190] sm:$0x3] %vm3466, 0.0
      %3516 = vst.msk [vmem:[#allocation3 + $0x198] sm:$0xff] %vm3463, 0.0
      %3517 = vst.msk [vmem:[#allocation3 + $0x1a0] sm:$0xff] %vm3463, 0.0
      %3518 = vst.msk [vmem:[#allocation3 + $0x1a8] sm:$0x3] %vm3466, 0.0
      %s3519 = scalar_lea.vmem [#allocation3], 24
      %3520 = vst.msk [vmem:[%s3519 + $0x1] sm:$0xff] %vm3463, %v3431
      %3521 = vst.msk [vmem:[%s3519 + $0x9] sm:$0xff] %vm3463, %v3432
      %3522 = vst.msk [vmem:[%s3519 + $0x19] sm:$0xff] %vm3463, %v3433
      %3523 = vst.msk [vmem:[%s3519 + $0x21] sm:$0xff] %vm3463, %v3434
      %3524 = vst.msk [vmem:[%s3519 + $0x31] sm:$0xff] %vm3463, %v3435
      %3525 = vst.msk [vmem:[%s3519 + $0x39] sm:$0xff] %vm3463, %v3436
      %3526 = vst.msk [vmem:[%s3519 + $0x49] sm:$0xff] %vm3463, %v3437
      %3527 = vst.msk [vmem:[%s3519 + $0x51] sm:$0xff] %vm3463, %v3438
      %3528 = vst.msk [vmem:[%s3519 + $0x61] sm:$0xff] %vm3463, %v3439
      %3529 = vst.msk [vmem:[%s3519 + $0x69] sm:$0xff] %vm3463, %v3440
      %3530 = vst.msk [vmem:[%s3519 + $0x79] sm:$0xff] %vm3463, %v3441
      %3531 = vst.msk [vmem:[%s3519 + $0x81] sm:$0xff] %vm3463, %v3442
      %3532 = vst.msk [vmem:[%s3519 + $0x91] sm:$0xff] %vm3463, %v3443
      %3533 = vst.msk [vmem:[%s3519 + $0x99] sm:$0xff] %vm3463, %v3444
      %3534 = vst.msk [vmem:[%s3519 + $0xa9] sm:$0xff] %vm3463, %v3445
      %3535 = vst.msk [vmem:[%s3519 + $0xb1] sm:$0xff] %vm3463, %v3446
      %3536 = vst.msk [vmem:[%s3519 + $0xc1] sm:$0xff] %vm3463, %v3447
      %3537 = vst.msk [vmem:[%s3519 + $0xc9] sm:$0xff] %vm3463, %v3448
      %3538 = vst.msk [vmem:[%s3519 + $0xd9] sm:$0xff] %vm3463, %v3449
      %3539 = vst.msk [vmem:[%s3519 + $0xe1] sm:$0xff] %vm3463, %v3450
      %3540 = vst.msk [vmem:[%s3519 + $0xf1] sm:$0xff] %vm3463, %v3451
      %3541 = vst.msk [vmem:[%s3519 + $0xf9] sm:$0xff] %vm3463, %v3452
      %3542 = vst.msk [vmem:[%s3519 + $0x109] sm:$0xff] %vm3463, %v3453
      %3543 = vst.msk [vmem:[%s3519 + $0x111] sm:$0xff] %vm3463, %v3454
      %3544 = vst.msk [vmem:[%s3519 + $0x121] sm:$0xff] %vm3463, %v3455
      %3545 = vst.msk [vmem:[%s3519 + $0x129] sm:$0xff] %vm3463, %v3456
      %3546 = vst.msk [vmem:[%s3519 + $0x139] sm:$0xff] %vm3463, %v3457
      %3547 = vst.msk [vmem:[%s3519 + $0x141] sm:$0xff] %vm3463, %v3458
      %3548 = vst.msk [vmem:[%s3519 + $0x151] sm:$0xff] %vm3463, %v3459
      %3549 = vst.msk [vmem:[%s3519 + $0x159] sm:$0xff] %vm3463, %v3460
      %3550 = vst.msk [vmem:[%s3519 + $0x169] sm:$0xff] %vm3463, %v3461
      %3551 = vst.msk [vmem:[%s3519 + $0x171] sm:$0xff] %vm3463, %v3462
      %v3552 = vld [vmem:[#allocation3] sm:$0xff]
      %v3553 = vld [vmem:[#allocation3 + $0x8] sm:$0xff]
      %v3554 = vld [vmem:[#allocation3 + $0x18] sm:$0xff]
      %v3555 = vld [vmem:[#allocation3 + $0x20] sm:$0xff]
      %v3556 = vld [vmem:[#allocation3 + $0x30] sm:$0xff]
      %v3557 = vld [vmem:[#allocation3 + $0x38] sm:$0xff]
      %v3558 = vld [vmem:[#allocation3 + $0x48] sm:$0xff]
      %v3559 = vld [vmem:[#allocation3 + $0x50] sm:$0xff]
      %v3560 = vld [vmem:[#allocation3 + $0x60] sm:$0xff]
      %v3561 = vld [vmem:[#allocation3 + $0x68] sm:$0xff]
      %v3562 = vld [vmem:[#allocation3 + $0x78] sm:$0xff]
      %v3563 = vld [vmem:[#allocation3 + $0x80] sm:$0xff]
      %v3564 = vld [vmem:[#allocation3 + $0x90] sm:$0xff]
      %v3565 = vld [vmem:[#allocation3 + $0x98] sm:$0xff]
      %v3566 = vld [vmem:[#allocation3 + $0xa8] sm:$0xff]
      %v3567 = vld [vmem:[#allocation3 + $0xb0] sm:$0xff]
      %v3568 = vld [vmem:[#allocation3 + $0xc0] sm:$0xff]
      %v3569 = vld [vmem:[#allocation3 + $0xc8] sm:$0xff]
      %v3570 = vld [vmem:[#allocation3 + $0xd8] sm:$0xff]
      %v3571 = vld [vmem:[#allocation3 + $0xe0] sm:$0xff]
      %v3572 = vld [vmem:[#allocation3 + $0xf0] sm:$0xff]
      %v3573 = vld [vmem:[#allocation3 + $0xf8] sm:$0xff]
      %v3574 = vld [vmem:[#allocation3 + $0x108] sm:$0xff]
      %v3575 = vld [vmem:[#allocation3 + $0x110] sm:$0xff]
      %v3576 = vld [vmem:[#allocation3 + $0x120] sm:$0xff]
      %v3577 = vld [vmem:[#allocation3 + $0x128] sm:$0xff]
      %v3578 = vld [vmem:[#allocation3 + $0x138] sm:$0xff]
      %v3579 = vld [vmem:[#allocation3 + $0x140] sm:$0xff]
      %v3580 = vld [vmem:[#allocation3 + $0x150] sm:$0xff]
      %v3581 = vld [vmem:[#allocation3 + $0x158] sm:$0xff]
      %v3582 = vld [vmem:[#allocation3 + $0x168] sm:$0xff]
      %v3583 = vld [vmem:[#allocation3 + $0x170] sm:$0xff]
      %v3584 = vpack.c.bf16 %v3553, %v3552
      %v3585 = vpack.c.bf16 %v3555, %v3554
      %v3586 = vpack.c.bf16 %v3557, %v3556
      %v3587 = vpack.c.bf16 %v3559, %v3558
      %v3588 = vpack.c.bf16 %v3561, %v3560
      %v3589 = vpack.c.bf16 %v3563, %v3562
      %v3590 = vpack.c.bf16 %v3565, %v3564
      %v3591 = vpack.c.bf16 %v3567, %v3566
      %v3592 = vpack.c.bf16 %v3569, %v3568
      %v3593 = vpack.c.bf16 %v3571, %v3570
      %v3594 = vpack.c.bf16 %v3573, %v3572
      %v3595 = vpack.c.bf16 %v3575, %v3574
      %v3596 = vpack.c.bf16 %v3577, %v3576
      %v3597 = vpack.c.bf16 %v3579, %v3578
      %v3598 = vpack.c.bf16 %v3581, %v3580
      %v3599 = vpack.c.bf16 %v3583, %v3582
      %v3600 = vld [vmem:[%s5] sm:$0xf]
      %v3601 = vld [vmem:[%s5 + $0x4] sm:$0xf]
      %v3602 = vld [vmem:[#allocation3 + $0x1] sm:$0xff]
      %v3603 = vld [vmem:[#allocation3 + $0x9] sm:$0xff]
      %v3604 = vld [vmem:[#allocation3 + $0x19] sm:$0xff]
      %v3605 = vld [vmem:[#allocation3 + $0x21] sm:$0xff]
      %v3606 = vld [vmem:[#allocation3 + $0x31] sm:$0xff]
      %v3607 = vld [vmem:[#allocation3 + $0x39] sm:$0xff]
      %v3608 = vld [vmem:[#allocation3 + $0x49] sm:$0xff]
      %v3609 = vld [vmem:[#allocation3 + $0x51] sm:$0xff]
      %v3610 = vld [vmem:[#allocation3 + $0x61] sm:$0xff]
      %v3611 = vld [vmem:[#allocation3 + $0x69] sm:$0xff]
      %v3612 = vld [vmem:[#allocation3 + $0x79] sm:$0xff]
      %v3613 = vld [vmem:[#allocation3 + $0x81] sm:$0xff]
      %v3614 = vld [vmem:[#allocation3 + $0x91] sm:$0xff]
      %v3615 = vld [vmem:[#allocation3 + $0x99] sm:$0xff]
      %v3616 = vld [vmem:[#allocation3 + $0xa9] sm:$0xff]
      %v3617 = vld [vmem:[#allocation3 + $0xb1] sm:$0xff]
      %v3618 = vld [vmem:[#allocation3 + $0xc1] sm:$0xff]
      %v3619 = vld [vmem:[#allocation3 + $0xc9] sm:$0xff]
      %v3620 = vld [vmem:[#allocation3 + $0xd9] sm:$0xff]
      %v3621 = vld [vmem:[#allocation3 + $0xe1] sm:$0xff]
      %v3622 = vld [vmem:[#allocation3 + $0xf1] sm:$0xff]
      %v3623 = vld [vmem:[#allocation3 + $0xf9] sm:$0xff]
      %v3624 = vld [vmem:[#allocation3 + $0x109] sm:$0xff]
      %v3625 = vld [vmem:[#allocation3 + $0x111] sm:$0xff]
      %v3626 = vld [vmem:[#allocation3 + $0x121] sm:$0xff]
      %v3627 = vld [vmem:[#allocation3 + $0x129] sm:$0xff]
      %v3628 = vld [vmem:[#allocation3 + $0x139] sm:$0xff]
      %v3629 = vld [vmem:[#allocation3 + $0x141] sm:$0xff]
      %v3630 = vld [vmem:[#allocation3 + $0x151] sm:$0xff]
      %v3631 = vld [vmem:[#allocation3 + $0x159] sm:$0xff]
      %v3632 = vld [vmem:[#allocation3 + $0x169] sm:$0xff]
      %v3633 = vld [vmem:[#allocation3 + $0x171] sm:$0xff]
      %v3634 = vpack.c.bf16 %v3603, %v3602
      %v3635 = vpack.c.bf16 %v3605, %v3604
      %v3636 = vpack.c.bf16 %v3607, %v3606
      %v3637 = vpack.c.bf16 %v3609, %v3608
      %v3638 = vpack.c.bf16 %v3611, %v3610
      %v3639 = vpack.c.bf16 %v3613, %v3612
      %v3640 = vpack.c.bf16 %v3615, %v3614
      %v3641 = vpack.c.bf16 %v3617, %v3616
      %v3642 = vpack.c.bf16 %v3619, %v3618
      %v3643 = vpack.c.bf16 %v3621, %v3620
      %v3644 = vpack.c.bf16 %v3623, %v3622
      %v3645 = vpack.c.bf16 %v3625, %v3624
      %v3646 = vpack.c.bf16 %v3627, %v3626
      %v3647 = vpack.c.bf16 %v3629, %v3628
      %v3648 = vpack.c.bf16 %v3631, %v3630
      %v3649 = vpack.c.bf16 %v3633, %v3632
      %s3650 = scalar_lea.vmem %s5, 8
      %v3651 = vld [vmem:[%s3650] sm:$0xf]
      %v3652 = vld [vmem:[%s3650 + $0x4] sm:$0xf]
      %v3655 = vunpack.c.l.b16 %v3651
      %v3656 = vunpack.c.l.b16 %v3652
      %v3657 = vpack.c.b16 %v3656, %v3655
      %v3660 = vsel %vm3463, %v3634, 0
      %v3663 = vsel %vm3463, %v3635, 0
      %v3666 = vsel %vm3463, %v3636, 0
      %v3669 = vsel %vm3463, %v3637, 0
      %v3672 = vsel %vm3463, %v3638, 0
      %v3675 = vsel %vm3463, %v3639, 0
      %v3678 = vsel %vm3463, %v3640, 0
      %v3681 = vsel %vm3463, %v3641, 0
      %v3684 = vsel %vm3463, %v3642, 0
      %v3687 = vsel %vm3463, %v3643, 0
      %v3690 = vsel %vm3463, %v3644, 0
      %v3693 = vsel %vm3463, %v3645, 0
      %v3696 = vsel %vm3463, %v3646, 0
      %v3699 = vsel %vm3463, %v3647, 0
      %v3702 = vsel %vm3463, %v3648, 0
      %v3705 = vsel %vm3463, %v3649, 0
      %3707 = vmatprep.subr.bf16.mxu0 0
      %3708 = vmatpush1.bf16.msra.mxu0 %v3657
      %3709 = vmatprep.subr.bf16.mxu0 0
      %3710 = vmatpush1.bf16.msra.mxu0 0
      %3711 = vmatprep.subr.bf16.mxu0 0
      %3712 = vmatpush1.bf16.msra.mxu0 0
      %3713 = vmatprep.subr.bf16.mxu0 0
      %3714 = vmatpush1.bf16.msra.mxu0 0
      %3715 = vmatprep.subr.bf16.mxu0 0
      %3716 = vmatpush1.bf16.msra.mxu0 0
      %3717 = vmatprep.subr.bf16.mxu0 0
      %3718 = vmatpush1.bf16.msra.mxu0 0
      %3719 = vmatprep.subr.bf16.mxu0 0
      %3720 = vmatpush1.bf16.msra.mxu0 0
      %3721 = vmatprep.subr.bf16.mxu0 0
      %3722 = vmatpush1.bf16.msra.mxu0 0
      %3723 = vmatprep.subr.bf16.mxu0 0
      %3724 = vmatpush1.bf16.msra.mxu0 0
      %3725 = vmatprep.subr.bf16.mxu0 0
      %3726 = vmatpush1.bf16.msra.mxu0 0
      %3727 = vmatprep.subr.bf16.mxu0 0
      %3728 = vmatpush1.bf16.msra.mxu0 0
      %3729 = vmatprep.subr.bf16.mxu0 0
      %3730 = vmatpush1.bf16.msra.mxu0 0
      %3731 = vmatprep.subr.bf16.mxu0 0
      %3732 = vmatpush1.bf16.msra.mxu0 0
      %3733 = vmatprep.subr.bf16.mxu0 0
      %3734 = vmatpush1.bf16.msra.mxu0 0
      %3735 = vmatprep.subr.bf16.mxu0 0
      %3736 = vmatpush1.bf16.msra.mxu0 0
      %3737 = vmatprep.subr.bf16.mxu0 0
      %3738 = vmatpush1.bf16.msra.mxu0 0
      %3739 = vmatprep.mubr.bf16.mxu0 0
      %3740 = vmatmul.mubr.bf16.gmra.mrb[0].mxu0 %v3660
      %v3741 = vpop.f32.mrb[0].mxu0
      %v3742 = vadd.f32 0.0, %v3741
      %v3743 = vpop.f32.mrb[0].mxu0
      %v3744 = vpop.f32.mrb[0].mxu0
      %v3745 = vadd.f32 0.0, %v3744
      %v3746 = vpop.f32.mrb[0].mxu0
      %3747 = vmatprep.mubr.bf16.mxu0 0
      %3748 = vmatmul.mubr.bf16.gmra.mrb[0].mxu0 %v3663
      %v3749 = vpop.f32.mrb[0].mxu0
      %v3750 = vadd.f32 0.0, %v3749
      %v3751 = vpop.f32.mrb[0].mxu0
      %v3752 = vpop.f32.mrb[0].mxu0
      %v3753 = vadd.f32 0.0, %v3752
      %v3754 = vpop.f32.mrb[0].mxu0
      %3755 = vmatprep.mubr.bf16.mxu0 0
      %3756 = vmatmul.mubr.bf16.gmra.mrb[0].mxu0 %v3666
      %v3757 = vpop.f32.mrb[0].mxu0
      %v3758 = vadd.f32 0.0, %v3757
      %v3759 = vpop.f32.mrb[0].mxu0
      %v3760 = vpop.f32.mrb[0].mxu0
      %v3761 = vadd.f32 0.0, %v3760
      %v3762 = vpop.f32.mrb[0].mxu0
      %3763 = vmatprep.mubr.bf16.mxu0 0
      %3764 = vmatmul.mubr.bf16.gmra.mrb[0].mxu0 %v3669
      %v3765 = vpop.f32.mrb[0].mxu0
      %v3766 = vadd.f32 0.0, %v3765
      %v3767 = vpop.f32.mrb[0].mxu0
      %v3768 = vpop.f32.mrb[0].mxu0
      %v3769 = vadd.f32 0.0, %v3768
      %v3770 = vpop.f32.mrb[0].mxu0
      %3771 = vmatprep.mubr.bf16.mxu0 0
      %3772 = vmatmul.mubr.bf16.gmra.mrb[0].mxu0 %v3672
      %v3773 = vpop.f32.mrb[0].mxu0
      %v3774 = vadd.f32 0.0, %v3773
      %v3775 = vpop.f32.mrb[0].mxu0
      %v3776 = vpop.f32.mrb[0].mxu0
      %v3777 = vadd.f32 0.0, %v3776
      %v3778 = vpop.f32.mrb[0].mxu0
      %3779 = vmatprep.mubr.bf16.mxu0 0
      %3780 = vmatmul.mubr.bf16.gmra.mrb[0].mxu0 %v3675
      %v3781 = vpop.f32.mrb[0].mxu0
      %v3782 = vadd.f32 0.0, %v3781
      %v3783 = vpop.f32.mrb[0].mxu0
      %v3784 = vpop.f32.mrb[0].mxu0
      %v3785 = vadd.f32 0.0, %v3784
      %v3786 = vpop.f32.mrb[0].mxu0
      %3787 = vmatprep.mubr.bf16.mxu0 0
      %3788 = vmatmul.mubr.bf16.gmra.mrb[0].mxu0 %v3678
      %v3789 = vpop.f32.mrb[0].mxu0
      %v3790 = vadd.f32 0.0, %v3789
      %v3791 = vpop.f32.mrb[0].mxu0
      %v3792 = vpop.f32.mrb[0].mxu0
      %v3793 = vadd.f32 0.0, %v3792
      %v3794 = vpop.f32.mrb[0].mxu0
      %3795 = vmatprep.mubr.bf16.mxu0 0
      %3796 = vmatmul.mubr.bf16.gmra.mrb[0].mxu0 %v3681
      %v3797 = vpop.f32.mrb[0].mxu0
      %v3798 = vadd.f32 0.0, %v3797
      %v3799 = vpop.f32.mrb[0].mxu0
      %v3800 = vpop.f32.mrb[0].mxu0
      %v3801 = vadd.f32 0.0, %v3800
      %v3802 = vpop.f32.mrb[0].mxu0
      %3803 = vmatprep.mubr.bf16.mxu0 0
      %3804 = vmatmul.mubr.bf16.gmra.mrb[0].mxu0 %v3684
      %v3805 = vpop.f32.mrb[0].mxu0
      %v3806 = vadd.f32 0.0, %v3805
      %v3807 = vpop.f32.mrb[0].mxu0
      %v3808 = vpop.f32.mrb[0].mxu0
      %v3809 = vadd.f32 0.0, %v3808
      %v3810 = vpop.f32.mrb[0].mxu0
      %3811 = vmatprep.mubr.bf16.mxu0 0
      %3812 = vmatmul.mubr.bf16.gmra.mrb[0].mxu0 %v3687
      %v3813 = vpop.f32.mrb[0].mxu0
      %v3814 = vadd.f32 0.0, %v3813
      %v3815 = vpop.f32.mrb[0].mxu0
      %v3816 = vpop.f32.mrb[0].mxu0
      %v3817 = vadd.f32 0.0, %v3816
      %v3818 = vpop.f32.mrb[0].mxu0
      %3819 = vmatprep.mubr.bf16.mxu0 0
      %3820 = vmatmul.mubr.bf16.gmra.mrb[0].mxu0 %v3690
      %v3821 = vpop.f32.mrb[0].mxu0
      %v3822 = vadd.f32 0.0, %v3821
      %v3823 = vpop.f32.mrb[0].mxu0
      %v3824 = vpop.f32.mrb[0].mxu0
      %v3825 = vadd.f32 0.0, %v3824
      %v3826 = vpop.f32.mrb[0].mxu0
      %3827 = vmatprep.mubr.bf16.mxu0 0
      %3828 = vmatmul.mubr.bf16.gmra.mrb[0].mxu0 %v3693
      %v3829 = vpop.f32.mrb[0].mxu0
      %v3830 = vadd.f32 0.0, %v3829
      %v3831 = vpop.f32.mrb[0].mxu0
      %v3832 = vpop.f32.mrb[0].mxu0
      %v3833 = vadd.f32 0.0, %v3832
      %v3834 = vpop.f32.mrb[0].mxu0
      %3835 = vmatprep.mubr.bf16.mxu0 0
      %3836 = vmatmul.mubr.bf16.gmra.mrb[0].mxu0 %v3696
      %v3837 = vpop.f32.mrb[0].mxu0
      %v3838 = vadd.f32 0.0, %v3837
      %v3839 = vpop.f32.mrb[0].mxu0
      %v3840 = vpop.f32.mrb[0].mxu0
      %v3841 = vadd.f32 0.0, %v3840
      %v3842 = vpop.f32.mrb[0].mxu0
      %3843 = vmatprep.mubr.bf16.mxu0 0
      %3844 = vmatmul.mubr.bf16.gmra.mrb[0].mxu0 %v3699
      %v3845 = vpop.f32.mrb[0].mxu0
      %v3846 = vadd.f32 0.0, %v3845
      %v3847 = vpop.f32.mrb[0].mxu0
      %v3848 = vpop.f32.mrb[0].mxu0
      %v3849 = vadd.f32 0.0, %v3848
      %v3850 = vpop.f32.mrb[0].mxu0
      %3851 = vmatprep.mubr.bf16.mxu0 0
      %3852 = vmatmul.mubr.bf16.gmra.mrb[0].mxu0 %v3702
      %v3853 = vpop.f32.mrb[0].mxu0
      %v3854 = vadd.f32 0.0, %v3853
      %v3855 = vpop.f32.mrb[0].mxu0
      %v3856 = vpop.f32.mrb[0].mxu0
      %v3857 = vadd.f32 0.0, %v3856
      %v3858 = vpop.f32.mrb[0].mxu0
      %3859 = vmatprep.mubr.bf16.mxu0 0
      %3860 = vmatmul.mubr.bf16.gmra.mrb[0].mxu0 %v3705
      %v3861 = vpop.f32.mrb[0].mxu0
      %v3862 = vadd.f32 0.0, %v3861
      %v3863 = vpop.f32.mrb[0].mxu0
      %v3864 = vpop.f32.mrb[0].mxu0
      %v3865 = vadd.f32 0.0, %v3864
      %v3866 = vpop.f32.mrb[0].mxu0
      %3867 = vdwg.mxu0
      %v3870 = vunpack.c.l.b16 %v3600
      %v3871 = vunpack.c.l.b16 %v3601
      %v3872 = vpack.c.b16 %v3871, %v3870
      %v3875 = vsel %vm3463, %v3584, 0
      %v3878 = vsel %vm3463, %v3585, 0
      %v3881 = vsel %vm3463, %v3586, 0
      %v3884 = vsel %vm3463, %v3587, 0
      %v3887 = vsel %vm3463, %v3588, 0
      %v3890 = vsel %vm3463, %v3589, 0
      %v3893 = vsel %vm3463, %v3590, 0
      %v3896 = vsel %vm3463, %v3591, 0
      %v3899 = vsel %vm3463, %v3592, 0
      %v3902 = vsel %vm3463, %v3593, 0
      %v3905 = vsel %vm3463, %v3594, 0
      %v3908 = vsel %vm3463, %v3595, 0
      %v3911 = vsel %vm3463, %v3596, 0
      %v3914 = vsel %vm3463, %v3597, 0
      %v3917 = vsel %vm3463, %v3598, 0
      %v3920 = vsel %vm3463, %v3599, 0
      %3922 = vmatprep.subr.bf16.mxu0 0
      %3923 = vmatpush1.bf16.msra.mxu0 %v3872
      %3924 = vmatprep.subr.bf16.mxu0 0
      %3925 = vmatpush1.bf16.msra.mxu0 0
      %3926 = vmatprep.subr.bf16.mxu0 0
      %3927 = vmatpush1.bf16.msra.mxu0 0
      %3928 = vmatprep.subr.bf16.mxu0 0
      %3929 = vmatpush1.bf16.msra.mxu0 0
      %3930 = vmatprep.subr.bf16.mxu0 0
      %3931 = vmatpush1.bf16.msra.mxu0 0
      %3932 = vmatprep.subr.bf16.mxu0 0
      %3933 = vmatpush1.bf16.msra.mxu0 0
      %3934 = vmatprep.subr.bf16.mxu0 0
      %3935 = vmatpush1.bf16.msra.mxu0 0
      %3936 = vmatprep.subr.bf16.mxu0 0
      %3937 = vmatpush1.bf16.msra.mxu0 0
      %3938 = vmatprep.subr.bf16.mxu0 0
      %3939 = vmatpush1.bf16.msra.mxu0 0
      %3940 = vmatprep.subr.bf16.mxu0 0
      %3941 = vmatpush1.bf16.msra.mxu0 0
      %3942 = vmatprep.subr.bf16.mxu0 0
      %3943 = vmatpush1.bf16.msra.mxu0 0
      %3944 = vmatprep.subr.bf16.mxu0 0
      %3945 = vmatpush1.bf16.msra.mxu0 0
      %3946 = vmatprep.subr.bf16.mxu0 0
      %3947 = vmatpush1.bf16.msra.mxu0 0
      %3948 = vmatprep.subr.bf16.mxu0 0
      %3949 = vmatpush1.bf16.msra.mxu0 0
      %3950 = vmatprep.subr.bf16.mxu0 0
      %3951 = vmatpush1.bf16.msra.mxu0 0
      %3952 = vmatprep.subr.bf16.mxu0 0
      %3953 = vmatpush1.bf16.msra.mxu0 0
      %3954 = vmatprep.mubr.bf16.mxu0 0
      %3955 = vmatmul.mubr.bf16.gmra.mrb[0].mxu0 %v3875
      %v3956 = vpop.f32.mrb[0].mxu0
      %v3957 = vadd.f32 %v3742, %v3956
      %v3958 = vpop.f32.mrb[0].mxu0
      %v3959 = vpop.f32.mrb[0].mxu0
      %v3960 = vadd.f32 %v3745, %v3959
      %v3961 = vpop.f32.mrb[0].mxu0
      %3962 = vmatprep.mubr.bf16.mxu0 0
      %3963 = vmatmul.mubr.bf16.gmra.mrb[0].mxu0 %v3878
      %v3964 = vpop.f32.mrb[0].mxu0
      %v3965 = vadd.f32 %v3750, %v3964
      %v3966 = vpop.f32.mrb[0].mxu0
      %v3967 = vpop.f32.mrb[0].mxu0
      %v3968 = vadd.f32 %v3753, %v3967
      %v3969 = vpop.f32.mrb[0].mxu0
      %3970 = vmatprep.mubr.bf16.mxu0 0
      %3971 = vmatmul.mubr.bf16.gmra.mrb[0].mxu0 %v3881
      %v3972 = vpop.f32.mrb[0].mxu0
      %v3973 = vadd.f32 %v3758, %v3972
      %v3974 = vpop.f32.mrb[0].mxu0
      %v3975 = vpop.f32.mrb[0].mxu0
      %v3976 = vadd.f32 %v3761, %v3975
      %v3977 = vpop.f32.mrb[0].mxu0
      %3978 = vmatprep.mubr.bf16.mxu0 0
      %3979 = vmatmul.mubr.bf16.gmra.mrb[0].mxu0 %v3884
      %v3980 = vpop.f32.mrb[0].mxu0
      %v3981 = vadd.f32 %v3766, %v3980
      %v3982 = vpop.f32.mrb[0].mxu0
      %v3983 = vpop.f32.mrb[0].mxu0
      %v3984 = vadd.f32 %v3769, %v3983
      %v3985 = vpop.f32.mrb[0].mxu0
      %3986 = vmatprep.mubr.bf16.mxu0 0
      %3987 = vmatmul.mubr.bf16.gmra.mrb[0].mxu0 %v3887
      %v3988 = vpop.f32.mrb[0].mxu0
      %v3989 = vadd.f32 %v3774, %v3988
      %v3990 = vpop.f32.mrb[0].mxu0
      %v3991 = vpop.f32.mrb[0].mxu0
      %v3992 = vadd.f32 %v3777, %v3991
      %v3993 = vpop.f32.mrb[0].mxu0
      %3994 = vmatprep.mubr.bf16.mxu0 0
      %3995 = vmatmul.mubr.bf16.gmra.mrb[0].mxu0 %v3890
      %v3996 = vpop.f32.mrb[0].mxu0
      %v3997 = vadd.f32 %v3782, %v3996
      %v3998 = vpop.f32.mrb[0].mxu0
      %v3999 = vpop.f32.mrb[0].mxu0
      %v4000 = vadd.f32 %v3785, %v3999
      %v4001 = vpop.f32.mrb[0].mxu0
      %4002 = vmatprep.mubr.bf16.mxu0 0
      %4003 = vmatmul.mubr.bf16.gmra.mrb[0].mxu0 %v3893
      %v4004 = vpop.f32.mrb[0].mxu0
      %v4005 = vadd.f32 %v3790, %v4004
      %v4006 = vpop.f32.mrb[0].mxu0
      %v4007 = vpop.f32.mrb[0].mxu0
      %v4008 = vadd.f32 %v3793, %v4007
      %v4009 = vpop.f32.mrb[0].mxu0
      %4010 = vmatprep.mubr.bf16.mxu0 0
      %4011 = vmatmul.mubr.bf16.gmra.mrb[0].mxu0 %v3896
      %v4012 = vpop.f32.mrb[0].mxu0
      %v4013 = vadd.f32 %v3798, %v4012
      %v4014 = vpop.f32.mrb[0].mxu0
      %v4015 = vpop.f32.mrb[0].mxu0
      %v4016 = vadd.f32 %v3801, %v4015
      %v4017 = vpop.f32.mrb[0].mxu0
      %4018 = vmatprep.mubr.bf16.mxu0 0
      %4019 = vmatmul.mubr.bf16.gmra.mrb[0].mxu0 %v3899
      %v4020 = vpop.f32.mrb[0].mxu0
      %v4021 = vadd.f32 %v3806, %v4020
      %v4022 = vpop.f32.mrb[0].mxu0
      %v4023 = vpop.f32.mrb[0].mxu0
      %v4024 = vadd.f32 %v3809, %v4023
      %v4025 = vpop.f32.mrb[0].mxu0
      %4026 = vmatprep.mubr.bf16.mxu0 0
      %4027 = vmatmul.mubr.bf16.gmra.mrb[0].mxu0 %v3902
      %v4028 = vpop.f32.mrb[0].mxu0
      %v4029 = vadd.f32 %v3814, %v4028
      %v4030 = vpop.f32.mrb[0].mxu0
      %v4031 = vpop.f32.mrb[0].mxu0
      %v4032 = vadd.f32 %v3817, %v4031
      %v4033 = vpop.f32.mrb[0].mxu0
      %4034 = vmatprep.mubr.bf16.mxu0 0
      %4035 = vmatmul.mubr.bf16.gmra.mrb[0].mxu0 %v3905
      %v4036 = vpop.f32.mrb[0].mxu0
      %v4037 = vadd.f32 %v3822, %v4036
      %v4038 = vpop.f32.mrb[0].mxu0
      %v4039 = vpop.f32.mrb[0].mxu0
      %v4040 = vadd.f32 %v3825, %v4039
      %v4041 = vpop.f32.mrb[0].mxu0
      %4042 = vmatprep.mubr.bf16.mxu0 0
      %4043 = vmatmul.mubr.bf16.gmra.mrb[0].mxu0 %v3908
      %v4044 = vpop.f32.mrb[0].mxu0
      %v4045 = vadd.f32 %v3830, %v4044
      %v4046 = vpop.f32.mrb[0].mxu0
      %v4047 = vpop.f32.mrb[0].mxu0
      %v4048 = vadd.f32 %v3833, %v4047
      %v4049 = vpop.f32.mrb[0].mxu0
      %4050 = vmatprep.mubr.bf16.mxu0 0
      %4051 = vmatmul.mubr.bf16.gmra.mrb[0].mxu0 %v3911
      %v4052 = vpop.f32.mrb[0].mxu0
      %v4053 = vadd.f32 %v3838, %v4052
      %v4054 = vpop.f32.mrb[0].mxu0
      %v4055 = vpop.f32.mrb[0].mxu0
      %v4056 = vadd.f32 %v3841, %v4055
      %v4057 = vpop.f32.mrb[0].mxu0
      %4058 = vmatprep.mubr.bf16.mxu0 0
      %4059 = vmatmul.mubr.bf16.gmra.mrb[0].mxu0 %v3914
      %v4060 = vpop.f32.mrb[0].mxu0
      %v4061 = vadd.f32 %v3846, %v4060
      %v4062 = vpop.f32.mrb[0].mxu0
      %v4063 = vpop.f32.mrb[0].mxu0
      %v4064 = vadd.f32 %v3849, %v4063
      %v4065 = vpop.f32.mrb[0].mxu0
      %4066 = vmatprep.mubr.bf16.mxu0 0
      %4067 = vmatmul.mubr.bf16.gmra.mrb[0].mxu0 %v3917
      %v4068 = vpop.f32.mrb[0].mxu0
      %v4069 = vadd.f32 %v3854, %v4068
      %v4070 = vpop.f32.mrb[0].mxu0
      %v4071 = vpop.f32.mrb[0].mxu0
      %v4072 = vadd.f32 %v3857, %v4071
      %v4073 = vpop.f32.mrb[0].mxu0
      %4074 = vmatprep.mubr.bf16.mxu0 0
      %4075 = vmatmul.mubr.bf16.gmra.mrb[0].mxu0 %v3920
      %v4076 = vpop.f32.mrb[0].mxu0
      %v4077 = vadd.f32 %v3862, %v4076
      %v4078 = vpop.f32.mrb[0].mxu0
      %v4079 = vpop.f32.mrb[0].mxu0
      %v4080 = vadd.f32 %v3865, %v4079
      %v4081 = vpop.f32.mrb[0].mxu0
      %4082 = vdwg.mxu0
      %v4083 = vld [vmem:[#allocation3 + $0x2] sm:$0xff]
      %v4084 = vld [vmem:[#allocation3 + $0xa] sm:$0xff]
      %v4085 = vld [vmem:[#allocation3 + $0x1a] sm:$0xff]
      %v4086 = vld [vmem:[#allocation3 + $0x22] sm:$0xff]
      %v4087 = vld [vmem:[#allocation3 + $0x32] sm:$0xff]
      %v4088 = vld [vmem:[#allocation3 + $0x3a] sm:$0xff]
      %v4089 = vld [vmem:[#allocation3 + $0x4a] sm:$0xff]
      %v4090 = vld [vmem:[#allocation3 + $0x52] sm:$0xff]
      %v4091 = vld [vmem:[#allocation3 + $0x62] sm:$0xff]
      %v4092 = vld [vmem:[#allocation3 + $0x6a] sm:$0xff]
      %v4093 = vld [vmem:[#allocation3 + $0x7a] sm:$0xff]
      %v4094 = vld [vmem:[#allocation3 + $0x82] sm:$0xff]
      %v4095 = vld [vmem:[#allocation3 + $0x92] sm:$0xff]
      %v4096 = vld [vmem:[#allocation3 + $0x9a] sm:$0xff]
      %v4097 = vld [vmem:[#allocation3 + $0xaa] sm:$0xff]
      %v4098 = vld [vmem:[#allocation3 + $0xb2] sm:$0xff]
      %v4099 = vld [vmem:[#allocation3 + $0xc2] sm:$0xff]
      %v4100 = vld [vmem:[#allocation3 + $0xca] sm:$0xff]
      %v4101 = vld [vmem:[#allocation3 + $0xda] sm:$0xff]
      %v4102 = vld [vmem:[#allocation3 + $0xe2] sm:$0xff]
      %v4103 = vld [vmem:[#allocation3 + $0xf2] sm:$0xff]
      %v4104 = vld [vmem:[#allocation3 + $0xfa] sm:$0xff]
      %v4105 = vld [vmem:[#allocation3 + $0x10a] sm:$0xff]
      %v4106 = vld [vmem:[#allocation3 + $0x112] sm:$0xff]
      %v4107 = vld [vmem:[#allocation3 + $0x122] sm:$0xff]
      %v4108 = vld [vmem:[#allocation3 + $0x12a] sm:$0xff]
      %v4109 = vld [vmem:[#allocation3 + $0x13a] sm:$0xff]
      %v4110 = vld [vmem:[#allocation3 + $0x142] sm:$0xff]
      %v4111 = vld [vmem:[#allocation3 + $0x152] sm:$0xff]
      %v4112 = vld [vmem:[#allocation3 + $0x15a] sm:$0xff]
      %v4113 = vld [vmem:[#allocation3 + $0x16a] sm:$0xff]
      %v4114 = vld [vmem:[#allocation3 + $0x172] sm:$0xff]
      %v4115 = vpack.c.bf16 %v4084, %v4083
      %v4116 = vpack.c.bf16 %v4086, %v4085
      %v4117 = vpack.c.bf16 %v4088, %v4087
      %v4118 = vpack.c.bf16 %v4090, %v4089
      %v4119 = vpack.c.bf16 %v4092, %v4091
      %v4120 = vpack.c.bf16 %v4094, %v4093
      %v4121 = vpack.c.bf16 %v4096, %v4095
      %v4122 = vpack.c.bf16 %v4098, %v4097
      %v4123 = vpack.c.bf16 %v4100, %v4099
      %v4124 = vpack.c.bf16 %v4102, %v4101
      %v4125 = vpack.c.bf16 %v4104, %v4103
      %v4126 = vpack.c.bf16 %v4106, %v4105
      %v4127 = vpack.c.bf16 %v4108, %v4107
      %v4128 = vpack.c.bf16 %v4110, %v4109
      %v4129 = vpack.c.bf16 %v4112, %v4111
      %v4130 = vpack.c.bf16 %v4114, %v4113
      %s4131 = scalar_lea.vmem %s5, 16
      %v4132 = vld [vmem:[%s4131] sm:$0xf]
      %v4133 = vld [vmem:[%s4131 + $0x4] sm:$0xf]
      %v4136 = vunpack.c.l.b16 %v4132
      %v4137 = vunpack.c.l.b16 %v4133
      %v4138 = vpack.c.b16 %v4137, %v4136
      %v4141 = vsel %vm3463, %v4115, 0
      %v4144 = vsel %vm3463, %v4116, 0
      %v4147 = vsel %vm3463, %v4117, 0
      %v4150 = vsel %vm3463, %v4118, 0
      %v4153 = vsel %vm3463, %v4119, 0
      %v4156 = vsel %vm3463, %v4120, 0
      %v4159 = vsel %vm3463, %v4121, 0
      %v4162 = vsel %vm3463, %v4122, 0
      %v4165 = vsel %vm3463, %v4123, 0
      %v4168 = vsel %vm3463, %v4124, 0
      %v4171 = vsel %vm3463, %v4125, 0
      %v4174 = vsel %vm3463, %v4126, 0
      %v4177 = vsel %vm3463, %v4127, 0
      %v4180 = vsel %vm3463, %v4128, 0
      %v4183 = vsel %vm3463, %v4129, 0
      %v4186 = vsel %vm3463, %v4130, 0
      %4188 = vmatprep.subr.bf16.mxu0 0
      %4189 = vmatpush1.bf16.msra.mxu0 %v4138
      %4190 = vmatprep.subr.bf16.mxu0 0
      %4191 = vmatpush1.bf16.msra.mxu0 0
      %4192 = vmatprep.subr.bf16.mxu0 0
      %4193 = vmatpush1.bf16.msra.mxu0 0
      %4194 = vmatprep.subr.bf16.mxu0 0
      %4195 = vmatpush1.bf16.msra.mxu0 0
      %4196 = vmatprep.subr.bf16.mxu0 0
      %4197 = vmatpush1.bf16.msra.mxu0 0
      %4198 = vmatprep.subr.bf16.mxu0 0
      %4199 = vmatpush1.bf16.msra.mxu0 0
      %4200 = vmatprep.subr.bf16.mxu0 0
      %4201 = vmatpush1.bf16.msra.mxu0 0
      %4202 = vmatprep.subr.bf16.mxu0 0
      %4203 = vmatpush1.bf16.msra.mxu0 0
      %4204 = vmatprep.subr.bf16.mxu0 0
      %4205 = vmatpush1.bf16.msra.mxu0 0
      %4206 = vmatprep.subr.bf16.mxu0 0
      %4207 = vmatpush1.bf16.msra.mxu0 0
      %4208 = vmatprep.subr.bf16.mxu0 0
      %4209 = vmatpush1.bf16.msra.mxu0 0
      %4210 = vmatprep.subr.bf16.mxu0 0
      %4211 = vmatpush1.bf16.msra.mxu0 0
      %4212 = vmatprep.subr.bf16.mxu0 0
      %4213 = vmatpush1.bf16.msra.mxu0 0
      %4214 = vmatprep.subr.bf16.mxu0 0
      %4215 = vmatpush1.bf16.msra.mxu0 0
      %4216 = vmatprep.subr.bf16.mxu0 0
      %4217 = vmatpush1.bf16.msra.mxu0 0
      %4218 = vmatprep.subr.bf16.mxu0 0
      %4219 = vmatpush1.bf16.msra.mxu0 0
      %4220 = vmatprep.mubr.bf16.mxu0 0
      %4221 = vmatmul.mubr.bf16.gmra.mrb[0].mxu0 %v4141
      %v4222 = vpop.f32.mrb[0].mxu0
      %v4223 = vadd.f32 0.0, %v4222
      %v4224 = vpop.f32.mrb[0].mxu0
      %v4225 = vpop.f32.mrb[0].mxu0
      %v4226 = vadd.f32 0.0, %v4225
      %v4227 = vpop.f32.mrb[0].mxu0
      %4228 = vmatprep.mubr.bf16.mxu0 0
      %4229 = vmatmul.mubr.bf16.gmra.mrb[0].mxu0 %v4144
      %v4230 = vpop.f32.mrb[0].mxu0
      %v4231 = vadd.f32 0.0, %v4230
      %v4232 = vpop.f32.mrb[0].mxu0
      %v4233 = vpop.f32.mrb[0].mxu0
      %v4234 = vadd.f32 0.0, %v4233
      %v4235 = vpop.f32.mrb[0].mxu0
      %4236 = vmatprep.mubr.bf16.mxu0 0
      %4237 = vmatmul.mubr.bf16.gmra.mrb[0].mxu0 %v4147
      %v4238 = vpop.f32.mrb[0].mxu0
      %v4239 = vadd.f32 0.0, %v4238
      %v4240 = vpop.f32.mrb[0].mxu0
      %v4241 = vpop.f32.mrb[0].mxu0
      %v4242 = vadd.f32 0.0, %v4241
      %v4243 = vpop.f32.mrb[0].mxu0
      %4244 = vmatprep.mubr.bf16.mxu0 0
      %4245 = vmatmul.mubr.bf16.gmra.mrb[0].mxu0 %v4150
      %v4246 = vpop.f32.mrb[0].mxu0
      %v4247 = vadd.f32 0.0, %v4246
      %v4248 = vpop.f32.mrb[0].mxu0
      %v4249 = vpop.f32.mrb[0].mxu0
      %v4250 = vadd.f32 0.0, %v4249
      %v4251 = vpop.f32.mrb[0].mxu0
      %4252 = vmatprep.mubr.bf16.mxu0 0
      %4253 = vmatmul.mubr.bf16.gmra.mrb[0].mxu0 %v4153
      %v4254 = vpop.f32.mrb[0].mxu0
      %v4255 = vadd.f32 0.0, %v4254
      %v4256 = vpop.f32.mrb[0].mxu0
      %v4257 = vpop.f32.mrb[0].mxu0
      %v4258 = vadd.f32 0.0, %v4257
      %v4259 = vpop.f32.mrb[0].mxu0
      %4260 = vmatprep.mubr.bf16.mxu0 0
      %4261 = vmatmul.mubr.bf16.gmra.mrb[0].mxu0 %v4156
      %v4262 = vpop.f32.mrb[0].mxu0
      %v4263 = vadd.f32 0.0, %v4262
      %v4264 = vpop.f32.mrb[0].mxu0
      %v4265 = vpop.f32.mrb[0].mxu0
      %v4266 = vadd.f32 0.0, %v4265
      %v4267 = vpop.f32.mrb[0].mxu0
      %4268 = vmatprep.mubr.bf16.mxu0 0
      %4269 = vmatmul.mubr.bf16.gmra.mrb[0].mxu0 %v4159
      %v4270 = vpop.f32.mrb[0].mxu0
      %v4271 = vadd.f32 0.0, %v4270
      %v4272 = vpop.f32.mrb[0].mxu0
      %v4273 = vpop.f32.mrb[0].mxu0
      %v4274 = vadd.f32 0.0, %v4273
      %v4275 = vpop.f32.mrb[0].mxu0
      %4276 = vmatprep.mubr.bf16.mxu0 0
      %4277 = vmatmul.mubr.bf16.gmra.mrb[0].mxu0 %v4162
      %v4278 = vpop.f32.mrb[0].mxu0
      %v4279 = vadd.f32 0.0, %v4278
      %v4280 = vpop.f32.mrb[0].mxu0
      %v4281 = vpop.f32.mrb[0].mxu0
      %v4282 = vadd.f32 0.0, %v4281
      %v4283 = vpop.f32.mrb[0].mxu0
      %4284 = vmatprep.mubr.bf16.mxu0 0
      %4285 = vmatmul.mubr.bf16.gmra.mrb[0].mxu0 %v4165
      %v4286 = vpop.f32.mrb[0].mxu0
      %v4287 = vadd.f32 0.0, %v4286
      %v4288 = vpop.f32.mrb[0].mxu0
      %v4289 = vpop.f32.mrb[0].mxu0
      %v4290 = vadd.f32 0.0, %v4289
      %v4291 = vpop.f32.mrb[0].mxu0
      %4292 = vmatprep.mubr.bf16.mxu0 0
      %4293 = vmatmul.mubr.bf16.gmra.mrb[0].mxu0 %v4168
      %v4294 = vpop.f32.mrb[0].mxu0
      %v4295 = vadd.f32 0.0, %v4294
      %v4296 = vpop.f32.mrb[0].mxu0
      %v4297 = vpop.f32.mrb[0].mxu0
      %v4298 = vadd.f32 0.0, %v4297
      %v4299 = vpop.f32.mrb[0].mxu0
      %4300 = vmatprep.mubr.bf16.mxu0 0
      %4301 = vmatmul.mubr.bf16.gmra.mrb[0].mxu0 %v4171
      %v4302 = vpop.f32.mrb[0].mxu0
      %v4303 = vadd.f32 0.0, %v4302
      %v4304 = vpop.f32.mrb[0].mxu0
      %v4305 = vpop.f32.mrb[0].mxu0
      %v4306 = vadd.f32 0.0, %v4305
      %v4307 = vpop.f32.mrb[0].mxu0
      %4308 = vmatprep.mubr.bf16.mxu0 0
      %4309 = vmatmul.mubr.bf16.gmra.mrb[0].mxu0 %v4174
      %v4310 = vpop.f32.mrb[0].mxu0
      %v4311 = vadd.f32 0.0, %v4310
      %v4312 = vpop.f32.mrb[0].mxu0
      %v4313 = vpop.f32.mrb[0].mxu0
      %v4314 = vadd.f32 0.0, %v4313
      %v4315 = vpop.f32.mrb[0].mxu0
      %4316 = vmatprep.mubr.bf16.mxu0 0
      %4317 = vmatmul.mubr.bf16.gmra.mrb[0].mxu0 %v4177
      %v4318 = vpop.f32.mrb[0].mxu0
      %v4319 = vadd.f32 0.0, %v4318
      %v4320 = vpop.f32.mrb[0].mxu0
      %v4321 = vpop.f32.mrb[0].mxu0
      %v4322 = vadd.f32 0.0, %v4321
      %v4323 = vpop.f32.mrb[0].mxu0
      %4324 = vmatprep.mubr.bf16.mxu0 0
      %4325 = vmatmul.mubr.bf16.gmra.mrb[0].mxu0 %v4180
      %v4326 = vpop.f32.mrb[0].mxu0
      %v4327 = vadd.f32 0.0, %v4326
      %v4328 = vpop.f32.mrb[0].mxu0
      %v4329 = vpop.f32.mrb[0].mxu0
      %v4330 = vadd.f32 0.0, %v4329
      %v4331 = vpop.f32.mrb[0].mxu0
      %4332 = vmatprep.mubr.bf16.mxu0 0
      %4333 = vmatmul.mubr.bf16.gmra.mrb[0].mxu0 %v4183
      %v4334 = vpop.f32.mrb[0].mxu0
      %v4335 = vadd.f32 0.0, %v4334
      %v4336 = vpop.f32.mrb[0].mxu0
      %v4337 = vpop.f32.mrb[0].mxu0
      %v4338 = vadd.f32 0.0, %v4337
      %v4339 = vpop.f32.mrb[0].mxu0
      %4340 = vmatprep.mubr.bf16.mxu0 0
      %4341 = vmatmul.mubr.bf16.gmra.mrb[0].mxu0 %v4186
      %v4342 = vpop.f32.mrb[0].mxu0
      %v4343 = vadd.f32 0.0, %v4342
      %v4344 = vpop.f32.mrb[0].mxu0
      %v4345 = vpop.f32.mrb[0].mxu0
      %v4346 = vadd.f32 0.0, %v4345
      %v4347 = vpop.f32.mrb[0].mxu0
      %4348 = vdwg.mxu0
      %v4349 = vadd.f32 %v3957, %v4223
      %v4350 = vadd.f32 %v3960, %v4226
      %v4351 = vadd.f32 %v3965, %v4231
      %v4352 = vadd.f32 %v3968, %v4234
      %v4353 = vadd.f32 %v3973, %v4239
      %v4354 = vadd.f32 %v3976, %v4242
      %v4355 = vadd.f32 %v3981, %v4247
      %v4356 = vadd.f32 %v3984, %v4250
      %v4357 = vadd.f32 %v3989, %v4255
      %v4358 = vadd.f32 %v3992, %v4258
      %v4359 = vadd.f32 %v3997, %v4263
      %v4360 = vadd.f32 %v4000, %v4266
      %v4361 = vadd.f32 %v4005, %v4271
      %v4362 = vadd.f32 %v4008, %v4274
      %v4363 = vadd.f32 %v4013, %v4279
      %v4364 = vadd.f32 %v4016, %v4282
      %v4365 = vadd.f32 %v4021, %v4287
      %v4366 = vadd.f32 %v4024, %v4290
      %v4367 = vadd.f32 %v4029, %v4295
      %v4368 = vadd.f32 %v4032, %v4298
      %v4369 = vadd.f32 %v4037, %v4303
      %v4370 = vadd.f32 %v4040, %v4306
      %v4371 = vadd.f32 %v4045, %v4311
      %v4372 = vadd.f32 %v4048, %v4314
      %v4373 = vadd.f32 %v4053, %v4319
      %v4374 = vadd.f32 %v4056, %v4322
      %v4375 = vadd.f32 %v4061, %v4327
      %v4376 = vadd.f32 %v4064, %v4330
      %v4377 = vadd.f32 %v4069, %v4335
      %v4378 = vadd.f32 %v4072, %v4338
      %v4379 = vadd.f32 %v4077, %v4343
      %v4380 = vadd.f32 %v4080, %v4346
      %v4381 = vld [vmem:[%s3519] sm:$0xff]
      %v4382 = vld [vmem:[%s3519 + $0x8] sm:$0xff]
      %v4383 = vld [vmem:[%s3519 + $0x18] sm:$0xff]
      %v4384 = vld [vmem:[%s3519 + $0x20] sm:$0xff]
      %v4385 = vld [vmem:[%s3519 + $0x30] sm:$0xff]
      %v4386 = vld [vmem:[%s3519 + $0x38] sm:$0xff]
      %v4387 = vld [vmem:[%s3519 + $0x48] sm:$0xff]
      %v4388 = vld [vmem:[%s3519 + $0x50] sm:$0xff]
      %v4389 = vld [vmem:[%s3519 + $0x60] sm:$0xff]
      %v4390 = vld [vmem:[%s3519 + $0x68] sm:$0xff]
      %v4391 = vld [vmem:[%s3519 + $0x78] sm:$0xff]
      %v4392 = vld [vmem:[%s3519 + $0x80] sm:$0xff]
      %v4393 = vld [vmem:[%s3519 + $0x90] sm:$0xff]
      %v4394 = vld [vmem:[%s3519 + $0x98] sm:$0xff]
      %v4395 = vld [vmem:[%s3519 + $0xa8] sm:$0xff]
      %v4396 = vld [vmem:[%s3519 + $0xb0] sm:$0xff]
      %v4397 = vld [vmem:[%s3519 + $0xc0] sm:$0xff]
      %v4398 = vld [vmem:[%s3519 + $0xc8] sm:$0xff]
      %v4399 = vld [vmem:[%s3519 + $0xd8] sm:$0xff]
      %v4400 = vld [vmem:[%s3519 + $0xe0] sm:$0xff]
      %v4401 = vld [vmem:[%s3519 + $0xf0] sm:$0xff]
      %v4402 = vld [vmem:[%s3519 + $0xf8] sm:$0xff]
      %v4403 = vld [vmem:[%s3519 + $0x108] sm:$0xff]
      %v4404 = vld [vmem:[%s3519 + $0x110] sm:$0xff]
      %v4405 = vld [vmem:[%s3519 + $0x120] sm:$0xff]
      %v4406 = vld [vmem:[%s3519 + $0x128] sm:$0xff]
      %v4407 = vld [vmem:[%s3519 + $0x138] sm:$0xff]
      %v4408 = vld [vmem:[%s3519 + $0x140] sm:$0xff]
      %v4409 = vld [vmem:[%s3519 + $0x150] sm:$0xff]
      %v4410 = vld [vmem:[%s3519 + $0x158] sm:$0xff]
      %v4411 = vld [vmem:[%s3519 + $0x168] sm:$0xff]
      %v4412 = vld [vmem:[%s3519 + $0x170] sm:$0xff]
      %v4413 = vpack.c.bf16 %v4382, %v4381
      %v4414 = vpack.c.bf16 %v4384, %v4383
      %v4415 = vpack.c.bf16 %v4386, %v4385
      %v4416 = vpack.c.bf16 %v4388, %v4387
      %v4417 = vpack.c.bf16 %v4390, %v4389
      %v4418 = vpack.c.bf16 %v4392, %v4391
      %v4419 = vpack.c.bf16 %v4394, %v4393
      %v4420 = vpack.c.bf16 %v4396, %v4395
      %v4421 = vpack.c.bf16 %v4398, %v4397
      %v4422 = vpack.c.bf16 %v4400, %v4399
      %v4423 = vpack.c.bf16 %v4402, %v4401
      %v4424 = vpack.c.bf16 %v4404, %v4403
      %v4425 = vpack.c.bf16 %v4406, %v4405
      %v4426 = vpack.c.bf16 %v4408, %v4407
      %v4427 = vpack.c.bf16 %v4410, %v4409
      %v4428 = vpack.c.bf16 %v4412, %v4411
      %s4429 = scalar_lea.vmem %s5, 24
      %v4430 = vld [vmem:[%s4429] sm:$0xf]
      %v4431 = vld [vmem:[%s4429 + $0x4] sm:$0xf]
      %v4434 = vunpack.c.l.b16 %v4430
      %v4435 = vunpack.c.l.b16 %v4431
      %v4436 = vpack.c.b16 %v4435, %v4434
      %v4439 = vsel %vm3463, %v4413, 0
      %v4442 = vsel %vm3463, %v4414, 0
      %v4445 = vsel %vm3463, %v4415, 0
      %v4448 = vsel %vm3463, %v4416, 0
      %v4451 = vsel %vm3463, %v4417, 0
      %v4454 = vsel %vm3463, %v4418, 0
      %v4457 = vsel %vm3463, %v4419, 0
      %v4460 = vsel %vm3463, %v4420, 0
      %v4463 = vsel %vm3463, %v4421, 0
      %v4466 = vsel %vm3463, %v4422, 0
      %v4469 = vsel %vm3463, %v4423, 0
      %v4472 = vsel %vm3463, %v4424, 0
      %v4475 = vsel %vm3463, %v4425, 0
      %v4478 = vsel %vm3463, %v4426, 0
      %v4481 = vsel %vm3463, %v4427, 0
      %v4484 = vsel %vm3463, %v4428, 0
      %4486 = vmatprep.subr.bf16.mxu0 0
      %4487 = vmatpush1.bf16.msra.mxu0 %v4436
      %4488 = vmatprep.subr.bf16.mxu0 0
      %4489 = vmatpush1.bf16.msra.mxu0 0
      %4490 = vmatprep.subr.bf16.mxu0 0
      %4491 = vmatpush1.bf16.msra.mxu0 0
      %4492 = vmatprep.subr.bf16.mxu0 0
      %4493 = vmatpush1.bf16.msra.mxu0 0
      %4494 = vmatprep.subr.bf16.mxu0 0
      %4495 = vmatpush1.bf16.msra.mxu0 0
      %4496 = vmatprep.subr.bf16.mxu0 0
      %4497 = vmatpush1.bf16.msra.mxu0 0
      %4498 = vmatprep.subr.bf16.mxu0 0
      %4499 = vmatpush1.bf16.msra.mxu0 0
      %4500 = vmatprep.subr.bf16.mxu0 0
      %4501 = vmatpush1.bf16.msra.mxu0 0
      %4502 = vmatprep.subr.bf16.mxu0 0
      %4503 = vmatpush1.bf16.msra.mxu0 0
      %4504 = vmatprep.subr.bf16.mxu0 0
      %4505 = vmatpush1.bf16.msra.mxu0 0
      %4506 = vmatprep.subr.bf16.mxu0 0
      %4507 = vmatpush1.bf16.msra.mxu0 0
      %4508 = vmatprep.subr.bf16.mxu0 0
      %4509 = vmatpush1.bf16.msra.mxu0 0
      %4510 = vmatprep.subr.bf16.mxu0 0
      %4511 = vmatpush1.bf16.msra.mxu0 0
      %4512 = vmatprep.subr.bf16.mxu0 0
      %4513 = vmatpush1.bf16.msra.mxu0 0
      %4514 = vmatprep.subr.bf16.mxu0 0
      %4515 = vmatpush1.bf16.msra.mxu0 0
      %4516 = vmatprep.subr.bf16.mxu0 0
      %4517 = vmatpush1.bf16.msra.mxu0 0
      %4518 = vmatprep.mubr.bf16.mxu0 0
      %4519 = vmatmul.mubr.bf16.gmra.mrb[0].mxu0 %v4439
      %v4520 = vpop.f32.mrb[0].mxu0
      %v4521 = vadd.f32 0.0, %v4520
      %v4522 = vpop.f32.mrb[0].mxu0
      %v4523 = vpop.f32.mrb[0].mxu0
      %v4524 = vadd.f32 0.0, %v4523
      %v4525 = vpop.f32.mrb[0].mxu0
      %4526 = vmatprep.mubr.bf16.mxu0 0
      %4527 = vmatmul.mubr.bf16.gmra.mrb[0].mxu0 %v4442
      %v4528 = vpop.f32.mrb[0].mxu0
      %v4529 = vadd.f32 0.0, %v4528
      %v4530 = vpop.f32.mrb[0].mxu0
      %v4531 = vpop.f32.mrb[0].mxu0
      %v4532 = vadd.f32 0.0, %v4531
      %v4533 = vpop.f32.mrb[0].mxu0
      %4534 = vmatprep.mubr.bf16.mxu0 0
      %4535 = vmatmul.mubr.bf16.gmra.mrb[0].mxu0 %v4445
      %v4536 = vpop.f32.mrb[0].mxu0
      %v4537 = vadd.f32 0.0, %v4536
      %v4538 = vpop.f32.mrb[0].mxu0
      %v4539 = vpop.f32.mrb[0].mxu0
      %v4540 = vadd.f32 0.0, %v4539
      %v4541 = vpop.f32.mrb[0].mxu0
      %4542 = vmatprep.mubr.bf16.mxu0 0
      %4543 = vmatmul.mubr.bf16.gmra.mrb[0].mxu0 %v4448
      %v4544 = vpop.f32.mrb[0].mxu0
      %v4545 = vadd.f32 0.0, %v4544
      %v4546 = vpop.f32.mrb[0].mxu0
      %v4547 = vpop.f32.mrb[0].mxu0
      %v4548 = vadd.f32 0.0, %v4547
      %v4549 = vpop.f32.mrb[0].mxu0
      %4550 = vmatprep.mubr.bf16.mxu0 0
      %4551 = vmatmul.mubr.bf16.gmra.mrb[0].mxu0 %v4451
      %v4552 = vpop.f32.mrb[0].mxu0
      %v4553 = vadd.f32 0.0, %v4552
      %v4554 = vpop.f32.mrb[0].mxu0
      %v4555 = vpop.f32.mrb[0].mxu0
      %v4556 = vadd.f32 0.0, %v4555
      %v4557 = vpop.f32.mrb[0].mxu0
      %4558 = vmatprep.mubr.bf16.mxu0 0
      %4559 = vmatmul.mubr.bf16.gmra.mrb[0].mxu0 %v4454
      %v4560 = vpop.f32.mrb[0].mxu0
      %v4561 = vadd.f32 0.0, %v4560
      %v4562 = vpop.f32.mrb[0].mxu0
      %v4563 = vpop.f32.mrb[0].mxu0
      %v4564 = vadd.f32 0.0, %v4563
      %v4565 = vpop.f32.mrb[0].mxu0
      %4566 = vmatprep.mubr.bf16.mxu0 0
      %4567 = vmatmul.mubr.bf16.gmra.mrb[0].mxu0 %v4457
      %v4568 = vpop.f32.mrb[0].mxu0
      %v4569 = vadd.f32 0.0, %v4568
      %v4570 = vpop.f32.mrb[0].mxu0
      %v4571 = vpop.f32.mrb[0].mxu0
      %v4572 = vadd.f32 0.0, %v4571
      %v4573 = vpop.f32.mrb[0].mxu0
      %4574 = vmatprep.mubr.bf16.mxu0 0
      %4575 = vmatmul.mubr.bf16.gmra.mrb[0].mxu0 %v4460
      %v4576 = vpop.f32.mrb[0].mxu0
      %v4577 = vadd.f32 0.0, %v4576
      %v4578 = vpop.f32.mrb[0].mxu0
      %v4579 = vpop.f32.mrb[0].mxu0
      %v4580 = vadd.f32 0.0, %v4579
      %v4581 = vpop.f32.mrb[0].mxu0
      %4582 = vmatprep.mubr.bf16.mxu0 0
      %4583 = vmatmul.mubr.bf16.gmra.mrb[0].mxu0 %v4463
      %v4584 = vpop.f32.mrb[0].mxu0
      %v4585 = vadd.f32 0.0, %v4584
      %v4586 = vpop.f32.mrb[0].mxu0
      %v4587 = vpop.f32.mrb[0].mxu0
      %v4588 = vadd.f32 0.0, %v4587
      %v4589 = vpop.f32.mrb[0].mxu0
      %4590 = vmatprep.mubr.bf16.mxu0 0
      %4591 = vmatmul.mubr.bf16.gmra.mrb[0].mxu0 %v4466
      %v4592 = vpop.f32.mrb[0].mxu0
      %v4593 = vadd.f32 0.0, %v4592
      %v4594 = vpop.f32.mrb[0].mxu0
      %v4595 = vpop.f32.mrb[0].mxu0
      %v4596 = vadd.f32 0.0, %v4595
      %v4597 = vpop.f32.mrb[0].mxu0
      %4598 = vmatprep.mubr.bf16.mxu0 0
      %4599 = vmatmul.mubr.bf16.gmra.mrb[0].mxu0 %v4469
      %v4600 = vpop.f32.mrb[0].mxu0
      %v4601 = vadd.f32 0.0, %v4600
      %v4602 = vpop.f32.mrb[0].mxu0
      %v4603 = vpop.f32.mrb[0].mxu0
      %v4604 = vadd.f32 0.0, %v4603
      %v4605 = vpop.f32.mrb[0].mxu0
      %4606 = vmatprep.mubr.bf16.mxu0 0
      %4607 = vmatmul.mubr.bf16.gmra.mrb[0].mxu0 %v4472
      %v4608 = vpop.f32.mrb[0].mxu0
      %v4609 = vadd.f32 0.0, %v4608
      %v4610 = vpop.f32.mrb[0].mxu0
      %v4611 = vpop.f32.mrb[0].mxu0
      %v4612 = vadd.f32 0.0, %v4611
      %v4613 = vpop.f32.mrb[0].mxu0
      %4614 = vmatprep.mubr.bf16.mxu0 0
      %4615 = vmatmul.mubr.bf16.gmra.mrb[0].mxu0 %v4475
      %v4616 = vpop.f32.mrb[0].mxu0
      %v4617 = vadd.f32 0.0, %v4616
      %v4618 = vpop.f32.mrb[0].mxu0
      %v4619 = vpop.f32.mrb[0].mxu0
      %v4620 = vadd.f32 0.0, %v4619
      %v4621 = vpop.f32.mrb[0].mxu0
      %4622 = vmatprep.mubr.bf16.mxu0 0
      %4623 = vmatmul.mubr.bf16.gmra.mrb[0].mxu0 %v4478
      %v4624 = vpop.f32.mrb[0].mxu0
      %v4625 = vadd.f32 0.0, %v4624
      %v4626 = vpop.f32.mrb[0].mxu0
      %v4627 = vpop.f32.mrb[0].mxu0
      %v4628 = vadd.f32 0.0, %v4627
      %v4629 = vpop.f32.mrb[0].mxu0
      %4630 = vmatprep.mubr.bf16.mxu0 0
      %4631 = vmatmul.mubr.bf16.gmra.mrb[0].mxu0 %v4481
      %v4632 = vpop.f32.mrb[0].mxu0
      %v4633 = vadd.f32 0.0, %v4632
      %v4634 = vpop.f32.mrb[0].mxu0
      %v4635 = vpop.f32.mrb[0].mxu0
      %v4636 = vadd.f32 0.0, %v4635
      %v4637 = vpop.f32.mrb[0].mxu0
      %4638 = vmatprep.mubr.bf16.mxu0 0
      %4639 = vmatmul.mubr.bf16.gmra.mrb[0].mxu0 %v4484
      %v4640 = vpop.f32.mrb[0].mxu0
      %v4641 = vadd.f32 0.0, %v4640
      %v4642 = vpop.f32.mrb[0].mxu0
      %v4643 = vpop.f32.mrb[0].mxu0
      %v4644 = vadd.f32 0.0, %v4643
      %v4645 = vpop.f32.mrb[0].mxu0
      %4646 = vdwg.mxu0
      %v4647 = vadd.f32 %v4349, %v4521
      %v4648 = vadd.f32 %v4350, %v4524
      %v4649 = vadd.f32 %v4351, %v4529
      %v4650 = vadd.f32 %v4352, %v4532
      %v4651 = vadd.f32 %v4353, %v4537
      %v4652 = vadd.f32 %v4354, %v4540
      %v4653 = vadd.f32 %v4355, %v4545
      %v4654 = vadd.f32 %v4356, %v4548
      %v4655 = vadd.f32 %v4357, %v4553
      %v4656 = vadd.f32 %v4358, %v4556
      %v4657 = vadd.f32 %v4359, %v4561
      %v4658 = vadd.f32 %v4360, %v4564
      %v4659 = vadd.f32 %v4361, %v4569
      %v4660 = vadd.f32 %v4362, %v4572
      %v4661 = vadd.f32 %v4363, %v4577
      %v4662 = vadd.f32 %v4364, %v4580
      %v4663 = vadd.f32 %v4365, %v4585
      %v4664 = vadd.f32 %v4366, %v4588
      %v4665 = vadd.f32 %v4367, %v4593
      %v4666 = vadd.f32 %v4368, %v4596
      %v4667 = vadd.f32 %v4369, %v4601
      %v4668 = vadd.f32 %v4370, %v4604
      %v4669 = vadd.f32 %v4371, %v4609
      %v4670 = vadd.f32 %v4372, %v4612
      %v4671 = vadd.f32 %v4373, %v4617
      %v4672 = vadd.f32 %v4374, %v4620
      %v4673 = vadd.f32 %v4375, %v4625
      %v4674 = vadd.f32 %v4376, %v4628
      %v4675 = vadd.f32 %v4377, %v4633
      %v4676 = vadd.f32 %v4378, %v4636
      %v4677 = vadd.f32 %v4379, %v4641
      %v4678 = vadd.f32 %v4380, %v4644
      %v4679 = vld [vmem:[%s3519 + $0x1] sm:$0xff]
      %v4680 = vld [vmem:[%s3519 + $0x9] sm:$0xff]
      %v4681 = vld [vmem:[%s3519 + $0x19] sm:$0xff]
      %v4682 = vld [vmem:[%s3519 + $0x21] sm:$0xff]
      %v4683 = vld [vmem:[%s3519 + $0x31] sm:$0xff]
      %v4684 = vld [vmem:[%s3519 + $0x39] sm:$0xff]
      %v4685 = vld [vmem:[%s3519 + $0x49] sm:$0xff]
      %v4686 = vld [vmem:[%s3519 + $0x51] sm:$0xff]
      %v4687 = vld [vmem:[%s3519 + $0x61] sm:$0xff]
      %v4688 = vld [vmem:[%s3519 + $0x69] sm:$0xff]
      %v4689 = vld [vmem:[%s3519 + $0x79] sm:$0xff]
      %v4690 = vld [vmem:[%s3519 + $0x81] sm:$0xff]
      %v4691 = vld [vmem:[%s3519 + $0x91] sm:$0xff]
      %v4692 = vld [vmem:[%s3519 + $0x99] sm:$0xff]
      %v4693 = vld [vmem:[%s3519 + $0xa9] sm:$0xff]
      %v4694 = vld [vmem:[%s3519 + $0xb1] sm:$0xff]
      %v4695 = vld [vmem:[%s3519 + $0xc1] sm:$0xff]
      %v4696 = vld [vmem:[%s3519 + $0xc9] sm:$0xff]
      %v4697 = vld [vmem:[%s3519 + $0xd9] sm:$0xff]
      %v4698 = vld [vmem:[%s3519 + $0xe1] sm:$0xff]
      %v4699 = vld [vmem:[%s3519 + $0xf1] sm:$0xff]
      %v4700 = vld [vmem:[%s3519 + $0xf9] sm:$0xff]
      %v4701 = vld [vmem:[%s3519 + $0x109] sm:$0xff]
      %v4702 = vld [vmem:[%s3519 + $0x111] sm:$0xff]
      %v4703 = vld [vmem:[%s3519 + $0x121] sm:$0xff]
      %v4704 = vld [vmem:[%s3519 + $0x129] sm:$0xff]
      %v4705 = vld [vmem:[%s3519 + $0x139] sm:$0xff]
      %v4706 = vld [vmem:[%s3519 + $0x141] sm:$0xff]
      %v4707 = vld [vmem:[%s3519 + $0x151] sm:$0xff]
      %v4708 = vld [vmem:[%s3519 + $0x159] sm:$0xff]
      %v4709 = vld [vmem:[%s3519 + $0x169] sm:$0xff]
      %v4710 = vld [vmem:[%s3519 + $0x171] sm:$0xff]
      %v4711 = vpack.c.bf16 %v4680, %v4679
      %v4712 = vpack.c.bf16 %v4682, %v4681
      %v4713 = vpack.c.bf16 %v4684, %v4683
      %v4714 = vpack.c.bf16 %v4686, %v4685
      %v4715 = vpack.c.bf16 %v4688, %v4687
      %v4716 = vpack.c.bf16 %v4690, %v4689
      %v4717 = vpack.c.bf16 %v4692, %v4691
      %v4718 = vpack.c.bf16 %v4694, %v4693
      %v4719 = vpack.c.bf16 %v4696, %v4695
      %v4720 = vpack.c.bf16 %v4698, %v4697
      %v4721 = vpack.c.bf16 %v4700, %v4699
      %v4722 = vpack.c.bf16 %v4702, %v4701
      %v4723 = vpack.c.bf16 %v4704, %v4703
      %v4724 = vpack.c.bf16 %v4706, %v4705
      %v4725 = vpack.c.bf16 %v4708, %v4707
      %v4726 = vpack.c.bf16 %v4710, %v4709
      %s4727 = scalar_lea.vmem %s5, 32
      %v4728 = vld [vmem:[%s4727] sm:$0xf]
      %v4729 = vld [vmem:[%s4727 + $0x4] sm:$0xf]
      %v4732 = vunpack.c.l.b16 %v4728
      %v4733 = vunpack.c.l.b16 %v4729
      %v4734 = vpack.c.b16 %v4733, %v4732
      %v4737 = vsel %vm3463, %v4711, 0
      %v4740 = vsel %vm3463, %v4712, 0
      %v4743 = vsel %vm3463, %v4713, 0
      %v4746 = vsel %vm3463, %v4714, 0
      %v4749 = vsel %vm3463, %v4715, 0
      %v4752 = vsel %vm3463, %v4716, 0
      %v4755 = vsel %vm3463, %v4717, 0
      %v4758 = vsel %vm3463, %v4718, 0
      %v4761 = vsel %vm3463, %v4719, 0
      %v4764 = vsel %vm3463, %v4720, 0
      %v4767 = vsel %vm3463, %v4721, 0
      %v4770 = vsel %vm3463, %v4722, 0
      %v4773 = vsel %vm3463, %v4723, 0
      %v4776 = vsel %vm3463, %v4724, 0
      %v4779 = vsel %vm3463, %v4725, 0
      %v4782 = vsel %vm3463, %v4726, 0
      %4784 = vmatprep.subr.bf16.mxu0 0
      %4785 = vmatpush1.bf16.msra.mxu0 %v4734
      %4786 = vmatprep.subr.bf16.mxu0 0
      %4787 = vmatpush1.bf16.msra.mxu0 0
      %4788 = vmatprep.subr.bf16.mxu0 0
      %4789 = vmatpush1.bf16.msra.mxu0 0
      %4790 = vmatprep.subr.bf16.mxu0 0
      %4791 = vmatpush1.bf16.msra.mxu0 0
      %4792 = vmatprep.subr.bf16.mxu0 0
      %4793 = vmatpush1.bf16.msra.mxu0 0
      %4794 = vmatprep.subr.bf16.mxu0 0
      %4795 = vmatpush1.bf16.msra.mxu0 0
      %4796 = vmatprep.subr.bf16.mxu0 0
      %4797 = vmatpush1.bf16.msra.mxu0 0
      %4798 = vmatprep.subr.bf16.mxu0 0
      %4799 = vmatpush1.bf16.msra.mxu0 0
      %4800 = vmatprep.subr.bf16.mxu0 0
      %4801 = vmatpush1.bf16.msra.mxu0 0
      %4802 = vmatprep.subr.bf16.mxu0 0
      %4803 = vmatpush1.bf16.msra.mxu0 0
      %4804 = vmatprep.subr.bf16.mxu0 0
      %4805 = vmatpush1.bf16.msra.mxu0 0
      %4806 = vmatprep.subr.bf16.mxu0 0
      %4807 = vmatpush1.bf16.msra.mxu0 0
      %4808 = vmatprep.subr.bf16.mxu0 0
      %4809 = vmatpush1.bf16.msra.mxu0 0
      %4810 = vmatprep.subr.bf16.mxu0 0
      %4811 = vmatpush1.bf16.msra.mxu0 0
      %4812 = vmatprep.subr.bf16.mxu0 0
      %4813 = vmatpush1.bf16.msra.mxu0 0
      %4814 = vmatprep.subr.bf16.mxu0 0
      %4815 = vmatpush1.bf16.msra.mxu0 0
      %4816 = vmatprep.mubr.bf16.mxu0 0
      %4817 = vmatmul.mubr.bf16.gmra.mrb[0].mxu0 %v4737
      %v4818 = vpop.f32.mrb[0].mxu0
      %v4819 = vadd.f32 0.0, %v4818
      %v4820 = vpop.f32.mrb[0].mxu0
      %v4821 = vpop.f32.mrb[0].mxu0
      %v4822 = vadd.f32 0.0, %v4821
      %v4823 = vpop.f32.mrb[0].mxu0
      %4824 = vmatprep.mubr.bf16.mxu0 0
      %4825 = vmatmul.mubr.bf16.gmra.mrb[0].mxu0 %v4740
      %v4826 = vpop.f32.mrb[0].mxu0
      %v4827 = vadd.f32 0.0, %v4826
      %v4828 = vpop.f32.mrb[0].mxu0
      %v4829 = vpop.f32.mrb[0].mxu0
      %v4830 = vadd.f32 0.0, %v4829
      %v4831 = vpop.f32.mrb[0].mxu0
      %4832 = vmatprep.mubr.bf16.mxu0 0
      %4833 = vmatmul.mubr.bf16.gmra.mrb[0].mxu0 %v4743
      %v4834 = vpop.f32.mrb[0].mxu0
      %v4835 = vadd.f32 0.0, %v4834
      %v4836 = vpop.f32.mrb[0].mxu0
      %v4837 = vpop.f32.mrb[0].mxu0
      %v4838 = vadd.f32 0.0, %v4837
      %v4839 = vpop.f32.mrb[0].mxu0
      %4840 = vmatprep.mubr.bf16.mxu0 0
      %4841 = vmatmul.mubr.bf16.gmra.mrb[0].mxu0 %v4746
      %v4842 = vpop.f32.mrb[0].mxu0
      %v4843 = vadd.f32 0.0, %v4842
      %v4844 = vpop.f32.mrb[0].mxu0
      %v4845 = vpop.f32.mrb[0].mxu0
      %v4846 = vadd.f32 0.0, %v4845
      %v4847 = vpop.f32.mrb[0].mxu0
      %4848 = vmatprep.mubr.bf16.mxu0 0
      %4849 = vmatmul.mubr.bf16.gmra.mrb[0].mxu0 %v4749
      %v4850 = vpop.f32.mrb[0].mxu0
      %v4851 = vadd.f32 0.0, %v4850
      %v4852 = vpop.f32.mrb[0].mxu0
      %v4853 = vpop.f32.mrb[0].mxu0
      %v4854 = vadd.f32 0.0, %v4853
      %v4855 = vpop.f32.mrb[0].mxu0
      %4856 = vmatprep.mubr.bf16.mxu0 0
      %4857 = vmatmul.mubr.bf16.gmra.mrb[0].mxu0 %v4752
      %v4858 = vpop.f32.mrb[0].mxu0
      %v4859 = vadd.f32 0.0, %v4858
      %v4860 = vpop.f32.mrb[0].mxu0
      %v4861 = vpop.f32.mrb[0].mxu0
      %v4862 = vadd.f32 0.0, %v4861
      %v4863 = vpop.f32.mrb[0].mxu0
      %4864 = vmatprep.mubr.bf16.mxu0 0
      %4865 = vmatmul.mubr.bf16.gmra.mrb[0].mxu0 %v4755
      %v4866 = vpop.f32.mrb[0].mxu0
      %v4867 = vadd.f32 0.0, %v4866
      %v4868 = vpop.f32.mrb[0].mxu0
      %v4869 = vpop.f32.mrb[0].mxu0
      %v4870 = vadd.f32 0.0, %v4869
      %v4871 = vpop.f32.mrb[0].mxu0
      %4872 = vmatprep.mubr.bf16.mxu0 0
      %4873 = vmatmul.mubr.bf16.gmra.mrb[0].mxu0 %v4758
      %v4874 = vpop.f32.mrb[0].mxu0
      %v4875 = vadd.f32 0.0, %v4874
      %v4876 = vpop.f32.mrb[0].mxu0
      %v4877 = vpop.f32.mrb[0].mxu0
      %v4878 = vadd.f32 0.0, %v4877
      %v4879 = vpop.f32.mrb[0].mxu0
      %4880 = vmatprep.mubr.bf16.mxu0 0
      %4881 = vmatmul.mubr.bf16.gmra.mrb[0].mxu0 %v4761
      %v4882 = vpop.f32.mrb[0].mxu0
      %v4883 = vadd.f32 0.0, %v4882
      %v4884 = vpop.f32.mrb[0].mxu0
      %v4885 = vpop.f32.mrb[0].mxu0
      %v4886 = vadd.f32 0.0, %v4885
      %v4887 = vpop.f32.mrb[0].mxu0
      %4888 = vmatprep.mubr.bf16.mxu0 0
      %4889 = vmatmul.mubr.bf16.gmra.mrb[0].mxu0 %v4764
      %v4890 = vpop.f32.mrb[0].mxu0
      %v4891 = vadd.f32 0.0, %v4890
      %v4892 = vpop.f32.mrb[0].mxu0
      %v4893 = vpop.f32.mrb[0].mxu0
      %v4894 = vadd.f32 0.0, %v4893
      %v4895 = vpop.f32.mrb[0].mxu0
      %4896 = vmatprep.mubr.bf16.mxu0 0
      %4897 = vmatmul.mubr.bf16.gmra.mrb[0].mxu0 %v4767
      %v4898 = vpop.f32.mrb[0].mxu0
      %v4899 = vadd.f32 0.0, %v4898
      %v4900 = vpop.f32.mrb[0].mxu0
      %v4901 = vpop.f32.mrb[0].mxu0
      %v4902 = vadd.f32 0.0, %v4901
      %v4903 = vpop.f32.mrb[0].mxu0
      %4904 = vmatprep.mubr.bf16.mxu0 0
      %4905 = vmatmul.mubr.bf16.gmra.mrb[0].mxu0 %v4770
      %v4906 = vpop.f32.mrb[0].mxu0
      %v4907 = vadd.f32 0.0, %v4906
      %v4908 = vpop.f32.mrb[0].mxu0
      %v4909 = vpop.f32.mrb[0].mxu0
      %v4910 = vadd.f32 0.0, %v4909
      %v4911 = vpop.f32.mrb[0].mxu0
      %4912 = vmatprep.mubr.bf16.mxu0 0
      %4913 = vmatmul.mubr.bf16.gmra.mrb[0].mxu0 %v4773
      %v4914 = vpop.f32.mrb[0].mxu0
      %v4915 = vadd.f32 0.0, %v4914
      %v4916 = vpop.f32.mrb[0].mxu0
      %v4917 = vpop.f32.mrb[0].mxu0
      %v4918 = vadd.f32 0.0, %v4917
      %v4919 = vpop.f32.mrb[0].mxu0
      %4920 = vmatprep.mubr.bf16.mxu0 0
      %4921 = vmatmul.mubr.bf16.gmra.mrb[0].mxu0 %v4776
      %v4922 = vpop.f32.mrb[0].mxu0
      %v4923 = vadd.f32 0.0, %v4922
      %v4924 = vpop.f32.mrb[0].mxu0
      %v4925 = vpop.f32.mrb[0].mxu0
      %v4926 = vadd.f32 0.0, %v4925
      %v4927 = vpop.f32.mrb[0].mxu0
      %4928 = vmatprep.mubr.bf16.mxu0 0
      %4929 = vmatmul.mubr.bf16.gmra.mrb[0].mxu0 %v4779
      %v4930 = vpop.f32.mrb[0].mxu0
      %v4931 = vadd.f32 0.0, %v4930
      %v4932 = vpop.f32.mrb[0].mxu0
      %v4933 = vpop.f32.mrb[0].mxu0
      %v4934 = vadd.f32 0.0, %v4933
      %v4935 = vpop.f32.mrb[0].mxu0
      %4936 = vmatprep.mubr.bf16.mxu0 0
      %4937 = vmatmul.mubr.bf16.gmra.mrb[0].mxu0 %v4782
      %v4938 = vpop.f32.mrb[0].mxu0
      %v4939 = vadd.f32 0.0, %v4938
      %v4940 = vpop.f32.mrb[0].mxu0
      %v4941 = vpop.f32.mrb[0].mxu0
      %v4942 = vadd.f32 0.0, %v4941
      %v4943 = vpop.f32.mrb[0].mxu0
      %4944 = vdwg.mxu0
      %v4945 = vadd.f32 %v4647, %v4819
      %v4946 = vadd.f32 %v4648, %v4822
      %v4947 = vadd.f32 %v4649, %v4827
      %v4948 = vadd.f32 %v4650, %v4830
      %v4949 = vadd.f32 %v4651, %v4835
      %v4950 = vadd.f32 %v4652, %v4838
      %v4951 = vadd.f32 %v4653, %v4843
      %v4952 = vadd.f32 %v4654, %v4846
      %v4953 = vadd.f32 %v4655, %v4851
      %v4954 = vadd.f32 %v4656, %v4854
      %v4955 = vadd.f32 %v4657, %v4859
      %v4956 = vadd.f32 %v4658, %v4862
      %v4957 = vadd.f32 %v4659, %v4867
      %v4958 = vadd.f32 %v4660, %v4870
      %v4959 = vadd.f32 %v4661, %v4875
      %v4960 = vadd.f32 %v4662, %v4878
      %v4961 = vadd.f32 %v4663, %v4883
      %v4962 = vadd.f32 %v4664, %v4886
      %v4963 = vadd.f32 %v4665, %v4891
      %v4964 = vadd.f32 %v4666, %v4894
      %v4965 = vadd.f32 %v4667, %v4899
      %v4966 = vadd.f32 %v4668, %v4902
      %v4967 = vadd.f32 %v4669, %v4907
      %v4968 = vadd.f32 %v4670, %v4910
      %v4969 = vadd.f32 %v4671, %v4915
      %v4970 = vadd.f32 %v4672, %v4918
      %v4971 = vadd.f32 %v4673, %v4923
      %v4972 = vadd.f32 %v4674, %v4926
      %v4973 = vadd.f32 %v4675, %v4931
      %v4974 = vadd.f32 %v4676, %v4934
      %v4975 = vadd.f32 %v4677, %v4939
      %v4976 = vadd.f32 %v4678, %v4942
      %v4977 = vld [vmem:[%s3519 + $0x2] sm:$0xff]
      %v4978 = vld [vmem:[%s3519 + $0xa] sm:$0xff]
      %v4979 = vld [vmem:[%s3519 + $0x1a] sm:$0xff]
      %v4980 = vld [vmem:[%s3519 + $0x22] sm:$0xff]
      %v4981 = vld [vmem:[%s3519 + $0x32] sm:$0xff]
      %v4982 = vld [vmem:[%s3519 + $0x3a] sm:$0xff]
      %v4983 = vld [vmem:[%s3519 + $0x4a] sm:$0xff]
      %v4984 = vld [vmem:[%s3519 + $0x52] sm:$0xff]
      %v4985 = vld [vmem:[%s3519 + $0x62] sm:$0xff]
      %v4986 = vld [vmem:[%s3519 + $0x6a] sm:$0xff]
      %v4987 = vld [vmem:[%s3519 + $0x7a] sm:$0xff]
      %v4988 = vld [vmem:[%s3519 + $0x82] sm:$0xff]
      %v4989 = vld [vmem:[%s3519 + $0x92] sm:$0xff]
      %v4990 = vld [vmem:[%s3519 + $0x9a] sm:$0xff]
      %v4991 = vld [vmem:[%s3519 + $0xaa] sm:$0xff]
      %v4992 = vld [vmem:[%s3519 + $0xb2] sm:$0xff]
      %v4993 = vld [vmem:[%s3519 + $0xc2] sm:$0xff]
      %v4994 = vld [vmem:[%s3519 + $0xca] sm:$0xff]
      %v4995 = vld [vmem:[%s3519 + $0xda] sm:$0xff]
      %v4996 = vld [vmem:[%s3519 + $0xe2] sm:$0xff]
      %v4997 = vld [vmem:[%s3519 + $0xf2] sm:$0xff]
      %v4998 = vld [vmem:[%s3519 + $0xfa] sm:$0xff]
      %v4999 = vld [vmem:[%s3519 + $0x10a] sm:$0xff]
      %v5000 = vld [vmem:[%s3519 + $0x112] sm:$0xff]
      %v5001 = vld [vmem:[%s3519 + $0x122] sm:$0xff]
      %v5002 = vld [vmem:[%s3519 + $0x12a] sm:$0xff]
      %v5003 = vld [vmem:[%s3519 + $0x13a] sm:$0xff]
      %v5004 = vld [vmem:[%s3519 + $0x142] sm:$0xff]
      %v5005 = vld [vmem:[%s3519 + $0x152] sm:$0xff]
      %v5006 = vld [vmem:[%s3519 + $0x15a] sm:$0xff]
      %v5007 = vld [vmem:[%s3519 + $0x16a] sm:$0xff]
      %v5008 = vld [vmem:[%s3519 + $0x172] sm:$0xff]
      %v5009 = vpack.c.bf16 %v4978, %v4977
      %v5010 = vpack.c.bf16 %v4980, %v4979
      %v5011 = vpack.c.bf16 %v4982, %v4981
      %v5012 = vpack.c.bf16 %v4984, %v4983
      %v5013 = vpack.c.bf16 %v4986, %v4985
      %v5014 = vpack.c.bf16 %v4988, %v4987
      %v5015 = vpack.c.bf16 %v4990, %v4989
      %v5016 = vpack.c.bf16 %v4992, %v4991
      %v5017 = vpack.c.bf16 %v4994, %v4993
      %v5018 = vpack.c.bf16 %v4996, %v4995
      %v5019 = vpack.c.bf16 %v4998, %v4997
      %v5020 = vpack.c.bf16 %v5000, %v4999
      %v5021 = vpack.c.bf16 %v5002, %v5001
      %v5022 = vpack.c.bf16 %v5004, %v5003
      %v5023 = vpack.c.bf16 %v5006, %v5005
      %v5024 = vpack.c.bf16 %v5008, %v5007
      %s5025 = scalar_lea.vmem %s5, 40
      %v5026 = vld [vmem:[%s5025] sm:$0xf]
      %v5027 = vld [vmem:[%s5025 + $0x4] sm:$0xf]
      %v5030 = vunpack.c.l.b16 %v5026
      %v5031 = vunpack.c.l.b16 %v5027
      %v5032 = vpack.c.b16 %v5031, %v5030
      %v5035 = vsel %vm3463, %v5009, 0
      %v5038 = vsel %vm3463, %v5010, 0
      %v5041 = vsel %vm3463, %v5011, 0
      %v5044 = vsel %vm3463, %v5012, 0
      %v5047 = vsel %vm3463, %v5013, 0
      %v5050 = vsel %vm3463, %v5014, 0
      %v5053 = vsel %vm3463, %v5015, 0
      %v5056 = vsel %vm3463, %v5016, 0
      %v5059 = vsel %vm3463, %v5017, 0
      %v5062 = vsel %vm3463, %v5018, 0
      %v5065 = vsel %vm3463, %v5019, 0
      %v5068 = vsel %vm3463, %v5020, 0
      %v5071 = vsel %vm3463, %v5021, 0
      %v5074 = vsel %vm3463, %v5022, 0
      %v5077 = vsel %vm3463, %v5023, 0
      %v5080 = vsel %vm3463, %v5024, 0
      %5082 = vmatprep.subr.bf16.mxu0 0
      %5083 = vmatpush1.bf16.msra.mxu0 %v5032
      %5084 = vmatprep.subr.bf16.mxu0 0
      %5085 = vmatpush1.bf16.msra.mxu0 0
      %5086 = vmatprep.subr.bf16.mxu0 0
      %5087 = vmatpush1.bf16.msra.mxu0 0
      %5088 = vmatprep.subr.bf16.mxu0 0
      %5089 = vmatpush1.bf16.msra.mxu0 0
      %5090 = vmatprep.subr.bf16.mxu0 0
      %5091 = vmatpush1.bf16.msra.mxu0 0
      %5092 = vmatprep.subr.bf16.mxu0 0
      %5093 = vmatpush1.bf16.msra.mxu0 0
      %5094 = vmatprep.subr.bf16.mxu0 0
      %5095 = vmatpush1.bf16.msra.mxu0 0
      %5096 = vmatprep.subr.bf16.mxu0 0
      %5097 = vmatpush1.bf16.msra.mxu0 0
      %5098 = vmatprep.subr.bf16.mxu0 0
      %5099 = vmatpush1.bf16.msra.mxu0 0
      %5100 = vmatprep.subr.bf16.mxu0 0
      %5101 = vmatpush1.bf16.msra.mxu0 0
      %5102 = vmatprep.subr.bf16.mxu0 0
      %5103 = vmatpush1.bf16.msra.mxu0 0
      %5104 = vmatprep.subr.bf16.mxu0 0
      %5105 = vmatpush1.bf16.msra.mxu0 0
      %5106 = vmatprep.subr.bf16.mxu0 0
      %5107 = vmatpush1.bf16.msra.mxu0 0
      %5108 = vmatprep.subr.bf16.mxu0 0
      %5109 = vmatpush1.bf16.msra.mxu0 0
      %5110 = vmatprep.subr.bf16.mxu0 0
      %5111 = vmatpush1.bf16.msra.mxu0 0
      %5112 = vmatprep.subr.bf16.mxu0 0
      %5113 = vmatpush1.bf16.msra.mxu0 0
      %5114 = vmatprep.mubr.bf16.mxu0 0
      %5115 = vmatmul.mubr.bf16.gmra.mrb[0].mxu0 %v5035
      %v5116 = vpop.f32.mrb[0].mxu0
      %v5117 = vadd.f32 0.0, %v5116
      %v5118 = vpop.f32.mrb[0].mxu0
      %v5119 = vpop.f32.mrb[0].mxu0
      %v5120 = vadd.f32 0.0, %v5119
      %v5121 = vpop.f32.mrb[0].mxu0
      %5122 = vmatprep.mubr.bf16.mxu0 0
      %5123 = vmatmul.mubr.bf16.gmra.mrb[0].mxu0 %v5038
      %v5124 = vpop.f32.mrb[0].mxu0
      %v5125 = vadd.f32 0.0, %v5124
      %v5126 = vpop.f32.mrb[0].mxu0
      %v5127 = vpop.f32.mrb[0].mxu0
      %v5128 = vadd.f32 0.0, %v5127
      %v5129 = vpop.f32.mrb[0].mxu0
      %5130 = vmatprep.mubr.bf16.mxu0 0
      %5131 = vmatmul.mubr.bf16.gmra.mrb[0].mxu0 %v5041
      %v5132 = vpop.f32.mrb[0].mxu0
      %v5133 = vadd.f32 0.0, %v5132
      %v5134 = vpop.f32.mrb[0].mxu0
      %v5135 = vpop.f32.mrb[0].mxu0
      %v5136 = vadd.f32 0.0, %v5135
      %v5137 = vpop.f32.mrb[0].mxu0
      %5138 = vmatprep.mubr.bf16.mxu0 0
      %5139 = vmatmul.mubr.bf16.gmra.mrb[0].mxu0 %v5044
      %v5140 = vpop.f32.mrb[0].mxu0
      %v5141 = vadd.f32 0.0, %v5140
      %v5142 = vpop.f32.mrb[0].mxu0
      %v5143 = vpop.f32.mrb[0].mxu0
      %v5144 = vadd.f32 0.0, %v5143
      %v5145 = vpop.f32.mrb[0].mxu0
      %5146 = vmatprep.mubr.bf16.mxu0 0
      %5147 = vmatmul.mubr.bf16.gmra.mrb[0].mxu0 %v5047
      %v5148 = vpop.f32.mrb[0].mxu0
      %v5149 = vadd.f32 0.0, %v5148
      %v5150 = vpop.f32.mrb[0].mxu0
      %v5151 = vpop.f32.mrb[0].mxu0
      %v5152 = vadd.f32 0.0, %v5151
      %v5153 = vpop.f32.mrb[0].mxu0
      %5154 = vmatprep.mubr.bf16.mxu0 0
      %5155 = vmatmul.mubr.bf16.gmra.mrb[0].mxu0 %v5050
      %v5156 = vpop.f32.mrb[0].mxu0
      %v5157 = vadd.f32 0.0, %v5156
      %v5158 = vpop.f32.mrb[0].mxu0
      %v5159 = vpop.f32.mrb[0].mxu0
      %v5160 = vadd.f32 0.0, %v5159
      %v5161 = vpop.f32.mrb[0].mxu0
      %5162 = vmatprep.mubr.bf16.mxu0 0
      %5163 = vmatmul.mubr.bf16.gmra.mrb[0].mxu0 %v5053
      %v5164 = vpop.f32.mrb[0].mxu0
      %v5165 = vadd.f32 0.0, %v5164
      %v5166 = vpop.f32.mrb[0].mxu0
      %v5167 = vpop.f32.mrb[0].mxu0
      %v5168 = vadd.f32 0.0, %v5167
      %v5169 = vpop.f32.mrb[0].mxu0
      %5170 = vmatprep.mubr.bf16.mxu0 0
      %5171 = vmatmul.mubr.bf16.gmra.mrb[0].mxu0 %v5056
      %v5172 = vpop.f32.mrb[0].mxu0
      %v5173 = vadd.f32 0.0, %v5172
      %v5174 = vpop.f32.mrb[0].mxu0
      %v5175 = vpop.f32.mrb[0].mxu0
      %v5176 = vadd.f32 0.0, %v5175
      %v5177 = vpop.f32.mrb[0].mxu0
      %5178 = vmatprep.mubr.bf16.mxu0 0
      %5179 = vmatmul.mubr.bf16.gmra.mrb[0].mxu0 %v5059
      %v5180 = vpop.f32.mrb[0].mxu0
      %v5181 = vadd.f32 0.0, %v5180
      %v5182 = vpop.f32.mrb[0].mxu0
      %v5183 = vpop.f32.mrb[0].mxu0
      %v5184 = vadd.f32 0.0, %v5183
      %v5185 = vpop.f32.mrb[0].mxu0
      %5186 = vmatprep.mubr.bf16.mxu0 0
      %5187 = vmatmul.mubr.bf16.gmra.mrb[0].mxu0 %v5062
      %v5188 = vpop.f32.mrb[0].mxu0
      %v5189 = vadd.f32 0.0, %v5188
      %v5190 = vpop.f32.mrb[0].mxu0
      %v5191 = vpop.f32.mrb[0].mxu0
      %v5192 = vadd.f32 0.0, %v5191
      %v5193 = vpop.f32.mrb[0].mxu0
      %5194 = vmatprep.mubr.bf16.mxu0 0
      %5195 = vmatmul.mubr.bf16.gmra.mrb[0].mxu0 %v5065
      %v5196 = vpop.f32.mrb[0].mxu0
      %v5197 = vadd.f32 0.0, %v5196
      %v5198 = vpop.f32.mrb[0].mxu0
      %v5199 = vpop.f32.mrb[0].mxu0
      %v5200 = vadd.f32 0.0, %v5199
      %v5201 = vpop.f32.mrb[0].mxu0
      %5202 = vmatprep.mubr.bf16.mxu0 0
      %5203 = vmatmul.mubr.bf16.gmra.mrb[0].mxu0 %v5068
      %v5204 = vpop.f32.mrb[0].mxu0
      %v5205 = vadd.f32 0.0, %v5204
      %v5206 = vpop.f32.mrb[0].mxu0
      %v5207 = vpop.f32.mrb[0].mxu0
      %v5208 = vadd.f32 0.0, %v5207
      %v5209 = vpop.f32.mrb[0].mxu0
      %5210 = vmatprep.mubr.bf16.mxu0 0
      %5211 = vmatmul.mubr.bf16.gmra.mrb[0].mxu0 %v5071
      %v5212 = vpop.f32.mrb[0].mxu0
      %v5213 = vadd.f32 0.0, %v5212
      %v5214 = vpop.f32.mrb[0].mxu0
      %v5215 = vpop.f32.mrb[0].mxu0
      %v5216 = vadd.f32 0.0, %v5215
      %v5217 = vpop.f32.mrb[0].mxu0
      %5218 = vmatprep.mubr.bf16.mxu0 0
      %5219 = vmatmul.mubr.bf16.gmra.mrb[0].mxu0 %v5074
      %v5220 = vpop.f32.mrb[0].mxu0
      %v5221 = vadd.f32 0.0, %v5220
      %v5222 = vpop.f32.mrb[0].mxu0
      %v5223 = vpop.f32.mrb[0].mxu0
      %v5224 = vadd.f32 0.0, %v5223
      %v5225 = vpop.f32.mrb[0].mxu0
      %5226 = vmatprep.mubr.bf16.mxu0 0
      %5227 = vmatmul.mubr.bf16.gmra.mrb[0].mxu0 %v5077
      %v5228 = vpop.f32.mrb[0].mxu0
      %v5229 = vadd.f32 0.0, %v5228
      %v5230 = vpop.f32.mrb[0].mxu0
      %v5231 = vpop.f32.mrb[0].mxu0
      %v5232 = vadd.f32 0.0, %v5231
      %v5233 = vpop.f32.mrb[0].mxu0
      %5234 = vmatprep.mubr.bf16.mxu0 0
      %5235 = vmatmul.mubr.bf16.gmra.mrb[0].mxu0 %v5080
      %v5236 = vpop.f32.mrb[0].mxu0
      %v5237 = vadd.f32 0.0, %v5236
      %v5238 = vpop.f32.mrb[0].mxu0
      %v5239 = vpop.f32.mrb[0].mxu0
      %v5240 = vadd.f32 0.0, %v5239
      %v5241 = vpop.f32.mrb[0].mxu0
      %5242 = vdwg.mxu0
      %v5243 = vadd.f32 %v4945, %v5117
      %v5244 = vadd.f32 %v4946, %v5120
      %v5245 = vadd.f32 %v4947, %v5125
      %v5246 = vadd.f32 %v4948, %v5128
      %v5247 = vadd.f32 %v4949, %v5133
      %v5248 = vadd.f32 %v4950, %v5136
      %v5249 = vadd.f32 %v4951, %v5141
      %v5250 = vadd.f32 %v4952, %v5144
      %v5251 = vadd.f32 %v4953, %v5149
      %v5252 = vadd.f32 %v4954, %v5152
      %v5253 = vadd.f32 %v4955, %v5157
      %v5254 = vadd.f32 %v4956, %v5160
      %v5255 = vadd.f32 %v4957, %v5165
      %v5256 = vadd.f32 %v4958, %v5168
      %v5257 = vadd.f32 %v4959, %v5173
      %v5258 = vadd.f32 %v4960, %v5176
      %v5259 = vadd.f32 %v4961, %v5181
      %v5260 = vadd.f32 %v4962, %v5184
      %v5261 = vadd.f32 %v4963, %v5189
      %v5262 = vadd.f32 %v4964, %v5192
      %v5263 = vadd.f32 %v4965, %v5197
      %v5264 = vadd.f32 %v4966, %v5200
      %v5265 = vadd.f32 %v4967, %v5205
      %v5266 = vadd.f32 %v4968, %v5208
      %v5267 = vadd.f32 %v4969, %v5213
      %v5268 = vadd.f32 %v4970, %v5216
      %v5269 = vadd.f32 %v4971, %v5221
      %v5270 = vadd.f32 %v4972, %v5224
      %v5271 = vadd.f32 %v4973, %v5229
      %v5272 = vadd.f32 %v4974, %v5232
      %v5273 = vadd.f32 %v4975, %v5237
      %v5274 = vadd.f32 %v4976, %v5240
      %s5275 = scalar_lea.vmem [#allocation3], 48
      %v5276 = vld [vmem:[%s5275] sm:$0xff]
      %v5277 = vld [vmem:[%s5275 + $0x8] sm:$0xff]
      %v5278 = vld [vmem:[%s5275 + $0x18] sm:$0xff]
      %v5279 = vld [vmem:[%s5275 + $0x20] sm:$0xff]
      %v5280 = vld [vmem:[%s5275 + $0x30] sm:$0xff]
      %v5281 = vld [vmem:[%s5275 + $0x38] sm:$0xff]
      %v5282 = vld [vmem:[%s5275 + $0x48] sm:$0xff]
      %v5283 = vld [vmem:[%s5275 + $0x50] sm:$0xff]
      %v5284 = vld [vmem:[%s5275 + $0x60] sm:$0xff]
      %v5285 = vld [vmem:[%s5275 + $0x68] sm:$0xff]
      %v5286 = vld [vmem:[%s5275 + $0x78] sm:$0xff]
      %v5287 = vld [vmem:[%s5275 + $0x80] sm:$0xff]
      %v5288 = vld [vmem:[%s5275 + $0x90] sm:$0xff]
      %v5289 = vld [vmem:[%s5275 + $0x98] sm:$0xff]
      %v5290 = vld [vmem:[%s5275 + $0xa8] sm:$0xff]
      %v5291 = vld [vmem:[%s5275 + $0xb0] sm:$0xff]
      %v5292 = vld [vmem:[%s5275 + $0xc0] sm:$0xff]
      %v5293 = vld [vmem:[%s5275 + $0xc8] sm:$0xff]
      %v5294 = vld [vmem:[%s5275 + $0xd8] sm:$0xff]
      %v5295 = vld [vmem:[%s5275 + $0xe0] sm:$0xff]
      %v5296 = vld [vmem:[%s5275 + $0xf0] sm:$0xff]
      %v5297 = vld [vmem:[%s5275 + $0xf8] sm:$0xff]
      %v5298 = vld [vmem:[%s5275 + $0x108] sm:$0xff]
      %v5299 = vld [vmem:[%s5275 + $0x110] sm:$0xff]
      %v5300 = vld [vmem:[%s5275 + $0x120] sm:$0xff]
      %v5301 = vld [vmem:[%s5275 + $0x128] sm:$0xff]
      %v5302 = vld [vmem:[%s5275 + $0x138] sm:$0xff]
      %v5303 = vld [vmem:[%s5275 + $0x140] sm:$0xff]
      %v5304 = vld [vmem:[%s5275 + $0x150] sm:$0xff]
      %v5305 = vld [vmem:[%s5275 + $0x158] sm:$0xff]
      %v5306 = vld [vmem:[%s5275 + $0x168] sm:$0xff]
      %v5307 = vld [vmem:[%s5275 + $0x170] sm:$0xff]
      %v5308 = vpack.c.bf16 %v5277, %v5276
      %v5309 = vpack.c.bf16 %v5279, %v5278
      %v5310 = vpack.c.bf16 %v5281, %v5280
      %v5311 = vpack.c.bf16 %v5283, %v5282
      %v5312 = vpack.c.bf16 %v5285, %v5284
      %v5313 = vpack.c.bf16 %v5287, %v5286
      %v5314 = vpack.c.bf16 %v5289, %v5288
      %v5315 = vpack.c.bf16 %v5291, %v5290
      %v5316 = vpack.c.bf16 %v5293, %v5292
      %v5317 = vpack.c.bf16 %v5295, %v5294
      %v5318 = vpack.c.bf16 %v5297, %v5296
      %v5319 = vpack.c.bf16 %v5299, %v5298
      %v5320 = vpack.c.bf16 %v5301, %v5300
      %v5321 = vpack.c.bf16 %v5303, %v5302
      %v5322 = vpack.c.bf16 %v5305, %v5304
      %v5323 = vpack.c.bf16 %v5307, %v5306
      %s5324 = scalar_lea.vmem %s5, 48
      %v5325 = vld [vmem:[%s5324] sm:$0xf]
      %v5326 = vld [vmem:[%s5324 + $0x4] sm:$0xf]
      %v5329 = vunpack.c.l.b16 %v5325
      %v5330 = vunpack.c.l.b16 %v5326
      %v5331 = vpack.c.b16 %v5330, %v5329
      %v5334 = vsel %vm3463, %v5308, 0
      %v5337 = vsel %vm3463, %v5309, 0
      %v5340 = vsel %vm3463, %v5310, 0
      %v5343 = vsel %vm3463, %v5311, 0
      %v5346 = vsel %vm3463, %v5312, 0
      %v5349 = vsel %vm3463, %v5313, 0
      %v5352 = vsel %vm3463, %v5314, 0
      %v5355 = vsel %vm3463, %v5315, 0
      %v5358 = vsel %vm3463, %v5316, 0
      %v5361 = vsel %vm3463, %v5317, 0
      %v5364 = vsel %vm3463, %v5318, 0
      %v5367 = vsel %vm3463, %v5319, 0
      %v5370 = vsel %vm3463, %v5320, 0
      %v5373 = vsel %vm3463, %v5321, 0
      %v5376 = vsel %vm3463, %v5322, 0
      %v5379 = vsel %vm3463, %v5323, 0
      %5381 = vmatprep.subr.bf16.mxu0 0
      %5382 = vmatpush1.bf16.msra.mxu0 %v5331
      %5383 = vmatprep.subr.bf16.mxu0 0
      %5384 = vmatpush1.bf16.msra.mxu0 0
      %5385 = vmatprep.subr.bf16.mxu0 0
      %5386 = vmatpush1.bf16.msra.mxu0 0
      %5387 = vmatprep.subr.bf16.mxu0 0
      %5388 = vmatpush1.bf16.msra.mxu0 0
      %5389 = vmatprep.subr.bf16.mxu0 0
      %5390 = vmatpush1.bf16.msra.mxu0 0
      %5391 = vmatprep.subr.bf16.mxu0 0
      %5392 = vmatpush1.bf16.msra.mxu0 0
      %5393 = vmatprep.subr.bf16.mxu0 0
      %5394 = vmatpush1.bf16.msra.mxu0 0
      %5395 = vmatprep.subr.bf16.mxu0 0
      %5396 = vmatpush1.bf16.msra.mxu0 0
      %5397 = vmatprep.subr.bf16.mxu0 0
      %5398 = vmatpush1.bf16.msra.mxu0 0
      %5399 = vmatprep.subr.bf16.mxu0 0
      %5400 = vmatpush1.bf16.msra.mxu0 0
      %5401 = vmatprep.subr.bf16.mxu0 0
      %5402 = vmatpush1.bf16.msra.mxu0 0
      %5403 = vmatprep.subr.bf16.mxu0 0
      %5404 = vmatpush1.bf16.msra.mxu0 0
      %5405 = vmatprep.subr.bf16.mxu0 0
      %5406 = vmatpush1.bf16.msra.mxu0 0
      %5407 = vmatprep.subr.bf16.mxu0 0
      %5408 = vmatpush1.bf16.msra.mxu0 0
      %5409 = vmatprep.subr.bf16.mxu0 0
      %5410 = vmatpush1.bf16.msra.mxu0 0
      %5411 = vmatprep.subr.bf16.mxu0 0
      %5412 = vmatpush1.bf16.msra.mxu0 0
      %5413 = vmatprep.mubr.bf16.mxu0 0
      %5414 = vmatmul.mubr.bf16.gmra.mrb[0].mxu0 %v5334
      %v5415 = vpop.f32.mrb[0].mxu0
      %v5416 = vadd.f32 0.0, %v5415
      %v5417 = vpop.f32.mrb[0].mxu0
      %v5418 = vpop.f32.mrb[0].mxu0
      %v5419 = vadd.f32 0.0, %v5418
      %v5420 = vpop.f32.mrb[0].mxu0
      %5421 = vmatprep.mubr.bf16.mxu0 0
      %5422 = vmatmul.mubr.bf16.gmra.mrb[0].mxu0 %v5337
      %v5423 = vpop.f32.mrb[0].mxu0
      %v5424 = vadd.f32 0.0, %v5423
      %v5425 = vpop.f32.mrb[0].mxu0
      %v5426 = vpop.f32.mrb[0].mxu0
      %v5427 = vadd.f32 0.0, %v5426
      %v5428 = vpop.f32.mrb[0].mxu0
      %5429 = vmatprep.mubr.bf16.mxu0 0
      %5430 = vmatmul.mubr.bf16.gmra.mrb[0].mxu0 %v5340
      %v5431 = vpop.f32.mrb[0].mxu0
      %v5432 = vadd.f32 0.0, %v5431
      %v5433 = vpop.f32.mrb[0].mxu0
      %v5434 = vpop.f32.mrb[0].mxu0
      %v5435 = vadd.f32 0.0, %v5434
      %v5436 = vpop.f32.mrb[0].mxu0
      %5437 = vmatprep.mubr.bf16.mxu0 0
      %5438 = vmatmul.mubr.bf16.gmra.mrb[0].mxu0 %v5343
      %v5439 = vpop.f32.mrb[0].mxu0
      %v5440 = vadd.f32 0.0, %v5439
      %v5441 = vpop.f32.mrb[0].mxu0
      %v5442 = vpop.f32.mrb[0].mxu0
      %v5443 = vadd.f32 0.0, %v5442
      %v5444 = vpop.f32.mrb[0].mxu0
      %5445 = vmatprep.mubr.bf16.mxu0 0
      %5446 = vmatmul.mubr.bf16.gmra.mrb[0].mxu0 %v5346
      %v5447 = vpop.f32.mrb[0].mxu0
      %v5448 = vadd.f32 0.0, %v5447
      %v5449 = vpop.f32.mrb[0].mxu0
      %v5450 = vpop.f32.mrb[0].mxu0
      %v5451 = vadd.f32 0.0, %v5450
      %v5452 = vpop.f32.mrb[0].mxu0
      %5453 = vmatprep.mubr.bf16.mxu0 0
      %5454 = vmatmul.mubr.bf16.gmra.mrb[0].mxu0 %v5349
      %v5455 = vpop.f32.mrb[0].mxu0
      %v5456 = vadd.f32 0.0, %v5455
      %v5457 = vpop.f32.mrb[0].mxu0
      %v5458 = vpop.f32.mrb[0].mxu0
      %v5459 = vadd.f32 0.0, %v5458
      %v5460 = vpop.f32.mrb[0].mxu0
      %5461 = vmatprep.mubr.bf16.mxu0 0
      %5462 = vmatmul.mubr.bf16.gmra.mrb[0].mxu0 %v5352
      %v5463 = vpop.f32.mrb[0].mxu0
      %v5464 = vadd.f32 0.0, %v5463
      %v5465 = vpop.f32.mrb[0].mxu0
      %v5466 = vpop.f32.mrb[0].mxu0
      %v5467 = vadd.f32 0.0, %v5466
      %v5468 = vpop.f32.mrb[0].mxu0
      %5469 = vmatprep.mubr.bf16.mxu0 0
      %5470 = vmatmul.mubr.bf16.gmra.mrb[0].mxu0 %v5355
      %v5471 = vpop.f32.mrb[0].mxu0
      %v5472 = vadd.f32 0.0, %v5471
      %v5473 = vpop.f32.mrb[0].mxu0
      %v5474 = vpop.f32.mrb[0].mxu0
      %v5475 = vadd.f32 0.0, %v5474
      %v5476 = vpop.f32.mrb[0].mxu0
      %5477 = vmatprep.mubr.bf16.mxu0 0
      %5478 = vmatmul.mubr.bf16.gmra.mrb[0].mxu0 %v5358
      %v5479 = vpop.f32.mrb[0].mxu0
      %v5480 = vadd.f32 0.0, %v5479
      %v5481 = vpop.f32.mrb[0].mxu0
      %v5482 = vpop.f32.mrb[0].mxu0
      %v5483 = vadd.f32 0.0, %v5482
      %v5484 = vpop.f32.mrb[0].mxu0
      %5485 = vmatprep.mubr.bf16.mxu0 0
      %5486 = vmatmul.mubr.bf16.gmra.mrb[0].mxu0 %v5361
      %v5487 = vpop.f32.mrb[0].mxu0
      %v5488 = vadd.f32 0.0, %v5487
      %v5489 = vpop.f32.mrb[0].mxu0
      %v5490 = vpop.f32.mrb[0].mxu0
      %v5491 = vadd.f32 0.0, %v5490
      %v5492 = vpop.f32.mrb[0].mxu0
      %5493 = vmatprep.mubr.bf16.mxu0 0
      %5494 = vmatmul.mubr.bf16.gmra.mrb[0].mxu0 %v5364
      %v5495 = vpop.f32.mrb[0].mxu0
      %v5496 = vadd.f32 0.0, %v5495
      %v5497 = vpop.f32.mrb[0].mxu0
      %v5498 = vpop.f32.mrb[0].mxu0
      %v5499 = vadd.f32 0.0, %v5498
      %v5500 = vpop.f32.mrb[0].mxu0
      %5501 = vmatprep.mubr.bf16.mxu0 0
      %5502 = vmatmul.mubr.bf16.gmra.mrb[0].mxu0 %v5367
      %v5503 = vpop.f32.mrb[0].mxu0
      %v5504 = vadd.f32 0.0, %v5503
      %v5505 = vpop.f32.mrb[0].mxu0
      %v5506 = vpop.f32.mrb[0].mxu0
      %v5507 = vadd.f32 0.0, %v5506
      %v5508 = vpop.f32.mrb[0].mxu0
      %5509 = vmatprep.mubr.bf16.mxu0 0
      %5510 = vmatmul.mubr.bf16.gmra.mrb[0].mxu0 %v5370
      %v5511 = vpop.f32.mrb[0].mxu0
      %v5512 = vadd.f32 0.0, %v5511
      %v5513 = vpop.f32.mrb[0].mxu0
      %v5514 = vpop.f32.mrb[0].mxu0
      %v5515 = vadd.f32 0.0, %v5514
      %v5516 = vpop.f32.mrb[0].mxu0
      %5517 = vmatprep.mubr.bf16.mxu0 0
      %5518 = vmatmul.mubr.bf16.gmra.mrb[0].mxu0 %v5373
      %v5519 = vpop.f32.mrb[0].mxu0
      %v5520 = vadd.f32 0.0, %v5519
      %v5521 = vpop.f32.mrb[0].mxu0
      %v5522 = vpop.f32.mrb[0].mxu0
      %v5523 = vadd.f32 0.0, %v5522
      %v5524 = vpop.f32.mrb[0].mxu0
      %5525 = vmatprep.mubr.bf16.mxu0 0
      %5526 = vmatmul.mubr.bf16.gmra.mrb[0].mxu0 %v5376
      %v5527 = vpop.f32.mrb[0].mxu0
      %v5528 = vadd.f32 0.0, %v5527
      %v5529 = vpop.f32.mrb[0].mxu0
      %v5530 = vpop.f32.mrb[0].mxu0
      %v5531 = vadd.f32 0.0, %v5530
      %v5532 = vpop.f32.mrb[0].mxu0
      %5533 = vmatprep.mubr.bf16.mxu0 0
      %5534 = vmatmul.mubr.bf16.gmra.mrb[0].mxu0 %v5379
      %v5535 = vpop.f32.mrb[0].mxu0
      %v5536 = vadd.f32 0.0, %v5535
      %v5537 = vpop.f32.mrb[0].mxu0
      %v5538 = vpop.f32.mrb[0].mxu0
      %v5539 = vadd.f32 0.0, %v5538
      %v5540 = vpop.f32.mrb[0].mxu0
      %5541 = vdwg.mxu0
      %v5542 = vadd.f32 %v5243, %v5416
      %v5543 = vadd.f32 %v5244, %v5419
      %v5544 = vadd.f32 %v5245, %v5424
      %v5545 = vadd.f32 %v5246, %v5427
      %v5546 = vadd.f32 %v5247, %v5432
      %v5547 = vadd.f32 %v5248, %v5435
      %v5548 = vadd.f32 %v5249, %v5440
      %v5549 = vadd.f32 %v5250, %v5443
      %v5550 = vadd.f32 %v5251, %v5448
      %v5551 = vadd.f32 %v5252, %v5451
      %v5552 = vadd.f32 %v5253, %v5456
      %v5553 = vadd.f32 %v5254, %v5459
      %v5554 = vadd.f32 %v5255, %v5464
      %v5555 = vadd.f32 %v5256, %v5467
      %v5556 = vadd.f32 %v5257, %v5472
      %v5557 = vadd.f32 %v5258, %v5475
      %v5558 = vadd.f32 %v5259, %v5480
      %v5559 = vadd.f32 %v5260, %v5483
      %v5560 = vadd.f32 %v5261, %v5488
      %v5561 = vadd.f32 %v5262, %v5491
      %v5562 = vadd.f32 %v5263, %v5496
      %v5563 = vadd.f32 %v5264, %v5499
      %v5564 = vadd.f32 %v5265, %v5504
      %v5565 = vadd.f32 %v5266, %v5507
      %v5566 = vadd.f32 %v5267, %v5512
      %v5567 = vadd.f32 %v5268, %v5515
      %v5568 = vadd.f32 %v5269, %v5520
      %v5569 = vadd.f32 %v5270, %v5523
      %v5570 = vadd.f32 %v5271, %v5528
      %v5571 = vadd.f32 %v5272, %v5531
      %v5572 = vadd.f32 %v5273, %v5536
      %v5573 = vadd.f32 %v5274, %v5539
      %v5574 = vld [vmem:[%s5275 + $0x1] sm:$0xff]
      %v5575 = vld [vmem:[%s5275 + $0x9] sm:$0xff]
      %v5576 = vld [vmem:[%s5275 + $0x19] sm:$0xff]
      %v5577 = vld [vmem:[%s5275 + $0x21] sm:$0xff]
      %v5578 = vld [vmem:[%s5275 + $0x31] sm:$0xff]
      %v5579 = vld [vmem:[%s5275 + $0x39] sm:$0xff]
      %v5580 = vld [vmem:[%s5275 + $0x49] sm:$0xff]
      %v5581 = vld [vmem:[%s5275 + $0x51] sm:$0xff]
      %v5582 = vld [vmem:[%s5275 + $0x61] sm:$0xff]
      %v5583 = vld [vmem:[%s5275 + $0x69] sm:$0xff]
      %v5584 = vld [vmem:[%s5275 + $0x79] sm:$0xff]
      %v5585 = vld [vmem:[%s5275 + $0x81] sm:$0xff]
      %v5586 = vld [vmem:[%s5275 + $0x91] sm:$0xff]
      %v5587 = vld [vmem:[%s5275 + $0x99] sm:$0xff]
      %v5588 = vld [vmem:[%s5275 + $0xa9] sm:$0xff]
      %v5589 = vld [vmem:[%s5275 + $0xb1] sm:$0xff]
      %v5590 = vld [vmem:[%s5275 + $0xc1] sm:$0xff]
      %v5591 = vld [vmem:[%s5275 + $0xc9] sm:$0xff]
      %v5592 = vld [vmem:[%s5275 + $0xd9] sm:$0xff]
      %v5593 = vld [vmem:[%s5275 + $0xe1] sm:$0xff]
      %v5594 = vld [vmem:[%s5275 + $0xf1] sm:$0xff]
      %v5595 = vld [vmem:[%s5275 + $0xf9] sm:$0xff]
      %v5596 = vld [vmem:[%s5275 + $0x109] sm:$0xff]
      %v5597 = vld [vmem:[%s5275 + $0x111] sm:$0xff]
      %v5598 = vld [vmem:[%s5275 + $0x121] sm:$0xff]
      %v5599 = vld [vmem:[%s5275 + $0x129] sm:$0xff]
      %v5600 = vld [vmem:[%s5275 + $0x139] sm:$0xff]
      %v5601 = vld [vmem:[%s5275 + $0x141] sm:$0xff]
      %v5602 = vld [vmem:[%s5275 + $0x151] sm:$0xff]
      %v5603 = vld [vmem:[%s5275 + $0x159] sm:$0xff]
      %v5604 = vld [vmem:[%s5275 + $0x169] sm:$0xff]
      %v5605 = vld [vmem:[%s5275 + $0x171] sm:$0xff]
      %v5606 = vpack.c.bf16 %v5575, %v5574
      %v5607 = vpack.c.bf16 %v5577, %v5576
      %v5608 = vpack.c.bf16 %v5579, %v5578
      %v5609 = vpack.c.bf16 %v5581, %v5580
      %v5610 = vpack.c.bf16 %v5583, %v5582
      %v5611 = vpack.c.bf16 %v5585, %v5584
      %v5612 = vpack.c.bf16 %v5587, %v5586
      %v5613 = vpack.c.bf16 %v5589, %v5588
      %v5614 = vpack.c.bf16 %v5591, %v5590
      %v5615 = vpack.c.bf16 %v5593, %v5592
      %v5616 = vpack.c.bf16 %v5595, %v5594
      %v5617 = vpack.c.bf16 %v5597, %v5596
      %v5618 = vpack.c.bf16 %v5599, %v5598
      %v5619 = vpack.c.bf16 %v5601, %v5600
      %v5620 = vpack.c.bf16 %v5603, %v5602
      %v5621 = vpack.c.bf16 %v5605, %v5604
      %s5622 = scalar_lea.vmem %s5, 56
      %v5623 = vld [vmem:[%s5622] sm:$0xf]
      %v5624 = vld [vmem:[%s5622 + $0x4] sm:$0xf]
      %v5627 = vunpack.c.l.b16 %v5623
      %v5628 = vunpack.c.l.b16 %v5624
      %v5629 = vpack.c.b16 %v5628, %v5627
      %v5632 = vsel %vm3463, %v5606, 0
      %v5635 = vsel %vm3463, %v5607, 0
      %v5638 = vsel %vm3463, %v5608, 0
      %v5641 = vsel %vm3463, %v5609, 0
      %v5644 = vsel %vm3463, %v5610, 0
      %v5647 = vsel %vm3463, %v5611, 0
      %v5650 = vsel %vm3463, %v5612, 0
      %v5653 = vsel %vm3463, %v5613, 0
      %v5656 = vsel %vm3463, %v5614, 0
      %v5659 = vsel %vm3463, %v5615, 0
      %v5662 = vsel %vm3463, %v5616, 0
      %v5665 = vsel %vm3463, %v5617, 0
      %v5668 = vsel %vm3463, %v5618, 0
      %v5671 = vsel %vm3463, %v5619, 0
      %v5674 = vsel %vm3463, %v5620, 0
      %v5677 = vsel %vm3463, %v5621, 0
      %5679 = vmatprep.subr.bf16.mxu0 0
      %5680 = vmatpush1.bf16.msra.mxu0 %v5629
      %5681 = vmatprep.subr.bf16.mxu0 0
      %5682 = vmatpush1.bf16.msra.mxu0 0
      %5683 = vmatprep.subr.bf16.mxu0 0
      %5684 = vmatpush1.bf16.msra.mxu0 0
      %5685 = vmatprep.subr.bf16.mxu0 0
      %5686 = vmatpush1.bf16.msra.mxu0 0
      %5687 = vmatprep.subr.bf16.mxu0 0
      %5688 = vmatpush1.bf16.msra.mxu0 0
      %5689 = vmatprep.subr.bf16.mxu0 0
      %5690 = vmatpush1.bf16.msra.mxu0 0
      %5691 = vmatprep.subr.bf16.mxu0 0
      %5692 = vmatpush1.bf16.msra.mxu0 0
      %5693 = vmatprep.subr.bf16.mxu0 0
      %5694 = vmatpush1.bf16.msra.mxu0 0
      %5695 = vmatprep.subr.bf16.mxu0 0
      %5696 = vmatpush1.bf16.msra.mxu0 0
      %5697 = vmatprep.subr.bf16.mxu0 0
      %5698 = vmatpush1.bf16.msra.mxu0 0
      %5699 = vmatprep.subr.bf16.mxu0 0
      %5700 = vmatpush1.bf16.msra.mxu0 0
      %5701 = vmatprep.subr.bf16.mxu0 0
      %5702 = vmatpush1.bf16.msra.mxu0 0
      %5703 = vmatprep.subr.bf16.mxu0 0
      %5704 = vmatpush1.bf16.msra.mxu0 0
      %5705 = vmatprep.subr.bf16.mxu0 0
      %5706 = vmatpush1.bf16.msra.mxu0 0
      %5707 = vmatprep.subr.bf16.mxu0 0
      %5708 = vmatpush1.bf16.msra.mxu0 0
      %5709 = vmatprep.subr.bf16.mxu0 0
      %5710 = vmatpush1.bf16.msra.mxu0 0
      %5711 = vmatprep.mubr.bf16.mxu0 0
      %5712 = vmatmul.mubr.bf16.gmra.mrb[0].mxu0 %v5632
      %v5713 = vpop.f32.mrb[0].mxu0
      %v5714 = vadd.f32 0.0, %v5713
      %v5715 = vpop.f32.mrb[0].mxu0
      %v5716 = vpop.f32.mrb[0].mxu0
      %v5717 = vadd.f32 0.0, %v5716
      %v5718 = vpop.f32.mrb[0].mxu0
      %5719 = vmatprep.mubr.bf16.mxu0 0
      %5720 = vmatmul.mubr.bf16.gmra.mrb[0].mxu0 %v5635
      %v5721 = vpop.f32.mrb[0].mxu0
      %v5722 = vadd.f32 0.0, %v5721
      %v5723 = vpop.f32.mrb[0].mxu0
      %v5724 = vpop.f32.mrb[0].mxu0
      %v5725 = vadd.f32 0.0, %v5724
      %v5726 = vpop.f32.mrb[0].mxu0
      %5727 = vmatprep.mubr.bf16.mxu0 0
      %5728 = vmatmul.mubr.bf16.gmra.mrb[0].mxu0 %v5638
      %v5729 = vpop.f32.mrb[0].mxu0
      %v5730 = vadd.f32 0.0, %v5729
      %v5731 = vpop.f32.mrb[0].mxu0
      %v5732 = vpop.f32.mrb[0].mxu0
      %v5733 = vadd.f32 0.0, %v5732
      %v5734 = vpop.f32.mrb[0].mxu0
      %5735 = vmatprep.mubr.bf16.mxu0 0
      %5736 = vmatmul.mubr.bf16.gmra.mrb[0].mxu0 %v5641
      %v5737 = vpop.f32.mrb[0].mxu0
      %v5738 = vadd.f32 0.0, %v5737
      %v5739 = vpop.f32.mrb[0].mxu0
      %v5740 = vpop.f32.mrb[0].mxu0
      %v5741 = vadd.f32 0.0, %v5740
      %v5742 = vpop.f32.mrb[0].mxu0
      %5743 = vmatprep.mubr.bf16.mxu0 0
      %5744 = vmatmul.mubr.bf16.gmra.mrb[0].mxu0 %v5644
      %v5745 = vpop.f32.mrb[0].mxu0
      %v5746 = vadd.f32 0.0, %v5745
      %v5747 = vpop.f32.mrb[0].mxu0
      %v5748 = vpop.f32.mrb[0].mxu0
      %v5749 = vadd.f32 0.0, %v5748
      %v5750 = vpop.f32.mrb[0].mxu0
      %5751 = vmatprep.mubr.bf16.mxu0 0
      %5752 = vmatmul.mubr.bf16.gmra.mrb[0].mxu0 %v5647
      %v5753 = vpop.f32.mrb[0].mxu0
      %v5754 = vadd.f32 0.0, %v5753
      %v5755 = vpop.f32.mrb[0].mxu0
      %v5756 = vpop.f32.mrb[0].mxu0
      %v5757 = vadd.f32 0.0, %v5756
      %v5758 = vpop.f32.mrb[0].mxu0
      %5759 = vmatprep.mubr.bf16.mxu0 0
      %5760 = vmatmul.mubr.bf16.gmra.mrb[0].mxu0 %v5650
      %v5761 = vpop.f32.mrb[0].mxu0
      %v5762 = vadd.f32 0.0, %v5761
      %v5763 = vpop.f32.mrb[0].mxu0
      %v5764 = vpop.f32.mrb[0].mxu0
      %v5765 = vadd.f32 0.0, %v5764
      %v5766 = vpop.f32.mrb[0].mxu0
      %5767 = vmatprep.mubr.bf16.mxu0 0
      %5768 = vmatmul.mubr.bf16.gmra.mrb[0].mxu0 %v5653
      %v5769 = vpop.f32.mrb[0].mxu0
      %v5770 = vadd.f32 0.0, %v5769
      %v5771 = vpop.f32.mrb[0].mxu0
      %v5772 = vpop.f32.mrb[0].mxu0
      %v5773 = vadd.f32 0.0, %v5772
      %v5774 = vpop.f32.mrb[0].mxu0
      %5775 = vmatprep.mubr.bf16.mxu0 0
      %5776 = vmatmul.mubr.bf16.gmra.mrb[0].mxu0 %v5656
      %v5777 = vpop.f32.mrb[0].mxu0
      %v5778 = vadd.f32 0.0, %v5777
      %v5779 = vpop.f32.mrb[0].mxu0
      %v5780 = vpop.f32.mrb[0].mxu0
      %v5781 = vadd.f32 0.0, %v5780
      %v5782 = vpop.f32.mrb[0].mxu0
      %5783 = vmatprep.mubr.bf16.mxu0 0
      %5784 = vmatmul.mubr.bf16.gmra.mrb[0].mxu0 %v5659
      %v5785 = vpop.f32.mrb[0].mxu0
      %v5786 = vadd.f32 0.0, %v5785
      %v5787 = vpop.f32.mrb[0].mxu0
      %v5788 = vpop.f32.mrb[0].mxu0
      %v5789 = vadd.f32 0.0, %v5788
      %v5790 = vpop.f32.mrb[0].mxu0
      %5791 = vmatprep.mubr.bf16.mxu0 0
      %5792 = vmatmul.mubr.bf16.gmra.mrb[0].mxu0 %v5662
      %v5793 = vpop.f32.mrb[0].mxu0
      %v5794 = vadd.f32 0.0, %v5793
      %v5795 = vpop.f32.mrb[0].mxu0
      %v5796 = vpop.f32.mrb[0].mxu0
      %v5797 = vadd.f32 0.0, %v5796
      %v5798 = vpop.f32.mrb[0].mxu0
      %5799 = vmatprep.mubr.bf16.mxu0 0
      %5800 = vmatmul.mubr.bf16.gmra.mrb[0].mxu0 %v5665
      %v5801 = vpop.f32.mrb[0].mxu0
      %v5802 = vadd.f32 0.0, %v5801
      %v5803 = vpop.f32.mrb[0].mxu0
      %v5804 = vpop.f32.mrb[0].mxu0
      %v5805 = vadd.f32 0.0, %v5804
      %v5806 = vpop.f32.mrb[0].mxu0
      %5807 = vmatprep.mubr.bf16.mxu0 0
      %5808 = vmatmul.mubr.bf16.gmra.mrb[0].mxu0 %v5668
      %v5809 = vpop.f32.mrb[0].mxu0
      %v5810 = vadd.f32 0.0, %v5809
      %v5811 = vpop.f32.mrb[0].mxu0
      %v5812 = vpop.f32.mrb[0].mxu0
      %v5813 = vadd.f32 0.0, %v5812
      %v5814 = vpop.f32.mrb[0].mxu0
      %5815 = vmatprep.mubr.bf16.mxu0 0
      %5816 = vmatmul.mubr.bf16.gmra.mrb[0].mxu0 %v5671
      %v5817 = vpop.f32.mrb[0].mxu0
      %v5818 = vadd.f32 0.0, %v5817
      %v5819 = vpop.f32.mrb[0].mxu0
      %v5820 = vpop.f32.mrb[0].mxu0
      %v5821 = vadd.f32 0.0, %v5820
      %v5822 = vpop.f32.mrb[0].mxu0
      %5823 = vmatprep.mubr.bf16.mxu0 0
      %5824 = vmatmul.mubr.bf16.gmra.mrb[0].mxu0 %v5674
      %v5825 = vpop.f32.mrb[0].mxu0
      %v5826 = vadd.f32 0.0, %v5825
      %v5827 = vpop.f32.mrb[0].mxu0
      %v5828 = vpop.f32.mrb[0].mxu0
      %v5829 = vadd.f32 0.0, %v5828
      %v5830 = vpop.f32.mrb[0].mxu0
      %5831 = vmatprep.mubr.bf16.mxu0 0
      %5832 = vmatmul.mubr.bf16.gmra.mrb[0].mxu0 %v5677
      %v5833 = vpop.f32.mrb[0].mxu0
      %v5834 = vadd.f32 0.0, %v5833
      %v5835 = vpop.f32.mrb[0].mxu0
      %v5836 = vpop.f32.mrb[0].mxu0
      %v5837 = vadd.f32 0.0, %v5836
      %v5838 = vpop.f32.mrb[0].mxu0
      %5839 = vdwg.mxu0
      %v5840 = vadd.f32 %v5542, %v5714
      %v5841 = vadd.f32 %v5543, %v5717
      %v5842 = vadd.f32 %v5544, %v5722
      %v5843 = vadd.f32 %v5545, %v5725
      %v5844 = vadd.f32 %v5546, %v5730
      %v5845 = vadd.f32 %v5547, %v5733
      %v5846 = vadd.f32 %v5548, %v5738
      %v5847 = vadd.f32 %v5549, %v5741
      %v5848 = vadd.f32 %v5550, %v5746
      %v5849 = vadd.f32 %v5551, %v5749
      %v5850 = vadd.f32 %v5552, %v5754
      %v5851 = vadd.f32 %v5553, %v5757
      %v5852 = vadd.f32 %v5554, %v5762
      %v5853 = vadd.f32 %v5555, %v5765
      %v5854 = vadd.f32 %v5556, %v5770
      %v5855 = vadd.f32 %v5557, %v5773
      %v5856 = vadd.f32 %v5558, %v5778
      %v5857 = vadd.f32 %v5559, %v5781
      %v5858 = vadd.f32 %v5560, %v5786
      %v5859 = vadd.f32 %v5561, %v5789
      %v5860 = vadd.f32 %v5562, %v5794
      %v5861 = vadd.f32 %v5563, %v5797
      %v5862 = vadd.f32 %v5564, %v5802
      %v5863 = vadd.f32 %v5565, %v5805
      %v5864 = vadd.f32 %v5566, %v5810
      %v5865 = vadd.f32 %v5567, %v5813
      %v5866 = vadd.f32 %v5568, %v5818
      %v5867 = vadd.f32 %v5569, %v5821
      %v5868 = vadd.f32 %v5570, %v5826
      %v5869 = vadd.f32 %v5571, %v5829
      %v5870 = vadd.f32 %v5572, %v5834
      %v5871 = vadd.f32 %v5573, %v5837
      %v5872 = vld [vmem:[%s5275 + $0x2] sm:$0xff]
      %v5873 = vld [vmem:[%s5275 + $0xa] sm:$0xff]
      %v5874 = vld [vmem:[%s5275 + $0x1a] sm:$0xff]
      %v5875 = vld [vmem:[%s5275 + $0x22] sm:$0xff]
      %v5876 = vld [vmem:[%s5275 + $0x32] sm:$0xff]
      %v5877 = vld [vmem:[%s5275 + $0x3a] sm:$0xff]
      %v5878 = vld [vmem:[%s5275 + $0x4a] sm:$0xff]
      %v5879 = vld [vmem:[%s5275 + $0x52] sm:$0xff]
      %v5880 = vld [vmem:[%s5275 + $0x62] sm:$0xff]
      %v5881 = vld [vmem:[%s5275 + $0x6a] sm:$0xff]
      %v5882 = vld [vmem:[%s5275 + $0x7a] sm:$0xff]
      %v5883 = vld [vmem:[%s5275 + $0x82] sm:$0xff]
      %v5884 = vld [vmem:[%s5275 + $0x92] sm:$0xff]
      %v5885 = vld [vmem:[%s5275 + $0x9a] sm:$0xff]
      %v5886 = vld [vmem:[%s5275 + $0xaa] sm:$0xff]
      %v5887 = vld [vmem:[%s5275 + $0xb2] sm:$0xff]
      %v5888 = vld [vmem:[%s5275 + $0xc2] sm:$0xff]
      %v5889 = vld [vmem:[%s5275 + $0xca] sm:$0xff]
      %v5890 = vld [vmem:[%s5275 + $0xda] sm:$0xff]
      %v5891 = vld [vmem:[%s5275 + $0xe2] sm:$0xff]
      %v5892 = vld [vmem:[%s5275 + $0xf2] sm:$0xff]
      %v5893 = vld [vmem:[%s5275 + $0xfa] sm:$0xff]
      %v5894 = vld [vmem:[%s5275 + $0x10a] sm:$0xff]
      %v5895 = vld [vmem:[%s5275 + $0x112] sm:$0xff]
      %v5896 = vld [vmem:[%s5275 + $0x122] sm:$0xff]
      %v5897 = vld [vmem:[%s5275 + $0x12a] sm:$0xff]
      %v5898 = vld [vmem:[%s5275 + $0x13a] sm:$0xff]
      %v5899 = vld [vmem:[%s5275 + $0x142] sm:$0xff]
      %v5900 = vld [vmem:[%s5275 + $0x152] sm:$0xff]
      %v5901 = vld [vmem:[%s5275 + $0x15a] sm:$0xff]
      %v5902 = vld [vmem:[%s5275 + $0x16a] sm:$0xff]
      %v5903 = vld [vmem:[%s5275 + $0x172] sm:$0xff]
      %v5904 = vpack.c.bf16 %v5873, %v5872
      %v5905 = vpack.c.bf16 %v5875, %v5874
      %v5906 = vpack.c.bf16 %v5877, %v5876
      %v5907 = vpack.c.bf16 %v5879, %v5878
      %v5908 = vpack.c.bf16 %v5881, %v5880
      %v5909 = vpack.c.bf16 %v5883, %v5882
      %v5910 = vpack.c.bf16 %v5885, %v5884
      %v5911 = vpack.c.bf16 %v5887, %v5886
      %v5912 = vpack.c.bf16 %v5889, %v5888
      %v5913 = vpack.c.bf16 %v5891, %v5890
      %v5914 = vpack.c.bf16 %v5893, %v5892
      %v5915 = vpack.c.bf16 %v5895, %v5894
      %v5916 = vpack.c.bf16 %v5897, %v5896
      %v5917 = vpack.c.bf16 %v5899, %v5898
      %v5918 = vpack.c.bf16 %v5901, %v5900
      %v5919 = vpack.c.bf16 %v5903, %v5902
      %s5920 = scalar_lea.vmem %s5, 64
      %v5921 = vld [vmem:[%s5920] sm:$0xf]
      %v5922 = vld [vmem:[%s5920 + $0x4] sm:$0xf]
      %v5925 = vunpack.c.l.b16 %v5921
      %v5926 = vunpack.c.l.b16 %v5922
      %v5927 = vpack.c.b16 %v5926, %v5925
      %v5930 = vsel %vm3463, %v5904, 0
      %v5933 = vsel %vm3463, %v5905, 0
      %v5936 = vsel %vm3463, %v5906, 0
      %v5939 = vsel %vm3463, %v5907, 0
      %v5942 = vsel %vm3463, %v5908, 0
      %v5945 = vsel %vm3463, %v5909, 0
      %v5948 = vsel %vm3463, %v5910, 0
      %v5951 = vsel %vm3463, %v5911, 0
      %v5954 = vsel %vm3463, %v5912, 0
      %v5957 = vsel %vm3463, %v5913, 0
      %v5960 = vsel %vm3463, %v5914, 0
      %v5963 = vsel %vm3463, %v5915, 0
      %v5966 = vsel %vm3463, %v5916, 0
      %v5969 = vsel %vm3463, %v5917, 0
      %v5972 = vsel %vm3463, %v5918, 0
      %v5975 = vsel %vm3463, %v5919, 0
      %5977 = vmatprep.subr.bf16.mxu0 0
      %5978 = vmatpush1.bf16.msra.mxu0 %v5927
      %5979 = vmatprep.subr.bf16.mxu0 0
      %5980 = vmatpush1.bf16.msra.mxu0 0
      %5981 = vmatprep.subr.bf16.mxu0 0
      %5982 = vmatpush1.bf16.msra.mxu0 0
      %5983 = vmatprep.subr.bf16.mxu0 0
      %5984 = vmatpush1.bf16.msra.mxu0 0
      %5985 = vmatprep.subr.bf16.mxu0 0
      %5986 = vmatpush1.bf16.msra.mxu0 0
      %5987 = vmatprep.subr.bf16.mxu0 0
      %5988 = vmatpush1.bf16.msra.mxu0 0
      %5989 = vmatprep.subr.bf16.mxu0 0
      %5990 = vmatpush1.bf16.msra.mxu0 0
      %5991 = vmatprep.subr.bf16.mxu0 0
      %5992 = vmatpush1.bf16.msra.mxu0 0
      %5993 = vmatprep.subr.bf16.mxu0 0
      %5994 = vmatpush1.bf16.msra.mxu0 0
      %5995 = vmatprep.subr.bf16.mxu0 0
      %5996 = vmatpush1.bf16.msra.mxu0 0
      %5997 = vmatprep.subr.bf16.mxu0 0
      %5998 = vmatpush1.bf16.msra.mxu0 0
      %5999 = vmatprep.subr.bf16.mxu0 0
      %6000 = vmatpush1.bf16.msra.mxu0 0
      %6001 = vmatprep.subr.bf16.mxu0 0
      %6002 = vmatpush1.bf16.msra.mxu0 0
      %6003 = vmatprep.subr.bf16.mxu0 0
      %6004 = vmatpush1.bf16.msra.mxu0 0
      %6005 = vmatprep.subr.bf16.mxu0 0
      %6006 = vmatpush1.bf16.msra.mxu0 0
      %6007 = vmatprep.subr.bf16.mxu0 0
      %6008 = vmatpush1.bf16.msra.mxu0 0
      %6009 = vmatprep.mubr.bf16.mxu0 0
      %6010 = vmatmul.mubr.bf16.gmra.mrb[0].mxu0 %v5930
      %v6011 = vpop.f32.mrb[0].mxu0
      %v6012 = vadd.f32 0.0, %v6011
      %v6013 = vpop.f32.mrb[0].mxu0
      %v6014 = vpop.f32.mrb[0].mxu0
      %v6015 = vadd.f32 0.0, %v6014
      %v6016 = vpop.f32.mrb[0].mxu0
      %6017 = vmatprep.mubr.bf16.mxu0 0
      %6018 = vmatmul.mubr.bf16.gmra.mrb[0].mxu0 %v5933
      %v6019 = vpop.f32.mrb[0].mxu0
      %v6020 = vadd.f32 0.0, %v6019
      %v6021 = vpop.f32.mrb[0].mxu0
      %v6022 = vpop.f32.mrb[0].mxu0
      %v6023 = vadd.f32 0.0, %v6022
      %v6024 = vpop.f32.mrb[0].mxu0
      %6025 = vmatprep.mubr.bf16.mxu0 0
      %6026 = vmatmul.mubr.bf16.gmra.mrb[0].mxu0 %v5936
      %v6027 = vpop.f32.mrb[0].mxu0
      %v6028 = vadd.f32 0.0, %v6027
      %v6029 = vpop.f32.mrb[0].mxu0
      %v6030 = vpop.f32.mrb[0].mxu0
      %v6031 = vadd.f32 0.0, %v6030
      %v6032 = vpop.f32.mrb[0].mxu0
      %6033 = vmatprep.mubr.bf16.mxu0 0
      %6034 = vmatmul.mubr.bf16.gmra.mrb[0].mxu0 %v5939
      %v6035 = vpop.f32.mrb[0].mxu0
      %v6036 = vadd.f32 0.0, %v6035
      %v6037 = vpop.f32.mrb[0].mxu0
      %v6038 = vpop.f32.mrb[0].mxu0
      %v6039 = vadd.f32 0.0, %v6038
      %v6040 = vpop.f32.mrb[0].mxu0
      %6041 = vmatprep.mubr.bf16.mxu0 0
      %6042 = vmatmul.mubr.bf16.gmra.mrb[0].mxu0 %v5942
      %v6043 = vpop.f32.mrb[0].mxu0
      %v6044 = vadd.f32 0.0, %v6043
      %v6045 = vpop.f32.mrb[0].mxu0
      %v6046 = vpop.f32.mrb[0].mxu0
      %v6047 = vadd.f32 0.0, %v6046
      %v6048 = vpop.f32.mrb[0].mxu0
      %6049 = vmatprep.mubr.bf16.mxu0 0
      %6050 = vmatmul.mubr.bf16.gmra.mrb[0].mxu0 %v5945
      %v6051 = vpop.f32.mrb[0].mxu0
      %v6052 = vadd.f32 0.0, %v6051
      %v6053 = vpop.f32.mrb[0].mxu0
      %v6054 = vpop.f32.mrb[0].mxu0
      %v6055 = vadd.f32 0.0, %v6054
      %v6056 = vpop.f32.mrb[0].mxu0
      %6057 = vmatprep.mubr.bf16.mxu0 0
      %6058 = vmatmul.mubr.bf16.gmra.mrb[0].mxu0 %v5948
      %v6059 = vpop.f32.mrb[0].mxu0
      %v6060 = vadd.f32 0.0, %v6059
      %v6061 = vpop.f32.mrb[0].mxu0
      %v6062 = vpop.f32.mrb[0].mxu0
      %v6063 = vadd.f32 0.0, %v6062
      %v6064 = vpop.f32.mrb[0].mxu0
      %6065 = vmatprep.mubr.bf16.mxu0 0
      %6066 = vmatmul.mubr.bf16.gmra.mrb[0].mxu0 %v5951
      %v6067 = vpop.f32.mrb[0].mxu0
      %v6068 = vadd.f32 0.0, %v6067
      %v6069 = vpop.f32.mrb[0].mxu0
      %v6070 = vpop.f32.mrb[0].mxu0
      %v6071 = vadd.f32 0.0, %v6070
      %v6072 = vpop.f32.mrb[0].mxu0
      %6073 = vmatprep.mubr.bf16.mxu0 0
      %6074 = vmatmul.mubr.bf16.gmra.mrb[0].mxu0 %v5954
      %v6075 = vpop.f32.mrb[0].mxu0
      %v6076 = vadd.f32 0.0, %v6075
      %v6077 = vpop.f32.mrb[0].mxu0
      %v6078 = vpop.f32.mrb[0].mxu0
      %v6079 = vadd.f32 0.0, %v6078
      %v6080 = vpop.f32.mrb[0].mxu0
      %6081 = vmatprep.mubr.bf16.mxu0 0
      %6082 = vmatmul.mubr.bf16.gmra.mrb[0].mxu0 %v5957
      %v6083 = vpop.f32.mrb[0].mxu0
      %v6084 = vadd.f32 0.0, %v6083
      %v6085 = vpop.f32.mrb[0].mxu0
      %v6086 = vpop.f32.mrb[0].mxu0
      %v6087 = vadd.f32 0.0, %v6086
      %v6088 = vpop.f32.mrb[0].mxu0
      %6089 = vmatprep.mubr.bf16.mxu0 0
      %6090 = vmatmul.mubr.bf16.gmra.mrb[0].mxu0 %v5960
      %v6091 = vpop.f32.mrb[0].mxu0
      %v6092 = vadd.f32 0.0, %v6091
      %v6093 = vpop.f32.mrb[0].mxu0
      %v6094 = vpop.f32.mrb[0].mxu0
      %v6095 = vadd.f32 0.0, %v6094
      %v6096 = vpop.f32.mrb[0].mxu0
      %6097 = vmatprep.mubr.bf16.mxu0 0
      %6098 = vmatmul.mubr.bf16.gmra.mrb[0].mxu0 %v5963
      %v6099 = vpop.f32.mrb[0].mxu0
      %v6100 = vadd.f32 0.0, %v6099
      %v6101 = vpop.f32.mrb[0].mxu0
      %v6102 = vpop.f32.mrb[0].mxu0
      %v6103 = vadd.f32 0.0, %v6102
      %v6104 = vpop.f32.mrb[0].mxu0
      %6105 = vmatprep.mubr.bf16.mxu0 0
      %6106 = vmatmul.mubr.bf16.gmra.mrb[0].mxu0 %v5966
      %v6107 = vpop.f32.mrb[0].mxu0
      %v6108 = vadd.f32 0.0, %v6107
      %v6109 = vpop.f32.mrb[0].mxu0
      %v6110 = vpop.f32.mrb[0].mxu0
      %v6111 = vadd.f32 0.0, %v6110
      %v6112 = vpop.f32.mrb[0].mxu0
      %6113 = vmatprep.mubr.bf16.mxu0 0
      %6114 = vmatmul.mubr.bf16.gmra.mrb[0].mxu0 %v5969
      %v6115 = vpop.f32.mrb[0].mxu0
      %v6116 = vadd.f32 0.0, %v6115
      %v6117 = vpop.f32.mrb[0].mxu0
      %v6118 = vpop.f32.mrb[0].mxu0
      %v6119 = vadd.f32 0.0, %v6118
      %v6120 = vpop.f32.mrb[0].mxu0
      %6121 = vmatprep.mubr.bf16.mxu0 0
      %6122 = vmatmul.mubr.bf16.gmra.mrb[0].mxu0 %v5972
      %v6123 = vpop.f32.mrb[0].mxu0
      %v6124 = vadd.f32 0.0, %v6123
      %v6125 = vpop.f32.mrb[0].mxu0
      %v6126 = vpop.f32.mrb[0].mxu0
      %v6127 = vadd.f32 0.0, %v6126
      %v6128 = vpop.f32.mrb[0].mxu0
      %6129 = vmatprep.mubr.bf16.mxu0 0
      %6130 = vmatmul.mubr.bf16.gmra.mrb[0].mxu0 %v5975
      %v6131 = vpop.f32.mrb[0].mxu0
      %v6132 = vadd.f32 0.0, %v6131
      %v6133 = vpop.f32.mrb[0].mxu0
      %v6134 = vpop.f32.mrb[0].mxu0
      %v6135 = vadd.f32 0.0, %v6134
      %v6136 = vpop.f32.mrb[0].mxu0
      %6137 = vdwg.mxu0
      %v6138 = vadd.f32 %v5840, %v6012
      %v6139 = vadd.f32 %v5841, %v6015
      %v6140 = vadd.f32 %v5842, %v6020
      %v6141 = vadd.f32 %v5843, %v6023
      %v6142 = vadd.f32 %v5844, %v6028
      %v6143 = vadd.f32 %v5845, %v6031
      %v6144 = vadd.f32 %v5846, %v6036
      %v6145 = vadd.f32 %v5847, %v6039
      %v6146 = vadd.f32 %v5848, %v6044
      %v6147 = vadd.f32 %v5849, %v6047
      %v6148 = vadd.f32 %v5850, %v6052
      %v6149 = vadd.f32 %v5851, %v6055
      %v6150 = vadd.f32 %v5852, %v6060
      %v6151 = vadd.f32 %v5853, %v6063
      %v6152 = vadd.f32 %v5854, %v6068
      %v6153 = vadd.f32 %v5855, %v6071
      %v6154 = vadd.f32 %v5856, %v6076
      %v6155 = vadd.f32 %v5857, %v6079
      %v6156 = vadd.f32 %v5858, %v6084
      %v6157 = vadd.f32 %v5859, %v6087
      %v6158 = vadd.f32 %v5860, %v6092
      %v6159 = vadd.f32 %v5861, %v6095
      %v6160 = vadd.f32 %v5862, %v6100
      %v6161 = vadd.f32 %v5863, %v6103
      %v6162 = vadd.f32 %v5864, %v6108
      %v6163 = vadd.f32 %v5865, %v6111
      %v6164 = vadd.f32 %v5866, %v6116
      %v6165 = vadd.f32 %v5867, %v6119
      %v6166 = vadd.f32 %v5868, %v6124
      %v6167 = vadd.f32 %v5869, %v6127
      %v6168 = vadd.f32 %v5870, %v6132
      %v6169 = vadd.f32 %v5871, %v6135
      %v6170 = vld [vmem:[%s6] sm:$0x1]
      %v6172 = vlaneseq
      %v6173 = vshrl.u32 %v6172, 7
      %v6174 = vsub.s32 0, %v6173
      %v6175 = vrot.slane %v6170, %v6174
      %v6177 = vadd.f32 %v6138, %v6175
      %v6178 = vadd.f32 %v6139, %v6175
      %v6179 = vadd.f32 %v6140, %v6175
      %v6180 = vadd.f32 %v6141, %v6175
      %v6181 = vadd.f32 %v6142, %v6175
      %v6182 = vadd.f32 %v6143, %v6175
      %v6183 = vadd.f32 %v6144, %v6175
      %v6184 = vadd.f32 %v6145, %v6175
      %v6185 = vadd.f32 %v6146, %v6175
      %v6186 = vadd.f32 %v6147, %v6175
      %v6187 = vadd.f32 %v6148, %v6175
      %v6188 = vadd.f32 %v6149, %v6175
      %v6189 = vadd.f32 %v6150, %v6175
      %v6190 = vadd.f32 %v6151, %v6175
      %v6191 = vadd.f32 %v6152, %v6175
      %v6192 = vadd.f32 %v6153, %v6175
      %v6193 = vadd.f32 %v6154, %v6175
      %v6194 = vadd.f32 %v6155, %v6175
      %v6195 = vadd.f32 %v6156, %v6175
      %v6196 = vadd.f32 %v6157, %v6175
      %v6197 = vadd.f32 %v6158, %v6175
      %v6198 = vadd.f32 %v6159, %v6175
      %v6199 = vadd.f32 %v6160, %v6175
      %v6200 = vadd.f32 %v6161, %v6175
      %v6201 = vadd.f32 %v6162, %v6175
      %v6202 = vadd.f32 %v6163, %v6175
      %v6203 = vadd.f32 %v6164, %v6175
      %v6204 = vadd.f32 %v6165, %v6175
      %v6205 = vadd.f32 %v6166, %v6175
      %v6206 = vadd.f32 %v6167, %v6175
      %v6207 = vadd.f32 %v6168, %v6175
      %v6208 = vadd.f32 %v6169, %v6175
      %v6209 = vmax.f32 %v6177, 0.0
      %v6210 = vmax.f32 %v6178, 0.0
      %v6211 = vmax.f32 %v6179, 0.0
      %v6212 = vmax.f32 %v6180, 0.0
      %v6213 = vmax.f32 %v6181, 0.0
      %v6214 = vmax.f32 %v6182, 0.0
      %v6215 = vmax.f32 %v6183, 0.0
      %v6216 = vmax.f32 %v6184, 0.0
      %v6217 = vmax.f32 %v6185, 0.0
      %v6218 = vmax.f32 %v6186, 0.0
      %v6219 = vmax.f32 %v6187, 0.0
      %v6220 = vmax.f32 %v6188, 0.0
      %v6221 = vmax.f32 %v6189, 0.0
      %v6222 = vmax.f32 %v6190, 0.0
      %v6223 = vmax.f32 %v6191, 0.0
      %v6224 = vmax.f32 %v6192, 0.0
      %v6225 = vmax.f32 %v6193, 0.0
      %v6226 = vmax.f32 %v6194, 0.0
      %v6227 = vmax.f32 %v6195, 0.0
      %v6228 = vmax.f32 %v6196, 0.0
      %v6229 = vmax.f32 %v6197, 0.0
      %v6230 = vmax.f32 %v6198, 0.0
      %v6231 = vmax.f32 %v6199, 0.0
      %v6232 = vmax.f32 %v6200, 0.0
      %v6233 = vmax.f32 %v6201, 0.0
      %v6234 = vmax.f32 %v6202, 0.0
      %v6235 = vmax.f32 %v6203, 0.0
      %v6236 = vmax.f32 %v6204, 0.0
      %v6237 = vmax.f32 %v6205, 0.0
      %v6238 = vmax.f32 %v6206, 0.0
      %v6239 = vmax.f32 %v6207, 0.0
      %v6240 = vmax.f32 %v6208, 0.0
      %v6241 = vld [vmem:[%s7] sm:$0xf]
      %v6242 = vld [vmem:[%s7 + $0x4] sm:$0xf]
      %v6243 = vld [vmem:[%s7 + $0x8] sm:$0xf]
      %v6244 = vld [vmem:[%s7 + $0xc] sm:$0x7]
      %v6245 = vpack.c.bf16 %v6210, %v6209
      %v6246 = vpack.c.bf16 %v6212, %v6211
      %v6247 = vpack.c.bf16 %v6214, %v6213
      %v6248 = vpack.c.bf16 %v6216, %v6215
      %v6249 = vpack.c.bf16 %v6218, %v6217
      %v6250 = vpack.c.bf16 %v6220, %v6219
      %v6251 = vpack.c.bf16 %v6222, %v6221
      %v6252 = vpack.c.bf16 %v6224, %v6223
      %v6253 = vpack.c.bf16 %v6226, %v6225
      %v6254 = vpack.c.bf16 %v6228, %v6227
      %v6255 = vpack.c.bf16 %v6230, %v6229
      %v6256 = vpack.c.bf16 %v6232, %v6231
      %v6257 = vpack.c.bf16 %v6234, %v6233
      %v6258 = vpack.c.bf16 %v6236, %v6235
      %v6259 = vpack.c.bf16 %v6238, %v6237
      %v6260 = vpack.c.bf16 %v6240, %v6239
      %v6261 = vld [vmem:[%s8] sm:$0xff]
      %v6262 = vld [vmem:[%s8 + $0x8] sm:$0xff]
      %v6263 = vld [vmem:[%s8 + $0x10] sm:$0xff]
      %v6264 = vld [vmem:[%s8 + $0x18] sm:$0x1f]
      %6266 = vset.pattern.permute.xlu0 0
      %6267 = vperm.xlu0 %6266, %v6261
      %v6268 = vpop.permute.xlu0 %6267
      %6271 = vset.pattern.permute.xlu0 0
      %6272 = vperm.xlu0 %6271, %v6262
      %v6273 = vpop.permute.xlu0 %6272
      %6276 = vset.pattern.permute.xlu0 0
      %6277 = vperm.xlu0 %6276, %v6263
      %v6278 = vpop.permute.xlu0 %6277
      %6281 = vset.pattern.permute.xlu0 0
      %6282 = vperm.xlu0 %6281, %v6264
      %v6283 = vpop.permute.xlu0 %6282
      %v6289 = vunpack.c.l.b16 %v6241
      %v6290 = vunpack.c.l.b16 %v6242
      %v6291 = vunpack.c.l.b16 %v6243
      %v6292 = vunpack.c.l.b16 %v6244
      %v6293 = vpack.c.b16 %v6290, %v6289
      %v6294 = vpack.c.b16 %v6292, %v6291
      %v6296 = vsel %vm3463, %v6293, 0
      %v6299 = vsel %vm3463, %v6294, 0
      %v6302 = vsel %vm3463, %v6245, 0
      %v6305 = vsel %vm3463, %v6246, 0
      %v6308 = vsel %vm3463, %v6247, 0
      %v6311 = vsel %vm3463, %v6248, 0
      %v6314 = vsel %vm3463, %v6249, 0
      %v6317 = vsel %vm3463, %v6250, 0
      %v6320 = vsel %vm3463, %v6251, 0
      %v6323 = vsel %vm3463, %v6252, 0
      %v6326 = vsel %vm3463, %v6253, 0
      %v6329 = vsel %vm3463, %v6254, 0
      %v6332 = vsel %vm3463, %v6255, 0
      %v6335 = vsel %vm3463, %v6256, 0
      %v6338 = vsel %vm3463, %v6257, 0
      %v6341 = vsel %vm3463, %v6258, 0
      %v6344 = vsel %vm3463, %v6259, 0
      %v6347 = vsel %vm3463, %v6260, 0
      %6349 = vmatprep.subr.bf16.mxu0 0
      %6350 = vmatpush1.bf16.xpose.msra.mxu0 %v6302
      %6351 = vmatprep.subr.bf16.mxu0 0
      %6352 = vmatpush1.bf16.xpose.msra.mxu0 %v6305
      %6353 = vmatprep.subr.bf16.mxu0 0
      %6354 = vmatpush1.bf16.xpose.msra.mxu0 %v6308
      %6355 = vmatprep.subr.bf16.mxu0 0
      %6356 = vmatpush1.bf16.xpose.msra.mxu0 %v6311
      %6357 = vmatprep.subr.bf16.mxu0 0
      %6358 = vmatpush1.bf16.xpose.msra.mxu0 %v6314
      %6359 = vmatprep.subr.bf16.mxu0 0
      %6360 = vmatpush1.bf16.xpose.msra.mxu0 %v6317
      %6361 = vmatprep.subr.bf16.mxu0 0
      %6362 = vmatpush1.bf16.xpose.msra.mxu0 %v6320
      %6363 = vmatprep.subr.bf16.mxu0 0
      %6364 = vmatpush1.bf16.xpose.msra.mxu0 %v6323
      %6365 = vmatprep.subr.bf16.mxu0 0
      %6366 = vmatpush1.bf16.xpose.msra.mxu0 %v6326
      %6367 = vmatprep.subr.bf16.mxu0 0
      %6368 = vmatpush1.bf16.xpose.msra.mxu0 %v6329
      %6369 = vmatprep.subr.bf16.mxu0 0
      %6370 = vmatpush1.bf16.xpose.msra.mxu0 %v6332
      %6371 = vmatprep.subr.bf16.mxu0 0
      %6372 = vmatpush1.bf16.xpose.msra.mxu0 %v6335
      %6373 = vmatprep.subr.bf16.mxu0 0
      %6374 = vmatpush1.bf16.xpose.msra.mxu0 %v6338
      %6375 = vmatprep.subr.bf16.mxu0 0
      %6376 = vmatpush1.bf16.xpose.msra.mxu0 %v6341
      %6377 = vmatprep.subr.bf16.mxu0 0
      %6378 = vmatpush1.bf16.xpose.msra.mxu0 %v6344
      %6379 = vmatprep.subr.bf16.mxu0 0
      %6380 = vmatpush1.bf16.xpose.msra.mxu0 %v6347
      %6381 = vmatprep.mubr.bf16.mxu0 0
      %6382 = vmatmul.mubr.bf16.gmra.mrb[0].mxu0 %v6296
      %v6383 = vpop.f32.mrb[0].mxu0
      %v6384 = vadd.f32 %v6268, %v6383
      %v6385 = vpop.f32.mrb[0].mxu0
      %v6386 = vadd.f32 %v6268, %v6385
      %v6387 = vpop.f32.mrb[0].mxu0
      %v6388 = vadd.f32 %v6273, %v6387
      %v6389 = vpop.f32.mrb[0].mxu0
      %v6390 = vadd.f32 %v6273, %v6389
      %6391 = vmatprep.mubr.bf16.mxu0 0
      %6392 = vmatmul.mubr.bf16.gmra.mrb[0].mxu0 %v6299
      %v6393 = vpop.f32.mrb[0].mxu0
      %v6394 = vadd.f32 %v6278, %v6393
      %v6395 = vpop.f32.mrb[0].mxu0
      %v6396 = vadd.f32 %v6278, %v6395
      %v6397 = vpop.f32.mrb[0].mxu0
      %v6398 = vadd.f32 %v6283, %v6397
      %v6399 = vpop.f32.mrb[0].mxu0
      %v6400 = vadd.f32 %v6283, %v6399
      %6401 = vdwg.mxu0
      %v6402 = vmax.f32 %v6384, 0.0
      %v6403 = vmax.f32 %v6386, 0.0
      %v6404 = vmax.f32 %v6388, 0.0
      %v6405 = vmax.f32 %v6390, 0.0
      %v6406 = vmax.f32 %v6394, 0.0
      %v6407 = vmax.f32 %v6396, 0.0
      %v6408 = vmax.f32 %v6398, 0.0
      %v6409 = vmax.f32 %v6400, 0.0
      %v6410 = vpack.c.bf16 %v416, %v415
      %v6411 = vpack.c.bf16 %v418, %v417
      %v6412 = vpack.c.bf16 %v420, %v419
      %v6413 = vpack.c.bf16 %v422, %v421
      %v6414 = vpack.c.bf16 %v424, %v423
      %v6415 = vpack.c.bf16 %v426, %v425
      %v6416 = vpack.c.bf16 %v428, %v427
      %v6417 = vpack.c.bf16 %v430, %v429
      %v6418 = vpack.c.bf16 %v432, %v431
      %v6419 = vpack.c.bf16 %v434, %v433
      %v6420 = vpack.c.bf16 %v436, %v435
      %v6421 = vpack.c.bf16 %v438, %v437
      %v6422 = vpack.c.bf16 %v440, %v439
      %v6423 = vpack.c.bf16 %v442, %v441
      %v6424 = vpack.c.bf16 %v444, %v443
      %v6425 = vpack.c.bf16 %v446, %v445
      %v6426 = vld [vmem:[%s9] sm:$0xf]
      %v6427 = vld [vmem:[%s9 + $0x4] sm:$0xf]
      %v6428 = vld [vmem:[%s9 + $0x8] sm:$0xf]
      %v6429 = vld [vmem:[%s9 + $0xc] sm:$0xf]
      %v6430 = vld [vmem:[%s10] sm:$0xf]
      %v6431 = vld [vmem:[%s10 + $0x4] sm:$0xf]
      %v6432 = vld [vmem:[%s10 + $0x8] sm:$0xf]
      %v6433 = vld [vmem:[%s10 + $0xc] sm:$0xf]
      %v6434 = vpack.c.bf16 %v6404, %v6402
      %v6435 = vpack.c.bf16 %v6405, %v6403
      %v6436 = vpack.c.bf16 %v6408, %v6406
      %v6437 = vpack.c.bf16 %v6409, %v6407
      %v6442 = vunpack.c.l.b16 %v6430
      %v6443 = vunpack.c.l.b16 %v6431
      %v6444 = vunpack.c.l.b16 %v6432
      %v6445 = vunpack.c.l.b16 %v6433
      %v6446 = vpack.c.b16 %v6443, %v6442
      %v6447 = vpack.c.b16 %v6445, %v6444
      %vm6448 = vcmask 236544
      %v6450 = vsel %vm6448, %v6446, 0
      %v6453 = vsel %vm6448, %v6447, 0
      %vm6455 = vcmask 1045504
      %vm6456 = vcmask 1046528
      %v6457 = vsel %vm6455, 4294967295, 65535
      %v6458 = vsel %vm6456, %v6457, 0
      %v6460 = vand.u32 %v6436, %v6458
      %v6463 = vand.u32 %v6437, %v6458
      %6465 = vmatprep.subr.bf16.mxu0 %v6435
      %6466 = vmatpush1.bf16.msra.mxu0 %v6434
      %6467 = vmatprep.subr.bf16.mxu0 %v6463
      %6468 = vmatpush1.bf16.msra.mxu0 %v6460
      %6469 = vmatprep.subr.bf16.mxu0 0
      %6470 = vmatpush1.bf16.msra.mxu0 0
      %6471 = vmatprep.subr.bf16.mxu0 0
      %6472 = vmatpush1.bf16.msra.mxu0 0
      %6473 = vmatprep.subr.bf16.mxu0 0
      %6474 = vmatpush1.bf16.msra.mxu0 0
      %6475 = vmatprep.subr.bf16.mxu0 0
      %6476 = vmatpush1.bf16.msra.mxu0 0
      %6477 = vmatprep.subr.bf16.mxu0 0
      %6478 = vmatpush1.bf16.msra.mxu0 0
      %6479 = vmatprep.subr.bf16.mxu0 0
      %6480 = vmatpush1.bf16.msra.mxu0 0
      %6481 = vmatprep.subr.bf16.mxu0 0
      %6482 = vmatpush1.bf16.msra.mxu0 0
      %6483 = vmatprep.subr.bf16.mxu0 0
      %6484 = vmatpush1.bf16.msra.mxu0 0
      %6485 = vmatprep.subr.bf16.mxu0 0
      %6486 = vmatpush1.bf16.msra.mxu0 0
      %6487 = vmatprep.subr.bf16.mxu0 0
      %6488 = vmatpush1.bf16.msra.mxu0 0
      %6489 = vmatprep.subr.bf16.mxu0 0
      %6490 = vmatpush1.bf16.msra.mxu0 0
      %6491 = vmatprep.subr.bf16.mxu0 0
      %6492 = vmatpush1.bf16.msra.mxu0 0
      %6493 = vmatprep.subr.bf16.mxu0 0
      %6494 = vmatpush1.bf16.msra.mxu0 0
      %6495 = vmatprep.subr.bf16.mxu0 0
      %6496 = vmatpush1.bf16.msra.mxu0 0
      %6497 = vmatprep.mubr.bf16.mxu0 0
      %6498 = vmatmul.mubr.bf16.gmra.mrb[0].mxu0 %v6450
      %v6499 = vpop.f32.mrb[0].mxu0
      %v6500 = vadd.f32 0.0, %v6499
      %v6501 = vpop.f32.mrb[0].mxu0
      %v6502 = vadd.f32 0.0, %v6501
      %v6503 = vpop.f32.mrb[0].mxu0
      %v6504 = vadd.f32 0.0, %v6503
      %v6505 = vpop.f32.mrb[0].mxu0
      %v6506 = vadd.f32 0.0, %v6505
      %6507 = vmatprep.mubr.bf16.mxu0 0
      %6508 = vmatmul.mubr.bf16.gmra.mrb[0].mxu0 %v6453
      %v6509 = vpop.f32.mrb[0].mxu0
      %v6510 = vadd.f32 0.0, %v6509
      %v6511 = vpop.f32.mrb[0].mxu0
      %v6512 = vadd.f32 0.0, %v6511
      %v6513 = vpop.f32.mrb[0].mxu0
      %v6514 = vadd.f32 0.0, %v6513
      %v6515 = vpop.f32.mrb[0].mxu0
      %v6516 = vadd.f32 0.0, %v6515
      %6517 = vdwg.mxu0
      %v6522 = vunpack.c.l.b16 %v6426
      %v6523 = vunpack.c.l.b16 %v6427
      %v6524 = vunpack.c.l.b16 %v6428
      %v6525 = vunpack.c.l.b16 %v6429
      %v6526 = vpack.c.b16 %v6523, %v6522
      %v6527 = vpack.c.b16 %v6525, %v6524
      %v6529 = vsel %vm447, %v6526, 0
      %v6532 = vsel %vm447, %v6527, 0
      %v6535 = vsel %vm447, %v6410, 0
      %v6538 = vsel %vm447, %v6411, 0
      %v6541 = vsel %vm447, %v6412, 0
      %v6544 = vsel %vm447, %v6413, 0
      %v6547 = vsel %vm447, %v6414, 0
      %v6550 = vsel %vm447, %v6415, 0
      %v6553 = vsel %vm447, %v6416, 0
      %v6556 = vsel %vm447, %v6417, 0
      %v6559 = vsel %vm447, %v6418, 0
      %v6562 = vsel %vm447, %v6419, 0
      %v6565 = vsel %vm447, %v6420, 0
      %v6568 = vsel %vm447, %v6421, 0
      %v6571 = vsel %vm447, %v6422, 0
      %v6574 = vsel %vm447, %v6423, 0
      %v6577 = vsel %vm447, %v6424, 0
      %v6580 = vsel %vm447, %v6425, 0
      %6582 = vmatprep.subr.bf16.mxu0 0
      %6583 = vmatpush1.bf16.xpose.msra.mxu0 %v6535
      %6584 = vmatprep.subr.bf16.mxu0 0
      %6585 = vmatpush1.bf16.xpose.msra.mxu0 %v6538
      %6586 = vmatprep.subr.bf16.mxu0 0
      %6587 = vmatpush1.bf16.xpose.msra.mxu0 %v6541
      %6588 = vmatprep.subr.bf16.mxu0 0
      %6589 = vmatpush1.bf16.xpose.msra.mxu0 %v6544
      %6590 = vmatprep.subr.bf16.mxu0 0
      %6591 = vmatpush1.bf16.xpose.msra.mxu0 %v6547
      %6592 = vmatprep.subr.bf16.mxu0 0
      %6593 = vmatpush1.bf16.xpose.msra.mxu0 %v6550
      %6594 = vmatprep.subr.bf16.mxu0 0
      %6595 = vmatpush1.bf16.xpose.msra.mxu0 %v6553
      %6596 = vmatprep.subr.bf16.mxu0 0
      %6597 = vmatpush1.bf16.xpose.msra.mxu0 %v6556
      %6598 = vmatprep.subr.bf16.mxu0 0
      %6599 = vmatpush1.bf16.xpose.msra.mxu0 %v6559
      %6600 = vmatprep.subr.bf16.mxu0 0
      %6601 = vmatpush1.bf16.xpose.msra.mxu0 %v6562
      %6602 = vmatprep.subr.bf16.mxu0 0
      %6603 = vmatpush1.bf16.xpose.msra.mxu0 %v6565
      %6604 = vmatprep.subr.bf16.mxu0 0
      %6605 = vmatpush1.bf16.xpose.msra.mxu0 %v6568
      %6606 = vmatprep.subr.bf16.mxu0 0
      %6607 = vmatpush1.bf16.xpose.msra.mxu0 %v6571
      %6608 = vmatprep.subr.bf16.mxu0 0
      %6609 = vmatpush1.bf16.xpose.msra.mxu0 %v6574
      %6610 = vmatprep.subr.bf16.mxu0 0
      %6611 = vmatpush1.bf16.xpose.msra.mxu0 %v6577
      %6612 = vmatprep.subr.bf16.mxu0 0
      %6613 = vmatpush1.bf16.xpose.msra.mxu0 %v6580
      %6614 = vmatprep.mubr.bf16.mxu0 0
      %6615 = vmatmul.mubr.bf16.gmra.mrb[0].mxu0 %v6529
      %v6616 = vpop.f32.mrb[0].mxu0
      %v6617 = vadd.f32 %v6500, %v6616
      %v6618 = vpop.f32.mrb[0].mxu0
      %v6619 = vadd.f32 %v6502, %v6618
      %v6620 = vpop.f32.mrb[0].mxu0
      %v6621 = vadd.f32 %v6504, %v6620
      %v6622 = vpop.f32.mrb[0].mxu0
      %v6623 = vadd.f32 %v6506, %v6622
      %6624 = vmatprep.mubr.bf16.mxu0 0
      %6625 = vmatmul.mubr.bf16.gmra.mrb[0].mxu0 %v6532
      %v6626 = vpop.f32.mrb[0].mxu0
      %v6627 = vadd.f32 %v6510, %v6626
      %v6628 = vpop.f32.mrb[0].mxu0
      %v6629 = vadd.f32 %v6512, %v6628
      %v6630 = vpop.f32.mrb[0].mxu0
      %v6631 = vadd.f32 %v6514, %v6630
      %v6632 = vpop.f32.mrb[0].mxu0
      %v6633 = vadd.f32 %v6516, %v6632
      %6634 = vdwg.mxu0
      %v6635 = vld [vmem:[%s11] sm:$0xff]
      %v6636 = vld [vmem:[%s11 + $0x8] sm:$0xff]
      %v6637 = vld [vmem:[%s11 + $0x10] sm:$0xff]
      %v6638 = vld [vmem:[%s11 + $0x18] sm:$0xff]
      %6640 = vset.pattern.permute.xlu0 0
      %6641 = vperm.xlu0 %6640, %v6635
      %v6642 = vpop.permute.xlu0 %6641
      %6645 = vset.pattern.permute.xlu0 0
      %6646 = vperm.xlu0 %6645, %v6636
      %v6647 = vpop.permute.xlu0 %6646
      %6650 = vset.pattern.permute.xlu0 0
      %6651 = vperm.xlu0 %6650, %v6637
      %v6652 = vpop.permute.xlu0 %6651
      %6655 = vset.pattern.permute.xlu0 0
      %6656 = vperm.xlu0 %6655, %v6638
      %v6657 = vpop.permute.xlu0 %6656
      %v6659 = vadd.f32 %v6617, %v6642
      %v6660 = vadd.f32 %v6619, %v6642
      %v6661 = vadd.f32 %v6621, %v6647
      %v6662 = vadd.f32 %v6623, %v6647
      %v6663 = vadd.f32 %v6627, %v6652
      %v6664 = vadd.f32 %v6629, %v6652
      %v6665 = vadd.f32 %v6631, %v6657
      %v6666 = vadd.f32 %v6633, %v6657
      %6667 = vst [vmem:[%s413] sm:$0xff] %v6659
      %6668 = vst [vmem:[%s413 + $0x8] sm:$0xff] %v6660
      %6669 = vst [vmem:[%s413 + $0x10] sm:$0xff] %v6661
      %6670 = vst [vmem:[%s413 + $0x18] sm:$0xff] %v6662
      %6671 = vst [vmem:[%s413 + $0x20] sm:$0xff] %v6663
      %6672 = vst [vmem:[%s413 + $0x28] sm:$0xff] %v6664
      %6673 = vst [vmem:[%s413 + $0x30] sm:$0xff] %v6665
      %6674 = vst [vmem:[%s413 + $0x38] sm:$0xff] %v6666
      %p6675 = scmp.lt.s32.totalorder %s23, 1
      %s6676 = scalar_select %p6675, %s23, 1
      %s6677 = smul.addr %s6676, 8
      %s6678 = smul.addr %s6677, 8
      %s6679 = scalar_lea.vmem %s12, %s6678
      // Predicated region
      $region69: #{scm_forward.1} parent=67 // pred_check
        %p6680 = pneg %p298
      $region70: #{scm_forward.1} parent=67 // pred_check_branch
        %6682 = sbr.rel (%p6680) target = $region72
      $region71: #{scm_forward.1} parent=67 // pred_region
        _
      $region72: #{scm_forward.1} parent=67 // pred_fallthru
        _
    $region68: #{scm_forward.1} parent=5 // pred_fallthru
      _
    %p6683 = scmp.le.s32.totalorder 2, %s18
    // Predicated region
    $region73: #{scm_forward.1} parent=5 // pred_check
      %p6684 = pneg %p6683
    $region74: #{scm_forward.1} parent=5 // pred_check_branch
      %6686 = sbr.rel (%p6684) target = $region76
    $region75: #{scm_forward.1} parent=5 // pred_region
      %s6687 = ssub.s32 %s18, 2
      // Predicated region
      $region77: #{scm_forward.1} parent=75 // pred_check
        %p6688 = pneg %p304
      $region78: #{scm_forward.1} parent=75 // pred_check_branch
        %6690 = sbr.rel (%p6688) target = $region80
      $region79: #{scm_forward.1} parent=75 // pred_region
        %p6691 = scmp.lt.s32.totalorder %s24, 1
        %s6692 = scalar_select %p6691, %s24, 1
        %s6693 = smul.addr %s6692, 8
        %s6694 = smul.addr %s6693, 8
        %s6695 = scalar_lea.vmem %s12, %s6694
      $region80: #{scm_forward.1} parent=75 // pred_fallthru
        _
    $region76: #{scm_forward.1} parent=5 // pred_fallthru
      _
  $region6: #{scm_forward.1} parent=0 // loop_footer
    %s22 = sadd.s32 1, %s18
  $region7: #{scm_forward.1} parent=0 // loop_footer_branch
    %17 = sbr.rel target = $region3
  $region8: #{scm_forward.1} parent=0 // loop_exit
    _

</llo_original>
